<compile_context>
chip_gen: v7x
topology: tpu7x:2x2x1
jax: 0.10.0
libtpu: 0.0.40
codegen_flags: <defaults>
</compile_context>

<pallas_src>
import functools
import math

import jax
import jax.numpy as jnp
from jax.experimental import pallas as pl
from jax.experimental.pallas import tpu as pltpu

BN_EPS = 1e-5
BN_SCALE = 1.0 / math.sqrt(1.0 + BN_EPS)
C_PAD = 128                      # lane-dense channel padding

# (inp, oup1, stride) for every BlazeBlock in MediaPipeBlazeFace (all kernel_size=3,
# all single-block, i.e. oup2 is None).
BLOCK_CFG = [
    (24, 24, 1), (24, 28, 1), (28, 32, 2), (32, 36, 1), (36, 42, 1),
    (42, 48, 2), (48, 56, 1), (56, 64, 1), (64, 72, 1), (72, 80, 1),
    (80, 88, 1), (88, 96, 2), (96, 96, 1), (96, 96, 1), (96, 96, 1), (96, 96, 1),
]
NB = len(BLOCK_CFG)
OUT_C = BLOCK_CFG[-1][1]


# ---------------------------------------------------------------------------
# Fused whole-network kernel
# ---------------------------------------------------------------------------

def _blazeface_kernel(x_ref, cw_ref, cb_ref, dww_ref, dwb_ref, pww_ref, pwb_ref,
                      o_ref, *, h0, w0):
    """One batch element, entire backbone.

    x_ref:   (1, h0*w0, 128)   space-to-depth'd first-conv input (12 real lanes)
    cw_ref:  (9, 128, 128)     first-conv tap matrices (rows>=12, cols>=24 zero)
    cb_ref:  (1, 128)          first-conv folded bias
    dww_ref: (16, 9, 128)      depthwise 3x3 weights per block (BN folded)
    dwb_ref: (16, 128)         depthwise biases
    pww_ref: (16, 128, 128)    pointwise weights (BN folded)
    pwb_ref: (16, 128)         pointwise biases
    o_ref:   (1, hf*wf, 128)   final activation (96 real lanes)
    """
    mask_cache = {}

    def col_masks(h, w):
        # boolean (h*w, 128) masks: position has a left / right in-row neighbour
        if (h, w) not in mask_cache:
            col = jax.lax.broadcasted_iota(jnp.int32, (w, C_PAD), 0)
            colh = jnp.concatenate([col] * h, axis=0) if h > 1 else col
            mask_cache[(h, w)] = (colh != 0, colh != (w - 1))
        return mask_cache[(h, w)]

    def shift(v, d, hw):
        # s[f] = v[f + d] for 0 <= f + d < hw, else 0     (requires |d| < hw)
        if d == 0:
            return v
        z = jnp.zeros((abs(d), C_PAD), jnp.float32)
        if d > 0:
            return jnp.concatenate([v[d:hw, :], z], axis=0)
        return jnp.concatenate([z, v[0:hw + d, :]], axis=0)

    def tap_slabs(a, h, w):
        # masked, shifted input slabs for every non-trivial tap of a 3x3 / pad-1 conv;
        # taps whose offset exceeds the spatial extent are skipped (degenerate stages).
        hw = h * w
        if w > 1:
            has_l, has_r = col_masks(h, w)
        for oy in (-1, 0, 1):
            if abs(oy) >= h:
                continue
            for ox in (-1, 0, 1):
                if abs(ox) >= w:
                    continue
                s = shift(a, oy * w + ox, hw)
                if ox == -1:
                    s = jnp.where(has_l, s, 0.0)
                elif ox == 1:
                    s = jnp.where(has_r, s, 0.0)
                yield (oy + 1) * 3 + (ox + 1), s

    h, w = h0, w0
    hw = h * w

    # ---- first conv: 5x5/s2/p2 on 3ch == 3x3/s1/p1 on the 12-ch s2d input ----
    x = x_ref[0]                                              # (hw, 128)
    acc = None
    for t, s in tap_slabs(x, h, w):
        c = jnp.dot(s, cw_ref[t], preferred_element_type=jnp.float32)
        acc = c if acc is None else acc + c
    a = jnp.maximum(acc + cb_ref[...], 0.0)                   # lanes >= 24 stay exactly 0

    # ---- 16 fused BlazeBlocks ----
    for b, (_cin, _cout, stride) in enumerate(BLOCK_CFG):
        wd = dww_ref[b]                                       # (9, 128)
        # depthwise 3x3 + folded BN : per-tap shift * per-channel weight (VPU)
        d = None
        for t, s in tap_slabs(a, h, w):
            c = s * wd[t:t + 1, :]
            d = c if d is None else d + c
        d = d + dwb_ref[b:b + 1, :]
        # pointwise 1x1 + folded BN : ONE flattened (hw,128)x(128,128) MXU dot
        p = jnp.dot(d, pww_ref[b], preferred_element_type=jnp.float32)
        p = p + pwb_ref[b:b + 1, :]
        if stride == 1:
            # residual add (channel zero-pad is free: padded lanes of `a` are 0)
            a = jnp.maximum(p + a, 0.0)
        else:
            # shortcut = 2x2/s2 max pool: max of the 4 neighbours, valid at even pos
            mp = jnp.maximum(jnp.maximum(a, shift(a, 1, hw)),
                             jnp.maximum(shift(a, w, hw), shift(a, w + 1, hw)))
            full = jnp.maximum(p + mp, 0.0)
            # subsample [0::2, 0::2] of the (h, w) view
            ho, wo = h // 2, w // 2
            rows = [full[(2 * y) * w + 2 * x_:(2 * y) * w + 2 * x_ + 1, :]
                    for y in range(ho) for x_ in range(wo)]
            a = rows[0] if len(rows) == 1 else jnp.concatenate(rows, axis=0)
            h, w, hw = ho, wo, ho * wo

    o_ref[0] = a


# ---------------------------------------------------------------------------
# Wrapper: thin XLA glue (space-to-depth of the 3-channel input + lane pad only)
# ---------------------------------------------------------------------------

@jax.jit
def mediapipe_blazeface(x_nchw, params):
    (cw, cb), (dww, dwb, pww, pwb) = params
    n, cin, h, w = x_nchw.shape
    assert cin == 3
    assert h % 16 == 0 and w % 16 == 0, "spatial dims must be multiples of 16"
    h0, w0 = h // 2, w // 2                 # spatial after the stride-2 first conv
    hw0 = h0 * w0
    hf, wf = h0 // 8, w0 // 8               # spatial after the three stride-2 blocks
    hwf = hf * wf

    # space-to-depth: (N,3,H,W) -> (N, H/2*W/2, 12) so the 5x5/s2 first conv is an
    # exact 3x3/s1 conv; pad to 128 lanes for lane-dense kernel I/O.
    xs = x_nchw.astype(jnp.float32).reshape(n, 3, h0, 2, w0, 2)
    xs = jnp.transpose(xs, (0, 2, 4, 3, 5, 1)).reshape(n, hw0, 12)
    xs = jnp.pad(xs, ((0, 0), (0, 0), (0, C_PAD - 12)))

    kernel = functools.partial(_blazeface_kernel, h0=h0, w0=w0)
    out = pl.pallas_call(
        kernel,
        out_shape=jax.ShapeDtypeStruct((n, hwf, C_PAD), jnp.float32),
        grid_spec=pltpu.PrefetchScalarGridSpec(
            num_scalar_prefetch=0,
            grid=(n,),
            in_specs=[
                pl.BlockSpec((1, hw0, C_PAD), lambda i: (i, 0, 0)),
                pl.BlockSpec((9, C_PAD, C_PAD), lambda i: (0, 0, 0)),
                pl.BlockSpec((1, C_PAD), lambda i: (0, 0)),
                pl.BlockSpec((NB, 9, C_PAD), lambda i: (0, 0, 0)),
                pl.BlockSpec((NB, C_PAD), lambda i: (0, 0)),
                pl.BlockSpec((NB, C_PAD, C_PAD), lambda i: (0, 0, 0)),
                pl.BlockSpec((NB, C_PAD), lambda i: (0, 0)),
            ],
            out_specs=pl.BlockSpec((1, hwf, C_PAD), lambda i: (i, 0, 0)),
        ),
        compiler_params=pltpu.CompilerParams(
            dimension_semantics=("parallel",),
            vmem_limit_bytes=32 * 1024 * 1024,
        ),
    )(xs, cw, cb, dww, dwb, pww, pwb)

    out = out[..., :OUT_C].reshape(n, hf, wf, OUT_C)          # drop lane padding
    return jnp.transpose(out, (0, 3, 1, 2))                   # NHWC -> NCHW


# ---------------------------------------------------------------------------
# Parameters (deterministic kaiming-normal conv weights, zero biases, BN folded with
# eval-mode identity running stats, channels zero-padded to 128 lanes)
# ---------------------------------------------------------------------------

def init_params(key):
    keys = iter(jax.random.split(key, 64))

    def kaiming(k, shape, fan_in):
        return jax.random.normal(k, shape, jnp.float32) * math.sqrt(2.0 / fan_in)

    # First conv, PyTorch weight (24,3,5,5); re-expressed as 9 (128,128) tap matrices
    # for the 3x3 conv over the 12-channel space-to-depth input:
    #   cw[t, (ry*2+rx)*3 + ci, co] = W5[u=2*oy+ry+2, v=2*ox+rx+2, ci, co]   (else 0)
    w5 = kaiming(next(keys), (5, 5, 3, 24), 75) * BN_SCALE          # (u, v, ci, co)
    cw = jnp.zeros((9, C_PAD, C_PAD), jnp.float32)
    for oy in (-1, 0, 1):
        for ox in (-1, 0, 1):
            t = (oy + 1) * 3 + (ox + 1)
            for ry in (0, 1):
                for rx in (0, 1):
                    u, v = 2 * oy + ry + 2, 2 * ox + rx + 2
                    if 0 <= u < 5 and 0 <= v < 5:
                        k0 = (ry * 2 + rx) * 3
                        cw = cw.at[t, k0:k0 + 3, 0:24].set(w5[u, v])
    cb = jnp.zeros((1, C_PAD), jnp.float32)

    dww, dwb, pww, pwb = [], [], [], []
    for (c_in, c_out, _stride) in BLOCK_CFG:
        # depthwise (c_in,1,3,3): fan_in = 9; tap-major (9, c_in) -> padded (9, 128)
        dw = kaiming(next(keys), (3, 3, c_in), 9).reshape(9, c_in) * BN_SCALE
        dww.append(jnp.pad(dw, ((0, 0), (0, C_PAD - c_in))))
        dwb.append(jnp.zeros((C_PAD,), jnp.float32))
        # pointwise (c_out,c_in,1,1): fan_in = c_in; stored as (c_in, c_out) -> (128,128)
        pw = kaiming(next(keys), (c_in, c_out), c_in) * BN_SCALE
        pww.append(jnp.pad(pw, ((0, C_PAD - c_in), (0, C_PAD - c_out))))
        pwb.append(jnp.zeros((C_PAD,), jnp.float32))

    return ((cw, cb),
            (jnp.stack(dww), jnp.stack(dwb), jnp.stack(pww), jnp.stack(pwb)))


if __name__ == "__main__":
    key = jax.random.PRNGKey(0)
    k_param, k_input = jax.random.split(key)
    params = init_params(k_param)
    # small input consistent with the module: batch=2, 3 channels, 16x16 spatial
    x = jax.random.normal(k_input, (2, 3, 16, 16), jnp.float32)
    y = mediapipe_blazeface(x, params)
    jax.block_until_ready(y)
    assert y.shape == (2, 96, 1, 1), y.shape
    print("KERNEL_OK")
</pallas_src>

<mosaic_0001>
module attributes {stable_mosaic.version = 11 : i64} {
  func.func @_blazeface_kernel(%arg0: i32, %arg1: memref<1x64x128xf32, #tpu.memory_space<vmem>>, %arg2: memref<9x128x128xf32, #tpu.memory_space<vmem>>, %arg3: memref<1x128xf32, #tpu.memory_space<vmem>>, %arg4: memref<16x9x128xf32, #tpu.memory_space<vmem>>, %arg5: memref<16x128xf32, #tpu.memory_space<vmem>>, %arg6: memref<16x128x128xf32, #tpu.memory_space<vmem>>, %arg7: memref<16x128xf32, #tpu.memory_space<vmem>>, %arg8: memref<1x1x128xf32, #tpu.memory_space<vmem>>) attributes {dimension_semantics = [#tpu.dimension_semantics<parallel>], iteration_bounds = array<i64: 2>, scalar_prefetch = 0 : i64, scratch_operands = 0 : i64, tpu.core_type = #tpu.core_type<tc>, window_params = [{transform_indices = @transform_0, window_bounds = array<i64: 1, 64, 128>}, {pipeline_mode = #tpu.pipeline_mode<synchronous>, transform_indices = @transform_1, window_bounds = array<i64: 9, 128, 128>}, {pipeline_mode = #tpu.pipeline_mode<synchronous>, transform_indices = @transform_2, window_bounds = array<i64: 1, 128>}, {pipeline_mode = #tpu.pipeline_mode<synchronous>, transform_indices = @transform_3, window_bounds = array<i64: 16, 9, 128>}, {pipeline_mode = #tpu.pipeline_mode<synchronous>, transform_indices = @transform_4, window_bounds = array<i64: 16, 128>}, {pipeline_mode = #tpu.pipeline_mode<synchronous>, transform_indices = @transform_5, window_bounds = array<i64: 16, 128, 128>}, {pipeline_mode = #tpu.pipeline_mode<synchronous>, transform_indices = @transform_6, window_bounds = array<i64: 16, 128>}, {transform_indices = @transform_7, window_bounds = array<i64: 1, 1, 128>}]} {
    %c0 = arith.constant 0 : index
    %c0_0 = arith.constant 0 : index
    %c0_1 = arith.constant 0 : index
    %0 = vector.load %arg1[%c0, %c0_0, %c0_1] : memref<1x64x128xf32, #tpu.memory_space<vmem>>, vector<1x64x128xf32>
    %1 = vector.shape_cast %0 : vector<1x64x128xf32> to vector<64x128xf32>
    %2 = tpu.iota {dimensions = array<i32: 0>} : vector<8x128xi32>
    %3 = tpu.concatenate %2, %2, %2, %2, %2, %2, %2, %2 in 0 : vector<8x128xi32>, vector<8x128xi32>, vector<8x128xi32>, vector<8x128xi32>, vector<8x128xi32>, vector<8x128xi32>, vector<8x128xi32>, vector<8x128xi32> -> vector<64x128xi32>
    %c0_i32 = arith.constant 0 : i32
    %4 = vector.broadcast %c0_i32 : i32 to vector<64x128xi32>
    %5 = arith.cmpi ne, %3, %4 : vector<64x128xi32>
    %c7_i32 = arith.constant 7 : i32
    %6 = vector.broadcast %c7_i32 : i32 to vector<64x128xi32>
    %7 = arith.cmpi ne, %3, %6 : vector<64x128xi32>
    %cst = arith.constant 0.000000e+00 : f32
    %8 = vector.broadcast %cst : f32 to vector<9x128xf32>
    %9 = vector.extract_strided_slice %1 {offsets = [0, 0], sizes = [55, 128], strides = [1, 1]} : vector<64x128xf32> to vector<55x128xf32>
    %10 = tpu.concatenate %8, %9 in 0 : vector<9x128xf32>, vector<55x128xf32> -> vector<64x128xf32>
    %cst_2 = arith.constant 0.000000e+00 : f32
    %11 = vector.broadcast %cst_2 : f32 to vector<64x128xf32>
    %12 = arith.select %5, %10, %11 : vector<64x128xi1>, vector<64x128xf32>
    %c0_3 = arith.constant 0 : index
    %c0_4 = arith.constant 0 : index
    %c0_5 = arith.constant 0 : index
    %13 = vector.load %arg2[%c0_3, %c0_4, %c0_5] : memref<9x128x128xf32, #tpu.memory_space<vmem>>, vector<1x128x128xf32>
    %14 = vector.shape_cast %13 : vector<1x128x128xf32> to vector<128x128xf32>
    %cst_6 = arith.constant dense<0.000000e+00> : vector<64x128xf32>
    %15 = tpu.matmul %12, %14, %cst_6 {dimension_numbers = #tpu.dot_dimension_numbers<[1], [0], [0], [1], [0, 0, 1, 1], [], []>} : vector<64x128xf32>, vector<128x128xf32>, vector<64x128xf32> -> vector<64x128xf32>
    %cst_7 = arith.constant 0.000000e+00 : f32
    %16 = vector.broadcast %cst_7 : f32 to vector<8x128xf32>
    %17 = vector.extract_strided_slice %1 {offsets = [0, 0], sizes = [56, 128], strides = [1, 1]} : vector<64x128xf32> to vector<56x128xf32>
    %18 = tpu.concatenate %16, %17 in 0 : vector<8x128xf32>, vector<56x128xf32> -> vector<64x128xf32>
    %c1 = arith.constant 1 : index
    %c0_8 = arith.constant 0 : index
    %c0_9 = arith.constant 0 : index
    %19 = vector.load %arg2[%c1, %c0_8, %c0_9] : memref<9x128x128xf32, #tpu.memory_space<vmem>>, vector<1x128x128xf32>
    %20 = vector.shape_cast %19 : vector<1x128x128xf32> to vector<128x128xf32>
    %cst_10 = arith.constant dense<0.000000e+00> : vector<64x128xf32>
    %21 = tpu.matmul %18, %20, %cst_10 {dimension_numbers = #tpu.dot_dimension_numbers<[1], [0], [0], [1], [0, 0, 1, 1], [], []>} : vector<64x128xf32>, vector<128x128xf32>, vector<64x128xf32> -> vector<64x128xf32>
    %22 = arith.addf %15, %21 : vector<64x128xf32>
    %cst_11 = arith.constant 0.000000e+00 : f32
    %23 = vector.broadcast %cst_11 : f32 to vector<7x128xf32>
    %24 = vector.extract_strided_slice %1 {offsets = [0, 0], sizes = [57, 128], strides = [1, 1]} : vector<64x128xf32> to vector<57x128xf32>
    %25 = tpu.concatenate %23, %24 in 0 : vector<7x128xf32>, vector<57x128xf32> -> vector<64x128xf32>
    %cst_12 = arith.constant 0.000000e+00 : f32
    %26 = vector.broadcast %cst_12 : f32 to vector<64x128xf32>
    %27 = arith.select %7, %25, %26 : vector<64x128xi1>, vector<64x128xf32>
    %c2 = arith.constant 2 : index
    %c0_13 = arith.constant 0 : index
    %c0_14 = arith.constant 0 : index
    %28 = vector.load %arg2[%c2, %c0_13, %c0_14] : memref<9x128x128xf32, #tpu.memory_space<vmem>>, vector<1x128x128xf32>
    %29 = vector.shape_cast %28 : vector<1x128x128xf32> to vector<128x128xf32>
    %cst_15 = arith.constant dense<0.000000e+00> : vector<64x128xf32>
    %30 = tpu.matmul %27, %29, %cst_15 {dimension_numbers = #tpu.dot_dimension_numbers<[1], [0], [0], [1], [0, 0, 1, 1], [], []>} : vector<64x128xf32>, vector<128x128xf32>, vector<64x128xf32> -> vector<64x128xf32>
    %31 = arith.addf %22, %30 : vector<64x128xf32>
    %cst_16 = arith.constant 0.000000e+00 : f32
    %32 = vector.broadcast %cst_16 : f32 to vector<1x128xf32>
    %33 = vector.extract_strided_slice %1 {offsets = [0, 0], sizes = [63, 128], strides = [1, 1]} : vector<64x128xf32> to vector<63x128xf32>
    %34 = tpu.concatenate %32, %33 in 0 : vector<1x128xf32>, vector<63x128xf32> -> vector<64x128xf32>
    %cst_17 = arith.constant 0.000000e+00 : f32
    %35 = vector.broadcast %cst_17 : f32 to vector<64x128xf32>
    %36 = arith.select %5, %34, %35 : vector<64x128xi1>, vector<64x128xf32>
    %c3 = arith.constant 3 : index
    %c0_18 = arith.constant 0 : index
    %c0_19 = arith.constant 0 : index
    %37 = vector.load %arg2[%c3, %c0_18, %c0_19] : memref<9x128x128xf32, #tpu.memory_space<vmem>>, vector<1x128x128xf32>
    %38 = vector.shape_cast %37 : vector<1x128x128xf32> to vector<128x128xf32>
    %cst_20 = arith.constant dense<0.000000e+00> : vector<64x128xf32>
    %39 = tpu.matmul %36, %38, %cst_20 {dimension_numbers = #tpu.dot_dimension_numbers<[1], [0], [0], [1], [0, 0, 1, 1], [], []>} : vector<64x128xf32>, vector<128x128xf32>, vector<64x128xf32> -> vector<64x128xf32>
    %40 = arith.addf %31, %39 : vector<64x128xf32>
    %c4 = arith.constant 4 : index
    %c0_21 = arith.constant 0 : index
    %c0_22 = arith.constant 0 : index
    %41 = vector.load %arg2[%c4, %c0_21, %c0_22] : memref<9x128x128xf32, #tpu.memory_space<vmem>>, vector<1x128x128xf32>
    %42 = vector.shape_cast %41 : vector<1x128x128xf32> to vector<128x128xf32>
    %cst_23 = arith.constant dense<0.000000e+00> : vector<64x128xf32>
    %43 = tpu.matmul %1, %42, %cst_23 {dimension_numbers = #tpu.dot_dimension_numbers<[1], [0], [0], [1], [0, 0, 1, 1], [], []>} : vector<64x128xf32>, vector<128x128xf32>, vector<64x128xf32> -> vector<64x128xf32>
    %44 = arith.addf %40, %43 : vector<64x128xf32>
    %cst_24 = arith.constant 0.000000e+00 : f32
    %45 = vector.broadcast %cst_24 : f32 to vector<1x128xf32>
    %46 = vector.extract_strided_slice %1 {offsets = [1, 0], sizes = [63, 128], strides = [1, 1]} : vector<64x128xf32> to vector<63x128xf32>
    %47 = tpu.concatenate %46, %45 in 0 : vector<63x128xf32>, vector<1x128xf32> -> vector<64x128xf32>
    %cst_25 = arith.constant 0.000000e+00 : f32
    %48 = vector.broadcast %cst_25 : f32 to vector<64x128xf32>
    %49 = arith.select %7, %47, %48 : vector<64x128xi1>, vector<64x128xf32>
    %c5 = arith.constant 5 : index
    %c0_26 = arith.constant 0 : index
    %c0_27 = arith.constant 0 : index
    %50 = vector.load %arg2[%c5, %c0_26, %c0_27] : memref<9x128x128xf32, #tpu.memory_space<vmem>>, vector<1x128x128xf32>
    %51 = vector.shape_cast %50 : vector<1x128x128xf32> to vector<128x128xf32>
    %cst_28 = arith.constant dense<0.000000e+00> : vector<64x128xf32>
    %52 = tpu.matmul %49, %51, %cst_28 {dimension_numbers = #tpu.dot_dimension_numbers<[1], [0], [0], [1], [0, 0, 1, 1], [], []>} : vector<64x128xf32>, vector<128x128xf32>, vector<64x128xf32> -> vector<64x128xf32>
    %53 = arith.addf %44, %52 : vector<64x128xf32>
    %cst_29 = arith.constant 0.000000e+00 : f32
    %54 = vector.broadcast %cst_29 : f32 to vector<7x128xf32>
    %55 = vector.extract_strided_slice %1 {offsets = [7, 0], sizes = [57, 128], strides = [1, 1]} : vector<64x128xf32> to vector<57x128xf32>
    %56 = tpu.concatenate %55, %54 in 0 : vector<57x128xf32>, vector<7x128xf32> -> vector<64x128xf32>
    %cst_30 = arith.constant 0.000000e+00 : f32
    %57 = vector.broadcast %cst_30 : f32 to vector<64x128xf32>
    %58 = arith.select %5, %56, %57 : vector<64x128xi1>, vector<64x128xf32>
    %c6 = arith.constant 6 : index
    %c0_31 = arith.constant 0 : index
    %c0_32 = arith.constant 0 : index
    %59 = vector.load %arg2[%c6, %c0_31, %c0_32] : memref<9x128x128xf32, #tpu.memory_space<vmem>>, vector<1x128x128xf32>
    %60 = vector.shape_cast %59 : vector<1x128x128xf32> to vector<128x128xf32>
    %cst_33 = arith.constant dense<0.000000e+00> : vector<64x128xf32>
    %61 = tpu.matmul %58, %60, %cst_33 {dimension_numbers = #tpu.dot_dimension_numbers<[1], [0], [0], [1], [0, 0, 1, 1], [], []>} : vector<64x128xf32>, vector<128x128xf32>, vector<64x128xf32> -> vector<64x128xf32>
    %62 = arith.addf %53, %61 : vector<64x128xf32>
    %cst_34 = arith.constant 0.000000e+00 : f32
    %63 = vector.broadcast %cst_34 : f32 to vector<8x128xf32>
    %64 = vector.extract_strided_slice %1 {offsets = [8, 0], sizes = [56, 128], strides = [1, 1]} : vector<64x128xf32> to vector<56x128xf32>
    %65 = tpu.concatenate %64, %63 in 0 : vector<56x128xf32>, vector<8x128xf32> -> vector<64x128xf32>
    %c7 = arith.constant 7 : index
    %c0_35 = arith.constant 0 : index
    %c0_36 = arith.constant 0 : index
    %66 = vector.load %arg2[%c7, %c0_35, %c0_36] : memref<9x128x128xf32, #tpu.memory_space<vmem>>, vector<1x128x128xf32>
    %67 = vector.shape_cast %66 : vector<1x128x128xf32> to vector<128x128xf32>
    %cst_37 = arith.constant dense<0.000000e+00> : vector<64x128xf32>
    %68 = tpu.matmul %65, %67, %cst_37 {dimension_numbers = #tpu.dot_dimension_numbers<[1], [0], [0], [1], [0, 0, 1, 1], [], []>} : vector<64x128xf32>, vector<128x128xf32>, vector<64x128xf32> -> vector<64x128xf32>
    %69 = arith.addf %62, %68 : vector<64x128xf32>
    %cst_38 = arith.constant 0.000000e+00 : f32
    %70 = vector.broadcast %cst_38 : f32 to vector<9x128xf32>
    %71 = vector.extract_strided_slice %1 {offsets = [9, 0], sizes = [55, 128], strides = [1, 1]} : vector<64x128xf32> to vector<55x128xf32>
    %72 = tpu.concatenate %71, %70 in 0 : vector<55x128xf32>, vector<9x128xf32> -> vector<64x128xf32>
    %cst_39 = arith.constant 0.000000e+00 : f32
    %73 = vector.broadcast %cst_39 : f32 to vector<64x128xf32>
    %74 = arith.select %7, %72, %73 : vector<64x128xi1>, vector<64x128xf32>
    %c8 = arith.constant 8 : index
    %c0_40 = arith.constant 0 : index
    %c0_41 = arith.constant 0 : index
    %75 = vector.load %arg2[%c8, %c0_40, %c0_41] : memref<9x128x128xf32, #tpu.memory_space<vmem>>, vector<1x128x128xf32>
    %76 = vector.shape_cast %75 : vector<1x128x128xf32> to vector<128x128xf32>
    %cst_42 = arith.constant dense<0.000000e+00> : vector<64x128xf32>
    %77 = tpu.matmul %74, %76, %cst_42 {dimension_numbers = #tpu.dot_dimension_numbers<[1], [0], [0], [1], [0, 0, 1, 1], [], []>} : vector<64x128xf32>, vector<128x128xf32>, vector<64x128xf32> -> vector<64x128xf32>
    %78 = arith.addf %69, %77 : vector<64x128xf32>
    %c0_43 = arith.constant 0 : index
    %c0_44 = arith.constant 0 : index
    %79 = vector.load %arg3[%c0_43, %c0_44] : memref<1x128xf32, #tpu.memory_space<vmem>>, vector<1x128xf32>
    %80 = vector.broadcast %79 : vector<1x128xf32> to vector<64x128xf32>
    %81 = arith.addf %78, %80 : vector<64x128xf32>
    %cst_45 = arith.constant 0.000000e+00 : f32
    %82 = vector.broadcast %cst_45 : f32 to vector<64x128xf32>
    %83 = arith.maximumf %81, %82 : vector<64x128xf32>
    %c0_46 = arith.constant 0 : index
    %c0_47 = arith.constant 0 : index
    %c0_48 = arith.constant 0 : index
    %84 = vector.load %arg4[%c0_46, %c0_47, %c0_48] : memref<16x9x128xf32, #tpu.memory_space<vmem>>, vector<1x9x128xf32>
    %85 = vector.shape_cast %84 : vector<1x9x128xf32> to vector<9x128xf32>
    %cst_49 = arith.constant 0.000000e+00 : f32
    %86 = vector.broadcast %cst_49 : f32 to vector<9x128xf32>
    %87 = vector.extract_strided_slice %83 {offsets = [0, 0], sizes = [55, 128], strides = [1, 1]} : vector<64x128xf32> to vector<55x128xf32>
    %88 = tpu.concatenate %86, %87 in 0 : vector<9x128xf32>, vector<55x128xf32> -> vector<64x128xf32>
    %cst_50 = arith.constant 0.000000e+00 : f32
    %89 = vector.broadcast %cst_50 : f32 to vector<64x128xf32>
    %90 = arith.select %5, %88, %89 : vector<64x128xi1>, vector<64x128xf32>
    %91 = vector.extract_strided_slice %85 {offsets = [0, 0], sizes = [1, 128], strides = [1, 1]} : vector<9x128xf32> to vector<1x128xf32>
    %92 = vector.broadcast %91 : vector<1x128xf32> to vector<64x128xf32>
    %93 = arith.mulf %90, %92 : vector<64x128xf32>
    %cst_51 = arith.constant 0.000000e+00 : f32
    %94 = vector.broadcast %cst_51 : f32 to vector<8x128xf32>
    %95 = vector.extract_strided_slice %83 {offsets = [0, 0], sizes = [56, 128], strides = [1, 1]} : vector<64x128xf32> to vector<56x128xf32>
    %96 = tpu.concatenate %94, %95 in 0 : vector<8x128xf32>, vector<56x128xf32> -> vector<64x128xf32>
    %97 = vector.extract_strided_slice %85 {offsets = [1, 0], sizes = [1, 128], strides = [1, 1]} : vector<9x128xf32> to vector<1x128xf32>
    %98 = vector.broadcast %97 : vector<1x128xf32> to vector<64x128xf32>
    %99 = arith.mulf %96, %98 : vector<64x128xf32>
    %100 = arith.addf %93, %99 : vector<64x128xf32>
    %cst_52 = arith.constant 0.000000e+00 : f32
    %101 = vector.broadcast %cst_52 : f32 to vector<7x128xf32>
    %102 = vector.extract_strided_slice %83 {offsets = [0, 0], sizes = [57, 128], strides = [1, 1]} : vector<64x128xf32> to vector<57x128xf32>
    %103 = tpu.concatenate %101, %102 in 0 : vector<7x128xf32>, vector<57x128xf32> -> vector<64x128xf32>
    %cst_53 = arith.constant 0.000000e+00 : f32
    %104 = vector.broadcast %cst_53 : f32 to vector<64x128xf32>
    %105 = arith.select %7, %103, %104 : vector<64x128xi1>, vector<64x128xf32>
    %106 = vector.extract_strided_slice %85 {offsets = [2, 0], sizes = [1, 128], strides = [1, 1]} : vector<9x128xf32> to vector<1x128xf32>
    %107 = vector.broadcast %106 : vector<1x128xf32> to vector<64x128xf32>
    %108 = arith.mulf %105, %107 : vector<64x128xf32>
    %109 = arith.addf %100, %108 : vector<64x128xf32>
    %cst_54 = arith.constant 0.000000e+00 : f32
    %110 = vector.broadcast %cst_54 : f32 to vector<1x128xf32>
    %111 = vector.extract_strided_slice %83 {offsets = [0, 0], sizes = [63, 128], strides = [1, 1]} : vector<64x128xf32> to vector<63x128xf32>
    %112 = tpu.concatenate %110, %111 in 0 : vector<1x128xf32>, vector<63x128xf32> -> vector<64x128xf32>
    %cst_55 = arith.constant 0.000000e+00 : f32
    %113 = vector.broadcast %cst_55 : f32 to vector<64x128xf32>
    %114 = arith.select %5, %112, %113 : vector<64x128xi1>, vector<64x128xf32>
    %115 = vector.extract_strided_slice %85 {offsets = [3, 0], sizes = [1, 128], strides = [1, 1]} : vector<9x128xf32> to vector<1x128xf32>
    %116 = vector.broadcast %115 : vector<1x128xf32> to vector<64x128xf32>
    %117 = arith.mulf %114, %116 : vector<64x128xf32>
    %118 = arith.addf %109, %117 : vector<64x128xf32>
    %119 = vector.extract_strided_slice %85 {offsets = [4, 0], sizes = [1, 128], strides = [1, 1]} : vector<9x128xf32> to vector<1x128xf32>
    %120 = vector.broadcast %119 : vector<1x128xf32> to vector<64x128xf32>
    %121 = arith.mulf %83, %120 : vector<64x128xf32>
    %122 = arith.addf %118, %121 : vector<64x128xf32>
    %cst_56 = arith.constant 0.000000e+00 : f32
    %123 = vector.broadcast %cst_56 : f32 to vector<1x128xf32>
    %124 = vector.extract_strided_slice %83 {offsets = [1, 0], sizes = [63, 128], strides = [1, 1]} : vector<64x128xf32> to vector<63x128xf32>
    %125 = tpu.concatenate %124, %123 in 0 : vector<63x128xf32>, vector<1x128xf32> -> vector<64x128xf32>
    %cst_57 = arith.constant 0.000000e+00 : f32
    %126 = vector.broadcast %cst_57 : f32 to vector<64x128xf32>
    %127 = arith.select %7, %125, %126 : vector<64x128xi1>, vector<64x128xf32>
    %128 = vector.extract_strided_slice %85 {offsets = [5, 0], sizes = [1, 128], strides = [1, 1]} : vector<9x128xf32> to vector<1x128xf32>
    %129 = vector.broadcast %128 : vector<1x128xf32> to vector<64x128xf32>
    %130 = arith.mulf %127, %129 : vector<64x128xf32>
    %131 = arith.addf %122, %130 : vector<64x128xf32>
    %cst_58 = arith.constant 0.000000e+00 : f32
    %132 = vector.broadcast %cst_58 : f32 to vector<7x128xf32>
    %133 = vector.extract_strided_slice %83 {offsets = [7, 0], sizes = [57, 128], strides = [1, 1]} : vector<64x128xf32> to vector<57x128xf32>
    %134 = tpu.concatenate %133, %132 in 0 : vector<57x128xf32>, vector<7x128xf32> -> vector<64x128xf32>
    %cst_59 = arith.constant 0.000000e+00 : f32
    %135 = vector.broadcast %cst_59 : f32 to vector<64x128xf32>
    %136 = arith.select %5, %134, %135 : vector<64x128xi1>, vector<64x128xf32>
    %137 = vector.extract_strided_slice %85 {offsets = [6, 0], sizes = [1, 128], strides = [1, 1]} : vector<9x128xf32> to vector<1x128xf32>
    %138 = vector.broadcast %137 : vector<1x128xf32> to vector<64x128xf32>
    %139 = arith.mulf %136, %138 : vector<64x128xf32>
    %140 = arith.addf %131, %139 : vector<64x128xf32>
    %cst_60 = arith.constant 0.000000e+00 : f32
    %141 = vector.broadcast %cst_60 : f32 to vector<8x128xf32>
    %142 = vector.extract_strided_slice %83 {offsets = [8, 0], sizes = [56, 128], strides = [1, 1]} : vector<64x128xf32> to vector<56x128xf32>
    %143 = tpu.concatenate %142, %141 in 0 : vector<56x128xf32>, vector<8x128xf32> -> vector<64x128xf32>
    %144 = vector.extract_strided_slice %85 {offsets = [7, 0], sizes = [1, 128], strides = [1, 1]} : vector<9x128xf32> to vector<1x128xf32>
    %145 = vector.broadcast %144 : vector<1x128xf32> to vector<64x128xf32>
    %146 = arith.mulf %143, %145 : vector<64x128xf32>
    %147 = arith.addf %140, %146 : vector<64x128xf32>
    %cst_61 = arith.constant 0.000000e+00 : f32
    %148 = vector.broadcast %cst_61 : f32 to vector<9x128xf32>
    %149 = vector.extract_strided_slice %83 {offsets = [9, 0], sizes = [55, 128], strides = [1, 1]} : vector<64x128xf32> to vector<55x128xf32>
    %150 = tpu.concatenate %149, %148 in 0 : vector<55x128xf32>, vector<9x128xf32> -> vector<64x128xf32>
    %cst_62 = arith.constant 0.000000e+00 : f32
    %151 = vector.broadcast %cst_62 : f32 to vector<64x128xf32>
    %152 = arith.select %7, %150, %151 : vector<64x128xi1>, vector<64x128xf32>
    %153 = vector.extract_strided_slice %85 {offsets = [8, 0], sizes = [1, 128], strides = [1, 1]} : vector<9x128xf32> to vector<1x128xf32>
    %154 = vector.broadcast %153 : vector<1x128xf32> to vector<64x128xf32>
    %155 = arith.mulf %152, %154 : vector<64x128xf32>
    %156 = arith.addf %147, %155 : vector<64x128xf32>
    %c0_63 = arith.constant 0 : index
    %c0_64 = arith.constant 0 : index
    %157 = vector.load %arg5[%c0_63, %c0_64] : memref<16x128xf32, #tpu.memory_space<vmem>>, vector<1x128xf32>
    %158 = vector.broadcast %157 : vector<1x128xf32> to vector<64x128xf32>
    %159 = arith.addf %156, %158 : vector<64x128xf32>
    %c0_65 = arith.constant 0 : index
    %c0_66 = arith.constant 0 : index
    %c0_67 = arith.constant 0 : index
    %160 = vector.load %arg6[%c0_65, %c0_66, %c0_67] : memref<16x128x128xf32, #tpu.memory_space<vmem>>, vector<1x128x128xf32>
    %161 = vector.shape_cast %160 : vector<1x128x128xf32> to vector<128x128xf32>
    %cst_68 = arith.constant dense<0.000000e+00> : vector<64x128xf32>
    %162 = tpu.matmul %159, %161, %cst_68 {dimension_numbers = #tpu.dot_dimension_numbers<[1], [0], [0], [1], [0, 0, 1, 1], [], []>} : vector<64x128xf32>, vector<128x128xf32>, vector<64x128xf32> -> vector<64x128xf32>
    %c0_69 = arith.constant 0 : index
    %c0_70 = arith.constant 0 : index
    %163 = vector.load %arg7[%c0_69, %c0_70] : memref<16x128xf32, #tpu.memory_space<vmem>>, vector<1x128xf32>
    %164 = vector.broadcast %163 : vector<1x128xf32> to vector<64x128xf32>
    %165 = arith.addf %162, %164 : vector<64x128xf32>
    %166 = arith.addf %165, %83 : vector<64x128xf32>
    %cst_71 = arith.constant 0.000000e+00 : f32
    %167 = vector.broadcast %cst_71 : f32 to vector<64x128xf32>
    %168 = arith.maximumf %166, %167 : vector<64x128xf32>
    %c1_72 = arith.constant 1 : index
    %c0_73 = arith.constant 0 : index
    %c0_74 = arith.constant 0 : index
    %169 = vector.load %arg4[%c1_72, %c0_73, %c0_74] : memref<16x9x128xf32, #tpu.memory_space<vmem>>, vector<1x9x128xf32>
    %170 = vector.shape_cast %169 : vector<1x9x128xf32> to vector<9x128xf32>
    %cst_75 = arith.constant 0.000000e+00 : f32
    %171 = vector.broadcast %cst_75 : f32 to vector<9x128xf32>
    %172 = vector.extract_strided_slice %168 {offsets = [0, 0], sizes = [55, 128], strides = [1, 1]} : vector<64x128xf32> to vector<55x128xf32>
    %173 = tpu.concatenate %171, %172 in 0 : vector<9x128xf32>, vector<55x128xf32> -> vector<64x128xf32>
    %cst_76 = arith.constant 0.000000e+00 : f32
    %174 = vector.broadcast %cst_76 : f32 to vector<64x128xf32>
    %175 = arith.select %5, %173, %174 : vector<64x128xi1>, vector<64x128xf32>
    %176 = vector.extract_strided_slice %170 {offsets = [0, 0], sizes = [1, 128], strides = [1, 1]} : vector<9x128xf32> to vector<1x128xf32>
    %177 = vector.broadcast %176 : vector<1x128xf32> to vector<64x128xf32>
    %178 = arith.mulf %175, %177 : vector<64x128xf32>
    %cst_77 = arith.constant 0.000000e+00 : f32
    %179 = vector.broadcast %cst_77 : f32 to vector<8x128xf32>
    %180 = vector.extract_strided_slice %168 {offsets = [0, 0], sizes = [56, 128], strides = [1, 1]} : vector<64x128xf32> to vector<56x128xf32>
    %181 = tpu.concatenate %179, %180 in 0 : vector<8x128xf32>, vector<56x128xf32> -> vector<64x128xf32>
    %182 = vector.extract_strided_slice %170 {offsets = [1, 0], sizes = [1, 128], strides = [1, 1]} : vector<9x128xf32> to vector<1x128xf32>
    %183 = vector.broadcast %182 : vector<1x128xf32> to vector<64x128xf32>
    %184 = arith.mulf %181, %183 : vector<64x128xf32>
    %185 = arith.addf %178, %184 : vector<64x128xf32>
    %cst_78 = arith.constant 0.000000e+00 : f32
    %186 = vector.broadcast %cst_78 : f32 to vector<7x128xf32>
    %187 = vector.extract_strided_slice %168 {offsets = [0, 0], sizes = [57, 128], strides = [1, 1]} : vector<64x128xf32> to vector<57x128xf32>
    %188 = tpu.concatenate %186, %187 in 0 : vector<7x128xf32>, vector<57x128xf32> -> vector<64x128xf32>
    %cst_79 = arith.constant 0.000000e+00 : f32
    %189 = vector.broadcast %cst_79 : f32 to vector<64x128xf32>
    %190 = arith.select %7, %188, %189 : vector<64x128xi1>, vector<64x128xf32>
    %191 = vector.extract_strided_slice %170 {offsets = [2, 0], sizes = [1, 128], strides = [1, 1]} : vector<9x128xf32> to vector<1x128xf32>
    %192 = vector.broadcast %191 : vector<1x128xf32> to vector<64x128xf32>
    %193 = arith.mulf %190, %192 : vector<64x128xf32>
    %194 = arith.addf %185, %193 : vector<64x128xf32>
    %cst_80 = arith.constant 0.000000e+00 : f32
    %195 = vector.broadcast %cst_80 : f32 to vector<1x128xf32>
    %196 = vector.extract_strided_slice %168 {offsets = [0, 0], sizes = [63, 128], strides = [1, 1]} : vector<64x128xf32> to vector<63x128xf32>
    %197 = tpu.concatenate %195, %196 in 0 : vector<1x128xf32>, vector<63x128xf32> -> vector<64x128xf32>
    %cst_81 = arith.constant 0.000000e+00 : f32
    %198 = vector.broadcast %cst_81 : f32 to vector<64x128xf32>
    %199 = arith.select %5, %197, %198 : vector<64x128xi1>, vector<64x128xf32>
    %200 = vector.extract_strided_slice %170 {offsets = [3, 0], sizes = [1, 128], strides = [1, 1]} : vector<9x128xf32> to vector<1x128xf32>
    %201 = vector.broadcast %200 : vector<1x128xf32> to vector<64x128xf32>
    %202 = arith.mulf %199, %201 : vector<64x128xf32>
    %203 = arith.addf %194, %202 : vector<64x128xf32>
    %204 = vector.extract_strided_slice %170 {offsets = [4, 0], sizes = [1, 128], strides = [1, 1]} : vector<9x128xf32> to vector<1x128xf32>
    %205 = vector.broadcast %204 : vector<1x128xf32> to vector<64x128xf32>
    %206 = arith.mulf %168, %205 : vector<64x128xf32>
    %207 = arith.addf %203, %206 : vector<64x128xf32>
    %cst_82 = arith.constant 0.000000e+00 : f32
    %208 = vector.broadcast %cst_82 : f32 to vector<1x128xf32>
    %209 = vector.extract_strided_slice %168 {offsets = [1, 0], sizes = [63, 128], strides = [1, 1]} : vector<64x128xf32> to vector<63x128xf32>
    %210 = tpu.concatenate %209, %208 in 0 : vector<63x128xf32>, vector<1x128xf32> -> vector<64x128xf32>
    %cst_83 = arith.constant 0.000000e+00 : f32
    %211 = vector.broadcast %cst_83 : f32 to vector<64x128xf32>
    %212 = arith.select %7, %210, %211 : vector<64x128xi1>, vector<64x128xf32>
    %213 = vector.extract_strided_slice %170 {offsets = [5, 0], sizes = [1, 128], strides = [1, 1]} : vector<9x128xf32> to vector<1x128xf32>
    %214 = vector.broadcast %213 : vector<1x128xf32> to vector<64x128xf32>
    %215 = arith.mulf %212, %214 : vector<64x128xf32>
    %216 = arith.addf %207, %215 : vector<64x128xf32>
    %cst_84 = arith.constant 0.000000e+00 : f32
    %217 = vector.broadcast %cst_84 : f32 to vector<7x128xf32>
    %218 = vector.extract_strided_slice %168 {offsets = [7, 0], sizes = [57, 128], strides = [1, 1]} : vector<64x128xf32> to vector<57x128xf32>
    %219 = tpu.concatenate %218, %217 in 0 : vector<57x128xf32>, vector<7x128xf32> -> vector<64x128xf32>
    %cst_85 = arith.constant 0.000000e+00 : f32
    %220 = vector.broadcast %cst_85 : f32 to vector<64x128xf32>
    %221 = arith.select %5, %219, %220 : vector<64x128xi1>, vector<64x128xf32>
    %222 = vector.extract_strided_slice %170 {offsets = [6, 0], sizes = [1, 128], strides = [1, 1]} : vector<9x128xf32> to vector<1x128xf32>
    %223 = vector.broadcast %222 : vector<1x128xf32> to vector<64x128xf32>
    %224 = arith.mulf %221, %223 : vector<64x128xf32>
    %225 = arith.addf %216, %224 : vector<64x128xf32>
    %cst_86 = arith.constant 0.000000e+00 : f32
    %226 = vector.broadcast %cst_86 : f32 to vector<8x128xf32>
    %227 = vector.extract_strided_slice %168 {offsets = [8, 0], sizes = [56, 128], strides = [1, 1]} : vector<64x128xf32> to vector<56x128xf32>
    %228 = tpu.concatenate %227, %226 in 0 : vector<56x128xf32>, vector<8x128xf32> -> vector<64x128xf32>
    %229 = vector.extract_strided_slice %170 {offsets = [7, 0], sizes = [1, 128], strides = [1, 1]} : vector<9x128xf32> to vector<1x128xf32>
    %230 = vector.broadcast %229 : vector<1x128xf32> to vector<64x128xf32>
    %231 = arith.mulf %228, %230 : vector<64x128xf32>
    %232 = arith.addf %225, %231 : vector<64x128xf32>
    %cst_87 = arith.constant 0.000000e+00 : f32
    %233 = vector.broadcast %cst_87 : f32 to vector<9x128xf32>
    %234 = vector.extract_strided_slice %168 {offsets = [9, 0], sizes = [55, 128], strides = [1, 1]} : vector<64x128xf32> to vector<55x128xf32>
    %235 = tpu.concatenate %234, %233 in 0 : vector<55x128xf32>, vector<9x128xf32> -> vector<64x128xf32>
    %cst_88 = arith.constant 0.000000e+00 : f32
    %236 = vector.broadcast %cst_88 : f32 to vector<64x128xf32>
    %237 = arith.select %7, %235, %236 : vector<64x128xi1>, vector<64x128xf32>
    %238 = vector.extract_strided_slice %170 {offsets = [8, 0], sizes = [1, 128], strides = [1, 1]} : vector<9x128xf32> to vector<1x128xf32>
    %239 = vector.broadcast %238 : vector<1x128xf32> to vector<64x128xf32>
    %240 = arith.mulf %237, %239 : vector<64x128xf32>
    %241 = arith.addf %232, %240 : vector<64x128xf32>
    %c1_89 = arith.constant 1 : index
    %c0_90 = arith.constant 0 : index
    %242 = vector.load %arg5[%c1_89, %c0_90] : memref<16x128xf32, #tpu.memory_space<vmem>>, vector<1x128xf32>
    %243 = vector.broadcast %242 : vector<1x128xf32> to vector<64x128xf32>
    %244 = arith.addf %241, %243 : vector<64x128xf32>
    %c1_91 = arith.constant 1 : index
    %c0_92 = arith.constant 0 : index
    %c0_93 = arith.constant 0 : index
    %245 = vector.load %arg6[%c1_91, %c0_92, %c0_93] : memref<16x128x128xf32, #tpu.memory_space<vmem>>, vector<1x128x128xf32>
    %246 = vector.shape_cast %245 : vector<1x128x128xf32> to vector<128x128xf32>
    %cst_94 = arith.constant dense<0.000000e+00> : vector<64x128xf32>
    %247 = tpu.matmul %244, %246, %cst_94 {dimension_numbers = #tpu.dot_dimension_numbers<[1], [0], [0], [1], [0, 0, 1, 1], [], []>} : vector<64x128xf32>, vector<128x128xf32>, vector<64x128xf32> -> vector<64x128xf32>
    %c1_95 = arith.constant 1 : index
    %c0_96 = arith.constant 0 : index
    %248 = vector.load %arg7[%c1_95, %c0_96] : memref<16x128xf32, #tpu.memory_space<vmem>>, vector<1x128xf32>
    %249 = vector.broadcast %248 : vector<1x128xf32> to vector<64x128xf32>
    %250 = arith.addf %247, %249 : vector<64x128xf32>
    %251 = arith.addf %250, %168 : vector<64x128xf32>
    %cst_97 = arith.constant 0.000000e+00 : f32
    %252 = vector.broadcast %cst_97 : f32 to vector<64x128xf32>
    %253 = arith.maximumf %251, %252 : vector<64x128xf32>
    %c2_98 = arith.constant 2 : index
    %c0_99 = arith.constant 0 : index
    %c0_100 = arith.constant 0 : index
    %254 = vector.load %arg4[%c2_98, %c0_99, %c0_100] : memref<16x9x128xf32, #tpu.memory_space<vmem>>, vector<1x9x128xf32>
    %255 = vector.shape_cast %254 : vector<1x9x128xf32> to vector<9x128xf32>
    %cst_101 = arith.constant 0.000000e+00 : f32
    %256 = vector.broadcast %cst_101 : f32 to vector<9x128xf32>
    %257 = vector.extract_strided_slice %253 {offsets = [0, 0], sizes = [55, 128], strides = [1, 1]} : vector<64x128xf32> to vector<55x128xf32>
    %258 = tpu.concatenate %256, %257 in 0 : vector<9x128xf32>, vector<55x128xf32> -> vector<64x128xf32>
    %cst_102 = arith.constant 0.000000e+00 : f32
    %259 = vector.broadcast %cst_102 : f32 to vector<64x128xf32>
    %260 = arith.select %5, %258, %259 : vector<64x128xi1>, vector<64x128xf32>
    %261 = vector.extract_strided_slice %255 {offsets = [0, 0], sizes = [1, 128], strides = [1, 1]} : vector<9x128xf32> to vector<1x128xf32>
    %262 = vector.broadcast %261 : vector<1x128xf32> to vector<64x128xf32>
    %263 = arith.mulf %260, %262 : vector<64x128xf32>
    %cst_103 = arith.constant 0.000000e+00 : f32
    %264 = vector.broadcast %cst_103 : f32 to vector<8x128xf32>
    %265 = vector.extract_strided_slice %253 {offsets = [0, 0], sizes = [56, 128], strides = [1, 1]} : vector<64x128xf32> to vector<56x128xf32>
    %266 = tpu.concatenate %264, %265 in 0 : vector<8x128xf32>, vector<56x128xf32> -> vector<64x128xf32>
    %267 = vector.extract_strided_slice %255 {offsets = [1, 0], sizes = [1, 128], strides = [1, 1]} : vector<9x128xf32> to vector<1x128xf32>
    %268 = vector.broadcast %267 : vector<1x128xf32> to vector<64x128xf32>
    %269 = arith.mulf %266, %268 : vector<64x128xf32>
    %270 = arith.addf %263, %269 : vector<64x128xf32>
    %cst_104 = arith.constant 0.000000e+00 : f32
    %271 = vector.broadcast %cst_104 : f32 to vector<7x128xf32>
    %272 = vector.extract_strided_slice %253 {offsets = [0, 0], sizes = [57, 128], strides = [1, 1]} : vector<64x128xf32> to vector<57x128xf32>
    %273 = tpu.concatenate %271, %272 in 0 : vector<7x128xf32>, vector<57x128xf32> -> vector<64x128xf32>
    %cst_105 = arith.constant 0.000000e+00 : f32
    %274 = vector.broadcast %cst_105 : f32 to vector<64x128xf32>
    %275 = arith.select %7, %273, %274 : vector<64x128xi1>, vector<64x128xf32>
    %276 = vector.extract_strided_slice %255 {offsets = [2, 0], sizes = [1, 128], strides = [1, 1]} : vector<9x128xf32> to vector<1x128xf32>
    %277 = vector.broadcast %276 : vector<1x128xf32> to vector<64x128xf32>
    %278 = arith.mulf %275, %277 : vector<64x128xf32>
    %279 = arith.addf %270, %278 : vector<64x128xf32>
    %cst_106 = arith.constant 0.000000e+00 : f32
    %280 = vector.broadcast %cst_106 : f32 to vector<1x128xf32>
    %281 = vector.extract_strided_slice %253 {offsets = [0, 0], sizes = [63, 128], strides = [1, 1]} : vector<64x128xf32> to vector<63x128xf32>
    %282 = tpu.concatenate %280, %281 in 0 : vector<1x128xf32>, vector<63x128xf32> -> vector<64x128xf32>
    %cst_107 = arith.constant 0.000000e+00 : f32
    %283 = vector.broadcast %cst_107 : f32 to vector<64x128xf32>
    %284 = arith.select %5, %282, %283 : vector<64x128xi1>, vector<64x128xf32>
    %285 = vector.extract_strided_slice %255 {offsets = [3, 0], sizes = [1, 128], strides = [1, 1]} : vector<9x128xf32> to vector<1x128xf32>
    %286 = vector.broadcast %285 : vector<1x128xf32> to vector<64x128xf32>
    %287 = arith.mulf %284, %286 : vector<64x128xf32>
    %288 = arith.addf %279, %287 : vector<64x128xf32>
    %289 = vector.extract_strided_slice %255 {offsets = [4, 0], sizes = [1, 128], strides = [1, 1]} : vector<9x128xf32> to vector<1x128xf32>
    %290 = vector.broadcast %289 : vector<1x128xf32> to vector<64x128xf32>
    %291 = arith.mulf %253, %290 : vector<64x128xf32>
    %292 = arith.addf %288, %291 : vector<64x128xf32>
    %cst_108 = arith.constant 0.000000e+00 : f32
    %293 = vector.broadcast %cst_108 : f32 to vector<1x128xf32>
    %294 = vector.extract_strided_slice %253 {offsets = [1, 0], sizes = [63, 128], strides = [1, 1]} : vector<64x128xf32> to vector<63x128xf32>
    %295 = tpu.concatenate %294, %293 in 0 : vector<63x128xf32>, vector<1x128xf32> -> vector<64x128xf32>
    %cst_109 = arith.constant 0.000000e+00 : f32
    %296 = vector.broadcast %cst_109 : f32 to vector<64x128xf32>
    %297 = arith.select %7, %295, %296 : vector<64x128xi1>, vector<64x128xf32>
    %298 = vector.extract_strided_slice %255 {offsets = [5, 0], sizes = [1, 128], strides = [1, 1]} : vector<9x128xf32> to vector<1x128xf32>
    %299 = vector.broadcast %298 : vector<1x128xf32> to vector<64x128xf32>
    %300 = arith.mulf %297, %299 : vector<64x128xf32>
    %301 = arith.addf %292, %300 : vector<64x128xf32>
    %cst_110 = arith.constant 0.000000e+00 : f32
    %302 = vector.broadcast %cst_110 : f32 to vector<7x128xf32>
    %303 = vector.extract_strided_slice %253 {offsets = [7, 0], sizes = [57, 128], strides = [1, 1]} : vector<64x128xf32> to vector<57x128xf32>
    %304 = tpu.concatenate %303, %302 in 0 : vector<57x128xf32>, vector<7x128xf32> -> vector<64x128xf32>
    %cst_111 = arith.constant 0.000000e+00 : f32
    %305 = vector.broadcast %cst_111 : f32 to vector<64x128xf32>
    %306 = arith.select %5, %304, %305 : vector<64x128xi1>, vector<64x128xf32>
    %307 = vector.extract_strided_slice %255 {offsets = [6, 0], sizes = [1, 128], strides = [1, 1]} : vector<9x128xf32> to vector<1x128xf32>
    %308 = vector.broadcast %307 : vector<1x128xf32> to vector<64x128xf32>
    %309 = arith.mulf %306, %308 : vector<64x128xf32>
    %310 = arith.addf %301, %309 : vector<64x128xf32>
    %cst_112 = arith.constant 0.000000e+00 : f32
    %311 = vector.broadcast %cst_112 : f32 to vector<8x128xf32>
    %312 = vector.extract_strided_slice %253 {offsets = [8, 0], sizes = [56, 128], strides = [1, 1]} : vector<64x128xf32> to vector<56x128xf32>
    %313 = tpu.concatenate %312, %311 in 0 : vector<56x128xf32>, vector<8x128xf32> -> vector<64x128xf32>
    %314 = vector.extract_strided_slice %255 {offsets = [7, 0], sizes = [1, 128], strides = [1, 1]} : vector<9x128xf32> to vector<1x128xf32>
    %315 = vector.broadcast %314 : vector<1x128xf32> to vector<64x128xf32>
    %316 = arith.mulf %313, %315 : vector<64x128xf32>
    %317 = arith.addf %310, %316 : vector<64x128xf32>
    %cst_113 = arith.constant 0.000000e+00 : f32
    %318 = vector.broadcast %cst_113 : f32 to vector<9x128xf32>
    %319 = vector.extract_strided_slice %253 {offsets = [9, 0], sizes = [55, 128], strides = [1, 1]} : vector<64x128xf32> to vector<55x128xf32>
    %320 = tpu.concatenate %319, %318 in 0 : vector<55x128xf32>, vector<9x128xf32> -> vector<64x128xf32>
    %cst_114 = arith.constant 0.000000e+00 : f32
    %321 = vector.broadcast %cst_114 : f32 to vector<64x128xf32>
    %322 = arith.select %7, %320, %321 : vector<64x128xi1>, vector<64x128xf32>
    %323 = vector.extract_strided_slice %255 {offsets = [8, 0], sizes = [1, 128], strides = [1, 1]} : vector<9x128xf32> to vector<1x128xf32>
    %324 = vector.broadcast %323 : vector<1x128xf32> to vector<64x128xf32>
    %325 = arith.mulf %322, %324 : vector<64x128xf32>
    %326 = arith.addf %317, %325 : vector<64x128xf32>
    %c2_115 = arith.constant 2 : index
    %c0_116 = arith.constant 0 : index
    %327 = vector.load %arg5[%c2_115, %c0_116] : memref<16x128xf32, #tpu.memory_space<vmem>>, vector<1x128xf32>
    %328 = vector.broadcast %327 : vector<1x128xf32> to vector<64x128xf32>
    %329 = arith.addf %326, %328 : vector<64x128xf32>
    %c2_117 = arith.constant 2 : index
    %c0_118 = arith.constant 0 : index
    %c0_119 = arith.constant 0 : index
    %330 = vector.load %arg6[%c2_117, %c0_118, %c0_119] : memref<16x128x128xf32, #tpu.memory_space<vmem>>, vector<1x128x128xf32>
    %331 = vector.shape_cast %330 : vector<1x128x128xf32> to vector<128x128xf32>
    %cst_120 = arith.constant dense<0.000000e+00> : vector<64x128xf32>
    %332 = tpu.matmul %329, %331, %cst_120 {dimension_numbers = #tpu.dot_dimension_numbers<[1], [0], [0], [1], [0, 0, 1, 1], [], []>} : vector<64x128xf32>, vector<128x128xf32>, vector<64x128xf32> -> vector<64x128xf32>
    %c2_121 = arith.constant 2 : index
    %c0_122 = arith.constant 0 : index
    %333 = vector.load %arg7[%c2_121, %c0_122] : memref<16x128xf32, #tpu.memory_space<vmem>>, vector<1x128xf32>
    %334 = vector.broadcast %333 : vector<1x128xf32> to vector<64x128xf32>
    %335 = arith.addf %332, %334 : vector<64x128xf32>
    %cst_123 = arith.constant 0.000000e+00 : f32
    %336 = vector.broadcast %cst_123 : f32 to vector<1x128xf32>
    %337 = vector.extract_strided_slice %253 {offsets = [1, 0], sizes = [63, 128], strides = [1, 1]} : vector<64x128xf32> to vector<63x128xf32>
    %338 = tpu.concatenate %337, %336 in 0 : vector<63x128xf32>, vector<1x128xf32> -> vector<64x128xf32>
    %339 = arith.maximumf %253, %338 : vector<64x128xf32>
    %cst_124 = arith.constant 0.000000e+00 : f32
    %340 = vector.broadcast %cst_124 : f32 to vector<8x128xf32>
    %341 = vector.extract_strided_slice %253 {offsets = [8, 0], sizes = [56, 128], strides = [1, 1]} : vector<64x128xf32> to vector<56x128xf32>
    %342 = tpu.concatenate %341, %340 in 0 : vector<56x128xf32>, vector<8x128xf32> -> vector<64x128xf32>
    %cst_125 = arith.constant 0.000000e+00 : f32
    %343 = vector.broadcast %cst_125 : f32 to vector<9x128xf32>
    %344 = vector.extract_strided_slice %253 {offsets = [9, 0], sizes = [55, 128], strides = [1, 1]} : vector<64x128xf32> to vector<55x128xf32>
    %345 = tpu.concatenate %344, %343 in 0 : vector<55x128xf32>, vector<9x128xf32> -> vector<64x128xf32>
    %346 = arith.maximumf %342, %345 : vector<64x128xf32>
    %347 = arith.maximumf %339, %346 : vector<64x128xf32>
    %348 = arith.addf %335, %347 : vector<64x128xf32>
    %cst_126 = arith.constant 0.000000e+00 : f32
    %349 = vector.broadcast %cst_126 : f32 to vector<64x128xf32>
    %350 = arith.maximumf %348, %349 : vector<64x128xf32>
    %351 = vector.extract_strided_slice %350 {offsets = [0, 0], sizes = [1, 128], strides = [1, 1]} : vector<64x128xf32> to vector<1x128xf32>
    %352 = vector.extract_strided_slice %350 {offsets = [2, 0], sizes = [1, 128], strides = [1, 1]} : vector<64x128xf32> to vector<1x128xf32>
    %353 = vector.extract_strided_slice %350 {offsets = [4, 0], sizes = [1, 128], strides = [1, 1]} : vector<64x128xf32> to vector<1x128xf32>
    %354 = vector.extract_strided_slice %350 {offsets = [6, 0], sizes = [1, 128], strides = [1, 1]} : vector<64x128xf32> to vector<1x128xf32>
    %355 = vector.extract_strided_slice %350 {offsets = [16, 0], sizes = [1, 128], strides = [1, 1]} : vector<64x128xf32> to vector<1x128xf32>
    %356 = vector.extract_strided_slice %350 {offsets = [18, 0], sizes = [1, 128], strides = [1, 1]} : vector<64x128xf32> to vector<1x128xf32>
    %357 = vector.extract_strided_slice %350 {offsets = [20, 0], sizes = [1, 128], strides = [1, 1]} : vector<64x128xf32> to vector<1x128xf32>
    %358 = vector.extract_strided_slice %350 {offsets = [22, 0], sizes = [1, 128], strides = [1, 1]} : vector<64x128xf32> to vector<1x128xf32>
    %359 = vector.extract_strided_slice %350 {offsets = [32, 0], sizes = [1, 128], strides = [1, 1]} : vector<64x128xf32> to vector<1x128xf32>
    %360 = vector.extract_strided_slice %350 {offsets = [34, 0], sizes = [1, 128], strides = [1, 1]} : vector<64x128xf32> to vector<1x128xf32>
    %361 = vector.extract_strided_slice %350 {offsets = [36, 0], sizes = [1, 128], strides = [1, 1]} : vector<64x128xf32> to vector<1x128xf32>
    %362 = vector.extract_strided_slice %350 {offsets = [38, 0], sizes = [1, 128], strides = [1, 1]} : vector<64x128xf32> to vector<1x128xf32>
    %363 = vector.extract_strided_slice %350 {offsets = [48, 0], sizes = [1, 128], strides = [1, 1]} : vector<64x128xf32> to vector<1x128xf32>
    %364 = vector.extract_strided_slice %350 {offsets = [50, 0], sizes = [1, 128], strides = [1, 1]} : vector<64x128xf32> to vector<1x128xf32>
    %365 = vector.extract_strided_slice %350 {offsets = [52, 0], sizes = [1, 128], strides = [1, 1]} : vector<64x128xf32> to vector<1x128xf32>
    %366 = vector.extract_strided_slice %350 {offsets = [54, 0], sizes = [1, 128], strides = [1, 1]} : vector<64x128xf32> to vector<1x128xf32>
    %367 = tpu.concatenate %351, %352, %353, %354, %355, %356, %357, %358, %359, %360, %361, %362, %363, %364, %365, %366 in 0 : vector<1x128xf32>, vector<1x128xf32>, vector<1x128xf32>, vector<1x128xf32>, vector<1x128xf32>, vector<1x128xf32>, vector<1x128xf32>, vector<1x128xf32>, vector<1x128xf32>, vector<1x128xf32>, vector<1x128xf32>, vector<1x128xf32>, vector<1x128xf32>, vector<1x128xf32>, vector<1x128xf32>, vector<1x128xf32> -> vector<16x128xf32>
    %c3_127 = arith.constant 3 : index
    %c0_128 = arith.constant 0 : index
    %c0_129 = arith.constant 0 : index
    %368 = vector.load %arg4[%c3_127, %c0_128, %c0_129] : memref<16x9x128xf32, #tpu.memory_space<vmem>>, vector<1x9x128xf32>
    %369 = vector.shape_cast %368 : vector<1x9x128xf32> to vector<9x128xf32>
    %370 = tpu.iota {dimensions = array<i32: 0>} : vector<4x128xi32>
    %371 = tpu.concatenate %370, %370, %370, %370 in 0 : vector<4x128xi32>, vector<4x128xi32>, vector<4x128xi32>, vector<4x128xi32> -> vector<16x128xi32>
    %c0_i32_130 = arith.constant 0 : i32
    %372 = vector.broadcast %c0_i32_130 : i32 to vector<16x128xi32>
    %373 = arith.cmpi ne, %371, %372 : vector<16x128xi32>
    %c3_i32 = arith.constant 3 : i32
    %374 = vector.broadcast %c3_i32 : i32 to vector<16x128xi32>
    %375 = arith.cmpi ne, %371, %374 : vector<16x128xi32>
    %cst_131 = arith.constant 0.000000e+00 : f32
    %376 = vector.broadcast %cst_131 : f32 to vector<5x128xf32>
    %377 = vector.extract_strided_slice %367 {offsets = [0, 0], sizes = [11, 128], strides = [1, 1]} : vector<16x128xf32> to vector<11x128xf32>
    %378 = tpu.concatenate %376, %377 in 0 : vector<5x128xf32>, vector<11x128xf32> -> vector<16x128xf32>
    %cst_132 = arith.constant 0.000000e+00 : f32
    %379 = vector.broadcast %cst_132 : f32 to vector<16x128xf32>
    %380 = arith.select %373, %378, %379 : vector<16x128xi1>, vector<16x128xf32>
    %381 = vector.extract_strided_slice %369 {offsets = [0, 0], sizes = [1, 128], strides = [1, 1]} : vector<9x128xf32> to vector<1x128xf32>
    %382 = vector.broadcast %381 : vector<1x128xf32> to vector<16x128xf32>
    %383 = arith.mulf %380, %382 : vector<16x128xf32>
    %cst_133 = arith.constant 0.000000e+00 : f32
    %384 = vector.broadcast %cst_133 : f32 to vector<4x128xf32>
    %385 = vector.extract_strided_slice %367 {offsets = [0, 0], sizes = [12, 128], strides = [1, 1]} : vector<16x128xf32> to vector<12x128xf32>
    %386 = tpu.concatenate %384, %385 in 0 : vector<4x128xf32>, vector<12x128xf32> -> vector<16x128xf32>
    %387 = vector.extract_strided_slice %369 {offsets = [1, 0], sizes = [1, 128], strides = [1, 1]} : vector<9x128xf32> to vector<1x128xf32>
    %388 = vector.broadcast %387 : vector<1x128xf32> to vector<16x128xf32>
    %389 = arith.mulf %386, %388 : vector<16x128xf32>
    %390 = arith.addf %383, %389 : vector<16x128xf32>
    %cst_134 = arith.constant 0.000000e+00 : f32
    %391 = vector.broadcast %cst_134 : f32 to vector<3x128xf32>
    %392 = vector.extract_strided_slice %367 {offsets = [0, 0], sizes = [13, 128], strides = [1, 1]} : vector<16x128xf32> to vector<13x128xf32>
    %393 = tpu.concatenate %391, %392 in 0 : vector<3x128xf32>, vector<13x128xf32> -> vector<16x128xf32>
    %cst_135 = arith.constant 0.000000e+00 : f32
    %394 = vector.broadcast %cst_135 : f32 to vector<16x128xf32>
    %395 = arith.select %375, %393, %394 : vector<16x128xi1>, vector<16x128xf32>
    %396 = vector.extract_strided_slice %369 {offsets = [2, 0], sizes = [1, 128], strides = [1, 1]} : vector<9x128xf32> to vector<1x128xf32>
    %397 = vector.broadcast %396 : vector<1x128xf32> to vector<16x128xf32>
    %398 = arith.mulf %395, %397 : vector<16x128xf32>
    %399 = arith.addf %390, %398 : vector<16x128xf32>
    %cst_136 = arith.constant 0.000000e+00 : f32
    %400 = vector.broadcast %cst_136 : f32 to vector<1x128xf32>
    %401 = vector.extract_strided_slice %367 {offsets = [0, 0], sizes = [15, 128], strides = [1, 1]} : vector<16x128xf32> to vector<15x128xf32>
    %402 = tpu.concatenate %400, %401 in 0 : vector<1x128xf32>, vector<15x128xf32> -> vector<16x128xf32>
    %cst_137 = arith.constant 0.000000e+00 : f32
    %403 = vector.broadcast %cst_137 : f32 to vector<16x128xf32>
    %404 = arith.select %373, %402, %403 : vector<16x128xi1>, vector<16x128xf32>
    %405 = vector.extract_strided_slice %369 {offsets = [3, 0], sizes = [1, 128], strides = [1, 1]} : vector<9x128xf32> to vector<1x128xf32>
    %406 = vector.broadcast %405 : vector<1x128xf32> to vector<16x128xf32>
    %407 = arith.mulf %404, %406 : vector<16x128xf32>
    %408 = arith.addf %399, %407 : vector<16x128xf32>
    %409 = vector.extract_strided_slice %369 {offsets = [4, 0], sizes = [1, 128], strides = [1, 1]} : vector<9x128xf32> to vector<1x128xf32>
    %410 = vector.broadcast %409 : vector<1x128xf32> to vector<16x128xf32>
    %411 = arith.mulf %367, %410 : vector<16x128xf32>
    %412 = arith.addf %408, %411 : vector<16x128xf32>
    %cst_138 = arith.constant 0.000000e+00 : f32
    %413 = vector.broadcast %cst_138 : f32 to vector<1x128xf32>
    %414 = vector.extract_strided_slice %367 {offsets = [1, 0], sizes = [15, 128], strides = [1, 1]} : vector<16x128xf32> to vector<15x128xf32>
    %415 = tpu.concatenate %414, %413 in 0 : vector<15x128xf32>, vector<1x128xf32> -> vector<16x128xf32>
    %cst_139 = arith.constant 0.000000e+00 : f32
    %416 = vector.broadcast %cst_139 : f32 to vector<16x128xf32>
    %417 = arith.select %375, %415, %416 : vector<16x128xi1>, vector<16x128xf32>
    %418 = vector.extract_strided_slice %369 {offsets = [5, 0], sizes = [1, 128], strides = [1, 1]} : vector<9x128xf32> to vector<1x128xf32>
    %419 = vector.broadcast %418 : vector<1x128xf32> to vector<16x128xf32>
    %420 = arith.mulf %417, %419 : vector<16x128xf32>
    %421 = arith.addf %412, %420 : vector<16x128xf32>
    %cst_140 = arith.constant 0.000000e+00 : f32
    %422 = vector.broadcast %cst_140 : f32 to vector<3x128xf32>
    %423 = vector.extract_strided_slice %367 {offsets = [3, 0], sizes = [13, 128], strides = [1, 1]} : vector<16x128xf32> to vector<13x128xf32>
    %424 = tpu.concatenate %423, %422 in 0 : vector<13x128xf32>, vector<3x128xf32> -> vector<16x128xf32>
    %cst_141 = arith.constant 0.000000e+00 : f32
    %425 = vector.broadcast %cst_141 : f32 to vector<16x128xf32>
    %426 = arith.select %373, %424, %425 : vector<16x128xi1>, vector<16x128xf32>
    %427 = vector.extract_strided_slice %369 {offsets = [6, 0], sizes = [1, 128], strides = [1, 1]} : vector<9x128xf32> to vector<1x128xf32>
    %428 = vector.broadcast %427 : vector<1x128xf32> to vector<16x128xf32>
    %429 = arith.mulf %426, %428 : vector<16x128xf32>
    %430 = arith.addf %421, %429 : vector<16x128xf32>
    %cst_142 = arith.constant 0.000000e+00 : f32
    %431 = vector.broadcast %cst_142 : f32 to vector<4x128xf32>
    %432 = vector.extract_strided_slice %367 {offsets = [4, 0], sizes = [12, 128], strides = [1, 1]} : vector<16x128xf32> to vector<12x128xf32>
    %433 = tpu.concatenate %432, %431 in 0 : vector<12x128xf32>, vector<4x128xf32> -> vector<16x128xf32>
    %434 = vector.extract_strided_slice %369 {offsets = [7, 0], sizes = [1, 128], strides = [1, 1]} : vector<9x128xf32> to vector<1x128xf32>
    %435 = vector.broadcast %434 : vector<1x128xf32> to vector<16x128xf32>
    %436 = arith.mulf %433, %435 : vector<16x128xf32>
    %437 = arith.addf %430, %436 : vector<16x128xf32>
    %cst_143 = arith.constant 0.000000e+00 : f32
    %438 = vector.broadcast %cst_143 : f32 to vector<5x128xf32>
    %439 = vector.extract_strided_slice %367 {offsets = [5, 0], sizes = [11, 128], strides = [1, 1]} : vector<16x128xf32> to vector<11x128xf32>
    %440 = tpu.concatenate %439, %438 in 0 : vector<11x128xf32>, vector<5x128xf32> -> vector<16x128xf32>
    %cst_144 = arith.constant 0.000000e+00 : f32
    %441 = vector.broadcast %cst_144 : f32 to vector<16x128xf32>
    %442 = arith.select %375, %440, %441 : vector<16x128xi1>, vector<16x128xf32>
    %443 = vector.extract_strided_slice %369 {offsets = [8, 0], sizes = [1, 128], strides = [1, 1]} : vector<9x128xf32> to vector<1x128xf32>
    %444 = vector.broadcast %443 : vector<1x128xf32> to vector<16x128xf32>
    %445 = arith.mulf %442, %444 : vector<16x128xf32>
    %446 = arith.addf %437, %445 : vector<16x128xf32>
    %c3_145 = arith.constant 3 : index
    %c0_146 = arith.constant 0 : index
    %447 = vector.load %arg5[%c3_145, %c0_146] : memref<16x128xf32, #tpu.memory_space<vmem>>, vector<1x128xf32>
    %448 = vector.broadcast %447 : vector<1x128xf32> to vector<16x128xf32>
    %449 = arith.addf %446, %448 : vector<16x128xf32>
    %c3_147 = arith.constant 3 : index
    %c0_148 = arith.constant 0 : index
    %c0_149 = arith.constant 0 : index
    %450 = vector.load %arg6[%c3_147, %c0_148, %c0_149] : memref<16x128x128xf32, #tpu.memory_space<vmem>>, vector<1x128x128xf32>
    %451 = vector.shape_cast %450 : vector<1x128x128xf32> to vector<128x128xf32>
    %cst_150 = arith.constant dense<0.000000e+00> : vector<16x128xf32>
    %452 = tpu.matmul %449, %451, %cst_150 {dimension_numbers = #tpu.dot_dimension_numbers<[1], [0], [0], [1], [0, 0, 1, 1], [], []>} : vector<16x128xf32>, vector<128x128xf32>, vector<16x128xf32> -> vector<16x128xf32>
    %c3_151 = arith.constant 3 : index
    %c0_152 = arith.constant 0 : index
    %453 = vector.load %arg7[%c3_151, %c0_152] : memref<16x128xf32, #tpu.memory_space<vmem>>, vector<1x128xf32>
    %454 = vector.broadcast %453 : vector<1x128xf32> to vector<16x128xf32>
    %455 = arith.addf %452, %454 : vector<16x128xf32>
    %456 = arith.addf %455, %367 : vector<16x128xf32>
    %cst_153 = arith.constant 0.000000e+00 : f32
    %457 = vector.broadcast %cst_153 : f32 to vector<16x128xf32>
    %458 = arith.maximumf %456, %457 : vector<16x128xf32>
    %c4_154 = arith.constant 4 : index
    %c0_155 = arith.constant 0 : index
    %c0_156 = arith.constant 0 : index
    %459 = vector.load %arg4[%c4_154, %c0_155, %c0_156] : memref<16x9x128xf32, #tpu.memory_space<vmem>>, vector<1x9x128xf32>
    %460 = vector.shape_cast %459 : vector<1x9x128xf32> to vector<9x128xf32>
    %cst_157 = arith.constant 0.000000e+00 : f32
    %461 = vector.broadcast %cst_157 : f32 to vector<5x128xf32>
    %462 = vector.extract_strided_slice %458 {offsets = [0, 0], sizes = [11, 128], strides = [1, 1]} : vector<16x128xf32> to vector<11x128xf32>
    %463 = tpu.concatenate %461, %462 in 0 : vector<5x128xf32>, vector<11x128xf32> -> vector<16x128xf32>
    %cst_158 = arith.constant 0.000000e+00 : f32
    %464 = vector.broadcast %cst_158 : f32 to vector<16x128xf32>
    %465 = arith.select %373, %463, %464 : vector<16x128xi1>, vector<16x128xf32>
    %466 = vector.extract_strided_slice %460 {offsets = [0, 0], sizes = [1, 128], strides = [1, 1]} : vector<9x128xf32> to vector<1x128xf32>
    %467 = vector.broadcast %466 : vector<1x128xf32> to vector<16x128xf32>
    %468 = arith.mulf %465, %467 : vector<16x128xf32>
    %cst_159 = arith.constant 0.000000e+00 : f32
    %469 = vector.broadcast %cst_159 : f32 to vector<4x128xf32>
    %470 = vector.extract_strided_slice %458 {offsets = [0, 0], sizes = [12, 128], strides = [1, 1]} : vector<16x128xf32> to vector<12x128xf32>
    %471 = tpu.concatenate %469, %470 in 0 : vector<4x128xf32>, vector<12x128xf32> -> vector<16x128xf32>
    %472 = vector.extract_strided_slice %460 {offsets = [1, 0], sizes = [1, 128], strides = [1, 1]} : vector<9x128xf32> to vector<1x128xf32>
    %473 = vector.broadcast %472 : vector<1x128xf32> to vector<16x128xf32>
    %474 = arith.mulf %471, %473 : vector<16x128xf32>
    %475 = arith.addf %468, %474 : vector<16x128xf32>
    %cst_160 = arith.constant 0.000000e+00 : f32
    %476 = vector.broadcast %cst_160 : f32 to vector<3x128xf32>
    %477 = vector.extract_strided_slice %458 {offsets = [0, 0], sizes = [13, 128], strides = [1, 1]} : vector<16x128xf32> to vector<13x128xf32>
    %478 = tpu.concatenate %476, %477 in 0 : vector<3x128xf32>, vector<13x128xf32> -> vector<16x128xf32>
    %cst_161 = arith.constant 0.000000e+00 : f32
    %479 = vector.broadcast %cst_161 : f32 to vector<16x128xf32>
    %480 = arith.select %375, %478, %479 : vector<16x128xi1>, vector<16x128xf32>
    %481 = vector.extract_strided_slice %460 {offsets = [2, 0], sizes = [1, 128], strides = [1, 1]} : vector<9x128xf32> to vector<1x128xf32>
    %482 = vector.broadcast %481 : vector<1x128xf32> to vector<16x128xf32>
    %483 = arith.mulf %480, %482 : vector<16x128xf32>
    %484 = arith.addf %475, %483 : vector<16x128xf32>
    %cst_162 = arith.constant 0.000000e+00 : f32
    %485 = vector.broadcast %cst_162 : f32 to vector<1x128xf32>
    %486 = vector.extract_strided_slice %458 {offsets = [0, 0], sizes = [15, 128], strides = [1, 1]} : vector<16x128xf32> to vector<15x128xf32>
    %487 = tpu.concatenate %485, %486 in 0 : vector<1x128xf32>, vector<15x128xf32> -> vector<16x128xf32>
    %cst_163 = arith.constant 0.000000e+00 : f32
    %488 = vector.broadcast %cst_163 : f32 to vector<16x128xf32>
    %489 = arith.select %373, %487, %488 : vector<16x128xi1>, vector<16x128xf32>
    %490 = vector.extract_strided_slice %460 {offsets = [3, 0], sizes = [1, 128], strides = [1, 1]} : vector<9x128xf32> to vector<1x128xf32>
    %491 = vector.broadcast %490 : vector<1x128xf32> to vector<16x128xf32>
    %492 = arith.mulf %489, %491 : vector<16x128xf32>
    %493 = arith.addf %484, %492 : vector<16x128xf32>
    %494 = vector.extract_strided_slice %460 {offsets = [4, 0], sizes = [1, 128], strides = [1, 1]} : vector<9x128xf32> to vector<1x128xf32>
    %495 = vector.broadcast %494 : vector<1x128xf32> to vector<16x128xf32>
    %496 = arith.mulf %458, %495 : vector<16x128xf32>
    %497 = arith.addf %493, %496 : vector<16x128xf32>
    %cst_164 = arith.constant 0.000000e+00 : f32
    %498 = vector.broadcast %cst_164 : f32 to vector<1x128xf32>
    %499 = vector.extract_strided_slice %458 {offsets = [1, 0], sizes = [15, 128], strides = [1, 1]} : vector<16x128xf32> to vector<15x128xf32>
    %500 = tpu.concatenate %499, %498 in 0 : vector<15x128xf32>, vector<1x128xf32> -> vector<16x128xf32>
    %cst_165 = arith.constant 0.000000e+00 : f32
    %501 = vector.broadcast %cst_165 : f32 to vector<16x128xf32>
    %502 = arith.select %375, %500, %501 : vector<16x128xi1>, vector<16x128xf32>
    %503 = vector.extract_strided_slice %460 {offsets = [5, 0], sizes = [1, 128], strides = [1, 1]} : vector<9x128xf32> to vector<1x128xf32>
    %504 = vector.broadcast %503 : vector<1x128xf32> to vector<16x128xf32>
    %505 = arith.mulf %502, %504 : vector<16x128xf32>
    %506 = arith.addf %497, %505 : vector<16x128xf32>
    %cst_166 = arith.constant 0.000000e+00 : f32
    %507 = vector.broadcast %cst_166 : f32 to vector<3x128xf32>
    %508 = vector.extract_strided_slice %458 {offsets = [3, 0], sizes = [13, 128], strides = [1, 1]} : vector<16x128xf32> to vector<13x128xf32>
    %509 = tpu.concatenate %508, %507 in 0 : vector<13x128xf32>, vector<3x128xf32> -> vector<16x128xf32>
    %cst_167 = arith.constant 0.000000e+00 : f32
    %510 = vector.broadcast %cst_167 : f32 to vector<16x128xf32>
    %511 = arith.select %373, %509, %510 : vector<16x128xi1>, vector<16x128xf32>
    %512 = vector.extract_strided_slice %460 {offsets = [6, 0], sizes = [1, 128], strides = [1, 1]} : vector<9x128xf32> to vector<1x128xf32>
    %513 = vector.broadcast %512 : vector<1x128xf32> to vector<16x128xf32>
    %514 = arith.mulf %511, %513 : vector<16x128xf32>
    %515 = arith.addf %506, %514 : vector<16x128xf32>
    %cst_168 = arith.constant 0.000000e+00 : f32
    %516 = vector.broadcast %cst_168 : f32 to vector<4x128xf32>
    %517 = vector.extract_strided_slice %458 {offsets = [4, 0], sizes = [12, 128], strides = [1, 1]} : vector<16x128xf32> to vector<12x128xf32>
    %518 = tpu.concatenate %517, %516 in 0 : vector<12x128xf32>, vector<4x128xf32> -> vector<16x128xf32>
    %519 = vector.extract_strided_slice %460 {offsets = [7, 0], sizes = [1, 128], strides = [1, 1]} : vector<9x128xf32> to vector<1x128xf32>
    %520 = vector.broadcast %519 : vector<1x128xf32> to vector<16x128xf32>
    %521 = arith.mulf %518, %520 : vector<16x128xf32>
    %522 = arith.addf %515, %521 : vector<16x128xf32>
    %cst_169 = arith.constant 0.000000e+00 : f32
    %523 = vector.broadcast %cst_169 : f32 to vector<5x128xf32>
    %524 = vector.extract_strided_slice %458 {offsets = [5, 0], sizes = [11, 128], strides = [1, 1]} : vector<16x128xf32> to vector<11x128xf32>
    %525 = tpu.concatenate %524, %523 in 0 : vector<11x128xf32>, vector<5x128xf32> -> vector<16x128xf32>
    %cst_170 = arith.constant 0.000000e+00 : f32
    %526 = vector.broadcast %cst_170 : f32 to vector<16x128xf32>
    %527 = arith.select %375, %525, %526 : vector<16x128xi1>, vector<16x128xf32>
    %528 = vector.extract_strided_slice %460 {offsets = [8, 0], sizes = [1, 128], strides = [1, 1]} : vector<9x128xf32> to vector<1x128xf32>
    %529 = vector.broadcast %528 : vector<1x128xf32> to vector<16x128xf32>
    %530 = arith.mulf %527, %529 : vector<16x128xf32>
    %531 = arith.addf %522, %530 : vector<16x128xf32>
    %c4_171 = arith.constant 4 : index
    %c0_172 = arith.constant 0 : index
    %532 = vector.load %arg5[%c4_171, %c0_172] : memref<16x128xf32, #tpu.memory_space<vmem>>, vector<1x128xf32>
    %533 = vector.broadcast %532 : vector<1x128xf32> to vector<16x128xf32>
    %534 = arith.addf %531, %533 : vector<16x128xf32>
    %c4_173 = arith.constant 4 : index
    %c0_174 = arith.constant 0 : index
    %c0_175 = arith.constant 0 : index
    %535 = vector.load %arg6[%c4_173, %c0_174, %c0_175] : memref<16x128x128xf32, #tpu.memory_space<vmem>>, vector<1x128x128xf32>
    %536 = vector.shape_cast %535 : vector<1x128x128xf32> to vector<128x128xf32>
    %cst_176 = arith.constant dense<0.000000e+00> : vector<16x128xf32>
    %537 = tpu.matmul %534, %536, %cst_176 {dimension_numbers = #tpu.dot_dimension_numbers<[1], [0], [0], [1], [0, 0, 1, 1], [], []>} : vector<16x128xf32>, vector<128x128xf32>, vector<16x128xf32> -> vector<16x128xf32>
    %c4_177 = arith.constant 4 : index
    %c0_178 = arith.constant 0 : index
    %538 = vector.load %arg7[%c4_177, %c0_178] : memref<16x128xf32, #tpu.memory_space<vmem>>, vector<1x128xf32>
    %539 = vector.broadcast %538 : vector<1x128xf32> to vector<16x128xf32>
    %540 = arith.addf %537, %539 : vector<16x128xf32>
    %541 = arith.addf %540, %458 : vector<16x128xf32>
    %cst_179 = arith.constant 0.000000e+00 : f32
    %542 = vector.broadcast %cst_179 : f32 to vector<16x128xf32>
    %543 = arith.maximumf %541, %542 : vector<16x128xf32>
    %c5_180 = arith.constant 5 : index
    %c0_181 = arith.constant 0 : index
    %c0_182 = arith.constant 0 : index
    %544 = vector.load %arg4[%c5_180, %c0_181, %c0_182] : memref<16x9x128xf32, #tpu.memory_space<vmem>>, vector<1x9x128xf32>
    %545 = vector.shape_cast %544 : vector<1x9x128xf32> to vector<9x128xf32>
    %cst_183 = arith.constant 0.000000e+00 : f32
    %546 = vector.broadcast %cst_183 : f32 to vector<5x128xf32>
    %547 = vector.extract_strided_slice %543 {offsets = [0, 0], sizes = [11, 128], strides = [1, 1]} : vector<16x128xf32> to vector<11x128xf32>
    %548 = tpu.concatenate %546, %547 in 0 : vector<5x128xf32>, vector<11x128xf32> -> vector<16x128xf32>
    %cst_184 = arith.constant 0.000000e+00 : f32
    %549 = vector.broadcast %cst_184 : f32 to vector<16x128xf32>
    %550 = arith.select %373, %548, %549 : vector<16x128xi1>, vector<16x128xf32>
    %551 = vector.extract_strided_slice %545 {offsets = [0, 0], sizes = [1, 128], strides = [1, 1]} : vector<9x128xf32> to vector<1x128xf32>
    %552 = vector.broadcast %551 : vector<1x128xf32> to vector<16x128xf32>
    %553 = arith.mulf %550, %552 : vector<16x128xf32>
    %cst_185 = arith.constant 0.000000e+00 : f32
    %554 = vector.broadcast %cst_185 : f32 to vector<4x128xf32>
    %555 = vector.extract_strided_slice %543 {offsets = [0, 0], sizes = [12, 128], strides = [1, 1]} : vector<16x128xf32> to vector<12x128xf32>
    %556 = tpu.concatenate %554, %555 in 0 : vector<4x128xf32>, vector<12x128xf32> -> vector<16x128xf32>
    %557 = vector.extract_strided_slice %545 {offsets = [1, 0], sizes = [1, 128], strides = [1, 1]} : vector<9x128xf32> to vector<1x128xf32>
    %558 = vector.broadcast %557 : vector<1x128xf32> to vector<16x128xf32>
    %559 = arith.mulf %556, %558 : vector<16x128xf32>
    %560 = arith.addf %553, %559 : vector<16x128xf32>
    %cst_186 = arith.constant 0.000000e+00 : f32
    %561 = vector.broadcast %cst_186 : f32 to vector<3x128xf32>
    %562 = vector.extract_strided_slice %543 {offsets = [0, 0], sizes = [13, 128], strides = [1, 1]} : vector<16x128xf32> to vector<13x128xf32>
    %563 = tpu.concatenate %561, %562 in 0 : vector<3x128xf32>, vector<13x128xf32> -> vector<16x128xf32>
    %cst_187 = arith.constant 0.000000e+00 : f32
    %564 = vector.broadcast %cst_187 : f32 to vector<16x128xf32>
    %565 = arith.select %375, %563, %564 : vector<16x128xi1>, vector<16x128xf32>
    %566 = vector.extract_strided_slice %545 {offsets = [2, 0], sizes = [1, 128], strides = [1, 1]} : vector<9x128xf32> to vector<1x128xf32>
    %567 = vector.broadcast %566 : vector<1x128xf32> to vector<16x128xf32>
    %568 = arith.mulf %565, %567 : vector<16x128xf32>
    %569 = arith.addf %560, %568 : vector<16x128xf32>
    %cst_188 = arith.constant 0.000000e+00 : f32
    %570 = vector.broadcast %cst_188 : f32 to vector<1x128xf32>
    %571 = vector.extract_strided_slice %543 {offsets = [0, 0], sizes = [15, 128], strides = [1, 1]} : vector<16x128xf32> to vector<15x128xf32>
    %572 = tpu.concatenate %570, %571 in 0 : vector<1x128xf32>, vector<15x128xf32> -> vector<16x128xf32>
    %cst_189 = arith.constant 0.000000e+00 : f32
    %573 = vector.broadcast %cst_189 : f32 to vector<16x128xf32>
    %574 = arith.select %373, %572, %573 : vector<16x128xi1>, vector<16x128xf32>
    %575 = vector.extract_strided_slice %545 {offsets = [3, 0], sizes = [1, 128], strides = [1, 1]} : vector<9x128xf32> to vector<1x128xf32>
    %576 = vector.broadcast %575 : vector<1x128xf32> to vector<16x128xf32>
    %577 = arith.mulf %574, %576 : vector<16x128xf32>
    %578 = arith.addf %569, %577 : vector<16x128xf32>
    %579 = vector.extract_strided_slice %545 {offsets = [4, 0], sizes = [1, 128], strides = [1, 1]} : vector<9x128xf32> to vector<1x128xf32>
    %580 = vector.broadcast %579 : vector<1x128xf32> to vector<16x128xf32>
    %581 = arith.mulf %543, %580 : vector<16x128xf32>
    %582 = arith.addf %578, %581 : vector<16x128xf32>
    %cst_190 = arith.constant 0.000000e+00 : f32
    %583 = vector.broadcast %cst_190 : f32 to vector<1x128xf32>
    %584 = vector.extract_strided_slice %543 {offsets = [1, 0], sizes = [15, 128], strides = [1, 1]} : vector<16x128xf32> to vector<15x128xf32>
    %585 = tpu.concatenate %584, %583 in 0 : vector<15x128xf32>, vector<1x128xf32> -> vector<16x128xf32>
    %cst_191 = arith.constant 0.000000e+00 : f32
    %586 = vector.broadcast %cst_191 : f32 to vector<16x128xf32>
    %587 = arith.select %375, %585, %586 : vector<16x128xi1>, vector<16x128xf32>
    %588 = vector.extract_strided_slice %545 {offsets = [5, 0], sizes = [1, 128], strides = [1, 1]} : vector<9x128xf32> to vector<1x128xf32>
    %589 = vector.broadcast %588 : vector<1x128xf32> to vector<16x128xf32>
    %590 = arith.mulf %587, %589 : vector<16x128xf32>
    %591 = arith.addf %582, %590 : vector<16x128xf32>
    %cst_192 = arith.constant 0.000000e+00 : f32
    %592 = vector.broadcast %cst_192 : f32 to vector<3x128xf32>
    %593 = vector.extract_strided_slice %543 {offsets = [3, 0], sizes = [13, 128], strides = [1, 1]} : vector<16x128xf32> to vector<13x128xf32>
    %594 = tpu.concatenate %593, %592 in 0 : vector<13x128xf32>, vector<3x128xf32> -> vector<16x128xf32>
    %cst_193 = arith.constant 0.000000e+00 : f32
    %595 = vector.broadcast %cst_193 : f32 to vector<16x128xf32>
    %596 = arith.select %373, %594, %595 : vector<16x128xi1>, vector<16x128xf32>
    %597 = vector.extract_strided_slice %545 {offsets = [6, 0], sizes = [1, 128], strides = [1, 1]} : vector<9x128xf32> to vector<1x128xf32>
    %598 = vector.broadcast %597 : vector<1x128xf32> to vector<16x128xf32>
    %599 = arith.mulf %596, %598 : vector<16x128xf32>
    %600 = arith.addf %591, %599 : vector<16x128xf32>
    %cst_194 = arith.constant 0.000000e+00 : f32
    %601 = vector.broadcast %cst_194 : f32 to vector<4x128xf32>
    %602 = vector.extract_strided_slice %543 {offsets = [4, 0], sizes = [12, 128], strides = [1, 1]} : vector<16x128xf32> to vector<12x128xf32>
    %603 = tpu.concatenate %602, %601 in 0 : vector<12x128xf32>, vector<4x128xf32> -> vector<16x128xf32>
    %604 = vector.extract_strided_slice %545 {offsets = [7, 0], sizes = [1, 128], strides = [1, 1]} : vector<9x128xf32> to vector<1x128xf32>
    %605 = vector.broadcast %604 : vector<1x128xf32> to vector<16x128xf32>
    %606 = arith.mulf %603, %605 : vector<16x128xf32>
    %607 = arith.addf %600, %606 : vector<16x128xf32>
    %cst_195 = arith.constant 0.000000e+00 : f32
    %608 = vector.broadcast %cst_195 : f32 to vector<5x128xf32>
    %609 = vector.extract_strided_slice %543 {offsets = [5, 0], sizes = [11, 128], strides = [1, 1]} : vector<16x128xf32> to vector<11x128xf32>
    %610 = tpu.concatenate %609, %608 in 0 : vector<11x128xf32>, vector<5x128xf32> -> vector<16x128xf32>
    %cst_196 = arith.constant 0.000000e+00 : f32
    %611 = vector.broadcast %cst_196 : f32 to vector<16x128xf32>
    %612 = arith.select %375, %610, %611 : vector<16x128xi1>, vector<16x128xf32>
    %613 = vector.extract_strided_slice %545 {offsets = [8, 0], sizes = [1, 128], strides = [1, 1]} : vector<9x128xf32> to vector<1x128xf32>
    %614 = vector.broadcast %613 : vector<1x128xf32> to vector<16x128xf32>
    %615 = arith.mulf %612, %614 : vector<16x128xf32>
    %616 = arith.addf %607, %615 : vector<16x128xf32>
    %c5_197 = arith.constant 5 : index
    %c0_198 = arith.constant 0 : index
    %617 = vector.load %arg5[%c5_197, %c0_198] : memref<16x128xf32, #tpu.memory_space<vmem>>, vector<1x128xf32>
    %618 = vector.broadcast %617 : vector<1x128xf32> to vector<16x128xf32>
    %619 = arith.addf %616, %618 : vector<16x128xf32>
    %c5_199 = arith.constant 5 : index
    %c0_200 = arith.constant 0 : index
    %c0_201 = arith.constant 0 : index
    %620 = vector.load %arg6[%c5_199, %c0_200, %c0_201] : memref<16x128x128xf32, #tpu.memory_space<vmem>>, vector<1x128x128xf32>
    %621 = vector.shape_cast %620 : vector<1x128x128xf32> to vector<128x128xf32>
    %cst_202 = arith.constant dense<0.000000e+00> : vector<16x128xf32>
    %622 = tpu.matmul %619, %621, %cst_202 {dimension_numbers = #tpu.dot_dimension_numbers<[1], [0], [0], [1], [0, 0, 1, 1], [], []>} : vector<16x128xf32>, vector<128x128xf32>, vector<16x128xf32> -> vector<16x128xf32>
    %c5_203 = arith.constant 5 : index
    %c0_204 = arith.constant 0 : index
    %623 = vector.load %arg7[%c5_203, %c0_204] : memref<16x128xf32, #tpu.memory_space<vmem>>, vector<1x128xf32>
    %624 = vector.broadcast %623 : vector<1x128xf32> to vector<16x128xf32>
    %625 = arith.addf %622, %624 : vector<16x128xf32>
    %cst_205 = arith.constant 0.000000e+00 : f32
    %626 = vector.broadcast %cst_205 : f32 to vector<1x128xf32>
    %627 = vector.extract_strided_slice %543 {offsets = [1, 0], sizes = [15, 128], strides = [1, 1]} : vector<16x128xf32> to vector<15x128xf32>
    %628 = tpu.concatenate %627, %626 in 0 : vector<15x128xf32>, vector<1x128xf32> -> vector<16x128xf32>
    %629 = arith.maximumf %543, %628 : vector<16x128xf32>
    %cst_206 = arith.constant 0.000000e+00 : f32
    %630 = vector.broadcast %cst_206 : f32 to vector<4x128xf32>
    %631 = vector.extract_strided_slice %543 {offsets = [4, 0], sizes = [12, 128], strides = [1, 1]} : vector<16x128xf32> to vector<12x128xf32>
    %632 = tpu.concatenate %631, %630 in 0 : vector<12x128xf32>, vector<4x128xf32> -> vector<16x128xf32>
    %cst_207 = arith.constant 0.000000e+00 : f32
    %633 = vector.broadcast %cst_207 : f32 to vector<5x128xf32>
    %634 = vector.extract_strided_slice %543 {offsets = [5, 0], sizes = [11, 128], strides = [1, 1]} : vector<16x128xf32> to vector<11x128xf32>
    %635 = tpu.concatenate %634, %633 in 0 : vector<11x128xf32>, vector<5x128xf32> -> vector<16x128xf32>
    %636 = arith.maximumf %632, %635 : vector<16x128xf32>
    %637 = arith.maximumf %629, %636 : vector<16x128xf32>
    %638 = arith.addf %625, %637 : vector<16x128xf32>
    %cst_208 = arith.constant 0.000000e+00 : f32
    %639 = vector.broadcast %cst_208 : f32 to vector<16x128xf32>
    %640 = arith.maximumf %638, %639 : vector<16x128xf32>
    %641 = vector.extract_strided_slice %640 {offsets = [0, 0], sizes = [1, 128], strides = [1, 1]} : vector<16x128xf32> to vector<1x128xf32>
    %642 = vector.extract_strided_slice %640 {offsets = [2, 0], sizes = [1, 128], strides = [1, 1]} : vector<16x128xf32> to vector<1x128xf32>
    %643 = vector.extract_strided_slice %640 {offsets = [8, 0], sizes = [1, 128], strides = [1, 1]} : vector<16x128xf32> to vector<1x128xf32>
    %644 = vector.extract_strided_slice %640 {offsets = [10, 0], sizes = [1, 128], strides = [1, 1]} : vector<16x128xf32> to vector<1x128xf32>
    %645 = tpu.concatenate %641, %642, %643, %644 in 0 : vector<1x128xf32>, vector<1x128xf32>, vector<1x128xf32>, vector<1x128xf32> -> vector<4x128xf32>
    %c6_209 = arith.constant 6 : index
    %c0_210 = arith.constant 0 : index
    %c0_211 = arith.constant 0 : index
    %646 = vector.load %arg4[%c6_209, %c0_210, %c0_211] : memref<16x9x128xf32, #tpu.memory_space<vmem>>, vector<1x9x128xf32>
    %647 = vector.shape_cast %646 : vector<1x9x128xf32> to vector<9x128xf32>
    %648 = tpu.iota {dimensions = array<i32: 0>} : vector<2x128xi32>
    %649 = tpu.concatenate %648, %648 in 0 : vector<2x128xi32>, vector<2x128xi32> -> vector<4x128xi32>
    %c0_i32_212 = arith.constant 0 : i32
    %650 = vector.broadcast %c0_i32_212 : i32 to vector<4x128xi32>
    %651 = arith.cmpi ne, %649, %650 : vector<4x128xi32>
    %c1_i32 = arith.constant 1 : i32
    %652 = vector.broadcast %c1_i32 : i32 to vector<4x128xi32>
    %653 = arith.cmpi ne, %649, %652 : vector<4x128xi32>
    %cst_213 = arith.constant 0.000000e+00 : f32
    %654 = vector.broadcast %cst_213 : f32 to vector<3x128xf32>
    %655 = vector.extract_strided_slice %645 {offsets = [0, 0], sizes = [1, 128], strides = [1, 1]} : vector<4x128xf32> to vector<1x128xf32>
    %656 = tpu.concatenate %654, %655 in 0 : vector<3x128xf32>, vector<1x128xf32> -> vector<4x128xf32>
    %cst_214 = arith.constant 0.000000e+00 : f32
    %657 = vector.broadcast %cst_214 : f32 to vector<4x128xf32>
    %658 = arith.select %651, %656, %657 : vector<4x128xi1>, vector<4x128xf32>
    %659 = vector.extract_strided_slice %647 {offsets = [0, 0], sizes = [1, 128], strides = [1, 1]} : vector<9x128xf32> to vector<1x128xf32>
    %660 = vector.broadcast %659 : vector<1x128xf32> to vector<4x128xf32>
    %661 = arith.mulf %658, %660 : vector<4x128xf32>
    %cst_215 = arith.constant 0.000000e+00 : f32
    %662 = vector.broadcast %cst_215 : f32 to vector<2x128xf32>
    %663 = vector.extract_strided_slice %645 {offsets = [0, 0], sizes = [2, 128], strides = [1, 1]} : vector<4x128xf32> to vector<2x128xf32>
    %664 = tpu.concatenate %662, %663 in 0 : vector<2x128xf32>, vector<2x128xf32> -> vector<4x128xf32>
    %665 = vector.extract_strided_slice %647 {offsets = [1, 0], sizes = [1, 128], strides = [1, 1]} : vector<9x128xf32> to vector<1x128xf32>
    %666 = vector.broadcast %665 : vector<1x128xf32> to vector<4x128xf32>
    %667 = arith.mulf %664, %666 : vector<4x128xf32>
    %668 = arith.addf %661, %667 : vector<4x128xf32>
    %cst_216 = arith.constant 0.000000e+00 : f32
    %669 = vector.broadcast %cst_216 : f32 to vector<1x128xf32>
    %670 = vector.extract_strided_slice %645 {offsets = [0, 0], sizes = [3, 128], strides = [1, 1]} : vector<4x128xf32> to vector<3x128xf32>
    %671 = tpu.concatenate %669, %670 in 0 : vector<1x128xf32>, vector<3x128xf32> -> vector<4x128xf32>
    %cst_217 = arith.constant 0.000000e+00 : f32
    %672 = vector.broadcast %cst_217 : f32 to vector<4x128xf32>
    %673 = arith.select %653, %671, %672 : vector<4x128xi1>, vector<4x128xf32>
    %674 = vector.extract_strided_slice %647 {offsets = [2, 0], sizes = [1, 128], strides = [1, 1]} : vector<9x128xf32> to vector<1x128xf32>
    %675 = vector.broadcast %674 : vector<1x128xf32> to vector<4x128xf32>
    %676 = arith.mulf %673, %675 : vector<4x128xf32>
    %677 = arith.addf %668, %676 : vector<4x128xf32>
    %cst_218 = arith.constant 0.000000e+00 : f32
    %678 = vector.broadcast %cst_218 : f32 to vector<1x128xf32>
    %679 = vector.extract_strided_slice %645 {offsets = [0, 0], sizes = [3, 128], strides = [1, 1]} : vector<4x128xf32> to vector<3x128xf32>
    %680 = tpu.concatenate %678, %679 in 0 : vector<1x128xf32>, vector<3x128xf32> -> vector<4x128xf32>
    %cst_219 = arith.constant 0.000000e+00 : f32
    %681 = vector.broadcast %cst_219 : f32 to vector<4x128xf32>
    %682 = arith.select %651, %680, %681 : vector<4x128xi1>, vector<4x128xf32>
    %683 = vector.extract_strided_slice %647 {offsets = [3, 0], sizes = [1, 128], strides = [1, 1]} : vector<9x128xf32> to vector<1x128xf32>
    %684 = vector.broadcast %683 : vector<1x128xf32> to vector<4x128xf32>
    %685 = arith.mulf %682, %684 : vector<4x128xf32>
    %686 = arith.addf %677, %685 : vector<4x128xf32>
    %687 = vector.extract_strided_slice %647 {offsets = [4, 0], sizes = [1, 128], strides = [1, 1]} : vector<9x128xf32> to vector<1x128xf32>
    %688 = vector.broadcast %687 : vector<1x128xf32> to vector<4x128xf32>
    %689 = arith.mulf %645, %688 : vector<4x128xf32>
    %690 = arith.addf %686, %689 : vector<4x128xf32>
    %cst_220 = arith.constant 0.000000e+00 : f32
    %691 = vector.broadcast %cst_220 : f32 to vector<1x128xf32>
    %692 = vector.extract_strided_slice %645 {offsets = [1, 0], sizes = [3, 128], strides = [1, 1]} : vector<4x128xf32> to vector<3x128xf32>
    %693 = tpu.concatenate %692, %691 in 0 : vector<3x128xf32>, vector<1x128xf32> -> vector<4x128xf32>
    %cst_221 = arith.constant 0.000000e+00 : f32
    %694 = vector.broadcast %cst_221 : f32 to vector<4x128xf32>
    %695 = arith.select %653, %693, %694 : vector<4x128xi1>, vector<4x128xf32>
    %696 = vector.extract_strided_slice %647 {offsets = [5, 0], sizes = [1, 128], strides = [1, 1]} : vector<9x128xf32> to vector<1x128xf32>
    %697 = vector.broadcast %696 : vector<1x128xf32> to vector<4x128xf32>
    %698 = arith.mulf %695, %697 : vector<4x128xf32>
    %699 = arith.addf %690, %698 : vector<4x128xf32>
    %cst_222 = arith.constant 0.000000e+00 : f32
    %700 = vector.broadcast %cst_222 : f32 to vector<1x128xf32>
    %701 = vector.extract_strided_slice %645 {offsets = [1, 0], sizes = [3, 128], strides = [1, 1]} : vector<4x128xf32> to vector<3x128xf32>
    %702 = tpu.concatenate %701, %700 in 0 : vector<3x128xf32>, vector<1x128xf32> -> vector<4x128xf32>
    %cst_223 = arith.constant 0.000000e+00 : f32
    %703 = vector.broadcast %cst_223 : f32 to vector<4x128xf32>
    %704 = arith.select %651, %702, %703 : vector<4x128xi1>, vector<4x128xf32>
    %705 = vector.extract_strided_slice %647 {offsets = [6, 0], sizes = [1, 128], strides = [1, 1]} : vector<9x128xf32> to vector<1x128xf32>
    %706 = vector.broadcast %705 : vector<1x128xf32> to vector<4x128xf32>
    %707 = arith.mulf %704, %706 : vector<4x128xf32>
    %708 = arith.addf %699, %707 : vector<4x128xf32>
    %cst_224 = arith.constant 0.000000e+00 : f32
    %709 = vector.broadcast %cst_224 : f32 to vector<2x128xf32>
    %710 = vector.extract_strided_slice %645 {offsets = [2, 0], sizes = [2, 128], strides = [1, 1]} : vector<4x128xf32> to vector<2x128xf32>
    %711 = tpu.concatenate %710, %709 in 0 : vector<2x128xf32>, vector<2x128xf32> -> vector<4x128xf32>
    %712 = vector.extract_strided_slice %647 {offsets = [7, 0], sizes = [1, 128], strides = [1, 1]} : vector<9x128xf32> to vector<1x128xf32>
    %713 = vector.broadcast %712 : vector<1x128xf32> to vector<4x128xf32>
    %714 = arith.mulf %711, %713 : vector<4x128xf32>
    %715 = arith.addf %708, %714 : vector<4x128xf32>
    %cst_225 = arith.constant 0.000000e+00 : f32
    %716 = vector.broadcast %cst_225 : f32 to vector<3x128xf32>
    %717 = vector.extract_strided_slice %645 {offsets = [3, 0], sizes = [1, 128], strides = [1, 1]} : vector<4x128xf32> to vector<1x128xf32>
    %718 = tpu.concatenate %717, %716 in 0 : vector<1x128xf32>, vector<3x128xf32> -> vector<4x128xf32>
    %cst_226 = arith.constant 0.000000e+00 : f32
    %719 = vector.broadcast %cst_226 : f32 to vector<4x128xf32>
    %720 = arith.select %653, %718, %719 : vector<4x128xi1>, vector<4x128xf32>
    %721 = vector.extract_strided_slice %647 {offsets = [8, 0], sizes = [1, 128], strides = [1, 1]} : vector<9x128xf32> to vector<1x128xf32>
    %722 = vector.broadcast %721 : vector<1x128xf32> to vector<4x128xf32>
    %723 = arith.mulf %720, %722 : vector<4x128xf32>
    %724 = arith.addf %715, %723 : vector<4x128xf32>
    %c6_227 = arith.constant 6 : index
    %c0_228 = arith.constant 0 : index
    %725 = vector.load %arg5[%c6_227, %c0_228] : memref<16x128xf32, #tpu.memory_space<vmem>>, vector<1x128xf32>
    %726 = vector.broadcast %725 : vector<1x128xf32> to vector<4x128xf32>
    %727 = arith.addf %724, %726 : vector<4x128xf32>
    %c6_229 = arith.constant 6 : index
    %c0_230 = arith.constant 0 : index
    %c0_231 = arith.constant 0 : index
    %728 = vector.load %arg6[%c6_229, %c0_230, %c0_231] : memref<16x128x128xf32, #tpu.memory_space<vmem>>, vector<1x128x128xf32>
    %729 = vector.shape_cast %728 : vector<1x128x128xf32> to vector<128x128xf32>
    %cst_232 = arith.constant dense<0.000000e+00> : vector<4x128xf32>
    %730 = tpu.matmul %727, %729, %cst_232 {dimension_numbers = #tpu.dot_dimension_numbers<[1], [0], [0], [1], [0, 0, 1, 1], [], []>} : vector<4x128xf32>, vector<128x128xf32>, vector<4x128xf32> -> vector<4x128xf32>
    %c6_233 = arith.constant 6 : index
    %c0_234 = arith.constant 0 : index
    %731 = vector.load %arg7[%c6_233, %c0_234] : memref<16x128xf32, #tpu.memory_space<vmem>>, vector<1x128xf32>
    %732 = vector.broadcast %731 : vector<1x128xf32> to vector<4x128xf32>
    %733 = arith.addf %730, %732 : vector<4x128xf32>
    %734 = arith.addf %733, %645 : vector<4x128xf32>
    %cst_235 = arith.constant 0.000000e+00 : f32
    %735 = vector.broadcast %cst_235 : f32 to vector<4x128xf32>
    %736 = arith.maximumf %734, %735 : vector<4x128xf32>
    %c7_236 = arith.constant 7 : index
    %c0_237 = arith.constant 0 : index
    %c0_238 = arith.constant 0 : index
    %737 = vector.load %arg4[%c7_236, %c0_237, %c0_238] : memref<16x9x128xf32, #tpu.memory_space<vmem>>, vector<1x9x128xf32>
    %738 = vector.shape_cast %737 : vector<1x9x128xf32> to vector<9x128xf32>
    %cst_239 = arith.constant 0.000000e+00 : f32
    %739 = vector.broadcast %cst_239 : f32 to vector<3x128xf32>
    %740 = vector.extract_strided_slice %736 {offsets = [0, 0], sizes = [1, 128], strides = [1, 1]} : vector<4x128xf32> to vector<1x128xf32>
    %741 = tpu.concatenate %739, %740 in 0 : vector<3x128xf32>, vector<1x128xf32> -> vector<4x128xf32>
    %cst_240 = arith.constant 0.000000e+00 : f32
    %742 = vector.broadcast %cst_240 : f32 to vector<4x128xf32>
    %743 = arith.select %651, %741, %742 : vector<4x128xi1>, vector<4x128xf32>
    %744 = vector.extract_strided_slice %738 {offsets = [0, 0], sizes = [1, 128], strides = [1, 1]} : vector<9x128xf32> to vector<1x128xf32>
    %745 = vector.broadcast %744 : vector<1x128xf32> to vector<4x128xf32>
    %746 = arith.mulf %743, %745 : vector<4x128xf32>
    %cst_241 = arith.constant 0.000000e+00 : f32
    %747 = vector.broadcast %cst_241 : f32 to vector<2x128xf32>
    %748 = vector.extract_strided_slice %736 {offsets = [0, 0], sizes = [2, 128], strides = [1, 1]} : vector<4x128xf32> to vector<2x128xf32>
    %749 = tpu.concatenate %747, %748 in 0 : vector<2x128xf32>, vector<2x128xf32> -> vector<4x128xf32>
    %750 = vector.extract_strided_slice %738 {offsets = [1, 0], sizes = [1, 128], strides = [1, 1]} : vector<9x128xf32> to vector<1x128xf32>
    %751 = vector.broadcast %750 : vector<1x128xf32> to vector<4x128xf32>
    %752 = arith.mulf %749, %751 : vector<4x128xf32>
    %753 = arith.addf %746, %752 : vector<4x128xf32>
    %cst_242 = arith.constant 0.000000e+00 : f32
    %754 = vector.broadcast %cst_242 : f32 to vector<1x128xf32>
    %755 = vector.extract_strided_slice %736 {offsets = [0, 0], sizes = [3, 128], strides = [1, 1]} : vector<4x128xf32> to vector<3x128xf32>
    %756 = tpu.concatenate %754, %755 in 0 : vector<1x128xf32>, vector<3x128xf32> -> vector<4x128xf32>
    %cst_243 = arith.constant 0.000000e+00 : f32
    %757 = vector.broadcast %cst_243 : f32 to vector<4x128xf32>
    %758 = arith.select %653, %756, %757 : vector<4x128xi1>, vector<4x128xf32>
    %759 = vector.extract_strided_slice %738 {offsets = [2, 0], sizes = [1, 128], strides = [1, 1]} : vector<9x128xf32> to vector<1x128xf32>
    %760 = vector.broadcast %759 : vector<1x128xf32> to vector<4x128xf32>
    %761 = arith.mulf %758, %760 : vector<4x128xf32>
    %762 = arith.addf %753, %761 : vector<4x128xf32>
    %cst_244 = arith.constant 0.000000e+00 : f32
    %763 = vector.broadcast %cst_244 : f32 to vector<1x128xf32>
    %764 = vector.extract_strided_slice %736 {offsets = [0, 0], sizes = [3, 128], strides = [1, 1]} : vector<4x128xf32> to vector<3x128xf32>
    %765 = tpu.concatenate %763, %764 in 0 : vector<1x128xf32>, vector<3x128xf32> -> vector<4x128xf32>
    %cst_245 = arith.constant 0.000000e+00 : f32
    %766 = vector.broadcast %cst_245 : f32 to vector<4x128xf32>
    %767 = arith.select %651, %765, %766 : vector<4x128xi1>, vector<4x128xf32>
    %768 = vector.extract_strided_slice %738 {offsets = [3, 0], sizes = [1, 128], strides = [1, 1]} : vector<9x128xf32> to vector<1x128xf32>
    %769 = vector.broadcast %768 : vector<1x128xf32> to vector<4x128xf32>
    %770 = arith.mulf %767, %769 : vector<4x128xf32>
    %771 = arith.addf %762, %770 : vector<4x128xf32>
    %772 = vector.extract_strided_slice %738 {offsets = [4, 0], sizes = [1, 128], strides = [1, 1]} : vector<9x128xf32> to vector<1x128xf32>
    %773 = vector.broadcast %772 : vector<1x128xf32> to vector<4x128xf32>
    %774 = arith.mulf %736, %773 : vector<4x128xf32>
    %775 = arith.addf %771, %774 : vector<4x128xf32>
    %cst_246 = arith.constant 0.000000e+00 : f32
    %776 = vector.broadcast %cst_246 : f32 to vector<1x128xf32>
    %777 = vector.extract_strided_slice %736 {offsets = [1, 0], sizes = [3, 128], strides = [1, 1]} : vector<4x128xf32> to vector<3x128xf32>
    %778 = tpu.concatenate %777, %776 in 0 : vector<3x128xf32>, vector<1x128xf32> -> vector<4x128xf32>
    %cst_247 = arith.constant 0.000000e+00 : f32
    %779 = vector.broadcast %cst_247 : f32 to vector<4x128xf32>
    %780 = arith.select %653, %778, %779 : vector<4x128xi1>, vector<4x128xf32>
    %781 = vector.extract_strided_slice %738 {offsets = [5, 0], sizes = [1, 128], strides = [1, 1]} : vector<9x128xf32> to vector<1x128xf32>
    %782 = vector.broadcast %781 : vector<1x128xf32> to vector<4x128xf32>
    %783 = arith.mulf %780, %782 : vector<4x128xf32>
    %784 = arith.addf %775, %783 : vector<4x128xf32>
    %cst_248 = arith.constant 0.000000e+00 : f32
    %785 = vector.broadcast %cst_248 : f32 to vector<1x128xf32>
    %786 = vector.extract_strided_slice %736 {offsets = [1, 0], sizes = [3, 128], strides = [1, 1]} : vector<4x128xf32> to vector<3x128xf32>
    %787 = tpu.concatenate %786, %785 in 0 : vector<3x128xf32>, vector<1x128xf32> -> vector<4x128xf32>
    %cst_249 = arith.constant 0.000000e+00 : f32
    %788 = vector.broadcast %cst_249 : f32 to vector<4x128xf32>
    %789 = arith.select %651, %787, %788 : vector<4x128xi1>, vector<4x128xf32>
    %790 = vector.extract_strided_slice %738 {offsets = [6, 0], sizes = [1, 128], strides = [1, 1]} : vector<9x128xf32> to vector<1x128xf32>
    %791 = vector.broadcast %790 : vector<1x128xf32> to vector<4x128xf32>
    %792 = arith.mulf %789, %791 : vector<4x128xf32>
    %793 = arith.addf %784, %792 : vector<4x128xf32>
    %cst_250 = arith.constant 0.000000e+00 : f32
    %794 = vector.broadcast %cst_250 : f32 to vector<2x128xf32>
    %795 = vector.extract_strided_slice %736 {offsets = [2, 0], sizes = [2, 128], strides = [1, 1]} : vector<4x128xf32> to vector<2x128xf32>
    %796 = tpu.concatenate %795, %794 in 0 : vector<2x128xf32>, vector<2x128xf32> -> vector<4x128xf32>
    %797 = vector.extract_strided_slice %738 {offsets = [7, 0], sizes = [1, 128], strides = [1, 1]} : vector<9x128xf32> to vector<1x128xf32>
    %798 = vector.broadcast %797 : vector<1x128xf32> to vector<4x128xf32>
    %799 = arith.mulf %796, %798 : vector<4x128xf32>
    %800 = arith.addf %793, %799 : vector<4x128xf32>
    %cst_251 = arith.constant 0.000000e+00 : f32
    %801 = vector.broadcast %cst_251 : f32 to vector<3x128xf32>
    %802 = vector.extract_strided_slice %736 {offsets = [3, 0], sizes = [1, 128], strides = [1, 1]} : vector<4x128xf32> to vector<1x128xf32>
    %803 = tpu.concatenate %802, %801 in 0 : vector<1x128xf32>, vector<3x128xf32> -> vector<4x128xf32>
    %cst_252 = arith.constant 0.000000e+00 : f32
    %804 = vector.broadcast %cst_252 : f32 to vector<4x128xf32>
    %805 = arith.select %653, %803, %804 : vector<4x128xi1>, vector<4x128xf32>
    %806 = vector.extract_strided_slice %738 {offsets = [8, 0], sizes = [1, 128], strides = [1, 1]} : vector<9x128xf32> to vector<1x128xf32>
    %807 = vector.broadcast %806 : vector<1x128xf32> to vector<4x128xf32>
    %808 = arith.mulf %805, %807 : vector<4x128xf32>
    %809 = arith.addf %800, %808 : vector<4x128xf32>
    %c7_253 = arith.constant 7 : index
    %c0_254 = arith.constant 0 : index
    %810 = vector.load %arg5[%c7_253, %c0_254] : memref<16x128xf32, #tpu.memory_space<vmem>>, vector<1x128xf32>
    %811 = vector.broadcast %810 : vector<1x128xf32> to vector<4x128xf32>
    %812 = arith.addf %809, %811 : vector<4x128xf32>
    %c7_255 = arith.constant 7 : index
    %c0_256 = arith.constant 0 : index
    %c0_257 = arith.constant 0 : index
    %813 = vector.load %arg6[%c7_255, %c0_256, %c0_257] : memref<16x128x128xf32, #tpu.memory_space<vmem>>, vector<1x128x128xf32>
    %814 = vector.shape_cast %813 : vector<1x128x128xf32> to vector<128x128xf32>
    %cst_258 = arith.constant dense<0.000000e+00> : vector<4x128xf32>
    %815 = tpu.matmul %812, %814, %cst_258 {dimension_numbers = #tpu.dot_dimension_numbers<[1], [0], [0], [1], [0, 0, 1, 1], [], []>} : vector<4x128xf32>, vector<128x128xf32>, vector<4x128xf32> -> vector<4x128xf32>
    %c7_259 = arith.constant 7 : index
    %c0_260 = arith.constant 0 : index
    %816 = vector.load %arg7[%c7_259, %c0_260] : memref<16x128xf32, #tpu.memory_space<vmem>>, vector<1x128xf32>
    %817 = vector.broadcast %816 : vector<1x128xf32> to vector<4x128xf32>
    %818 = arith.addf %815, %817 : vector<4x128xf32>
    %819 = arith.addf %818, %736 : vector<4x128xf32>
    %cst_261 = arith.constant 0.000000e+00 : f32
    %820 = vector.broadcast %cst_261 : f32 to vector<4x128xf32>
    %821 = arith.maximumf %819, %820 : vector<4x128xf32>
    %c8_262 = arith.constant 8 : index
    %c0_263 = arith.constant 0 : index
    %c0_264 = arith.constant 0 : index
    %822 = vector.load %arg4[%c8_262, %c0_263, %c0_264] : memref<16x9x128xf32, #tpu.memory_space<vmem>>, vector<1x9x128xf32>
    %823 = vector.shape_cast %822 : vector<1x9x128xf32> to vector<9x128xf32>
    %cst_265 = arith.constant 0.000000e+00 : f32
    %824 = vector.broadcast %cst_265 : f32 to vector<3x128xf32>
    %825 = vector.extract_strided_slice %821 {offsets = [0, 0], sizes = [1, 128], strides = [1, 1]} : vector<4x128xf32> to vector<1x128xf32>
    %826 = tpu.concatenate %824, %825 in 0 : vector<3x128xf32>, vector<1x128xf32> -> vector<4x128xf32>
    %cst_266 = arith.constant 0.000000e+00 : f32
    %827 = vector.broadcast %cst_266 : f32 to vector<4x128xf32>
    %828 = arith.select %651, %826, %827 : vector<4x128xi1>, vector<4x128xf32>
    %829 = vector.extract_strided_slice %823 {offsets = [0, 0], sizes = [1, 128], strides = [1, 1]} : vector<9x128xf32> to vector<1x128xf32>
    %830 = vector.broadcast %829 : vector<1x128xf32> to vector<4x128xf32>
    %831 = arith.mulf %828, %830 : vector<4x128xf32>
    %cst_267 = arith.constant 0.000000e+00 : f32
    %832 = vector.broadcast %cst_267 : f32 to vector<2x128xf32>
    %833 = vector.extract_strided_slice %821 {offsets = [0, 0], sizes = [2, 128], strides = [1, 1]} : vector<4x128xf32> to vector<2x128xf32>
    %834 = tpu.concatenate %832, %833 in 0 : vector<2x128xf32>, vector<2x128xf32> -> vector<4x128xf32>
    %835 = vector.extract_strided_slice %823 {offsets = [1, 0], sizes = [1, 128], strides = [1, 1]} : vector<9x128xf32> to vector<1x128xf32>
    %836 = vector.broadcast %835 : vector<1x128xf32> to vector<4x128xf32>
    %837 = arith.mulf %834, %836 : vector<4x128xf32>
    %838 = arith.addf %831, %837 : vector<4x128xf32>
    %cst_268 = arith.constant 0.000000e+00 : f32
    %839 = vector.broadcast %cst_268 : f32 to vector<1x128xf32>
    %840 = vector.extract_strided_slice %821 {offsets = [0, 0], sizes = [3, 128], strides = [1, 1]} : vector<4x128xf32> to vector<3x128xf32>
    %841 = tpu.concatenate %839, %840 in 0 : vector<1x128xf32>, vector<3x128xf32> -> vector<4x128xf32>
    %cst_269 = arith.constant 0.000000e+00 : f32
    %842 = vector.broadcast %cst_269 : f32 to vector<4x128xf32>
    %843 = arith.select %653, %841, %842 : vector<4x128xi1>, vector<4x128xf32>
    %844 = vector.extract_strided_slice %823 {offsets = [2, 0], sizes = [1, 128], strides = [1, 1]} : vector<9x128xf32> to vector<1x128xf32>
    %845 = vector.broadcast %844 : vector<1x128xf32> to vector<4x128xf32>
    %846 = arith.mulf %843, %845 : vector<4x128xf32>
    %847 = arith.addf %838, %846 : vector<4x128xf32>
    %cst_270 = arith.constant 0.000000e+00 : f32
    %848 = vector.broadcast %cst_270 : f32 to vector<1x128xf32>
    %849 = vector.extract_strided_slice %821 {offsets = [0, 0], sizes = [3, 128], strides = [1, 1]} : vector<4x128xf32> to vector<3x128xf32>
    %850 = tpu.concatenate %848, %849 in 0 : vector<1x128xf32>, vector<3x128xf32> -> vector<4x128xf32>
    %cst_271 = arith.constant 0.000000e+00 : f32
    %851 = vector.broadcast %cst_271 : f32 to vector<4x128xf32>
    %852 = arith.select %651, %850, %851 : vector<4x128xi1>, vector<4x128xf32>
    %853 = vector.extract_strided_slice %823 {offsets = [3, 0], sizes = [1, 128], strides = [1, 1]} : vector<9x128xf32> to vector<1x128xf32>
    %854 = vector.broadcast %853 : vector<1x128xf32> to vector<4x128xf32>
    %855 = arith.mulf %852, %854 : vector<4x128xf32>
    %856 = arith.addf %847, %855 : vector<4x128xf32>
    %857 = vector.extract_strided_slice %823 {offsets = [4, 0], sizes = [1, 128], strides = [1, 1]} : vector<9x128xf32> to vector<1x128xf32>
    %858 = vector.broadcast %857 : vector<1x128xf32> to vector<4x128xf32>
    %859 = arith.mulf %821, %858 : vector<4x128xf32>
    %860 = arith.addf %856, %859 : vector<4x128xf32>
    %cst_272 = arith.constant 0.000000e+00 : f32
    %861 = vector.broadcast %cst_272 : f32 to vector<1x128xf32>
    %862 = vector.extract_strided_slice %821 {offsets = [1, 0], sizes = [3, 128], strides = [1, 1]} : vector<4x128xf32> to vector<3x128xf32>
    %863 = tpu.concatenate %862, %861 in 0 : vector<3x128xf32>, vector<1x128xf32> -> vector<4x128xf32>
    %cst_273 = arith.constant 0.000000e+00 : f32
    %864 = vector.broadcast %cst_273 : f32 to vector<4x128xf32>
    %865 = arith.select %653, %863, %864 : vector<4x128xi1>, vector<4x128xf32>
    %866 = vector.extract_strided_slice %823 {offsets = [5, 0], sizes = [1, 128], strides = [1, 1]} : vector<9x128xf32> to vector<1x128xf32>
    %867 = vector.broadcast %866 : vector<1x128xf32> to vector<4x128xf32>
    %868 = arith.mulf %865, %867 : vector<4x128xf32>
    %869 = arith.addf %860, %868 : vector<4x128xf32>
    %cst_274 = arith.constant 0.000000e+00 : f32
    %870 = vector.broadcast %cst_274 : f32 to vector<1x128xf32>
    %871 = vector.extract_strided_slice %821 {offsets = [1, 0], sizes = [3, 128], strides = [1, 1]} : vector<4x128xf32> to vector<3x128xf32>
    %872 = tpu.concatenate %871, %870 in 0 : vector<3x128xf32>, vector<1x128xf32> -> vector<4x128xf32>
    %cst_275 = arith.constant 0.000000e+00 : f32
    %873 = vector.broadcast %cst_275 : f32 to vector<4x128xf32>
    %874 = arith.select %651, %872, %873 : vector<4x128xi1>, vector<4x128xf32>
    %875 = vector.extract_strided_slice %823 {offsets = [6, 0], sizes = [1, 128], strides = [1, 1]} : vector<9x128xf32> to vector<1x128xf32>
    %876 = vector.broadcast %875 : vector<1x128xf32> to vector<4x128xf32>
    %877 = arith.mulf %874, %876 : vector<4x128xf32>
    %878 = arith.addf %869, %877 : vector<4x128xf32>
    %cst_276 = arith.constant 0.000000e+00 : f32
    %879 = vector.broadcast %cst_276 : f32 to vector<2x128xf32>
    %880 = vector.extract_strided_slice %821 {offsets = [2, 0], sizes = [2, 128], strides = [1, 1]} : vector<4x128xf32> to vector<2x128xf32>
    %881 = tpu.concatenate %880, %879 in 0 : vector<2x128xf32>, vector<2x128xf32> -> vector<4x128xf32>
    %882 = vector.extract_strided_slice %823 {offsets = [7, 0], sizes = [1, 128], strides = [1, 1]} : vector<9x128xf32> to vector<1x128xf32>
    %883 = vector.broadcast %882 : vector<1x128xf32> to vector<4x128xf32>
    %884 = arith.mulf %881, %883 : vector<4x128xf32>
    %885 = arith.addf %878, %884 : vector<4x128xf32>
    %cst_277 = arith.constant 0.000000e+00 : f32
    %886 = vector.broadcast %cst_277 : f32 to vector<3x128xf32>
    %887 = vector.extract_strided_slice %821 {offsets = [3, 0], sizes = [1, 128], strides = [1, 1]} : vector<4x128xf32> to vector<1x128xf32>
    %888 = tpu.concatenate %887, %886 in 0 : vector<1x128xf32>, vector<3x128xf32> -> vector<4x128xf32>
    %cst_278 = arith.constant 0.000000e+00 : f32
    %889 = vector.broadcast %cst_278 : f32 to vector<4x128xf32>
    %890 = arith.select %653, %888, %889 : vector<4x128xi1>, vector<4x128xf32>
    %891 = vector.extract_strided_slice %823 {offsets = [8, 0], sizes = [1, 128], strides = [1, 1]} : vector<9x128xf32> to vector<1x128xf32>
    %892 = vector.broadcast %891 : vector<1x128xf32> to vector<4x128xf32>
    %893 = arith.mulf %890, %892 : vector<4x128xf32>
    %894 = arith.addf %885, %893 : vector<4x128xf32>
    %c8_279 = arith.constant 8 : index
    %c0_280 = arith.constant 0 : index
    %895 = vector.load %arg5[%c8_279, %c0_280] : memref<16x128xf32, #tpu.memory_space<vmem>>, vector<1x128xf32>
    %896 = vector.broadcast %895 : vector<1x128xf32> to vector<4x128xf32>
    %897 = arith.addf %894, %896 : vector<4x128xf32>
    %c8_281 = arith.constant 8 : index
    %c0_282 = arith.constant 0 : index
    %c0_283 = arith.constant 0 : index
    %898 = vector.load %arg6[%c8_281, %c0_282, %c0_283] : memref<16x128x128xf32, #tpu.memory_space<vmem>>, vector<1x128x128xf32>
    %899 = vector.shape_cast %898 : vector<1x128x128xf32> to vector<128x128xf32>
    %cst_284 = arith.constant dense<0.000000e+00> : vector<4x128xf32>
    %900 = tpu.matmul %897, %899, %cst_284 {dimension_numbers = #tpu.dot_dimension_numbers<[1], [0], [0], [1], [0, 0, 1, 1], [], []>} : vector<4x128xf32>, vector<128x128xf32>, vector<4x128xf32> -> vector<4x128xf32>
    %c8_285 = arith.constant 8 : index
    %c0_286 = arith.constant 0 : index
    %901 = vector.load %arg7[%c8_285, %c0_286] : memref<16x128xf32, #tpu.memory_space<vmem>>, vector<1x128xf32>
    %902 = vector.broadcast %901 : vector<1x128xf32> to vector<4x128xf32>
    %903 = arith.addf %900, %902 : vector<4x128xf32>
    %904 = arith.addf %903, %821 : vector<4x128xf32>
    %cst_287 = arith.constant 0.000000e+00 : f32
    %905 = vector.broadcast %cst_287 : f32 to vector<4x128xf32>
    %906 = arith.maximumf %904, %905 : vector<4x128xf32>
    %c9 = arith.constant 9 : index
    %c0_288 = arith.constant 0 : index
    %c0_289 = arith.constant 0 : index
    %907 = vector.load %arg4[%c9, %c0_288, %c0_289] : memref<16x9x128xf32, #tpu.memory_space<vmem>>, vector<1x9x128xf32>
    %908 = vector.shape_cast %907 : vector<1x9x128xf32> to vector<9x128xf32>
    %cst_290 = arith.constant 0.000000e+00 : f32
    %909 = vector.broadcast %cst_290 : f32 to vector<3x128xf32>
    %910 = vector.extract_strided_slice %906 {offsets = [0, 0], sizes = [1, 128], strides = [1, 1]} : vector<4x128xf32> to vector<1x128xf32>
    %911 = tpu.concatenate %909, %910 in 0 : vector<3x128xf32>, vector<1x128xf32> -> vector<4x128xf32>
    %cst_291 = arith.constant 0.000000e+00 : f32
    %912 = vector.broadcast %cst_291 : f32 to vector<4x128xf32>
    %913 = arith.select %651, %911, %912 : vector<4x128xi1>, vector<4x128xf32>
    %914 = vector.extract_strided_slice %908 {offsets = [0, 0], sizes = [1, 128], strides = [1, 1]} : vector<9x128xf32> to vector<1x128xf32>
    %915 = vector.broadcast %914 : vector<1x128xf32> to vector<4x128xf32>
    %916 = arith.mulf %913, %915 : vector<4x128xf32>
    %cst_292 = arith.constant 0.000000e+00 : f32
    %917 = vector.broadcast %cst_292 : f32 to vector<2x128xf32>
    %918 = vector.extract_strided_slice %906 {offsets = [0, 0], sizes = [2, 128], strides = [1, 1]} : vector<4x128xf32> to vector<2x128xf32>
    %919 = tpu.concatenate %917, %918 in 0 : vector<2x128xf32>, vector<2x128xf32> -> vector<4x128xf32>
    %920 = vector.extract_strided_slice %908 {offsets = [1, 0], sizes = [1, 128], strides = [1, 1]} : vector<9x128xf32> to vector<1x128xf32>
    %921 = vector.broadcast %920 : vector<1x128xf32> to vector<4x128xf32>
    %922 = arith.mulf %919, %921 : vector<4x128xf32>
    %923 = arith.addf %916, %922 : vector<4x128xf32>
    %cst_293 = arith.constant 0.000000e+00 : f32
    %924 = vector.broadcast %cst_293 : f32 to vector<1x128xf32>
    %925 = vector.extract_strided_slice %906 {offsets = [0, 0], sizes = [3, 128], strides = [1, 1]} : vector<4x128xf32> to vector<3x128xf32>
    %926 = tpu.concatenate %924, %925 in 0 : vector<1x128xf32>, vector<3x128xf32> -> vector<4x128xf32>
    %cst_294 = arith.constant 0.000000e+00 : f32
    %927 = vector.broadcast %cst_294 : f32 to vector<4x128xf32>
    %928 = arith.select %653, %926, %927 : vector<4x128xi1>, vector<4x128xf32>
    %929 = vector.extract_strided_slice %908 {offsets = [2, 0], sizes = [1, 128], strides = [1, 1]} : vector<9x128xf32> to vector<1x128xf32>
    %930 = vector.broadcast %929 : vector<1x128xf32> to vector<4x128xf32>
    %931 = arith.mulf %928, %930 : vector<4x128xf32>
    %932 = arith.addf %923, %931 : vector<4x128xf32>
    %cst_295 = arith.constant 0.000000e+00 : f32
    %933 = vector.broadcast %cst_295 : f32 to vector<1x128xf32>
    %934 = vector.extract_strided_slice %906 {offsets = [0, 0], sizes = [3, 128], strides = [1, 1]} : vector<4x128xf32> to vector<3x128xf32>
    %935 = tpu.concatenate %933, %934 in 0 : vector<1x128xf32>, vector<3x128xf32> -> vector<4x128xf32>
    %cst_296 = arith.constant 0.000000e+00 : f32
    %936 = vector.broadcast %cst_296 : f32 to vector<4x128xf32>
    %937 = arith.select %651, %935, %936 : vector<4x128xi1>, vector<4x128xf32>
    %938 = vector.extract_strided_slice %908 {offsets = [3, 0], sizes = [1, 128], strides = [1, 1]} : vector<9x128xf32> to vector<1x128xf32>
    %939 = vector.broadcast %938 : vector<1x128xf32> to vector<4x128xf32>
    %940 = arith.mulf %937, %939 : vector<4x128xf32>
    %941 = arith.addf %932, %940 : vector<4x128xf32>
    %942 = vector.extract_strided_slice %908 {offsets = [4, 0], sizes = [1, 128], strides = [1, 1]} : vector<9x128xf32> to vector<1x128xf32>
    %943 = vector.broadcast %942 : vector<1x128xf32> to vector<4x128xf32>
    %944 = arith.mulf %906, %943 : vector<4x128xf32>
    %945 = arith.addf %941, %944 : vector<4x128xf32>
    %cst_297 = arith.constant 0.000000e+00 : f32
    %946 = vector.broadcast %cst_297 : f32 to vector<1x128xf32>
    %947 = vector.extract_strided_slice %906 {offsets = [1, 0], sizes = [3, 128], strides = [1, 1]} : vector<4x128xf32> to vector<3x128xf32>
    %948 = tpu.concatenate %947, %946 in 0 : vector<3x128xf32>, vector<1x128xf32> -> vector<4x128xf32>
    %cst_298 = arith.constant 0.000000e+00 : f32
    %949 = vector.broadcast %cst_298 : f32 to vector<4x128xf32>
    %950 = arith.select %653, %948, %949 : vector<4x128xi1>, vector<4x128xf32>
    %951 = vector.extract_strided_slice %908 {offsets = [5, 0], sizes = [1, 128], strides = [1, 1]} : vector<9x128xf32> to vector<1x128xf32>
    %952 = vector.broadcast %951 : vector<1x128xf32> to vector<4x128xf32>
    %953 = arith.mulf %950, %952 : vector<4x128xf32>
    %954 = arith.addf %945, %953 : vector<4x128xf32>
    %cst_299 = arith.constant 0.000000e+00 : f32
    %955 = vector.broadcast %cst_299 : f32 to vector<1x128xf32>
    %956 = vector.extract_strided_slice %906 {offsets = [1, 0], sizes = [3, 128], strides = [1, 1]} : vector<4x128xf32> to vector<3x128xf32>
    %957 = tpu.concatenate %956, %955 in 0 : vector<3x128xf32>, vector<1x128xf32> -> vector<4x128xf32>
    %cst_300 = arith.constant 0.000000e+00 : f32
    %958 = vector.broadcast %cst_300 : f32 to vector<4x128xf32>
    %959 = arith.select %651, %957, %958 : vector<4x128xi1>, vector<4x128xf32>
    %960 = vector.extract_strided_slice %908 {offsets = [6, 0], sizes = [1, 128], strides = [1, 1]} : vector<9x128xf32> to vector<1x128xf32>
    %961 = vector.broadcast %960 : vector<1x128xf32> to vector<4x128xf32>
    %962 = arith.mulf %959, %961 : vector<4x128xf32>
    %963 = arith.addf %954, %962 : vector<4x128xf32>
    %cst_301 = arith.constant 0.000000e+00 : f32
    %964 = vector.broadcast %cst_301 : f32 to vector<2x128xf32>
    %965 = vector.extract_strided_slice %906 {offsets = [2, 0], sizes = [2, 128], strides = [1, 1]} : vector<4x128xf32> to vector<2x128xf32>
    %966 = tpu.concatenate %965, %964 in 0 : vector<2x128xf32>, vector<2x128xf32> -> vector<4x128xf32>
    %967 = vector.extract_strided_slice %908 {offsets = [7, 0], sizes = [1, 128], strides = [1, 1]} : vector<9x128xf32> to vector<1x128xf32>
    %968 = vector.broadcast %967 : vector<1x128xf32> to vector<4x128xf32>
    %969 = arith.mulf %966, %968 : vector<4x128xf32>
    %970 = arith.addf %963, %969 : vector<4x128xf32>
    %cst_302 = arith.constant 0.000000e+00 : f32
    %971 = vector.broadcast %cst_302 : f32 to vector<3x128xf32>
    %972 = vector.extract_strided_slice %906 {offsets = [3, 0], sizes = [1, 128], strides = [1, 1]} : vector<4x128xf32> to vector<1x128xf32>
    %973 = tpu.concatenate %972, %971 in 0 : vector<1x128xf32>, vector<3x128xf32> -> vector<4x128xf32>
    %cst_303 = arith.constant 0.000000e+00 : f32
    %974 = vector.broadcast %cst_303 : f32 to vector<4x128xf32>
    %975 = arith.select %653, %973, %974 : vector<4x128xi1>, vector<4x128xf32>
    %976 = vector.extract_strided_slice %908 {offsets = [8, 0], sizes = [1, 128], strides = [1, 1]} : vector<9x128xf32> to vector<1x128xf32>
    %977 = vector.broadcast %976 : vector<1x128xf32> to vector<4x128xf32>
    %978 = arith.mulf %975, %977 : vector<4x128xf32>
    %979 = arith.addf %970, %978 : vector<4x128xf32>
    %c9_304 = arith.constant 9 : index
    %c0_305 = arith.constant 0 : index
    %980 = vector.load %arg5[%c9_304, %c0_305] : memref<16x128xf32, #tpu.memory_space<vmem>>, vector<1x128xf32>
    %981 = vector.broadcast %980 : vector<1x128xf32> to vector<4x128xf32>
    %982 = arith.addf %979, %981 : vector<4x128xf32>
    %c9_306 = arith.constant 9 : index
    %c0_307 = arith.constant 0 : index
    %c0_308 = arith.constant 0 : index
    %983 = vector.load %arg6[%c9_306, %c0_307, %c0_308] : memref<16x128x128xf32, #tpu.memory_space<vmem>>, vector<1x128x128xf32>
    %984 = vector.shape_cast %983 : vector<1x128x128xf32> to vector<128x128xf32>
    %cst_309 = arith.constant dense<0.000000e+00> : vector<4x128xf32>
    %985 = tpu.matmul %982, %984, %cst_309 {dimension_numbers = #tpu.dot_dimension_numbers<[1], [0], [0], [1], [0, 0, 1, 1], [], []>} : vector<4x128xf32>, vector<128x128xf32>, vector<4x128xf32> -> vector<4x128xf32>
    %c9_310 = arith.constant 9 : index
    %c0_311 = arith.constant 0 : index
    %986 = vector.load %arg7[%c9_310, %c0_311] : memref<16x128xf32, #tpu.memory_space<vmem>>, vector<1x128xf32>
    %987 = vector.broadcast %986 : vector<1x128xf32> to vector<4x128xf32>
    %988 = arith.addf %985, %987 : vector<4x128xf32>
    %989 = arith.addf %988, %906 : vector<4x128xf32>
    %cst_312 = arith.constant 0.000000e+00 : f32
    %990 = vector.broadcast %cst_312 : f32 to vector<4x128xf32>
    %991 = arith.maximumf %989, %990 : vector<4x128xf32>
    %c10 = arith.constant 10 : index
    %c0_313 = arith.constant 0 : index
    %c0_314 = arith.constant 0 : index
    %992 = vector.load %arg4[%c10, %c0_313, %c0_314] : memref<16x9x128xf32, #tpu.memory_space<vmem>>, vector<1x9x128xf32>
    %993 = vector.shape_cast %992 : vector<1x9x128xf32> to vector<9x128xf32>
    %cst_315 = arith.constant 0.000000e+00 : f32
    %994 = vector.broadcast %cst_315 : f32 to vector<3x128xf32>
    %995 = vector.extract_strided_slice %991 {offsets = [0, 0], sizes = [1, 128], strides = [1, 1]} : vector<4x128xf32> to vector<1x128xf32>
    %996 = tpu.concatenate %994, %995 in 0 : vector<3x128xf32>, vector<1x128xf32> -> vector<4x128xf32>
    %cst_316 = arith.constant 0.000000e+00 : f32
    %997 = vector.broadcast %cst_316 : f32 to vector<4x128xf32>
    %998 = arith.select %651, %996, %997 : vector<4x128xi1>, vector<4x128xf32>
    %999 = vector.extract_strided_slice %993 {offsets = [0, 0], sizes = [1, 128], strides = [1, 1]} : vector<9x128xf32> to vector<1x128xf32>
    %1000 = vector.broadcast %999 : vector<1x128xf32> to vector<4x128xf32>
    %1001 = arith.mulf %998, %1000 : vector<4x128xf32>
    %cst_317 = arith.constant 0.000000e+00 : f32
    %1002 = vector.broadcast %cst_317 : f32 to vector<2x128xf32>
    %1003 = vector.extract_strided_slice %991 {offsets = [0, 0], sizes = [2, 128], strides = [1, 1]} : vector<4x128xf32> to vector<2x128xf32>
    %1004 = tpu.concatenate %1002, %1003 in 0 : vector<2x128xf32>, vector<2x128xf32> -> vector<4x128xf32>
    %1005 = vector.extract_strided_slice %993 {offsets = [1, 0], sizes = [1, 128], strides = [1, 1]} : vector<9x128xf32> to vector<1x128xf32>
    %1006 = vector.broadcast %1005 : vector<1x128xf32> to vector<4x128xf32>
    %1007 = arith.mulf %1004, %1006 : vector<4x128xf32>
    %1008 = arith.addf %1001, %1007 : vector<4x128xf32>
    %cst_318 = arith.constant 0.000000e+00 : f32
    %1009 = vector.broadcast %cst_318 : f32 to vector<1x128xf32>
    %1010 = vector.extract_strided_slice %991 {offsets = [0, 0], sizes = [3, 128], strides = [1, 1]} : vector<4x128xf32> to vector<3x128xf32>
    %1011 = tpu.concatenate %1009, %1010 in 0 : vector<1x128xf32>, vector<3x128xf32> -> vector<4x128xf32>
    %cst_319 = arith.constant 0.000000e+00 : f32
    %1012 = vector.broadcast %cst_319 : f32 to vector<4x128xf32>
    %1013 = arith.select %653, %1011, %1012 : vector<4x128xi1>, vector<4x128xf32>
    %1014 = vector.extract_strided_slice %993 {offsets = [2, 0], sizes = [1, 128], strides = [1, 1]} : vector<9x128xf32> to vector<1x128xf32>
    %1015 = vector.broadcast %1014 : vector<1x128xf32> to vector<4x128xf32>
    %1016 = arith.mulf %1013, %1015 : vector<4x128xf32>
    %1017 = arith.addf %1008, %1016 : vector<4x128xf32>
    %cst_320 = arith.constant 0.000000e+00 : f32
    %1018 = vector.broadcast %cst_320 : f32 to vector<1x128xf32>
    %1019 = vector.extract_strided_slice %991 {offsets = [0, 0], sizes = [3, 128], strides = [1, 1]} : vector<4x128xf32> to vector<3x128xf32>
    %1020 = tpu.concatenate %1018, %1019 in 0 : vector<1x128xf32>, vector<3x128xf32> -> vector<4x128xf32>
    %cst_321 = arith.constant 0.000000e+00 : f32
    %1021 = vector.broadcast %cst_321 : f32 to vector<4x128xf32>
    %1022 = arith.select %651, %1020, %1021 : vector<4x128xi1>, vector<4x128xf32>
    %1023 = vector.extract_strided_slice %993 {offsets = [3, 0], sizes = [1, 128], strides = [1, 1]} : vector<9x128xf32> to vector<1x128xf32>
    %1024 = vector.broadcast %1023 : vector<1x128xf32> to vector<4x128xf32>
    %1025 = arith.mulf %1022, %1024 : vector<4x128xf32>
    %1026 = arith.addf %1017, %1025 : vector<4x128xf32>
    %1027 = vector.extract_strided_slice %993 {offsets = [4, 0], sizes = [1, 128], strides = [1, 1]} : vector<9x128xf32> to vector<1x128xf32>
    %1028 = vector.broadcast %1027 : vector<1x128xf32> to vector<4x128xf32>
    %1029 = arith.mulf %991, %1028 : vector<4x128xf32>
    %1030 = arith.addf %1026, %1029 : vector<4x128xf32>
    %cst_322 = arith.constant 0.000000e+00 : f32
    %1031 = vector.broadcast %cst_322 : f32 to vector<1x128xf32>
    %1032 = vector.extract_strided_slice %991 {offsets = [1, 0], sizes = [3, 128], strides = [1, 1]} : vector<4x128xf32> to vector<3x128xf32>
    %1033 = tpu.concatenate %1032, %1031 in 0 : vector<3x128xf32>, vector<1x128xf32> -> vector<4x128xf32>
    %cst_323 = arith.constant 0.000000e+00 : f32
    %1034 = vector.broadcast %cst_323 : f32 to vector<4x128xf32>
    %1035 = arith.select %653, %1033, %1034 : vector<4x128xi1>, vector<4x128xf32>
    %1036 = vector.extract_strided_slice %993 {offsets = [5, 0], sizes = [1, 128], strides = [1, 1]} : vector<9x128xf32> to vector<1x128xf32>
    %1037 = vector.broadcast %1036 : vector<1x128xf32> to vector<4x128xf32>
    %1038 = arith.mulf %1035, %1037 : vector<4x128xf32>
    %1039 = arith.addf %1030, %1038 : vector<4x128xf32>
    %cst_324 = arith.constant 0.000000e+00 : f32
    %1040 = vector.broadcast %cst_324 : f32 to vector<1x128xf32>
    %1041 = vector.extract_strided_slice %991 {offsets = [1, 0], sizes = [3, 128], strides = [1, 1]} : vector<4x128xf32> to vector<3x128xf32>
    %1042 = tpu.concatenate %1041, %1040 in 0 : vector<3x128xf32>, vector<1x128xf32> -> vector<4x128xf32>
    %cst_325 = arith.constant 0.000000e+00 : f32
    %1043 = vector.broadcast %cst_325 : f32 to vector<4x128xf32>
    %1044 = arith.select %651, %1042, %1043 : vector<4x128xi1>, vector<4x128xf32>
    %1045 = vector.extract_strided_slice %993 {offsets = [6, 0], sizes = [1, 128], strides = [1, 1]} : vector<9x128xf32> to vector<1x128xf32>
    %1046 = vector.broadcast %1045 : vector<1x128xf32> to vector<4x128xf32>
    %1047 = arith.mulf %1044, %1046 : vector<4x128xf32>
    %1048 = arith.addf %1039, %1047 : vector<4x128xf32>
    %cst_326 = arith.constant 0.000000e+00 : f32
    %1049 = vector.broadcast %cst_326 : f32 to vector<2x128xf32>
    %1050 = vector.extract_strided_slice %991 {offsets = [2, 0], sizes = [2, 128], strides = [1, 1]} : vector<4x128xf32> to vector<2x128xf32>
    %1051 = tpu.concatenate %1050, %1049 in 0 : vector<2x128xf32>, vector<2x128xf32> -> vector<4x128xf32>
    %1052 = vector.extract_strided_slice %993 {offsets = [7, 0], sizes = [1, 128], strides = [1, 1]} : vector<9x128xf32> to vector<1x128xf32>
    %1053 = vector.broadcast %1052 : vector<1x128xf32> to vector<4x128xf32>
    %1054 = arith.mulf %1051, %1053 : vector<4x128xf32>
    %1055 = arith.addf %1048, %1054 : vector<4x128xf32>
    %cst_327 = arith.constant 0.000000e+00 : f32
    %1056 = vector.broadcast %cst_327 : f32 to vector<3x128xf32>
    %1057 = vector.extract_strided_slice %991 {offsets = [3, 0], sizes = [1, 128], strides = [1, 1]} : vector<4x128xf32> to vector<1x128xf32>
    %1058 = tpu.concatenate %1057, %1056 in 0 : vector<1x128xf32>, vector<3x128xf32> -> vector<4x128xf32>
    %cst_328 = arith.constant 0.000000e+00 : f32
    %1059 = vector.broadcast %cst_328 : f32 to vector<4x128xf32>
    %1060 = arith.select %653, %1058, %1059 : vector<4x128xi1>, vector<4x128xf32>
    %1061 = vector.extract_strided_slice %993 {offsets = [8, 0], sizes = [1, 128], strides = [1, 1]} : vector<9x128xf32> to vector<1x128xf32>
    %1062 = vector.broadcast %1061 : vector<1x128xf32> to vector<4x128xf32>
    %1063 = arith.mulf %1060, %1062 : vector<4x128xf32>
    %1064 = arith.addf %1055, %1063 : vector<4x128xf32>
    %c10_329 = arith.constant 10 : index
    %c0_330 = arith.constant 0 : index
    %1065 = vector.load %arg5[%c10_329, %c0_330] : memref<16x128xf32, #tpu.memory_space<vmem>>, vector<1x128xf32>
    %1066 = vector.broadcast %1065 : vector<1x128xf32> to vector<4x128xf32>
    %1067 = arith.addf %1064, %1066 : vector<4x128xf32>
    %c10_331 = arith.constant 10 : index
    %c0_332 = arith.constant 0 : index
    %c0_333 = arith.constant 0 : index
    %1068 = vector.load %arg6[%c10_331, %c0_332, %c0_333] : memref<16x128x128xf32, #tpu.memory_space<vmem>>, vector<1x128x128xf32>
    %1069 = vector.shape_cast %1068 : vector<1x128x128xf32> to vector<128x128xf32>
    %cst_334 = arith.constant dense<0.000000e+00> : vector<4x128xf32>
    %1070 = tpu.matmul %1067, %1069, %cst_334 {dimension_numbers = #tpu.dot_dimension_numbers<[1], [0], [0], [1], [0, 0, 1, 1], [], []>} : vector<4x128xf32>, vector<128x128xf32>, vector<4x128xf32> -> vector<4x128xf32>
    %c10_335 = arith.constant 10 : index
    %c0_336 = arith.constant 0 : index
    %1071 = vector.load %arg7[%c10_335, %c0_336] : memref<16x128xf32, #tpu.memory_space<vmem>>, vector<1x128xf32>
    %1072 = vector.broadcast %1071 : vector<1x128xf32> to vector<4x128xf32>
    %1073 = arith.addf %1070, %1072 : vector<4x128xf32>
    %1074 = arith.addf %1073, %991 : vector<4x128xf32>
    %cst_337 = arith.constant 0.000000e+00 : f32
    %1075 = vector.broadcast %cst_337 : f32 to vector<4x128xf32>
    %1076 = arith.maximumf %1074, %1075 : vector<4x128xf32>
    %c11 = arith.constant 11 : index
    %c0_338 = arith.constant 0 : index
    %c0_339 = arith.constant 0 : index
    %1077 = vector.load %arg4[%c11, %c0_338, %c0_339] : memref<16x9x128xf32, #tpu.memory_space<vmem>>, vector<1x9x128xf32>
    %1078 = vector.shape_cast %1077 : vector<1x9x128xf32> to vector<9x128xf32>
    %cst_340 = arith.constant 0.000000e+00 : f32
    %1079 = vector.broadcast %cst_340 : f32 to vector<3x128xf32>
    %1080 = vector.extract_strided_slice %1076 {offsets = [0, 0], sizes = [1, 128], strides = [1, 1]} : vector<4x128xf32> to vector<1x128xf32>
    %1081 = tpu.concatenate %1079, %1080 in 0 : vector<3x128xf32>, vector<1x128xf32> -> vector<4x128xf32>
    %cst_341 = arith.constant 0.000000e+00 : f32
    %1082 = vector.broadcast %cst_341 : f32 to vector<4x128xf32>
    %1083 = arith.select %651, %1081, %1082 : vector<4x128xi1>, vector<4x128xf32>
    %1084 = vector.extract_strided_slice %1078 {offsets = [0, 0], sizes = [1, 128], strides = [1, 1]} : vector<9x128xf32> to vector<1x128xf32>
    %1085 = vector.broadcast %1084 : vector<1x128xf32> to vector<4x128xf32>
    %1086 = arith.mulf %1083, %1085 : vector<4x128xf32>
    %cst_342 = arith.constant 0.000000e+00 : f32
    %1087 = vector.broadcast %cst_342 : f32 to vector<2x128xf32>
    %1088 = vector.extract_strided_slice %1076 {offsets = [0, 0], sizes = [2, 128], strides = [1, 1]} : vector<4x128xf32> to vector<2x128xf32>
    %1089 = tpu.concatenate %1087, %1088 in 0 : vector<2x128xf32>, vector<2x128xf32> -> vector<4x128xf32>
    %1090 = vector.extract_strided_slice %1078 {offsets = [1, 0], sizes = [1, 128], strides = [1, 1]} : vector<9x128xf32> to vector<1x128xf32>
    %1091 = vector.broadcast %1090 : vector<1x128xf32> to vector<4x128xf32>
    %1092 = arith.mulf %1089, %1091 : vector<4x128xf32>
    %1093 = arith.addf %1086, %1092 : vector<4x128xf32>
    %cst_343 = arith.constant 0.000000e+00 : f32
    %1094 = vector.broadcast %cst_343 : f32 to vector<1x128xf32>
    %1095 = vector.extract_strided_slice %1076 {offsets = [0, 0], sizes = [3, 128], strides = [1, 1]} : vector<4x128xf32> to vector<3x128xf32>
    %1096 = tpu.concatenate %1094, %1095 in 0 : vector<1x128xf32>, vector<3x128xf32> -> vector<4x128xf32>
    %cst_344 = arith.constant 0.000000e+00 : f32
    %1097 = vector.broadcast %cst_344 : f32 to vector<4x128xf32>
    %1098 = arith.select %653, %1096, %1097 : vector<4x128xi1>, vector<4x128xf32>
    %1099 = vector.extract_strided_slice %1078 {offsets = [2, 0], sizes = [1, 128], strides = [1, 1]} : vector<9x128xf32> to vector<1x128xf32>
    %1100 = vector.broadcast %1099 : vector<1x128xf32> to vector<4x128xf32>
    %1101 = arith.mulf %1098, %1100 : vector<4x128xf32>
    %1102 = arith.addf %1093, %1101 : vector<4x128xf32>
    %cst_345 = arith.constant 0.000000e+00 : f32
    %1103 = vector.broadcast %cst_345 : f32 to vector<1x128xf32>
    %1104 = vector.extract_strided_slice %1076 {offsets = [0, 0], sizes = [3, 128], strides = [1, 1]} : vector<4x128xf32> to vector<3x128xf32>
    %1105 = tpu.concatenate %1103, %1104 in 0 : vector<1x128xf32>, vector<3x128xf32> -> vector<4x128xf32>
    %cst_346 = arith.constant 0.000000e+00 : f32
    %1106 = vector.broadcast %cst_346 : f32 to vector<4x128xf32>
    %1107 = arith.select %651, %1105, %1106 : vector<4x128xi1>, vector<4x128xf32>
    %1108 = vector.extract_strided_slice %1078 {offsets = [3, 0], sizes = [1, 128], strides = [1, 1]} : vector<9x128xf32> to vector<1x128xf32>
    %1109 = vector.broadcast %1108 : vector<1x128xf32> to vector<4x128xf32>
    %1110 = arith.mulf %1107, %1109 : vector<4x128xf32>
    %1111 = arith.addf %1102, %1110 : vector<4x128xf32>
    %1112 = vector.extract_strided_slice %1078 {offsets = [4, 0], sizes = [1, 128], strides = [1, 1]} : vector<9x128xf32> to vector<1x128xf32>
    %1113 = vector.broadcast %1112 : vector<1x128xf32> to vector<4x128xf32>
    %1114 = arith.mulf %1076, %1113 : vector<4x128xf32>
    %1115 = arith.addf %1111, %1114 : vector<4x128xf32>
    %cst_347 = arith.constant 0.000000e+00 : f32
    %1116 = vector.broadcast %cst_347 : f32 to vector<1x128xf32>
    %1117 = vector.extract_strided_slice %1076 {offsets = [1, 0], sizes = [3, 128], strides = [1, 1]} : vector<4x128xf32> to vector<3x128xf32>
    %1118 = tpu.concatenate %1117, %1116 in 0 : vector<3x128xf32>, vector<1x128xf32> -> vector<4x128xf32>
    %cst_348 = arith.constant 0.000000e+00 : f32
    %1119 = vector.broadcast %cst_348 : f32 to vector<4x128xf32>
    %1120 = arith.select %653, %1118, %1119 : vector<4x128xi1>, vector<4x128xf32>
    %1121 = vector.extract_strided_slice %1078 {offsets = [5, 0], sizes = [1, 128], strides = [1, 1]} : vector<9x128xf32> to vector<1x128xf32>
    %1122 = vector.broadcast %1121 : vector<1x128xf32> to vector<4x128xf32>
    %1123 = arith.mulf %1120, %1122 : vector<4x128xf32>
    %1124 = arith.addf %1115, %1123 : vector<4x128xf32>
    %cst_349 = arith.constant 0.000000e+00 : f32
    %1125 = vector.broadcast %cst_349 : f32 to vector<1x128xf32>
    %1126 = vector.extract_strided_slice %1076 {offsets = [1, 0], sizes = [3, 128], strides = [1, 1]} : vector<4x128xf32> to vector<3x128xf32>
    %1127 = tpu.concatenate %1126, %1125 in 0 : vector<3x128xf32>, vector<1x128xf32> -> vector<4x128xf32>
    %cst_350 = arith.constant 0.000000e+00 : f32
    %1128 = vector.broadcast %cst_350 : f32 to vector<4x128xf32>
    %1129 = arith.select %651, %1127, %1128 : vector<4x128xi1>, vector<4x128xf32>
    %1130 = vector.extract_strided_slice %1078 {offsets = [6, 0], sizes = [1, 128], strides = [1, 1]} : vector<9x128xf32> to vector<1x128xf32>
    %1131 = vector.broadcast %1130 : vector<1x128xf32> to vector<4x128xf32>
    %1132 = arith.mulf %1129, %1131 : vector<4x128xf32>
    %1133 = arith.addf %1124, %1132 : vector<4x128xf32>
    %cst_351 = arith.constant 0.000000e+00 : f32
    %1134 = vector.broadcast %cst_351 : f32 to vector<2x128xf32>
    %1135 = vector.extract_strided_slice %1076 {offsets = [2, 0], sizes = [2, 128], strides = [1, 1]} : vector<4x128xf32> to vector<2x128xf32>
    %1136 = tpu.concatenate %1135, %1134 in 0 : vector<2x128xf32>, vector<2x128xf32> -> vector<4x128xf32>
    %1137 = vector.extract_strided_slice %1078 {offsets = [7, 0], sizes = [1, 128], strides = [1, 1]} : vector<9x128xf32> to vector<1x128xf32>
    %1138 = vector.broadcast %1137 : vector<1x128xf32> to vector<4x128xf32>
    %1139 = arith.mulf %1136, %1138 : vector<4x128xf32>
    %1140 = arith.addf %1133, %1139 : vector<4x128xf32>
    %cst_352 = arith.constant 0.000000e+00 : f32
    %1141 = vector.broadcast %cst_352 : f32 to vector<3x128xf32>
    %1142 = vector.extract_strided_slice %1076 {offsets = [3, 0], sizes = [1, 128], strides = [1, 1]} : vector<4x128xf32> to vector<1x128xf32>
    %1143 = tpu.concatenate %1142, %1141 in 0 : vector<1x128xf32>, vector<3x128xf32> -> vector<4x128xf32>
    %cst_353 = arith.constant 0.000000e+00 : f32
    %1144 = vector.broadcast %cst_353 : f32 to vector<4x128xf32>
    %1145 = arith.select %653, %1143, %1144 : vector<4x128xi1>, vector<4x128xf32>
    %1146 = vector.extract_strided_slice %1078 {offsets = [8, 0], sizes = [1, 128], strides = [1, 1]} : vector<9x128xf32> to vector<1x128xf32>
    %1147 = vector.broadcast %1146 : vector<1x128xf32> to vector<4x128xf32>
    %1148 = arith.mulf %1145, %1147 : vector<4x128xf32>
    %1149 = arith.addf %1140, %1148 : vector<4x128xf32>
    %c11_354 = arith.constant 11 : index
    %c0_355 = arith.constant 0 : index
    %1150 = vector.load %arg5[%c11_354, %c0_355] : memref<16x128xf32, #tpu.memory_space<vmem>>, vector<1x128xf32>
    %1151 = vector.broadcast %1150 : vector<1x128xf32> to vector<4x128xf32>
    %1152 = arith.addf %1149, %1151 : vector<4x128xf32>
    %c11_356 = arith.constant 11 : index
    %c0_357 = arith.constant 0 : index
    %c0_358 = arith.constant 0 : index
    %1153 = vector.load %arg6[%c11_356, %c0_357, %c0_358] : memref<16x128x128xf32, #tpu.memory_space<vmem>>, vector<1x128x128xf32>
    %1154 = vector.shape_cast %1153 : vector<1x128x128xf32> to vector<128x128xf32>
    %cst_359 = arith.constant dense<0.000000e+00> : vector<4x128xf32>
    %1155 = tpu.matmul %1152, %1154, %cst_359 {dimension_numbers = #tpu.dot_dimension_numbers<[1], [0], [0], [1], [0, 0, 1, 1], [], []>} : vector<4x128xf32>, vector<128x128xf32>, vector<4x128xf32> -> vector<4x128xf32>
    %c11_360 = arith.constant 11 : index
    %c0_361 = arith.constant 0 : index
    %1156 = vector.load %arg7[%c11_360, %c0_361] : memref<16x128xf32, #tpu.memory_space<vmem>>, vector<1x128xf32>
    %1157 = vector.broadcast %1156 : vector<1x128xf32> to vector<4x128xf32>
    %1158 = arith.addf %1155, %1157 : vector<4x128xf32>
    %cst_362 = arith.constant 0.000000e+00 : f32
    %1159 = vector.broadcast %cst_362 : f32 to vector<1x128xf32>
    %1160 = vector.extract_strided_slice %1076 {offsets = [1, 0], sizes = [3, 128], strides = [1, 1]} : vector<4x128xf32> to vector<3x128xf32>
    %1161 = tpu.concatenate %1160, %1159 in 0 : vector<3x128xf32>, vector<1x128xf32> -> vector<4x128xf32>
    %1162 = arith.maximumf %1076, %1161 : vector<4x128xf32>
    %cst_363 = arith.constant 0.000000e+00 : f32
    %1163 = vector.broadcast %cst_363 : f32 to vector<2x128xf32>
    %1164 = vector.extract_strided_slice %1076 {offsets = [2, 0], sizes = [2, 128], strides = [1, 1]} : vector<4x128xf32> to vector<2x128xf32>
    %1165 = tpu.concatenate %1164, %1163 in 0 : vector<2x128xf32>, vector<2x128xf32> -> vector<4x128xf32>
    %cst_364 = arith.constant 0.000000e+00 : f32
    %1166 = vector.broadcast %cst_364 : f32 to vector<3x128xf32>
    %1167 = vector.extract_strided_slice %1076 {offsets = [3, 0], sizes = [1, 128], strides = [1, 1]} : vector<4x128xf32> to vector<1x128xf32>
    %1168 = tpu.concatenate %1167, %1166 in 0 : vector<1x128xf32>, vector<3x128xf32> -> vector<4x128xf32>
    %1169 = arith.maximumf %1165, %1168 : vector<4x128xf32>
    %1170 = arith.maximumf %1162, %1169 : vector<4x128xf32>
    %1171 = arith.addf %1158, %1170 : vector<4x128xf32>
    %cst_365 = arith.constant 0.000000e+00 : f32
    %1172 = vector.broadcast %cst_365 : f32 to vector<4x128xf32>
    %1173 = arith.maximumf %1171, %1172 : vector<4x128xf32>
    %1174 = vector.extract_strided_slice %1173 {offsets = [0, 0], sizes = [1, 128], strides = [1, 1]} : vector<4x128xf32> to vector<1x128xf32>
    %c12 = arith.constant 12 : index
    %c0_366 = arith.constant 0 : index
    %c0_367 = arith.constant 0 : index
    %1175 = vector.load %arg4[%c12, %c0_366, %c0_367] : memref<16x9x128xf32, #tpu.memory_space<vmem>>, vector<1x9x128xf32>
    %1176 = vector.shape_cast %1175 : vector<1x9x128xf32> to vector<9x128xf32>
    %1177 = vector.extract_strided_slice %1176 {offsets = [4, 0], sizes = [1, 128], strides = [1, 1]} : vector<9x128xf32> to vector<1x128xf32>
    %1178 = arith.mulf %1174, %1177 : vector<1x128xf32>
    %c12_368 = arith.constant 12 : index
    %c0_369 = arith.constant 0 : index
    %1179 = vector.load %arg5[%c12_368, %c0_369] : memref<16x128xf32, #tpu.memory_space<vmem>>, vector<1x128xf32>
    %1180 = arith.addf %1178, %1179 : vector<1x128xf32>
    %c12_370 = arith.constant 12 : index
    %c0_371 = arith.constant 0 : index
    %c0_372 = arith.constant 0 : index
    %1181 = vector.load %arg6[%c12_370, %c0_371, %c0_372] : memref<16x128x128xf32, #tpu.memory_space<vmem>>, vector<1x128x128xf32>
    %1182 = vector.shape_cast %1181 : vector<1x128x128xf32> to vector<128x128xf32>
    %cst_373 = arith.constant dense<0.000000e+00> : vector<1x128xf32>
    %1183 = tpu.matmul %1180, %1182, %cst_373 {dimension_numbers = #tpu.dot_dimension_numbers<[1], [0], [0], [1], [0, 0, 1, 1], [], []>} : vector<1x128xf32>, vector<128x128xf32>, vector<1x128xf32> -> vector<1x128xf32>
    %c12_374 = arith.constant 12 : index
    %c0_375 = arith.constant 0 : index
    %1184 = vector.load %arg7[%c12_374, %c0_375] : memref<16x128xf32, #tpu.memory_space<vmem>>, vector<1x128xf32>
    %1185 = arith.addf %1183, %1184 : vector<1x128xf32>
    %1186 = arith.addf %1185, %1174 : vector<1x128xf32>
    %cst_376 = arith.constant 0.000000e+00 : f32
    %1187 = vector.broadcast %cst_376 : f32 to vector<1x128xf32>
    %1188 = arith.maximumf %1186, %1187 : vector<1x128xf32>
    %c13 = arith.constant 13 : index
    %c0_377 = arith.constant 0 : index
    %c0_378 = arith.constant 0 : index
    %1189 = vector.load %arg4[%c13, %c0_377, %c0_378] : memref<16x9x128xf32, #tpu.memory_space<vmem>>, vector<1x9x128xf32>
    %1190 = vector.shape_cast %1189 : vector<1x9x128xf32> to vector<9x128xf32>
    %1191 = vector.extract_strided_slice %1190 {offsets = [4, 0], sizes = [1, 128], strides = [1, 1]} : vector<9x128xf32> to vector<1x128xf32>
    %1192 = arith.mulf %1188, %1191 : vector<1x128xf32>
    %c13_379 = arith.constant 13 : index
    %c0_380 = arith.constant 0 : index
    %1193 = vector.load %arg5[%c13_379, %c0_380] : memref<16x128xf32, #tpu.memory_space<vmem>>, vector<1x128xf32>
    %1194 = arith.addf %1192, %1193 : vector<1x128xf32>
    %c13_381 = arith.constant 13 : index
    %c0_382 = arith.constant 0 : index
    %c0_383 = arith.constant 0 : index
    %1195 = vector.load %arg6[%c13_381, %c0_382, %c0_383] : memref<16x128x128xf32, #tpu.memory_space<vmem>>, vector<1x128x128xf32>
    %1196 = vector.shape_cast %1195 : vector<1x128x128xf32> to vector<128x128xf32>
    %cst_384 = arith.constant dense<0.000000e+00> : vector<1x128xf32>
    %1197 = tpu.matmul %1194, %1196, %cst_384 {dimension_numbers = #tpu.dot_dimension_numbers<[1], [0], [0], [1], [0, 0, 1, 1], [], []>} : vector<1x128xf32>, vector<128x128xf32>, vector<1x128xf32> -> vector<1x128xf32>
    %c13_385 = arith.constant 13 : index
    %c0_386 = arith.constant 0 : index
    %1198 = vector.load %arg7[%c13_385, %c0_386] : memref<16x128xf32, #tpu.memory_space<vmem>>, vector<1x128xf32>
    %1199 = arith.addf %1197, %1198 : vector<1x128xf32>
    %1200 = arith.addf %1199, %1188 : vector<1x128xf32>
    %cst_387 = arith.constant 0.000000e+00 : f32
    %1201 = vector.broadcast %cst_387 : f32 to vector<1x128xf32>
    %1202 = arith.maximumf %1200, %1201 : vector<1x128xf32>
    %c14 = arith.constant 14 : index
    %c0_388 = arith.constant 0 : index
    %c0_389 = arith.constant 0 : index
    %1203 = vector.load %arg4[%c14, %c0_388, %c0_389] : memref<16x9x128xf32, #tpu.memory_space<vmem>>, vector<1x9x128xf32>
    %1204 = vector.shape_cast %1203 : vector<1x9x128xf32> to vector<9x128xf32>
    %1205 = vector.extract_strided_slice %1204 {offsets = [4, 0], sizes = [1, 128], strides = [1, 1]} : vector<9x128xf32> to vector<1x128xf32>
    %1206 = arith.mulf %1202, %1205 : vector<1x128xf32>
    %c14_390 = arith.constant 14 : index
    %c0_391 = arith.constant 0 : index
    %1207 = vector.load %arg5[%c14_390, %c0_391] : memref<16x128xf32, #tpu.memory_space<vmem>>, vector<1x128xf32>
    %1208 = arith.addf %1206, %1207 : vector<1x128xf32>
    %c14_392 = arith.constant 14 : index
    %c0_393 = arith.constant 0 : index
    %c0_394 = arith.constant 0 : index
    %1209 = vector.load %arg6[%c14_392, %c0_393, %c0_394] : memref<16x128x128xf32, #tpu.memory_space<vmem>>, vector<1x128x128xf32>
    %1210 = vector.shape_cast %1209 : vector<1x128x128xf32> to vector<128x128xf32>
    %cst_395 = arith.constant dense<0.000000e+00> : vector<1x128xf32>
    %1211 = tpu.matmul %1208, %1210, %cst_395 {dimension_numbers = #tpu.dot_dimension_numbers<[1], [0], [0], [1], [0, 0, 1, 1], [], []>} : vector<1x128xf32>, vector<128x128xf32>, vector<1x128xf32> -> vector<1x128xf32>
    %c14_396 = arith.constant 14 : index
    %c0_397 = arith.constant 0 : index
    %1212 = vector.load %arg7[%c14_396, %c0_397] : memref<16x128xf32, #tpu.memory_space<vmem>>, vector<1x128xf32>
    %1213 = arith.addf %1211, %1212 : vector<1x128xf32>
    %1214 = arith.addf %1213, %1202 : vector<1x128xf32>
    %cst_398 = arith.constant 0.000000e+00 : f32
    %1215 = vector.broadcast %cst_398 : f32 to vector<1x128xf32>
    %1216 = arith.maximumf %1214, %1215 : vector<1x128xf32>
    %c15 = arith.constant 15 : index
    %c0_399 = arith.constant 0 : index
    %c0_400 = arith.constant 0 : index
    %1217 = vector.load %arg4[%c15, %c0_399, %c0_400] : memref<16x9x128xf32, #tpu.memory_space<vmem>>, vector<1x9x128xf32>
    %1218 = vector.shape_cast %1217 : vector<1x9x128xf32> to vector<9x128xf32>
    %1219 = vector.extract_strided_slice %1218 {offsets = [4, 0], sizes = [1, 128], strides = [1, 1]} : vector<9x128xf32> to vector<1x128xf32>
    %1220 = arith.mulf %1216, %1219 : vector<1x128xf32>
    %c15_401 = arith.constant 15 : index
    %c0_402 = arith.constant 0 : index
    %1221 = vector.load %arg5[%c15_401, %c0_402] : memref<16x128xf32, #tpu.memory_space<vmem>>, vector<1x128xf32>
    %1222 = arith.addf %1220, %1221 : vector<1x128xf32>
    %c15_403 = arith.constant 15 : index
    %c0_404 = arith.constant 0 : index
    %c0_405 = arith.constant 0 : index
    %1223 = vector.load %arg6[%c15_403, %c0_404, %c0_405] : memref<16x128x128xf32, #tpu.memory_space<vmem>>, vector<1x128x128xf32>
    %1224 = vector.shape_cast %1223 : vector<1x128x128xf32> to vector<128x128xf32>
    %cst_406 = arith.constant dense<0.000000e+00> : vector<1x128xf32>
    %1225 = tpu.matmul %1222, %1224, %cst_406 {dimension_numbers = #tpu.dot_dimension_numbers<[1], [0], [0], [1], [0, 0, 1, 1], [], []>} : vector<1x128xf32>, vector<128x128xf32>, vector<1x128xf32> -> vector<1x128xf32>
    %c15_407 = arith.constant 15 : index
    %c0_408 = arith.constant 0 : index
    %1226 = vector.load %arg7[%c15_407, %c0_408] : memref<16x128xf32, #tpu.memory_space<vmem>>, vector<1x128xf32>
    %1227 = arith.addf %1225, %1226 : vector<1x128xf32>
    %1228 = arith.addf %1227, %1216 : vector<1x128xf32>
    %cst_409 = arith.constant 0.000000e+00 : f32
    %1229 = vector.broadcast %cst_409 : f32 to vector<1x128xf32>
    %1230 = arith.maximumf %1228, %1229 : vector<1x128xf32>
    %c0_410 = arith.constant 0 : index
    %c0_411 = arith.constant 0 : index
    %c0_412 = arith.constant 0 : index
    %1231 = vector.load %arg8[%c0_410, %c0_411, %c0_412] : memref<1x1x128xf32, #tpu.memory_space<vmem>>, vector<1x1x128xf32>
    %1232 = vector.shape_cast %1231 : vector<1x1x128xf32> to vector<1x128xf32>
    %1233 = vector.shape_cast %1230 : vector<1x128xf32> to vector<1x1x128xf32>
    tpu.vector_store %arg8[%c0_410, %c0_411, %c0_412], %1233 {strides = array<i32>} : memref<1x1x128xf32, #tpu.memory_space<vmem>>, vector<1x1x128xf32>,
    return
  }
  func.func @transform_0(%arg0: i32) -> (i32, i32, i32) {
    %c0_i32 = arith.constant 0 : i32
    %c0_i32_0 = arith.constant 0 : i32
    %c0_i32_1 = arith.constant 0 : i32
    return %arg0, %c0_i32, %c0_i32_0 : i32, i32, i32
  }
  func.func @transform_1(%arg0: i32) -> (i32, i32, i32) {
    %c0_i32 = arith.constant 0 : i32
    %c0_i32_0 = arith.constant 0 : i32
    %c0_i32_1 = arith.constant 0 : i32
    %c0_i32_2 = arith.constant 0 : i32
    return %c0_i32, %c0_i32_0, %c0_i32_1 : i32, i32, i32
  }
  func.func @transform_2(%arg0: i32) -> (i32, i32) {
    %c0_i32 = arith.constant 0 : i32
    %c0_i32_0 = arith.constant 0 : i32
    %c0_i32_1 = arith.constant 0 : i32
    return %c0_i32, %c0_i32_0 : i32, i32
  }
  func.func @transform_3(%arg0: i32) -> (i32, i32, i32) {
    %c0_i32 = arith.constant 0 : i32
    %c0_i32_0 = arith.constant 0 : i32
    %c0_i32_1 = arith.constant 0 : i32
    %c0_i32_2 = arith.constant 0 : i32
    return %c0_i32, %c0_i32_0, %c0_i32_1 : i32, i32, i32
  }
  func.func @transform_4(%arg0: i32) -> (i32, i32) {
    %c0_i32 = arith.constant 0 : i32
    %c0_i32_0 = arith.constant 0 : i32
    %c0_i32_1 = arith.constant 0 : i32
    return %c0_i32, %c0_i32_0 : i32, i32
  }
  func.func @transform_5(%arg0: i32) -> (i32, i32, i32) {
    %c0_i32 = arith.constant 0 : i32
    %c0_i32_0 = arith.constant 0 : i32
    %c0_i32_1 = arith.constant 0 : i32
    %c0_i32_2 = arith.constant 0 : i32
    return %c0_i32, %c0_i32_0, %c0_i32_1 : i32, i32, i32
  }
  func.func @transform_6(%arg0: i32) -> (i32, i32) {
    %c0_i32 = arith.constant 0 : i32
    %c0_i32_0 = arith.constant 0 : i32
    %c0_i32_1 = arith.constant 0 : i32
    return %c0_i32, %c0_i32_0 : i32, i32
  }
  func.func @transform_7(%arg0: i32) -> (i32, i32, i32) {
    %c0_i32 = arith.constant 0 : i32
    %c0_i32_0 = arith.constant 0 : i32
    %c0_i32_1 = arith.constant 0 : i32
    return %arg0, %c0_i32, %c0_i32_0 : i32, i32, i32
  }
}

</mosaic_0001>

<llo_original>
// kernel: mediapipe_blazeface.1
$region0: #{mediapipe_blazeface.1}
  #allocation0 [shape = 'u32[]', space=smem, size = 0x4, offset = 0x4, fixed_abs, tag = 'smem constant byte address 0x4 - core index']
  #allocation1 [shape = 'u32[144,128]{1,0:T(1,128)}', space=vmem, size = 0x12000, scoped, tag = 'internal scratch']
  %s0 = inlined_call_operand.vmem [shape: f32[2,64,128], index: 0, kind: input, shape index: {}]
  %s1 = inlined_call_operand.hbm [shape: f32[9,128,128], index: 1, kind: input, shape index: {}]
  %s2 = inlined_call_operand.vmem [shape: f32[1,128], index: 2, kind: input, shape index: {}]
  %s3 = inlined_call_operand.vmem [shape: f32[16,9,128], index: 3, kind: input, shape index: {}]
  %s4 = inlined_call_operand.vmem [shape: f32[16,128], index: 4, kind: input, shape index: {}]
  %s5 = inlined_call_operand.vmem [shape: f32[16,128,128], index: 5, kind: input, shape index: {}]
  %s6 = inlined_call_operand.vmem [shape: f32[16,128], index: 6, kind: input, shape index: {}]
  %s7 = inlined_call_operand.vmem [shape: f32[2,1,128], index: 7, kind: output, shape index: {}]
  %s8 = sld [smem:[#allocation0]]
  $region65: #{mediapipe_blazeface.1} parent=0
    _
  %s10 = ssub.s32 1, %s8
  %s11 = scalar_select 0, %s10, %s8
  $region1: #{mediapipe_blazeface.1} parent=0
    #allocation2 [shape = 'u8[589824]{0}', space=vmem, size = 0x90000, scoped, tag = 'input window, operand 1, single buffered']
    #allocation3 [shape = 's32[2]{0}', space=sflag, size = 0x8, scoped, tag = 'scoped memory for mediapipe_blazeface.1']
    %12 = vsyncpa [#allocation3], 0
    loop: start=0, step=1, limit=4
    $region2: #{mediapipe_blazeface.1} parent=1 // loop_pre_header
      _
    $region3: #{mediapipe_blazeface.1} parent=1 // loop_header
      %s14 = sphi 0, %s18
      %p15 = scmp.ge.s32.totalorder %s14, 4
      %s24 = sphi 0, %s26
      %s27 = sphi 0, %s24
      %s28 = sphi 0, %s27
      %s44 = sphi 0, %s28
      %s48 = sphi 0, %s48
      %s50 = sphi 0, %s48
      %s51 = sphi 0, %s50
      %s65 = sphi 0, %s51
      %s69 = sphi 0, %s69
      %s71 = sphi 0, %s69
      %s72 = sphi 0, %s71
      %s86 = sphi 0, %s72
      %s90 = sphi 0, %s90
      %s92 = sphi 0, %s90
      %s93 = sphi 0, %s92
      %s107 = sphi 0, %s93
      %s111 = sphi 0, %s111
      %s113 = sphi 0, %s111
      %s114 = sphi 0, %s113
      %s128 = sphi 0, %s114
      %s132 = sphi 0, %s132
      %s134 = sphi 0, %s132
      %s135 = sphi 0, %s134
      %s149 = sphi 0, %s135
      %s153 = sphi 0, %s153
      %s155 = sphi 0, %s153
      %s156 = sphi 0, %s155
      %s170 = sphi 0, %s156
      %s176 = sphi 0, %s178
      %s179 = sphi 0, %s176
      %s180 = sphi 0, %s179
      %s196 = sphi 0, %s180
    $region4: #{mediapipe_blazeface.1} parent=1 // loop_header_branch
      %17 = sbr.rel (%p15) target = $region8
    $region5: #{mediapipe_blazeface.1} parent=1 // loop_body
      %s19 = ssub.s32 %s14, 1
      %s20 = ssub.s32 %s14, 2
      %s21 = sadd.s32 %s14, 1
      %s22 = ssub.s32 %s14, %s21
      %p23 = scmp.eq.s32.totalorder %s22, 0
      %s25 = sadd.s32 %s24, 1
      %s26 = scalar_select %p23, %s24, %s25
      %p29 = pneg %p23
      %p30 = scmp.eq.s32.totalorder %s14, 1
      %p31 = por %p29, %p30
      %p32 = scmp.ne.s32.totalorder %s24, %s27
      %p33 = scmp.eq.s32.totalorder %s14, 0
      %p34 = por %p32, %p33
      %p35 = scmp.ne.s32.totalorder %s24, %s27
      %p36 = scmp.eq.s32.totalorder %s19, 1
      %p37 = por %p35, %p36
      %p38 = scmp.ne.s32.totalorder %s27, %s28
      %p39 = scmp.eq.s32.totalorder %s19, 0
      %p40 = por %p38, %p39
      %p41 = scmp.ne.s32.totalorder %s27, %s28
      %p42 = scmp.eq.s32.totalorder %s20, 1
      %p43 = por %p41, %p42
      %p45 = scmp.ne.s32.totalorder %s28, %s44
      %p46 = scmp.eq.s32.totalorder %s20, 0
      %p47 = por %p45, %p46
      %s49 = sadd.s32 %s48, 1
      %p52 = scmp.eq.s32.totalorder %s14, 1
      %p53 = scmp.ne.s32.totalorder %s48, %s50
      %p54 = scmp.eq.s32.totalorder %s14, 0
      %p55 = por %p53, %p54
      %p56 = scmp.ne.s32.totalorder %s48, %s50
      %p57 = scmp.eq.s32.totalorder %s19, 1
      %p58 = por %p56, %p57
      %p59 = scmp.ne.s32.totalorder %s50, %s51
      %p60 = scmp.eq.s32.totalorder %s19, 0
      %p61 = por %p59, %p60
      %p62 = scmp.ne.s32.totalorder %s50, %s51
      %p63 = scmp.eq.s32.totalorder %s20, 1
      %p64 = por %p62, %p63
      %p66 = scmp.ne.s32.totalorder %s51, %s65
      %p67 = scmp.eq.s32.totalorder %s20, 0
      %p68 = por %p66, %p67
      %s70 = sadd.s32 %s69, 1
      %p73 = scmp.eq.s32.totalorder %s14, 1
      %p74 = scmp.ne.s32.totalorder %s69, %s71
      %p75 = scmp.eq.s32.totalorder %s14, 0
      %p76 = por %p74, %p75
      %p77 = scmp.ne.s32.totalorder %s69, %s71
      %p78 = scmp.eq.s32.totalorder %s19, 1
      %p79 = por %p77, %p78
      %p80 = scmp.ne.s32.totalorder %s71, %s72
      %p81 = scmp.eq.s32.totalorder %s19, 0
      %p82 = por %p80, %p81
      %p83 = scmp.ne.s32.totalorder %s71, %s72
      %p84 = scmp.eq.s32.totalorder %s20, 1
      %p85 = por %p83, %p84
      %p87 = scmp.ne.s32.totalorder %s72, %s86
      %p88 = scmp.eq.s32.totalorder %s20, 0
      %p89 = por %p87, %p88
      %s91 = sadd.s32 %s90, 1
      %p94 = scmp.eq.s32.totalorder %s14, 1
      %p95 = scmp.ne.s32.totalorder %s90, %s92
      %p96 = scmp.eq.s32.totalorder %s14, 0
      %p97 = por %p95, %p96
      %p98 = scmp.ne.s32.totalorder %s90, %s92
      %p99 = scmp.eq.s32.totalorder %s19, 1
      %p100 = por %p98, %p99
      %p101 = scmp.ne.s32.totalorder %s92, %s93
      %p102 = scmp.eq.s32.totalorder %s19, 0
      %p103 = por %p101, %p102
      %p104 = scmp.ne.s32.totalorder %s92, %s93
      %p105 = scmp.eq.s32.totalorder %s20, 1
      %p106 = por %p104, %p105
      %p108 = scmp.ne.s32.totalorder %s93, %s107
      %p109 = scmp.eq.s32.totalorder %s20, 0
      %p110 = por %p108, %p109
      %s112 = sadd.s32 %s111, 1
      %p115 = scmp.eq.s32.totalorder %s14, 1
      %p116 = scmp.ne.s32.totalorder %s111, %s113
      %p117 = scmp.eq.s32.totalorder %s14, 0
      %p118 = por %p116, %p117
      %p119 = scmp.ne.s32.totalorder %s111, %s113
      %p120 = scmp.eq.s32.totalorder %s19, 1
      %p121 = por %p119, %p120
      %p122 = scmp.ne.s32.totalorder %s113, %s114
      %p123 = scmp.eq.s32.totalorder %s19, 0
      %p124 = por %p122, %p123
      %p125 = scmp.ne.s32.totalorder %s113, %s114
      %p126 = scmp.eq.s32.totalorder %s20, 1
      %p127 = por %p125, %p126
      %p129 = scmp.ne.s32.totalorder %s114, %s128
      %p130 = scmp.eq.s32.totalorder %s20, 0
      %p131 = por %p129, %p130
      %s133 = sadd.s32 %s132, 1
      %p136 = scmp.eq.s32.totalorder %s14, 1
      %p137 = scmp.ne.s32.totalorder %s132, %s134
      %p138 = scmp.eq.s32.totalorder %s14, 0
      %p139 = por %p137, %p138
      %p140 = scmp.ne.s32.totalorder %s132, %s134
      %p141 = scmp.eq.s32.totalorder %s19, 1
      %p142 = por %p140, %p141
      %p143 = scmp.ne.s32.totalorder %s134, %s135
      %p144 = scmp.eq.s32.totalorder %s19, 0
      %p145 = por %p143, %p144
      %p146 = scmp.ne.s32.totalorder %s134, %s135
      %p147 = scmp.eq.s32.totalorder %s20, 1
      %p148 = por %p146, %p147
      %p150 = scmp.ne.s32.totalorder %s135, %s149
      %p151 = scmp.eq.s32.totalorder %s20, 0
      %p152 = por %p150, %p151
      %s154 = sadd.s32 %s153, 1
      %p157 = scmp.eq.s32.totalorder %s14, 1
      %p158 = scmp.ne.s32.totalorder %s153, %s155
      %p159 = scmp.eq.s32.totalorder %s14, 0
      %p160 = por %p158, %p159
      %p161 = scmp.ne.s32.totalorder %s153, %s155
      %p162 = scmp.eq.s32.totalorder %s19, 1
      %p163 = por %p161, %p162
      %p164 = scmp.ne.s32.totalorder %s155, %s156
      %p165 = scmp.eq.s32.totalorder %s19, 0
      %p166 = por %p164, %p165
      %p167 = scmp.ne.s32.totalorder %s155, %s156
      %p168 = scmp.eq.s32.totalorder %s20, 1
      %p169 = por %p167, %p168
      %p171 = scmp.ne.s32.totalorder %s156, %s170
      %p172 = scmp.eq.s32.totalorder %s20, 0
      %p173 = por %p171, %p172
      %s174 = ssub.s32 %s14, %s21
      %p175 = scmp.eq.s32.totalorder %s174, 0
      %s177 = sadd.s32 %s176, 1
      %s178 = scalar_select %p175, %s176, %s177
      %p181 = pneg %p175
      %p182 = scmp.eq.s32.totalorder %s14, 1
      %p183 = por %p181, %p182
      %p184 = scmp.ne.s32.totalorder %s176, %s179
      %p185 = scmp.eq.s32.totalorder %s14, 0
      %p186 = por %p184, %p185
      %p187 = scmp.ne.s32.totalorder %s176, %s179
      %p188 = scmp.eq.s32.totalorder %s19, 1
      %p189 = por %p187, %p188
      %p190 = scmp.ne.s32.totalorder %s179, %s180
      %p191 = scmp.eq.s32.totalorder %s19, 0
      %p192 = por %p190, %p191
      %p193 = scmp.ne.s32.totalorder %s179, %s180
      %p194 = scmp.eq.s32.totalorder %s20, 1
      %p195 = por %p193, %p194
      %p197 = scmp.ne.s32.totalorder %s180, %s196
      %p198 = scmp.eq.s32.totalorder %s20, 0
      %p199 = por %p197, %p198
      %p200 = scmp.le.s32.totalorder 1, %s14
      %p201 = scmp.lt.s32.totalorder %s14, 3
      %p202 = pnand %p200, %p201
      %p203 = pneg %p202
      // Predicated region
      $region9: #{mediapipe_blazeface.1} parent=5 // pred_check
        _
      $region10: #{mediapipe_blazeface.1} parent=5 // pred_check_branch
        %205 = sbr.rel (%p202) target = $region12
      $region11: #{mediapipe_blazeface.1} parent=5 // pred_region
        %s206 = ssub.s32 %s14, 1
        // Predicated region
        $region13: #{mediapipe_blazeface.1} parent=11 // pred_check
          %p207 = pneg %p61
        $region14: #{mediapipe_blazeface.1} parent=11 // pred_check_branch
          %209 = sbr.rel (%p207) target = $region16
        $region15: #{mediapipe_blazeface.1} parent=11 // pred_region
          %s211 = ssub.s32 18432, 18432
          %212 = vsyncadd [#allocation3], %s211
          %s213 = sshll.u32 [#allocation2], 4
          %s214 = int_to_ptr.vmem [resolvable:$true] %s213
          %219 = dma.hbm_to_vmem [thread:$0]  %s1, 18432, %s214, [#allocation3], 128, 128, 8
        $region16: #{mediapipe_blazeface.1} parent=11 // pred_fallthru
          _
        // Predicated region
        $region17: #{mediapipe_blazeface.1} parent=11 // pred_check
          %p220 = pneg %p82
        $region18: #{mediapipe_blazeface.1} parent=11 // pred_check_branch
          %222 = sbr.rel (%p220) target = $region20
        $region19: #{mediapipe_blazeface.1} parent=11 // pred_region
          _
        $region20: #{mediapipe_blazeface.1} parent=11 // pred_fallthru
          _
        // Predicated region
        $region21: #{mediapipe_blazeface.1} parent=11 // pred_check
          %p223 = pneg %p103
        $region22: #{mediapipe_blazeface.1} parent=11 // pred_check_branch
          %225 = sbr.rel (%p223) target = $region24
        $region23: #{mediapipe_blazeface.1} parent=11 // pred_region
          _
        $region24: #{mediapipe_blazeface.1} parent=11 // pred_fallthru
          _
        // Predicated region
        $region25: #{mediapipe_blazeface.1} parent=11 // pred_check
          %p226 = pneg %p124
        $region26: #{mediapipe_blazeface.1} parent=11 // pred_check_branch
          %228 = sbr.rel (%p226) target = $region28
        $region27: #{mediapipe_blazeface.1} parent=11 // pred_region
          _
        $region28: #{mediapipe_blazeface.1} parent=11 // pred_fallthru
          _
        // Predicated region
        $region29: #{mediapipe_blazeface.1} parent=11 // pred_check
          %p229 = pneg %p145
        $region30: #{mediapipe_blazeface.1} parent=11 // pred_check_branch
          %231 = sbr.rel (%p229) target = $region32
        $region31: #{mediapipe_blazeface.1} parent=11 // pred_region
          _
        $region32: #{mediapipe_blazeface.1} parent=11 // pred_fallthru
          _
        // Predicated region
        $region33: #{mediapipe_blazeface.1} parent=11 // pred_check
          %p232 = pneg %p166
        $region34: #{mediapipe_blazeface.1} parent=11 // pred_check_branch
          %234 = sbr.rel (%p232) target = $region36
        $region35: #{mediapipe_blazeface.1} parent=11 // pred_region
          _
        $region36: #{mediapipe_blazeface.1} parent=11 // pred_fallthru
          _
      $region12: #{mediapipe_blazeface.1} parent=5 // pred_fallthru
        _
      %p235 = scmp.lt.s32.totalorder %s14, 2
      // Predicated region
      $region37: #{mediapipe_blazeface.1} parent=5 // pred_check
        %p236 = pneg %p235
      $region38: #{mediapipe_blazeface.1} parent=5 // pred_check_branch
        %238 = sbr.rel (%p236) target = $region40
      $region39: #{mediapipe_blazeface.1} parent=5 // pred_region
        // Predicated region
        $region41: #{mediapipe_blazeface.1} parent=39 // pred_check
          %p239 = pneg %p34
        $region42: #{mediapipe_blazeface.1} parent=39 // pred_check_branch
          %241 = sbr.rel (%p239) target = $region44
        $region43: #{mediapipe_blazeface.1} parent=39 // pred_region
          %p242 = scmp.lt.s32.totalorder %s14, 1
          %s243 = scalar_select %p242, %s14, 1
          %s244 = smul.addr %s243, 8
          %s245 = smul.addr %s244, 8
          %s246 = scalar_lea.vmem %s0, %s245
        $region44: #{mediapipe_blazeface.1} parent=39 // pred_fallthru
          _
      $region40: #{mediapipe_blazeface.1} parent=5 // pred_fallthru
        _
      %p247 = scmp.le.s32.totalorder 1, %s14
      %p248 = scmp.lt.s32.totalorder %s14, 3
      %p249 = pnand %p247, %p248
      %p250 = pneg %p249
      // Predicated region
      $region45: #{mediapipe_blazeface.1} parent=5 // pred_check
        _
      $region46: #{mediapipe_blazeface.1} parent=5 // pred_check_branch
        %252 = sbr.rel (%p249) target = $region48
      $region47: #{mediapipe_blazeface.1} parent=5 // pred_region
        %s253 = ssub.s32 %s14, 1
        // Predicated region
        $region49: #{mediapipe_blazeface.1} parent=47 // pred_check
          %p254 = pneg %p61
        $region50: #{mediapipe_blazeface.1} parent=47 // pred_check_branch
          %256 = sbr.rel (%p254) target = $region52
        $region51: #{mediapipe_blazeface.1} parent=47 // pred_region
          %257 = dma.done [#allocation3], 18432
        $region52: #{mediapipe_blazeface.1} parent=47 // pred_fallthru
          _
        %p258 = scmp.lt.s32.totalorder %s19, 1
        %s259 = scalar_select %p258, %s19, 1
        %s260 = smul.addr %s259, 8
        %s261 = smul.addr %s260, 8
        %s262 = scalar_lea.vmem %s0, %s261
        %p263 = pneg %p40
        %p264 = pneg %p37
        %p265 = pneg %p61
        %p266 = pneg %p58
        %p267 = pneg %p82
        %p268 = pneg %p79
        %p269 = pneg %p103
        %p270 = pneg %p100
        %p271 = pneg %p124
        %p272 = pneg %p121
        %p273 = pneg %p145
        %p274 = pneg %p142
        %p275 = pneg %p166
        %p276 = pneg %p163
        %p277 = pneg %p192
        %p278 = pneg %p189
        %p279 = scmp.lt.s32.totalorder %s19, 1
        %s280 = scalar_select %p279, %s19, 1
        %s281 = scalar_lea.vmem %s7, %s280
        %p282 = scmp.lt.s32.totalorder %s19, 1
        %s283 = scalar_select %p282, %s19, 1
        %s284 = smul.addr %s283, 8
        %s285 = smul.addr %s284, 8
        %s286 = scalar_lea.vmem %s0, %s285
        %p287 = scmp.lt.s32.totalorder %s19, 1
        %s288 = scalar_select %p287, %s19, 1
        %s289 = scalar_lea.vmem %s7, %s288
        %v290 = vld [vmem:[%s286] sm:$0xff]
        %v291 = vld [vmem:[%s286 + $0x8] sm:$0xff]
        %v292 = vld [vmem:[%s286 + $0x10] sm:$0xff]
        %v293 = vld [vmem:[%s286 + $0x18] sm:$0xff]
        %v294 = vld [vmem:[%s286 + $0x20] sm:$0xff]
        %v295 = vld [vmem:[%s286 + $0x28] sm:$0xff]
        %v296 = vld [vmem:[%s286 + $0x30] sm:$0xff]
        %v297 = vld [vmem:[%s286 + $0x38] sm:$0xff]
        %v298 = vlaneseq
        %v299 = vshrl.u32 %v298, 7
        %vm300 = vcmp.ne.s32.totalorder %v299, 0
        %vm301 = vcmp.ne.s32.totalorder %v299, 7
        %vm309 = vcmask 1040384
        %v310 = vrot.slane %v290, 7
        %v311 = vrot.slane %v291, 7
        %v312 = vsel %vm309, %v310, %v311
        %v313 = vrot.slane %v292, 7
        %v314 = vsel %vm309, %v311, %v313
        %v315 = vrot.slane %v293, 7
        %v316 = vsel %vm309, %v313, %v315
        %v317 = vrot.slane %v294, 7
        %v318 = vsel %vm309, %v315, %v317
        %v319 = vrot.slane %v295, 7
        %v320 = vsel %vm309, %v317, %v319
        %v321 = vrot.slane %v296, 7
        %v322 = vsel %vm309, %v319, %v321
        %v330 = vsel %vm309, 0.0, %v310
        %v331 = vsel %vm300, %v330, 0.0
        %v332 = vsel %vm300, %v312, 0.0
        %v333 = vsel %vm300, %v314, 0.0
        %v334 = vsel %vm300, %v316, 0.0
        %v335 = vsel %vm300, %v318, 0.0
        %v336 = vsel %vm300, %v320, 0.0
        %v337 = vsel %vm300, %v322, 0.0
        %v338 = vld [vmem:[#allocation2] sm:$0xff]
        %v339 = vld [vmem:[#allocation2 + $0x8] sm:$0xff]
        %v340 = vld [vmem:[#allocation2 + $0x10] sm:$0xff]
        %v341 = vld [vmem:[#allocation2 + $0x18] sm:$0xff]
        %v342 = vld [vmem:[#allocation2 + $0x20] sm:$0xff]
        %v343 = vld [vmem:[#allocation2 + $0x28] sm:$0xff]
        %v344 = vld [vmem:[#allocation2 + $0x30] sm:$0xff]
        %v345 = vld [vmem:[#allocation2 + $0x38] sm:$0xff]
        %v346 = vld [vmem:[#allocation2 + $0x40] sm:$0xff]
        %v347 = vld [vmem:[#allocation2 + $0x48] sm:$0xff]
        %v348 = vld [vmem:[#allocation2 + $0x50] sm:$0xff]
        %v349 = vld [vmem:[#allocation2 + $0x58] sm:$0xff]
        %v350 = vld [vmem:[#allocation2 + $0x60] sm:$0xff]
        %v351 = vld [vmem:[#allocation2 + $0x68] sm:$0xff]
        %v352 = vld [vmem:[#allocation2 + $0x70] sm:$0xff]
        %v353 = vld [vmem:[#allocation2 + $0x78] sm:$0xff]
        %s354 = scalar_lea.vmem [#allocation2], 128
        %v355 = vld [vmem:[%s354] sm:$0xff]
        %v356 = vld [vmem:[%s354 + $0x8] sm:$0xff]
        %v357 = vld [vmem:[%s354 + $0x10] sm:$0xff]
        %v358 = vld [vmem:[%s354 + $0x18] sm:$0xff]
        %v359 = vld [vmem:[%s354 + $0x20] sm:$0xff]
        %v360 = vld [vmem:[%s354 + $0x28] sm:$0xff]
        %v361 = vld [vmem:[%s354 + $0x30] sm:$0xff]
        %v362 = vld [vmem:[%s354 + $0x38] sm:$0xff]
        %v363 = vld [vmem:[%s354 + $0x40] sm:$0xff]
        %v364 = vld [vmem:[%s354 + $0x48] sm:$0xff]
        %v365 = vld [vmem:[%s354 + $0x50] sm:$0xff]
        %v366 = vld [vmem:[%s354 + $0x58] sm:$0xff]
        %v367 = vld [vmem:[%s354 + $0x60] sm:$0xff]
        %v368 = vld [vmem:[%s354 + $0x68] sm:$0xff]
        %v369 = vld [vmem:[%s354 + $0x70] sm:$0xff]
        %v370 = vld [vmem:[%s354 + $0x78] sm:$0xff]
        %371 = vmatprep.subr.mxu0 0.0
        %372 = vmatpush1.msra.mxu0 %v355
        %373 = vmatprep.subr.mxu0 0.0
        %374 = vmatpush1.msra.mxu0 %v356
        %375 = vmatprep.subr.mxu0 0.0
        %376 = vmatpush1.msra.mxu0 %v357
        %377 = vmatprep.subr.mxu0 0.0
        %378 = vmatpush1.msra.mxu0 %v358
        %379 = vmatprep.subr.mxu0 0.0
        %380 = vmatpush1.msra.mxu0 %v359
        %381 = vmatprep.subr.mxu0 0.0
        %382 = vmatpush1.msra.mxu0 %v360
        %383 = vmatprep.subr.mxu0 0.0
        %384 = vmatpush1.msra.mxu0 %v361
        %385 = vmatprep.subr.mxu0 0.0
        %386 = vmatpush1.msra.mxu0 %v362
        %387 = vmatprep.subr.mxu0 0.0
        %388 = vmatpush1.msra.mxu0 %v363
        %389 = vmatprep.subr.mxu0 0.0
        %390 = vmatpush1.msra.mxu0 %v364
        %391 = vmatprep.subr.mxu0 0.0
        %392 = vmatpush1.msra.mxu0 %v365
        %393 = vmatprep.subr.mxu0 0.0
        %394 = vmatpush1.msra.mxu0 %v366
        %395 = vmatprep.subr.mxu0 0.0
        %396 = vmatpush1.msra.mxu0 %v367
        %397 = vmatprep.subr.mxu0 0.0
        %398 = vmatpush1.msra.mxu0 %v368
        %399 = vmatprep.subr.mxu0 0.0
        %400 = vmatpush1.msra.mxu0 %v369
        %401 = vmatprep.subr.mxu0 0.0
        %402 = vmatpush1.msra.mxu0 %v370
        %403 = vmatprep.subr.mxu0 0.0
        %404 = vmatpush1.msra.mxu0 0.0
        %405 = vmatprep.subr.mxu0 0.0
        %406 = vmatpush1.msra.mxu0 0.0
        %407 = vmatprep.subr.mxu0 0.0
        %408 = vmatpush1.msra.mxu0 0.0
        %409 = vmatprep.subr.mxu0 0.0
        %410 = vmatpush1.msra.mxu0 0.0
        %411 = vmatprep.subr.mxu0 0.0
        %412 = vmatpush1.msra.mxu0 0.0
        %413 = vmatprep.subr.mxu0 0.0
        %414 = vmatpush1.msra.mxu0 0.0
        %415 = vmatprep.subr.mxu0 0.0
        %416 = vmatpush1.msra.mxu0 0.0
        %417 = vmatprep.subr.mxu0 0.0
        %418 = vmatpush1.msra.mxu0 0.0
        %419 = vmatprep.subr.mxu0 0.0
        %420 = vmatpush1.msra.mxu0 0.0
        %421 = vmatprep.subr.mxu0 0.0
        %422 = vmatpush1.msra.mxu0 0.0
        %423 = vmatprep.subr.mxu0 0.0
        %424 = vmatpush1.msra.mxu0 0.0
        %425 = vmatprep.subr.mxu0 0.0
        %426 = vmatpush1.msra.mxu0 0.0
        %427 = vmatprep.subr.mxu0 0.0
        %428 = vmatpush1.msra.mxu0 0.0
        %429 = vmatprep.subr.mxu0 0.0
        %430 = vmatpush1.msra.mxu0 0.0
        %431 = vmatprep.subr.mxu0 0.0
        %432 = vmatpush1.msra.mxu0 0.0
        %433 = vmatprep.subr.mxu0 0.0
        %434 = vmatpush1.msra.mxu0 0.0
        %435 = vmatprep.mubr.f32.mxu0 0.0
        %436 = vmatmul.mubr.f32.gmra.mrb[0].mxu0 0.0
        %v437 = vpop.f32.mrb[0].mxu0
        %v438 = vadd.f32 0.0, %v437
        %v439 = vpop.f32.mrb[0].mxu0
        %440 = vmatprep.mubr.f32.mxu0 0.0
        %441 = vmatmul.mubr.f32.gmra.mrb[0].mxu0 %v290
        %v442 = vpop.f32.mrb[0].mxu0
        %v443 = vadd.f32 0.0, %v442
        %v444 = vpop.f32.mrb[0].mxu0
        %445 = vmatprep.mubr.f32.mxu0 0.0
        %446 = vmatmul.mubr.f32.gmra.mrb[0].mxu0 %v291
        %v447 = vpop.f32.mrb[0].mxu0
        %v448 = vadd.f32 0.0, %v447
        %v449 = vpop.f32.mrb[0].mxu0
        %450 = vmatprep.mubr.f32.mxu0 0.0
        %451 = vmatmul.mubr.f32.gmra.mrb[0].mxu0 %v292
        %v452 = vpop.f32.mrb[0].mxu0
        %v453 = vadd.f32 0.0, %v452
        %v454 = vpop.f32.mrb[0].mxu0
        %455 = vmatprep.mubr.f32.mxu0 0.0
        %456 = vmatmul.mubr.f32.gmra.mrb[0].mxu0 %v293
        %v457 = vpop.f32.mrb[0].mxu0
        %v458 = vadd.f32 0.0, %v457
        %v459 = vpop.f32.mrb[0].mxu0
        %460 = vmatprep.mubr.f32.mxu0 0.0
        %461 = vmatmul.mubr.f32.gmra.mrb[0].mxu0 %v294
        %v462 = vpop.f32.mrb[0].mxu0
        %v463 = vadd.f32 0.0, %v462
        %v464 = vpop.f32.mrb[0].mxu0
        %465 = vmatprep.mubr.f32.mxu0 0.0
        %466 = vmatmul.mubr.f32.gmra.mrb[0].mxu0 %v295
        %v467 = vpop.f32.mrb[0].mxu0
        %v468 = vadd.f32 0.0, %v467
        %v469 = vpop.f32.mrb[0].mxu0
        %470 = vmatprep.mubr.f32.mxu0 0.0
        %471 = vmatmul.mubr.f32.gmra.mrb[0].mxu0 %v296
        %v472 = vpop.f32.mrb[0].mxu0
        %v473 = vadd.f32 0.0, %v472
        %v474 = vpop.f32.mrb[0].mxu0
        %475 = vdwg.mxu0
        %476 = vmatprep.subr.mxu0 0.0
        %477 = vmatpush1.msra.mxu0 %v338
        %478 = vmatprep.subr.mxu0 0.0
        %479 = vmatpush1.msra.mxu0 %v339
        %480 = vmatprep.subr.mxu0 0.0
        %481 = vmatpush1.msra.mxu0 %v340
        %482 = vmatprep.subr.mxu0 0.0
        %483 = vmatpush1.msra.mxu0 %v341
        %484 = vmatprep.subr.mxu0 0.0
        %485 = vmatpush1.msra.mxu0 %v342
        %486 = vmatprep.subr.mxu0 0.0
        %487 = vmatpush1.msra.mxu0 %v343
        %488 = vmatprep.subr.mxu0 0.0
        %489 = vmatpush1.msra.mxu0 %v344
        %490 = vmatprep.subr.mxu0 0.0
        %491 = vmatpush1.msra.mxu0 %v345
        %492 = vmatprep.subr.mxu0 0.0
        %493 = vmatpush1.msra.mxu0 %v346
        %494 = vmatprep.subr.mxu0 0.0
        %495 = vmatpush1.msra.mxu0 %v347
        %496 = vmatprep.subr.mxu0 0.0
        %497 = vmatpush1.msra.mxu0 %v348
        %498 = vmatprep.subr.mxu0 0.0
        %499 = vmatpush1.msra.mxu0 %v349
        %500 = vmatprep.subr.mxu0 0.0
        %501 = vmatpush1.msra.mxu0 %v350
        %502 = vmatprep.subr.mxu0 0.0
        %503 = vmatpush1.msra.mxu0 %v351
        %504 = vmatprep.subr.mxu0 0.0
        %505 = vmatpush1.msra.mxu0 %v352
        %506 = vmatprep.subr.mxu0 0.0
        %507 = vmatpush1.msra.mxu0 %v353
        %508 = vmatprep.subr.mxu0 0.0
        %509 = vmatpush1.msra.mxu0 0.0
        %510 = vmatprep.subr.mxu0 0.0
        %511 = vmatpush1.msra.mxu0 0.0
        %512 = vmatprep.subr.mxu0 0.0
        %513 = vmatpush1.msra.mxu0 0.0
        %514 = vmatprep.subr.mxu0 0.0
        %515 = vmatpush1.msra.mxu0 0.0
        %516 = vmatprep.subr.mxu0 0.0
        %517 = vmatpush1.msra.mxu0 0.0
        %518 = vmatprep.subr.mxu0 0.0
        %519 = vmatpush1.msra.mxu0 0.0
        %520 = vmatprep.subr.mxu0 0.0
        %521 = vmatpush1.msra.mxu0 0.0
        %522 = vmatprep.subr.mxu0 0.0
        %523 = vmatpush1.msra.mxu0 0.0
        %524 = vmatprep.subr.mxu0 0.0
        %525 = vmatpush1.msra.mxu0 0.0
        %526 = vmatprep.subr.mxu0 0.0
        %527 = vmatpush1.msra.mxu0 0.0
        %528 = vmatprep.subr.mxu0 0.0
        %529 = vmatpush1.msra.mxu0 0.0
        %530 = vmatprep.subr.mxu0 0.0
        %531 = vmatpush1.msra.mxu0 0.0
        %532 = vmatprep.subr.mxu0 0.0
        %533 = vmatpush1.msra.mxu0 0.0
        %534 = vmatprep.subr.mxu0 0.0
        %535 = vmatpush1.msra.mxu0 0.0
        %536 = vmatprep.subr.mxu0 0.0
        %537 = vmatpush1.msra.mxu0 0.0
        %538 = vmatprep.subr.mxu0 0.0
        %539 = vmatpush1.msra.mxu0 0.0
        %540 = vmatprep.mubr.f32.mxu0 0.0
        %541 = vmatmul.mubr.f32.gmra.mrb[0].mxu0 0.0
        %v542 = vpop.f32.mrb[0].mxu0
        %v543 = vadd.f32 %v438, %v542
        %v544 = vpop.f32.mrb[0].mxu0
        %545 = vmatprep.mubr.f32.mxu0 0.0
        %546 = vmatmul.mubr.f32.gmra.mrb[0].mxu0 %v331
        %v547 = vpop.f32.mrb[0].mxu0
        %v548 = vadd.f32 %v443, %v547
        %v549 = vpop.f32.mrb[0].mxu0
        %550 = vmatprep.mubr.f32.mxu0 0.0
        %551 = vmatmul.mubr.f32.gmra.mrb[0].mxu0 %v332
        %v552 = vpop.f32.mrb[0].mxu0
        %v553 = vadd.f32 %v448, %v552
        %v554 = vpop.f32.mrb[0].mxu0
        %555 = vmatprep.mubr.f32.mxu0 0.0
        %556 = vmatmul.mubr.f32.gmra.mrb[0].mxu0 %v333
        %v557 = vpop.f32.mrb[0].mxu0
        %v558 = vadd.f32 %v453, %v557
        %v559 = vpop.f32.mrb[0].mxu0
        %560 = vmatprep.mubr.f32.mxu0 0.0
        %561 = vmatmul.mubr.f32.gmra.mrb[0].mxu0 %v334
        %v562 = vpop.f32.mrb[0].mxu0
        %v563 = vadd.f32 %v458, %v562
        %v564 = vpop.f32.mrb[0].mxu0
        %565 = vmatprep.mubr.f32.mxu0 0.0
        %566 = vmatmul.mubr.f32.gmra.mrb[0].mxu0 %v335
        %v567 = vpop.f32.mrb[0].mxu0
        %v568 = vadd.f32 %v463, %v567
        %v569 = vpop.f32.mrb[0].mxu0
        %570 = vmatprep.mubr.f32.mxu0 0.0
        %571 = vmatmul.mubr.f32.gmra.mrb[0].mxu0 %v336
        %v572 = vpop.f32.mrb[0].mxu0
        %v573 = vadd.f32 %v468, %v572
        %v574 = vpop.f32.mrb[0].mxu0
        %575 = vmatprep.mubr.f32.mxu0 0.0
        %576 = vmatmul.mubr.f32.gmra.mrb[0].mxu0 %v337
        %v577 = vpop.f32.mrb[0].mxu0
        %v578 = vadd.f32 %v473, %v577
        %v579 = vpop.f32.mrb[0].mxu0
        %580 = vdwg.mxu0
        %vm582 = vcmask 1046528
        %v583 = vrot.slane %v290, 1
        %v584 = vrot.slane %v291, 1
        %v585 = vsel %vm582, %v583, %v584
        %v586 = vrot.slane %v292, 1
        %v587 = vsel %vm582, %v584, %v586
        %v588 = vrot.slane %v293, 1
        %v589 = vsel %vm582, %v586, %v588
        %v590 = vrot.slane %v294, 1
        %v591 = vsel %vm582, %v588, %v590
        %v592 = vrot.slane %v295, 1
        %v593 = vsel %vm582, %v590, %v592
        %v594 = vrot.slane %v296, 1
        %v595 = vsel %vm582, %v592, %v594
        %v596 = vrot.slane %v297, 1
        %v597 = vsel %vm582, %v594, %v596
        %v606 = vsel %vm582, 0.0, %v583
        %v607 = vsel %vm301, %v606, 0.0
        %v608 = vsel %vm301, %v585, 0.0
        %v609 = vsel %vm301, %v587, 0.0
        %v610 = vsel %vm301, %v589, 0.0
        %v611 = vsel %vm301, %v591, 0.0
        %v612 = vsel %vm301, %v593, 0.0
        %v613 = vsel %vm301, %v595, 0.0
        %v614 = vsel %vm301, %v597, 0.0
        %s615 = scalar_lea.vmem [#allocation2], 256
        %v616 = vld [vmem:[%s615] sm:$0xff]
        %v617 = vld [vmem:[%s615 + $0x8] sm:$0xff]
        %v618 = vld [vmem:[%s615 + $0x10] sm:$0xff]
        %v619 = vld [vmem:[%s615 + $0x18] sm:$0xff]
        %v620 = vld [vmem:[%s615 + $0x20] sm:$0xff]
        %v621 = vld [vmem:[%s615 + $0x28] sm:$0xff]
        %v622 = vld [vmem:[%s615 + $0x30] sm:$0xff]
        %v623 = vld [vmem:[%s615 + $0x38] sm:$0xff]
        %v624 = vld [vmem:[%s615 + $0x40] sm:$0xff]
        %v625 = vld [vmem:[%s615 + $0x48] sm:$0xff]
        %v626 = vld [vmem:[%s615 + $0x50] sm:$0xff]
        %v627 = vld [vmem:[%s615 + $0x58] sm:$0xff]
        %v628 = vld [vmem:[%s615 + $0x60] sm:$0xff]
        %v629 = vld [vmem:[%s615 + $0x68] sm:$0xff]
        %v630 = vld [vmem:[%s615 + $0x70] sm:$0xff]
        %v631 = vld [vmem:[%s615 + $0x78] sm:$0xff]
        %632 = vmatprep.subr.mxu0 0.0
        %633 = vmatpush1.msra.mxu0 %v616
        %634 = vmatprep.subr.mxu0 0.0
        %635 = vmatpush1.msra.mxu0 %v617
        %636 = vmatprep.subr.mxu0 0.0
        %637 = vmatpush1.msra.mxu0 %v618
        %638 = vmatprep.subr.mxu0 0.0
        %639 = vmatpush1.msra.mxu0 %v619
        %640 = vmatprep.subr.mxu0 0.0
        %641 = vmatpush1.msra.mxu0 %v620
        %642 = vmatprep.subr.mxu0 0.0
        %643 = vmatpush1.msra.mxu0 %v621
        %644 = vmatprep.subr.mxu0 0.0
        %645 = vmatpush1.msra.mxu0 %v622
        %646 = vmatprep.subr.mxu0 0.0
        %647 = vmatpush1.msra.mxu0 %v623
        %648 = vmatprep.subr.mxu0 0.0
        %649 = vmatpush1.msra.mxu0 %v624
        %650 = vmatprep.subr.mxu0 0.0
        %651 = vmatpush1.msra.mxu0 %v625
        %652 = vmatprep.subr.mxu0 0.0
        %653 = vmatpush1.msra.mxu0 %v626
        %654 = vmatprep.subr.mxu0 0.0
        %655 = vmatpush1.msra.mxu0 %v627
        %656 = vmatprep.subr.mxu0 0.0
        %657 = vmatpush1.msra.mxu0 %v628
        %658 = vmatprep.subr.mxu0 0.0
        %659 = vmatpush1.msra.mxu0 %v629
        %660 = vmatprep.subr.mxu0 0.0
        %661 = vmatpush1.msra.mxu0 %v630
        %662 = vmatprep.subr.mxu0 0.0
        %663 = vmatpush1.msra.mxu0 %v631
        %664 = vmatprep.subr.mxu0 0.0
        %665 = vmatpush1.msra.mxu0 0.0
        %666 = vmatprep.subr.mxu0 0.0
        %667 = vmatpush1.msra.mxu0 0.0
        %668 = vmatprep.subr.mxu0 0.0
        %669 = vmatpush1.msra.mxu0 0.0
        %670 = vmatprep.subr.mxu0 0.0
        %671 = vmatpush1.msra.mxu0 0.0
        %672 = vmatprep.subr.mxu0 0.0
        %673 = vmatpush1.msra.mxu0 0.0
        %674 = vmatprep.subr.mxu0 0.0
        %675 = vmatpush1.msra.mxu0 0.0
        %676 = vmatprep.subr.mxu0 0.0
        %677 = vmatpush1.msra.mxu0 0.0
        %678 = vmatprep.subr.mxu0 0.0
        %679 = vmatpush1.msra.mxu0 0.0
        %680 = vmatprep.subr.mxu0 0.0
        %681 = vmatpush1.msra.mxu0 0.0
        %682 = vmatprep.subr.mxu0 0.0
        %683 = vmatpush1.msra.mxu0 0.0
        %684 = vmatprep.subr.mxu0 0.0
        %685 = vmatpush1.msra.mxu0 0.0
        %686 = vmatprep.subr.mxu0 0.0
        %687 = vmatpush1.msra.mxu0 0.0
        %688 = vmatprep.subr.mxu0 0.0
        %689 = vmatpush1.msra.mxu0 0.0
        %690 = vmatprep.subr.mxu0 0.0
        %691 = vmatpush1.msra.mxu0 0.0
        %692 = vmatprep.subr.mxu0 0.0
        %693 = vmatpush1.msra.mxu0 0.0
        %694 = vmatprep.subr.mxu0 0.0
        %695 = vmatpush1.msra.mxu0 0.0
        %696 = vmatprep.mubr.f32.mxu0 0.0
        %697 = vmatmul.mubr.f32.gmra.mrb[0].mxu0 %v607
        %v698 = vpop.f32.mrb[0].mxu0
        %v699 = vadd.f32 0.0, %v698
        %v700 = vpop.f32.mrb[0].mxu0
        %701 = vmatprep.mubr.f32.mxu0 0.0
        %702 = vmatmul.mubr.f32.gmra.mrb[0].mxu0 %v608
        %v703 = vpop.f32.mrb[0].mxu0
        %v704 = vadd.f32 0.0, %v703
        %v705 = vpop.f32.mrb[0].mxu0
        %706 = vmatprep.mubr.f32.mxu0 0.0
        %707 = vmatmul.mubr.f32.gmra.mrb[0].mxu0 %v609
        %v708 = vpop.f32.mrb[0].mxu0
        %v709 = vadd.f32 0.0, %v708
        %v710 = vpop.f32.mrb[0].mxu0
        %711 = vmatprep.mubr.f32.mxu0 0.0
        %712 = vmatmul.mubr.f32.gmra.mrb[0].mxu0 %v610
        %v713 = vpop.f32.mrb[0].mxu0
        %v714 = vadd.f32 0.0, %v713
        %v715 = vpop.f32.mrb[0].mxu0
        %716 = vmatprep.mubr.f32.mxu0 0.0
        %717 = vmatmul.mubr.f32.gmra.mrb[0].mxu0 %v611
        %v718 = vpop.f32.mrb[0].mxu0
        %v719 = vadd.f32 0.0, %v718
        %v720 = vpop.f32.mrb[0].mxu0
        %721 = vmatprep.mubr.f32.mxu0 0.0
        %722 = vmatmul.mubr.f32.gmra.mrb[0].mxu0 %v612
        %v723 = vpop.f32.mrb[0].mxu0
        %v724 = vadd.f32 0.0, %v723
        %v725 = vpop.f32.mrb[0].mxu0
        %726 = vmatprep.mubr.f32.mxu0 0.0
        %727 = vmatmul.mubr.f32.gmra.mrb[0].mxu0 %v613
        %v728 = vpop.f32.mrb[0].mxu0
        %v729 = vadd.f32 0.0, %v728
        %v730 = vpop.f32.mrb[0].mxu0
        %731 = vmatprep.mubr.f32.mxu0 0.0
        %732 = vmatmul.mubr.f32.gmra.mrb[0].mxu0 %v614
        %v733 = vpop.f32.mrb[0].mxu0
        %v734 = vadd.f32 0.0, %v733
        %v735 = vpop.f32.mrb[0].mxu0
        %736 = vdwg.mxu0
        %v737 = vadd.f32 %v543, %v699
        %v738 = vadd.f32 %v548, %v704
        %v739 = vadd.f32 %v553, %v709
        %v740 = vadd.f32 %v558, %v714
        %v741 = vadd.f32 %v563, %v719
        %v742 = vadd.f32 %v568, %v724
        %v743 = vadd.f32 %v573, %v729
        %v744 = vadd.f32 %v578, %v734
        %v745 = vrot.slane %v297, 7
        %v746 = vsel %vm309, %v321, %v745
        %v748 = vsel %vm300, %v746, 0.0
        %s749 = scalar_lea.vmem [#allocation2], 384
        %v750 = vld [vmem:[%s749] sm:$0xff]
        %v751 = vld [vmem:[%s749 + $0x8] sm:$0xff]
        %v752 = vld [vmem:[%s749 + $0x10] sm:$0xff]
        %v753 = vld [vmem:[%s749 + $0x18] sm:$0xff]
        %v754 = vld [vmem:[%s749 + $0x20] sm:$0xff]
        %v755 = vld [vmem:[%s749 + $0x28] sm:$0xff]
        %v756 = vld [vmem:[%s749 + $0x30] sm:$0xff]
        %v757 = vld [vmem:[%s749 + $0x38] sm:$0xff]
        %v758 = vld [vmem:[%s749 + $0x40] sm:$0xff]
        %v759 = vld [vmem:[%s749 + $0x48] sm:$0xff]
        %v760 = vld [vmem:[%s749 + $0x50] sm:$0xff]
        %v761 = vld [vmem:[%s749 + $0x58] sm:$0xff]
        %v762 = vld [vmem:[%s749 + $0x60] sm:$0xff]
        %v763 = vld [vmem:[%s749 + $0x68] sm:$0xff]
        %v764 = vld [vmem:[%s749 + $0x70] sm:$0xff]
        %v765 = vld [vmem:[%s749 + $0x78] sm:$0xff]
        %766 = vmatprep.subr.mxu0 0.0
        %767 = vmatpush1.msra.mxu0 %v750
        %768 = vmatprep.subr.mxu0 0.0
        %769 = vmatpush1.msra.mxu0 %v751
        %770 = vmatprep.subr.mxu0 0.0
        %771 = vmatpush1.msra.mxu0 %v752
        %772 = vmatprep.subr.mxu0 0.0
        %773 = vmatpush1.msra.mxu0 %v753
        %774 = vmatprep.subr.mxu0 0.0
        %775 = vmatpush1.msra.mxu0 %v754
        %776 = vmatprep.subr.mxu0 0.0
        %777 = vmatpush1.msra.mxu0 %v755
        %778 = vmatprep.subr.mxu0 0.0
        %779 = vmatpush1.msra.mxu0 %v756
        %780 = vmatprep.subr.mxu0 0.0
        %781 = vmatpush1.msra.mxu0 %v757
        %782 = vmatprep.subr.mxu0 0.0
        %783 = vmatpush1.msra.mxu0 %v758
        %784 = vmatprep.subr.mxu0 0.0
        %785 = vmatpush1.msra.mxu0 %v759
        %786 = vmatprep.subr.mxu0 0.0
        %787 = vmatpush1.msra.mxu0 %v760
        %788 = vmatprep.subr.mxu0 0.0
        %789 = vmatpush1.msra.mxu0 %v761
        %790 = vmatprep.subr.mxu0 0.0
        %791 = vmatpush1.msra.mxu0 %v762
        %792 = vmatprep.subr.mxu0 0.0
        %793 = vmatpush1.msra.mxu0 %v763
        %794 = vmatprep.subr.mxu0 0.0
        %795 = vmatpush1.msra.mxu0 %v764
        %796 = vmatprep.subr.mxu0 0.0
        %797 = vmatpush1.msra.mxu0 %v765
        %798 = vmatprep.subr.mxu0 0.0
        %799 = vmatpush1.msra.mxu0 0.0
        %800 = vmatprep.subr.mxu0 0.0
        %801 = vmatpush1.msra.mxu0 0.0
        %802 = vmatprep.subr.mxu0 0.0
        %803 = vmatpush1.msra.mxu0 0.0
        %804 = vmatprep.subr.mxu0 0.0
        %805 = vmatpush1.msra.mxu0 0.0
        %806 = vmatprep.subr.mxu0 0.0
        %807 = vmatpush1.msra.mxu0 0.0
        %808 = vmatprep.subr.mxu0 0.0
        %809 = vmatpush1.msra.mxu0 0.0
        %810 = vmatprep.subr.mxu0 0.0
        %811 = vmatpush1.msra.mxu0 0.0
        %812 = vmatprep.subr.mxu0 0.0
        %813 = vmatpush1.msra.mxu0 0.0
        %814 = vmatprep.subr.mxu0 0.0
        %815 = vmatpush1.msra.mxu0 0.0
        %816 = vmatprep.subr.mxu0 0.0
        %817 = vmatpush1.msra.mxu0 0.0
        %818 = vmatprep.subr.mxu0 0.0
        %819 = vmatpush1.msra.mxu0 0.0
        %820 = vmatprep.subr.mxu0 0.0
        %821 = vmatpush1.msra.mxu0 0.0
        %822 = vmatprep.subr.mxu0 0.0
        %823 = vmatpush1.msra.mxu0 0.0
        %824 = vmatprep.subr.mxu0 0.0
        %825 = vmatpush1.msra.mxu0 0.0
        %826 = vmatprep.subr.mxu0 0.0
        %827 = vmatpush1.msra.mxu0 0.0
        %828 = vmatprep.subr.mxu0 0.0
        %829 = vmatpush1.msra.mxu0 0.0
        %830 = vmatprep.mubr.f32.mxu0 0.0
        %831 = vmatmul.mubr.f32.gmra.mrb[0].mxu0 %v331
        %v832 = vpop.f32.mrb[0].mxu0
        %v833 = vadd.f32 0.0, %v832
        %v834 = vpop.f32.mrb[0].mxu0
        %835 = vmatprep.mubr.f32.mxu0 0.0
        %836 = vmatmul.mubr.f32.gmra.mrb[0].mxu0 %v332
        %v837 = vpop.f32.mrb[0].mxu0
        %v838 = vadd.f32 0.0, %v837
        %v839 = vpop.f32.mrb[0].mxu0
        %840 = vmatprep.mubr.f32.mxu0 0.0
        %841 = vmatmul.mubr.f32.gmra.mrb[0].mxu0 %v333
        %v842 = vpop.f32.mrb[0].mxu0
        %v843 = vadd.f32 0.0, %v842
        %v844 = vpop.f32.mrb[0].mxu0
        %845 = vmatprep.mubr.f32.mxu0 0.0
        %846 = vmatmul.mubr.f32.gmra.mrb[0].mxu0 %v334
        %v847 = vpop.f32.mrb[0].mxu0
        %v848 = vadd.f32 0.0, %v847
        %v849 = vpop.f32.mrb[0].mxu0
        %850 = vmatprep.mubr.f32.mxu0 0.0
        %851 = vmatmul.mubr.f32.gmra.mrb[0].mxu0 %v335
        %v852 = vpop.f32.mrb[0].mxu0
        %v853 = vadd.f32 0.0, %v852
        %v854 = vpop.f32.mrb[0].mxu0
        %855 = vmatprep.mubr.f32.mxu0 0.0
        %856 = vmatmul.mubr.f32.gmra.mrb[0].mxu0 %v336
        %v857 = vpop.f32.mrb[0].mxu0
        %v858 = vadd.f32 0.0, %v857
        %v859 = vpop.f32.mrb[0].mxu0
        %860 = vmatprep.mubr.f32.mxu0 0.0
        %861 = vmatmul.mubr.f32.gmra.mrb[0].mxu0 %v337
        %v862 = vpop.f32.mrb[0].mxu0
        %v863 = vadd.f32 0.0, %v862
        %v864 = vpop.f32.mrb[0].mxu0
        %865 = vmatprep.mubr.f32.mxu0 0.0
        %866 = vmatmul.mubr.f32.gmra.mrb[0].mxu0 %v748
        %v867 = vpop.f32.mrb[0].mxu0
        %v868 = vadd.f32 0.0, %v867
        %v869 = vpop.f32.mrb[0].mxu0
        %870 = vdwg.mxu0
        %v871 = vadd.f32 %v737, %v833
        %v872 = vadd.f32 %v738, %v838
        %v873 = vadd.f32 %v739, %v843
        %v874 = vadd.f32 %v740, %v848
        %v875 = vadd.f32 %v741, %v853
        %v876 = vadd.f32 %v742, %v858
        %v877 = vadd.f32 %v743, %v863
        %v878 = vadd.f32 %v744, %v868
        %s879 = scalar_lea.vmem [#allocation2], 512
        %v880 = vld [vmem:[%s879] sm:$0xff]
        %v881 = vld [vmem:[%s879 + $0x8] sm:$0xff]
        %v882 = vld [vmem:[%s879 + $0x10] sm:$0xff]
        %v883 = vld [vmem:[%s879 + $0x18] sm:$0xff]
        %v884 = vld [vmem:[%s879 + $0x20] sm:$0xff]
        %v885 = vld [vmem:[%s879 + $0x28] sm:$0xff]
        %v886 = vld [vmem:[%s879 + $0x30] sm:$0xff]
        %v887 = vld [vmem:[%s879 + $0x38] sm:$0xff]
        %v888 = vld [vmem:[%s879 + $0x40] sm:$0xff]
        %v889 = vld [vmem:[%s879 + $0x48] sm:$0xff]
        %v890 = vld [vmem:[%s879 + $0x50] sm:$0xff]
        %v891 = vld [vmem:[%s879 + $0x58] sm:$0xff]
        %v892 = vld [vmem:[%s879 + $0x60] sm:$0xff]
        %v893 = vld [vmem:[%s879 + $0x68] sm:$0xff]
        %v894 = vld [vmem:[%s879 + $0x70] sm:$0xff]
        %v895 = vld [vmem:[%s879 + $0x78] sm:$0xff]
        %896 = vmatprep.subr.mxu0 0.0
        %897 = vmatpush1.msra.mxu0 %v880
        %898 = vmatprep.subr.mxu0 0.0
        %899 = vmatpush1.msra.mxu0 %v881
        %900 = vmatprep.subr.mxu0 0.0
        %901 = vmatpush1.msra.mxu0 %v882
        %902 = vmatprep.subr.mxu0 0.0
        %903 = vmatpush1.msra.mxu0 %v883
        %904 = vmatprep.subr.mxu0 0.0
        %905 = vmatpush1.msra.mxu0 %v884
        %906 = vmatprep.subr.mxu0 0.0
        %907 = vmatpush1.msra.mxu0 %v885
        %908 = vmatprep.subr.mxu0 0.0
        %909 = vmatpush1.msra.mxu0 %v886
        %910 = vmatprep.subr.mxu0 0.0
        %911 = vmatpush1.msra.mxu0 %v887
        %912 = vmatprep.subr.mxu0 0.0
        %913 = vmatpush1.msra.mxu0 %v888
        %914 = vmatprep.subr.mxu0 0.0
        %915 = vmatpush1.msra.mxu0 %v889
        %916 = vmatprep.subr.mxu0 0.0
        %917 = vmatpush1.msra.mxu0 %v890
        %918 = vmatprep.subr.mxu0 0.0
        %919 = vmatpush1.msra.mxu0 %v891
        %920 = vmatprep.subr.mxu0 0.0
        %921 = vmatpush1.msra.mxu0 %v892
        %922 = vmatprep.subr.mxu0 0.0
        %923 = vmatpush1.msra.mxu0 %v893
        %924 = vmatprep.subr.mxu0 0.0
        %925 = vmatpush1.msra.mxu0 %v894
        %926 = vmatprep.subr.mxu0 0.0
        %927 = vmatpush1.msra.mxu0 %v895
        %928 = vmatprep.subr.mxu0 0.0
        %929 = vmatpush1.msra.mxu0 0.0
        %930 = vmatprep.subr.mxu0 0.0
        %931 = vmatpush1.msra.mxu0 0.0
        %932 = vmatprep.subr.mxu0 0.0
        %933 = vmatpush1.msra.mxu0 0.0
        %934 = vmatprep.subr.mxu0 0.0
        %935 = vmatpush1.msra.mxu0 0.0
        %936 = vmatprep.subr.mxu0 0.0
        %937 = vmatpush1.msra.mxu0 0.0
        %938 = vmatprep.subr.mxu0 0.0
        %939 = vmatpush1.msra.mxu0 0.0
        %940 = vmatprep.subr.mxu0 0.0
        %941 = vmatpush1.msra.mxu0 0.0
        %942 = vmatprep.subr.mxu0 0.0
        %943 = vmatpush1.msra.mxu0 0.0
        %944 = vmatprep.subr.mxu0 0.0
        %945 = vmatpush1.msra.mxu0 0.0
        %946 = vmatprep.subr.mxu0 0.0
        %947 = vmatpush1.msra.mxu0 0.0
        %948 = vmatprep.subr.mxu0 0.0
        %949 = vmatpush1.msra.mxu0 0.0
        %950 = vmatprep.subr.mxu0 0.0
        %951 = vmatpush1.msra.mxu0 0.0
        %952 = vmatprep.subr.mxu0 0.0
        %953 = vmatpush1.msra.mxu0 0.0
        %954 = vmatprep.subr.mxu0 0.0
        %955 = vmatpush1.msra.mxu0 0.0
        %956 = vmatprep.subr.mxu0 0.0
        %957 = vmatpush1.msra.mxu0 0.0
        %958 = vmatprep.subr.mxu0 0.0
        %959 = vmatpush1.msra.mxu0 0.0
        %960 = vmatprep.mubr.f32.mxu0 0.0
        %961 = vmatmul.mubr.f32.gmra.mrb[0].mxu0 %v290
        %v962 = vpop.f32.mrb[0].mxu0
        %v963 = vadd.f32 0.0, %v962
        %v964 = vpop.f32.mrb[0].mxu0
        %965 = vmatprep.mubr.f32.mxu0 0.0
        %966 = vmatmul.mubr.f32.gmra.mrb[0].mxu0 %v291
        %v967 = vpop.f32.mrb[0].mxu0
        %v968 = vadd.f32 0.0, %v967
        %v969 = vpop.f32.mrb[0].mxu0
        %970 = vmatprep.mubr.f32.mxu0 0.0
        %971 = vmatmul.mubr.f32.gmra.mrb[0].mxu0 %v292
        %v972 = vpop.f32.mrb[0].mxu0
        %v973 = vadd.f32 0.0, %v972
        %v974 = vpop.f32.mrb[0].mxu0
        %975 = vmatprep.mubr.f32.mxu0 0.0
        %976 = vmatmul.mubr.f32.gmra.mrb[0].mxu0 %v293
        %v977 = vpop.f32.mrb[0].mxu0
        %v978 = vadd.f32 0.0, %v977
        %v979 = vpop.f32.mrb[0].mxu0
        %980 = vmatprep.mubr.f32.mxu0 0.0
        %981 = vmatmul.mubr.f32.gmra.mrb[0].mxu0 %v294
        %v982 = vpop.f32.mrb[0].mxu0
        %v983 = vadd.f32 0.0, %v982
        %v984 = vpop.f32.mrb[0].mxu0
        %985 = vmatprep.mubr.f32.mxu0 0.0
        %986 = vmatmul.mubr.f32.gmra.mrb[0].mxu0 %v295
        %v987 = vpop.f32.mrb[0].mxu0
        %v988 = vadd.f32 0.0, %v987
        %v989 = vpop.f32.mrb[0].mxu0
        %990 = vmatprep.mubr.f32.mxu0 0.0
        %991 = vmatmul.mubr.f32.gmra.mrb[0].mxu0 %v296
        %v992 = vpop.f32.mrb[0].mxu0
        %v993 = vadd.f32 0.0, %v992
        %v994 = vpop.f32.mrb[0].mxu0
        %995 = vmatprep.mubr.f32.mxu0 0.0
        %996 = vmatmul.mubr.f32.gmra.mrb[0].mxu0 %v297
        %v997 = vpop.f32.mrb[0].mxu0
        %v998 = vadd.f32 0.0, %v997
        %v999 = vpop.f32.mrb[0].mxu0
        %1000 = vdwg.mxu0
        %v1001 = vadd.f32 %v871, %v963
        %v1002 = vadd.f32 %v872, %v968
        %v1003 = vadd.f32 %v873, %v973
        %v1004 = vadd.f32 %v874, %v978
        %v1005 = vadd.f32 %v875, %v983
        %v1006 = vadd.f32 %v876, %v988
        %v1007 = vadd.f32 %v877, %v993
        %v1008 = vadd.f32 %v878, %v998
        %v1010 = vsel %vm582, %v596, 0.0
        %v1011 = vsel %vm301, %v1010, 0.0
        %s1012 = scalar_lea.vmem [#allocation2], 640
        %v1013 = vld [vmem:[%s1012] sm:$0xff]
        %v1014 = vld [vmem:[%s1012 + $0x8] sm:$0xff]
        %v1015 = vld [vmem:[%s1012 + $0x10] sm:$0xff]
        %v1016 = vld [vmem:[%s1012 + $0x18] sm:$0xff]
        %v1017 = vld [vmem:[%s1012 + $0x20] sm:$0xff]
        %v1018 = vld [vmem:[%s1012 + $0x28] sm:$0xff]
        %v1019 = vld [vmem:[%s1012 + $0x30] sm:$0xff]
        %v1020 = vld [vmem:[%s1012 + $0x38] sm:$0xff]
        %v1021 = vld [vmem:[%s1012 + $0x40] sm:$0xff]
        %v1022 = vld [vmem:[%s1012 + $0x48] sm:$0xff]
        %v1023 = vld [vmem:[%s1012 + $0x50] sm:$0xff]
        %v1024 = vld [vmem:[%s1012 + $0x58] sm:$0xff]
        %v1025 = vld [vmem:[%s1012 + $0x60] sm:$0xff]
        %v1026 = vld [vmem:[%s1012 + $0x68] sm:$0xff]
        %v1027 = vld [vmem:[%s1012 + $0x70] sm:$0xff]
        %v1028 = vld [vmem:[%s1012 + $0x78] sm:$0xff]
        %1029 = vmatprep.subr.mxu0 0.0
        %1030 = vmatpush1.msra.mxu0 %v1013
        %1031 = vmatprep.subr.mxu0 0.0
        %1032 = vmatpush1.msra.mxu0 %v1014
        %1033 = vmatprep.subr.mxu0 0.0
        %1034 = vmatpush1.msra.mxu0 %v1015
        %1035 = vmatprep.subr.mxu0 0.0
        %1036 = vmatpush1.msra.mxu0 %v1016
        %1037 = vmatprep.subr.mxu0 0.0
        %1038 = vmatpush1.msra.mxu0 %v1017
        %1039 = vmatprep.subr.mxu0 0.0
        %1040 = vmatpush1.msra.mxu0 %v1018
        %1041 = vmatprep.subr.mxu0 0.0
        %1042 = vmatpush1.msra.mxu0 %v1019
        %1043 = vmatprep.subr.mxu0 0.0
        %1044 = vmatpush1.msra.mxu0 %v1020
        %1045 = vmatprep.subr.mxu0 0.0
        %1046 = vmatpush1.msra.mxu0 %v1021
        %1047 = vmatprep.subr.mxu0 0.0
        %1048 = vmatpush1.msra.mxu0 %v1022
        %1049 = vmatprep.subr.mxu0 0.0
        %1050 = vmatpush1.msra.mxu0 %v1023
        %1051 = vmatprep.subr.mxu0 0.0
        %1052 = vmatpush1.msra.mxu0 %v1024
        %1053 = vmatprep.subr.mxu0 0.0
        %1054 = vmatpush1.msra.mxu0 %v1025
        %1055 = vmatprep.subr.mxu0 0.0
        %1056 = vmatpush1.msra.mxu0 %v1026
        %1057 = vmatprep.subr.mxu0 0.0
        %1058 = vmatpush1.msra.mxu0 %v1027
        %1059 = vmatprep.subr.mxu0 0.0
        %1060 = vmatpush1.msra.mxu0 %v1028
        %1061 = vmatprep.subr.mxu0 0.0
        %1062 = vmatpush1.msra.mxu0 0.0
        %1063 = vmatprep.subr.mxu0 0.0
        %1064 = vmatpush1.msra.mxu0 0.0
        %1065 = vmatprep.subr.mxu0 0.0
        %1066 = vmatpush1.msra.mxu0 0.0
        %1067 = vmatprep.subr.mxu0 0.0
        %1068 = vmatpush1.msra.mxu0 0.0
        %1069 = vmatprep.subr.mxu0 0.0
        %1070 = vmatpush1.msra.mxu0 0.0
        %1071 = vmatprep.subr.mxu0 0.0
        %1072 = vmatpush1.msra.mxu0 0.0
        %1073 = vmatprep.subr.mxu0 0.0
        %1074 = vmatpush1.msra.mxu0 0.0
        %1075 = vmatprep.subr.mxu0 0.0
        %1076 = vmatpush1.msra.mxu0 0.0
        %1077 = vmatprep.subr.mxu0 0.0
        %1078 = vmatpush1.msra.mxu0 0.0
        %1079 = vmatprep.subr.mxu0 0.0
        %1080 = vmatpush1.msra.mxu0 0.0
        %1081 = vmatprep.subr.mxu0 0.0
        %1082 = vmatpush1.msra.mxu0 0.0
        %1083 = vmatprep.subr.mxu0 0.0
        %1084 = vmatpush1.msra.mxu0 0.0
        %1085 = vmatprep.subr.mxu0 0.0
        %1086 = vmatpush1.msra.mxu0 0.0
        %1087 = vmatprep.subr.mxu0 0.0
        %1088 = vmatpush1.msra.mxu0 0.0
        %1089 = vmatprep.subr.mxu0 0.0
        %1090 = vmatpush1.msra.mxu0 0.0
        %1091 = vmatprep.subr.mxu0 0.0
        %1092 = vmatpush1.msra.mxu0 0.0
        %1093 = vmatprep.mubr.f32.mxu0 0.0
        %1094 = vmatmul.mubr.f32.gmra.mrb[0].mxu0 %v608
        %v1095 = vpop.f32.mrb[0].mxu0
        %v1096 = vadd.f32 0.0, %v1095
        %v1097 = vpop.f32.mrb[0].mxu0
        %1098 = vmatprep.mubr.f32.mxu0 0.0
        %1099 = vmatmul.mubr.f32.gmra.mrb[0].mxu0 %v609
        %v1100 = vpop.f32.mrb[0].mxu0
        %v1101 = vadd.f32 0.0, %v1100
        %v1102 = vpop.f32.mrb[0].mxu0
        %1103 = vmatprep.mubr.f32.mxu0 0.0
        %1104 = vmatmul.mubr.f32.gmra.mrb[0].mxu0 %v610
        %v1105 = vpop.f32.mrb[0].mxu0
        %v1106 = vadd.f32 0.0, %v1105
        %v1107 = vpop.f32.mrb[0].mxu0
        %1108 = vmatprep.mubr.f32.mxu0 0.0
        %1109 = vmatmul.mubr.f32.gmra.mrb[0].mxu0 %v611
        %v1110 = vpop.f32.mrb[0].mxu0
        %v1111 = vadd.f32 0.0, %v1110
        %v1112 = vpop.f32.mrb[0].mxu0
        %1113 = vmatprep.mubr.f32.mxu0 0.0
        %1114 = vmatmul.mubr.f32.gmra.mrb[0].mxu0 %v612
        %v1115 = vpop.f32.mrb[0].mxu0
        %v1116 = vadd.f32 0.0, %v1115
        %v1117 = vpop.f32.mrb[0].mxu0
        %1118 = vmatprep.mubr.f32.mxu0 0.0
        %1119 = vmatmul.mubr.f32.gmra.mrb[0].mxu0 %v613
        %v1120 = vpop.f32.mrb[0].mxu0
        %v1121 = vadd.f32 0.0, %v1120
        %v1122 = vpop.f32.mrb[0].mxu0
        %1123 = vmatprep.mubr.f32.mxu0 0.0
        %1124 = vmatmul.mubr.f32.gmra.mrb[0].mxu0 %v614
        %v1125 = vpop.f32.mrb[0].mxu0
        %v1126 = vadd.f32 0.0, %v1125
        %v1127 = vpop.f32.mrb[0].mxu0
        %1128 = vmatprep.mubr.f32.mxu0 0.0
        %1129 = vmatmul.mubr.f32.gmra.mrb[0].mxu0 %v1011
        %v1130 = vpop.f32.mrb[0].mxu0
        %v1131 = vadd.f32 0.0, %v1130
        %v1132 = vpop.f32.mrb[0].mxu0
        %1133 = vdwg.mxu0
        %v1134 = vadd.f32 %v1001, %v1096
        %v1135 = vadd.f32 %v1002, %v1101
        %v1136 = vadd.f32 %v1003, %v1106
        %v1137 = vadd.f32 %v1004, %v1111
        %v1138 = vadd.f32 %v1005, %v1116
        %v1139 = vadd.f32 %v1006, %v1121
        %v1140 = vadd.f32 %v1007, %v1126
        %v1141 = vadd.f32 %v1008, %v1131
        %v1143 = vsel %vm309, %v745, 0.0
        %v1144 = vsel %vm300, %v1143, 0.0
        %s1145 = scalar_lea.vmem [#allocation2], 768
        %v1146 = vld [vmem:[%s1145] sm:$0xff]
        %v1147 = vld [vmem:[%s1145 + $0x8] sm:$0xff]
        %v1148 = vld [vmem:[%s1145 + $0x10] sm:$0xff]
        %v1149 = vld [vmem:[%s1145 + $0x18] sm:$0xff]
        %v1150 = vld [vmem:[%s1145 + $0x20] sm:$0xff]
        %v1151 = vld [vmem:[%s1145 + $0x28] sm:$0xff]
        %v1152 = vld [vmem:[%s1145 + $0x30] sm:$0xff]
        %v1153 = vld [vmem:[%s1145 + $0x38] sm:$0xff]
        %v1154 = vld [vmem:[%s1145 + $0x40] sm:$0xff]
        %v1155 = vld [vmem:[%s1145 + $0x48] sm:$0xff]
        %v1156 = vld [vmem:[%s1145 + $0x50] sm:$0xff]
        %v1157 = vld [vmem:[%s1145 + $0x58] sm:$0xff]
        %v1158 = vld [vmem:[%s1145 + $0x60] sm:$0xff]
        %v1159 = vld [vmem:[%s1145 + $0x68] sm:$0xff]
        %v1160 = vld [vmem:[%s1145 + $0x70] sm:$0xff]
        %v1161 = vld [vmem:[%s1145 + $0x78] sm:$0xff]
        %1162 = vmatprep.subr.mxu0 0.0
        %1163 = vmatpush1.msra.mxu0 %v1146
        %1164 = vmatprep.subr.mxu0 0.0
        %1165 = vmatpush1.msra.mxu0 %v1147
        %1166 = vmatprep.subr.mxu0 0.0
        %1167 = vmatpush1.msra.mxu0 %v1148
        %1168 = vmatprep.subr.mxu0 0.0
        %1169 = vmatpush1.msra.mxu0 %v1149
        %1170 = vmatprep.subr.mxu0 0.0
        %1171 = vmatpush1.msra.mxu0 %v1150
        %1172 = vmatprep.subr.mxu0 0.0
        %1173 = vmatpush1.msra.mxu0 %v1151
        %1174 = vmatprep.subr.mxu0 0.0
        %1175 = vmatpush1.msra.mxu0 %v1152
        %1176 = vmatprep.subr.mxu0 0.0
        %1177 = vmatpush1.msra.mxu0 %v1153
        %1178 = vmatprep.subr.mxu0 0.0
        %1179 = vmatpush1.msra.mxu0 %v1154
        %1180 = vmatprep.subr.mxu0 0.0
        %1181 = vmatpush1.msra.mxu0 %v1155
        %1182 = vmatprep.subr.mxu0 0.0
        %1183 = vmatpush1.msra.mxu0 %v1156
        %1184 = vmatprep.subr.mxu0 0.0
        %1185 = vmatpush1.msra.mxu0 %v1157
        %1186 = vmatprep.subr.mxu0 0.0
        %1187 = vmatpush1.msra.mxu0 %v1158
        %1188 = vmatprep.subr.mxu0 0.0
        %1189 = vmatpush1.msra.mxu0 %v1159
        %1190 = vmatprep.subr.mxu0 0.0
        %1191 = vmatpush1.msra.mxu0 %v1160
        %1192 = vmatprep.subr.mxu0 0.0
        %1193 = vmatpush1.msra.mxu0 %v1161
        %1194 = vmatprep.subr.mxu0 0.0
        %1195 = vmatpush1.msra.mxu0 0.0
        %1196 = vmatprep.subr.mxu0 0.0
        %1197 = vmatpush1.msra.mxu0 0.0
        %1198 = vmatprep.subr.mxu0 0.0
        %1199 = vmatpush1.msra.mxu0 0.0
        %1200 = vmatprep.subr.mxu0 0.0
        %1201 = vmatpush1.msra.mxu0 0.0
        %1202 = vmatprep.subr.mxu0 0.0
        %1203 = vmatpush1.msra.mxu0 0.0
        %1204 = vmatprep.subr.mxu0 0.0
        %1205 = vmatpush1.msra.mxu0 0.0
        %1206 = vmatprep.subr.mxu0 0.0
        %1207 = vmatpush1.msra.mxu0 0.0
        %1208 = vmatprep.subr.mxu0 0.0
        %1209 = vmatpush1.msra.mxu0 0.0
        %1210 = vmatprep.subr.mxu0 0.0
        %1211 = vmatpush1.msra.mxu0 0.0
        %1212 = vmatprep.subr.mxu0 0.0
        %1213 = vmatpush1.msra.mxu0 0.0
        %1214 = vmatprep.subr.mxu0 0.0
        %1215 = vmatpush1.msra.mxu0 0.0
        %1216 = vmatprep.subr.mxu0 0.0
        %1217 = vmatpush1.msra.mxu0 0.0
        %1218 = vmatprep.subr.mxu0 0.0
        %1219 = vmatpush1.msra.mxu0 0.0
        %1220 = vmatprep.subr.mxu0 0.0
        %1221 = vmatpush1.msra.mxu0 0.0
        %1222 = vmatprep.subr.mxu0 0.0
        %1223 = vmatpush1.msra.mxu0 0.0
        %1224 = vmatprep.subr.mxu0 0.0
        %1225 = vmatpush1.msra.mxu0 0.0
        %1226 = vmatprep.mubr.f32.mxu0 0.0
        %1227 = vmatmul.mubr.f32.gmra.mrb[0].mxu0 %v332
        %v1228 = vpop.f32.mrb[0].mxu0
        %v1229 = vadd.f32 0.0, %v1228
        %v1230 = vpop.f32.mrb[0].mxu0
        %1231 = vmatprep.mubr.f32.mxu0 0.0
        %1232 = vmatmul.mubr.f32.gmra.mrb[0].mxu0 %v333
        %v1233 = vpop.f32.mrb[0].mxu0
        %v1234 = vadd.f32 0.0, %v1233
        %v1235 = vpop.f32.mrb[0].mxu0
        %1236 = vmatprep.mubr.f32.mxu0 0.0
        %1237 = vmatmul.mubr.f32.gmra.mrb[0].mxu0 %v334
        %v1238 = vpop.f32.mrb[0].mxu0
        %v1239 = vadd.f32 0.0, %v1238
        %v1240 = vpop.f32.mrb[0].mxu0
        %1241 = vmatprep.mubr.f32.mxu0 0.0
        %1242 = vmatmul.mubr.f32.gmra.mrb[0].mxu0 %v335
        %v1243 = vpop.f32.mrb[0].mxu0
        %v1244 = vadd.f32 0.0, %v1243
        %v1245 = vpop.f32.mrb[0].mxu0
        %1246 = vmatprep.mubr.f32.mxu0 0.0
        %1247 = vmatmul.mubr.f32.gmra.mrb[0].mxu0 %v336
        %v1248 = vpop.f32.mrb[0].mxu0
        %v1249 = vadd.f32 0.0, %v1248
        %v1250 = vpop.f32.mrb[0].mxu0
        %1251 = vmatprep.mubr.f32.mxu0 0.0
        %1252 = vmatmul.mubr.f32.gmra.mrb[0].mxu0 %v337
        %v1253 = vpop.f32.mrb[0].mxu0
        %v1254 = vadd.f32 0.0, %v1253
        %v1255 = vpop.f32.mrb[0].mxu0
        %1256 = vmatprep.mubr.f32.mxu0 0.0
        %1257 = vmatmul.mubr.f32.gmra.mrb[0].mxu0 %v748
        %v1258 = vpop.f32.mrb[0].mxu0
        %v1259 = vadd.f32 0.0, %v1258
        %v1260 = vpop.f32.mrb[0].mxu0
        %1261 = vmatprep.mubr.f32.mxu0 0.0
        %1262 = vmatmul.mubr.f32.gmra.mrb[0].mxu0 %v1144
        %v1263 = vpop.f32.mrb[0].mxu0
        %v1264 = vadd.f32 0.0, %v1263
        %v1265 = vpop.f32.mrb[0].mxu0
        %1266 = vdwg.mxu0
        %v1267 = vadd.f32 %v1134, %v1229
        %v1268 = vadd.f32 %v1135, %v1234
        %v1269 = vadd.f32 %v1136, %v1239
        %v1270 = vadd.f32 %v1137, %v1244
        %v1271 = vadd.f32 %v1138, %v1249
        %v1272 = vadd.f32 %v1139, %v1254
        %v1273 = vadd.f32 %v1140, %v1259
        %v1274 = vadd.f32 %v1141, %v1264
        %s1275 = scalar_lea.vmem [#allocation2], 896
        %v1276 = vld [vmem:[%s1275] sm:$0xff]
        %v1277 = vld [vmem:[%s1275 + $0x8] sm:$0xff]
        %v1278 = vld [vmem:[%s1275 + $0x10] sm:$0xff]
        %v1279 = vld [vmem:[%s1275 + $0x18] sm:$0xff]
        %v1280 = vld [vmem:[%s1275 + $0x20] sm:$0xff]
        %v1281 = vld [vmem:[%s1275 + $0x28] sm:$0xff]
        %v1282 = vld [vmem:[%s1275 + $0x30] sm:$0xff]
        %v1283 = vld [vmem:[%s1275 + $0x38] sm:$0xff]
        %v1284 = vld [vmem:[%s1275 + $0x40] sm:$0xff]
        %v1285 = vld [vmem:[%s1275 + $0x48] sm:$0xff]
        %v1286 = vld [vmem:[%s1275 + $0x50] sm:$0xff]
        %v1287 = vld [vmem:[%s1275 + $0x58] sm:$0xff]
        %v1288 = vld [vmem:[%s1275 + $0x60] sm:$0xff]
        %v1289 = vld [vmem:[%s1275 + $0x68] sm:$0xff]
        %v1290 = vld [vmem:[%s1275 + $0x70] sm:$0xff]
        %v1291 = vld [vmem:[%s1275 + $0x78] sm:$0xff]
        %1292 = vmatprep.subr.mxu0 0.0
        %1293 = vmatpush1.msra.mxu0 %v1276
        %1294 = vmatprep.subr.mxu0 0.0
        %1295 = vmatpush1.msra.mxu0 %v1277
        %1296 = vmatprep.subr.mxu0 0.0
        %1297 = vmatpush1.msra.mxu0 %v1278
        %1298 = vmatprep.subr.mxu0 0.0
        %1299 = vmatpush1.msra.mxu0 %v1279
        %1300 = vmatprep.subr.mxu0 0.0
        %1301 = vmatpush1.msra.mxu0 %v1280
        %1302 = vmatprep.subr.mxu0 0.0
        %1303 = vmatpush1.msra.mxu0 %v1281
        %1304 = vmatprep.subr.mxu0 0.0
        %1305 = vmatpush1.msra.mxu0 %v1282
        %1306 = vmatprep.subr.mxu0 0.0
        %1307 = vmatpush1.msra.mxu0 %v1283
        %1308 = vmatprep.subr.mxu0 0.0
        %1309 = vmatpush1.msra.mxu0 %v1284
        %1310 = vmatprep.subr.mxu0 0.0
        %1311 = vmatpush1.msra.mxu0 %v1285
        %1312 = vmatprep.subr.mxu0 0.0
        %1313 = vmatpush1.msra.mxu0 %v1286
        %1314 = vmatprep.subr.mxu0 0.0
        %1315 = vmatpush1.msra.mxu0 %v1287
        %1316 = vmatprep.subr.mxu0 0.0
        %1317 = vmatpush1.msra.mxu0 %v1288
        %1318 = vmatprep.subr.mxu0 0.0
        %1319 = vmatpush1.msra.mxu0 %v1289
        %1320 = vmatprep.subr.mxu0 0.0
        %1321 = vmatpush1.msra.mxu0 %v1290
        %1322 = vmatprep.subr.mxu0 0.0
        %1323 = vmatpush1.msra.mxu0 %v1291
        %1324 = vmatprep.subr.mxu0 0.0
        %1325 = vmatpush1.msra.mxu0 0.0
        %1326 = vmatprep.subr.mxu0 0.0
        %1327 = vmatpush1.msra.mxu0 0.0
        %1328 = vmatprep.subr.mxu0 0.0
        %1329 = vmatpush1.msra.mxu0 0.0
        %1330 = vmatprep.subr.mxu0 0.0
        %1331 = vmatpush1.msra.mxu0 0.0
        %1332 = vmatprep.subr.mxu0 0.0
        %1333 = vmatpush1.msra.mxu0 0.0
        %1334 = vmatprep.subr.mxu0 0.0
        %1335 = vmatpush1.msra.mxu0 0.0
        %1336 = vmatprep.subr.mxu0 0.0
        %1337 = vmatpush1.msra.mxu0 0.0
        %1338 = vmatprep.subr.mxu0 0.0
        %1339 = vmatpush1.msra.mxu0 0.0
        %1340 = vmatprep.subr.mxu0 0.0
        %1341 = vmatpush1.msra.mxu0 0.0
        %1342 = vmatprep.subr.mxu0 0.0
        %1343 = vmatpush1.msra.mxu0 0.0
        %1344 = vmatprep.subr.mxu0 0.0
        %1345 = vmatpush1.msra.mxu0 0.0
        %1346 = vmatprep.subr.mxu0 0.0
        %1347 = vmatpush1.msra.mxu0 0.0
        %1348 = vmatprep.subr.mxu0 0.0
        %1349 = vmatpush1.msra.mxu0 0.0
        %1350 = vmatprep.subr.mxu0 0.0
        %1351 = vmatpush1.msra.mxu0 0.0
        %1352 = vmatprep.subr.mxu0 0.0
        %1353 = vmatpush1.msra.mxu0 0.0
        %1354 = vmatprep.subr.mxu0 0.0
        %1355 = vmatpush1.msra.mxu0 0.0
        %1356 = vmatprep.mubr.f32.mxu0 0.0
        %1357 = vmatmul.mubr.f32.gmra.mrb[0].mxu0 %v291
        %v1358 = vpop.f32.mrb[0].mxu0
        %v1359 = vadd.f32 0.0, %v1358
        %v1360 = vpop.f32.mrb[0].mxu0
        %1361 = vmatprep.mubr.f32.mxu0 0.0
        %1362 = vmatmul.mubr.f32.gmra.mrb[0].mxu0 %v292
        %v1363 = vpop.f32.mrb[0].mxu0
        %v1364 = vadd.f32 0.0, %v1363
        %v1365 = vpop.f32.mrb[0].mxu0
        %1366 = vmatprep.mubr.f32.mxu0 0.0
        %1367 = vmatmul.mubr.f32.gmra.mrb[0].mxu0 %v293
        %v1368 = vpop.f32.mrb[0].mxu0
        %v1369 = vadd.f32 0.0, %v1368
        %v1370 = vpop.f32.mrb[0].mxu0
        %1371 = vmatprep.mubr.f32.mxu0 0.0
        %1372 = vmatmul.mubr.f32.gmra.mrb[0].mxu0 %v294
        %v1373 = vpop.f32.mrb[0].mxu0
        %v1374 = vadd.f32 0.0, %v1373
        %v1375 = vpop.f32.mrb[0].mxu0
        %1376 = vmatprep.mubr.f32.mxu0 0.0
        %1377 = vmatmul.mubr.f32.gmra.mrb[0].mxu0 %v295
        %v1378 = vpop.f32.mrb[0].mxu0
        %v1379 = vadd.f32 0.0, %v1378
        %v1380 = vpop.f32.mrb[0].mxu0
        %1381 = vmatprep.mubr.f32.mxu0 0.0
        %1382 = vmatmul.mubr.f32.gmra.mrb[0].mxu0 %v296
        %v1383 = vpop.f32.mrb[0].mxu0
        %v1384 = vadd.f32 0.0, %v1383
        %v1385 = vpop.f32.mrb[0].mxu0
        %1386 = vmatprep.mubr.f32.mxu0 0.0
        %1387 = vmatmul.mubr.f32.gmra.mrb[0].mxu0 %v297
        %v1388 = vpop.f32.mrb[0].mxu0
        %v1389 = vadd.f32 0.0, %v1388
        %v1390 = vpop.f32.mrb[0].mxu0
        %1391 = vmatprep.mubr.f32.mxu0 0.0
        %1392 = vmatmul.mubr.f32.gmra.mrb[0].mxu0 0.0
        %v1393 = vpop.f32.mrb[0].mxu0
        %v1394 = vadd.f32 0.0, %v1393
        %v1395 = vpop.f32.mrb[0].mxu0
        %1396 = vdwg.mxu0
        %v1397 = vadd.f32 %v1267, %v1359
        %v1398 = vadd.f32 %v1268, %v1364
        %v1399 = vadd.f32 %v1269, %v1369
        %v1400 = vadd.f32 %v1270, %v1374
        %v1401 = vadd.f32 %v1271, %v1379
        %v1402 = vadd.f32 %v1272, %v1384
        %v1403 = vadd.f32 %v1273, %v1389
        %v1404 = vadd.f32 %v1274, %v1394
        %s1405 = scalar_lea.vmem [#allocation2], 1024
        %v1406 = vld [vmem:[%s1405] sm:$0xff]
        %v1407 = vld [vmem:[%s1405 + $0x8] sm:$0xff]
        %v1408 = vld [vmem:[%s1405 + $0x10] sm:$0xff]
        %v1409 = vld [vmem:[%s1405 + $0x18] sm:$0xff]
        %v1410 = vld [vmem:[%s1405 + $0x20] sm:$0xff]
        %v1411 = vld [vmem:[%s1405 + $0x28] sm:$0xff]
        %v1412 = vld [vmem:[%s1405 + $0x30] sm:$0xff]
        %v1413 = vld [vmem:[%s1405 + $0x38] sm:$0xff]
        %v1414 = vld [vmem:[%s1405 + $0x40] sm:$0xff]
        %v1415 = vld [vmem:[%s1405 + $0x48] sm:$0xff]
        %v1416 = vld [vmem:[%s1405 + $0x50] sm:$0xff]
        %v1417 = vld [vmem:[%s1405 + $0x58] sm:$0xff]
        %v1418 = vld [vmem:[%s1405 + $0x60] sm:$0xff]
        %v1419 = vld [vmem:[%s1405 + $0x68] sm:$0xff]
        %v1420 = vld [vmem:[%s1405 + $0x70] sm:$0xff]
        %v1421 = vld [vmem:[%s1405 + $0x78] sm:$0xff]
        %1422 = vmatprep.subr.mxu0 0.0
        %1423 = vmatpush1.msra.mxu0 %v1406
        %1424 = vmatprep.subr.mxu0 0.0
        %1425 = vmatpush1.msra.mxu0 %v1407
        %1426 = vmatprep.subr.mxu0 0.0
        %1427 = vmatpush1.msra.mxu0 %v1408
        %1428 = vmatprep.subr.mxu0 0.0
        %1429 = vmatpush1.msra.mxu0 %v1409
        %1430 = vmatprep.subr.mxu0 0.0
        %1431 = vmatpush1.msra.mxu0 %v1410
        %1432 = vmatprep.subr.mxu0 0.0
        %1433 = vmatpush1.msra.mxu0 %v1411
        %1434 = vmatprep.subr.mxu0 0.0
        %1435 = vmatpush1.msra.mxu0 %v1412
        %1436 = vmatprep.subr.mxu0 0.0
        %1437 = vmatpush1.msra.mxu0 %v1413
        %1438 = vmatprep.subr.mxu0 0.0
        %1439 = vmatpush1.msra.mxu0 %v1414
        %1440 = vmatprep.subr.mxu0 0.0
        %1441 = vmatpush1.msra.mxu0 %v1415
        %1442 = vmatprep.subr.mxu0 0.0
        %1443 = vmatpush1.msra.mxu0 %v1416
        %1444 = vmatprep.subr.mxu0 0.0
        %1445 = vmatpush1.msra.mxu0 %v1417
        %1446 = vmatprep.subr.mxu0 0.0
        %1447 = vmatpush1.msra.mxu0 %v1418
        %1448 = vmatprep.subr.mxu0 0.0
        %1449 = vmatpush1.msra.mxu0 %v1419
        %1450 = vmatprep.subr.mxu0 0.0
        %1451 = vmatpush1.msra.mxu0 %v1420
        %1452 = vmatprep.subr.mxu0 0.0
        %1453 = vmatpush1.msra.mxu0 %v1421
        %1454 = vmatprep.subr.mxu0 0.0
        %1455 = vmatpush1.msra.mxu0 0.0
        %1456 = vmatprep.subr.mxu0 0.0
        %1457 = vmatpush1.msra.mxu0 0.0
        %1458 = vmatprep.subr.mxu0 0.0
        %1459 = vmatpush1.msra.mxu0 0.0
        %1460 = vmatprep.subr.mxu0 0.0
        %1461 = vmatpush1.msra.mxu0 0.0
        %1462 = vmatprep.subr.mxu0 0.0
        %1463 = vmatpush1.msra.mxu0 0.0
        %1464 = vmatprep.subr.mxu0 0.0
        %1465 = vmatpush1.msra.mxu0 0.0
        %1466 = vmatprep.subr.mxu0 0.0
        %1467 = vmatpush1.msra.mxu0 0.0
        %1468 = vmatprep.subr.mxu0 0.0
        %1469 = vmatpush1.msra.mxu0 0.0
        %1470 = vmatprep.subr.mxu0 0.0
        %1471 = vmatpush1.msra.mxu0 0.0
        %1472 = vmatprep.subr.mxu0 0.0
        %1473 = vmatpush1.msra.mxu0 0.0
        %1474 = vmatprep.subr.mxu0 0.0
        %1475 = vmatpush1.msra.mxu0 0.0
        %1476 = vmatprep.subr.mxu0 0.0
        %1477 = vmatpush1.msra.mxu0 0.0
        %1478 = vmatprep.subr.mxu0 0.0
        %1479 = vmatpush1.msra.mxu0 0.0
        %1480 = vmatprep.subr.mxu0 0.0
        %1481 = vmatpush1.msra.mxu0 0.0
        %1482 = vmatprep.subr.mxu0 0.0
        %1483 = vmatpush1.msra.mxu0 0.0
        %1484 = vmatprep.subr.mxu0 0.0
        %1485 = vmatpush1.msra.mxu0 0.0
        %1486 = vmatprep.mubr.f32.mxu0 0.0
        %1487 = vmatmul.mubr.f32.gmra.mrb[0].mxu0 %v609
        %v1488 = vpop.f32.mrb[0].mxu0
        %v1489 = vadd.f32 0.0, %v1488
        %v1490 = vpop.f32.mrb[0].mxu0
        %1491 = vmatprep.mubr.f32.mxu0 0.0
        %1492 = vmatmul.mubr.f32.gmra.mrb[0].mxu0 %v610
        %v1493 = vpop.f32.mrb[0].mxu0
        %v1494 = vadd.f32 0.0, %v1493
        %v1495 = vpop.f32.mrb[0].mxu0
        %1496 = vmatprep.mubr.f32.mxu0 0.0
        %1497 = vmatmul.mubr.f32.gmra.mrb[0].mxu0 %v611
        %v1498 = vpop.f32.mrb[0].mxu0
        %v1499 = vadd.f32 0.0, %v1498
        %v1500 = vpop.f32.mrb[0].mxu0
        %1501 = vmatprep.mubr.f32.mxu0 0.0
        %1502 = vmatmul.mubr.f32.gmra.mrb[0].mxu0 %v612
        %v1503 = vpop.f32.mrb[0].mxu0
        %v1504 = vadd.f32 0.0, %v1503
        %v1505 = vpop.f32.mrb[0].mxu0
        %1506 = vmatprep.mubr.f32.mxu0 0.0
        %1507 = vmatmul.mubr.f32.gmra.mrb[0].mxu0 %v613
        %v1508 = vpop.f32.mrb[0].mxu0
        %v1509 = vadd.f32 0.0, %v1508
        %v1510 = vpop.f32.mrb[0].mxu0
        %1511 = vmatprep.mubr.f32.mxu0 0.0
        %1512 = vmatmul.mubr.f32.gmra.mrb[0].mxu0 %v614
        %v1513 = vpop.f32.mrb[0].mxu0
        %v1514 = vadd.f32 0.0, %v1513
        %v1515 = vpop.f32.mrb[0].mxu0
        %1516 = vmatprep.mubr.f32.mxu0 0.0
        %1517 = vmatmul.mubr.f32.gmra.mrb[0].mxu0 %v1011
        %v1518 = vpop.f32.mrb[0].mxu0
        %v1519 = vadd.f32 0.0, %v1518
        %v1520 = vpop.f32.mrb[0].mxu0
        %1521 = vmatprep.mubr.f32.mxu0 0.0
        %1522 = vmatmul.mubr.f32.gmra.mrb[0].mxu0 0.0
        %v1523 = vpop.f32.mrb[0].mxu0
        %v1524 = vadd.f32 0.0, %v1523
        %v1525 = vpop.f32.mrb[0].mxu0
        %1526 = vdwg.mxu0
        %v1527 = vadd.f32 %v1397, %v1489
        %v1528 = vadd.f32 %v1398, %v1494
        %v1529 = vadd.f32 %v1399, %v1499
        %v1530 = vadd.f32 %v1400, %v1504
        %v1531 = vadd.f32 %v1401, %v1509
        %v1532 = vadd.f32 %v1402, %v1514
        %v1533 = vadd.f32 %v1403, %v1519
        %v1534 = vadd.f32 %v1404, %v1524
        %v1535 = vld [vmem:[%s2] sm:$0x1]
        %v1537 = vlaneseq
        %v1538 = vshrl.u32 %v1537, 7
        %v1539 = vsub.s32 0, %v1538
        %v1540 = vrot.slane %v1535, %v1539
        %v1542 = vadd.f32 %v1527, %v1540
        %v1543 = vadd.f32 %v1528, %v1540
        %v1544 = vadd.f32 %v1529, %v1540
        %v1545 = vadd.f32 %v1530, %v1540
        %v1546 = vadd.f32 %v1531, %v1540
        %v1547 = vadd.f32 %v1532, %v1540
        %v1548 = vadd.f32 %v1533, %v1540
        %v1549 = vadd.f32 %v1534, %v1540
        %v1550 = vmax.f32 %v1542, 0.0
        %v1551 = vmax.f32 %v1543, 0.0
        %v1552 = vmax.f32 %v1544, 0.0
        %v1553 = vmax.f32 %v1545, 0.0
        %v1554 = vmax.f32 %v1546, 0.0
        %v1555 = vmax.f32 %v1547, 0.0
        %v1556 = vmax.f32 %v1548, 0.0
        %v1557 = vmax.f32 %v1549, 0.0
        %v1558 = vld [vmem:[%s3] sm:$0xff]
        %v1559 = vld [vmem:[%s3 + $0x8] sm:$0x1]
        %v1567 = vrot.slane %v1550, 7
        %v1568 = vrot.slane %v1551, 7
        %v1569 = vsel %vm309, %v1567, %v1568
        %v1570 = vrot.slane %v1552, 7
        %v1571 = vsel %vm309, %v1568, %v1570
        %v1572 = vrot.slane %v1553, 7
        %v1573 = vsel %vm309, %v1570, %v1572
        %v1574 = vrot.slane %v1554, 7
        %v1575 = vsel %vm309, %v1572, %v1574
        %v1576 = vrot.slane %v1555, 7
        %v1577 = vsel %vm309, %v1574, %v1576
        %v1578 = vrot.slane %v1556, 7
        %v1579 = vsel %vm309, %v1576, %v1578
        %v1587 = vsel %vm309, 0.0, %v1567
        %v1588 = vsel %vm300, %v1587, 0.0
        %v1589 = vsel %vm300, %v1569, 0.0
        %v1590 = vsel %vm300, %v1571, 0.0
        %v1591 = vsel %vm300, %v1573, 0.0
        %v1592 = vsel %vm300, %v1575, 0.0
        %v1593 = vsel %vm300, %v1577, 0.0
        %v1594 = vsel %vm300, %v1579, 0.0
        %v1595 = vlaneseq
        %v1596 = vshrl.u32 %v1595, 7
        %v1597 = vsub.s32 0, %v1596
        %v1598 = vrot.slane %v1558, %v1597
        %v1599 = vmul.f32 %v1598, 0.0
        %v1600 = vmul.f32 %v1588, %v1598
        %v1601 = vmul.f32 %v1589, %v1598
        %v1602 = vmul.f32 %v1590, %v1598
        %v1603 = vmul.f32 %v1591, %v1598
        %v1604 = vmul.f32 %v1592, %v1598
        %v1605 = vmul.f32 %v1593, %v1598
        %v1606 = vmul.f32 %v1594, %v1598
        %v1607 = vlaneseq
        %v1608 = vshrl.u32 %v1607, 7
        %v1609 = vsub.s32 1, %v1608
        %v1610 = vrot.slane %v1558, %v1609
        %v1611 = vmul.f32 %v1610, 0.0
        %v1612 = vmul.f32 %v1550, %v1610
        %v1613 = vmul.f32 %v1551, %v1610
        %v1614 = vmul.f32 %v1552, %v1610
        %v1615 = vmul.f32 %v1553, %v1610
        %v1616 = vmul.f32 %v1554, %v1610
        %v1617 = vmul.f32 %v1555, %v1610
        %v1618 = vmul.f32 %v1556, %v1610
        %v1619 = vadd.f32 %v1599, %v1611
        %v1620 = vadd.f32 %v1600, %v1612
        %v1621 = vadd.f32 %v1601, %v1613
        %v1622 = vadd.f32 %v1602, %v1614
        %v1623 = vadd.f32 %v1603, %v1615
        %v1624 = vadd.f32 %v1604, %v1616
        %v1625 = vadd.f32 %v1605, %v1617
        %v1626 = vadd.f32 %v1606, %v1618
        %v1628 = vrot.slane %v1550, 1
        %v1629 = vrot.slane %v1551, 1
        %v1630 = vsel %vm582, %v1628, %v1629
        %v1631 = vrot.slane %v1552, 1
        %v1632 = vsel %vm582, %v1629, %v1631
        %v1633 = vrot.slane %v1553, 1
        %v1634 = vsel %vm582, %v1631, %v1633
        %v1635 = vrot.slane %v1554, 1
        %v1636 = vsel %vm582, %v1633, %v1635
        %v1637 = vrot.slane %v1555, 1
        %v1638 = vsel %vm582, %v1635, %v1637
        %v1639 = vrot.slane %v1556, 1
        %v1640 = vsel %vm582, %v1637, %v1639
        %v1641 = vrot.slane %v1557, 1
        %v1642 = vsel %vm582, %v1639, %v1641
        %v1651 = vsel %vm582, 0.0, %v1628
        %v1652 = vsel %vm301, %v1651, 0.0
        %v1653 = vsel %vm301, %v1630, 0.0
        %v1654 = vsel %vm301, %v1632, 0.0
        %v1655 = vsel %vm301, %v1634, 0.0
        %v1656 = vsel %vm301, %v1636, 0.0
        %v1657 = vsel %vm301, %v1638, 0.0
        %v1658 = vsel %vm301, %v1640, 0.0
        %v1659 = vsel %vm301, %v1642, 0.0
        %v1660 = vlaneseq
        %v1661 = vshrl.u32 %v1660, 7
        %v1662 = vsub.s32 2, %v1661
        %v1663 = vrot.slane %v1558, %v1662
        %v1664 = vmul.f32 %v1652, %v1663
        %v1665 = vmul.f32 %v1653, %v1663
        %v1666 = vmul.f32 %v1654, %v1663
        %v1667 = vmul.f32 %v1655, %v1663
        %v1668 = vmul.f32 %v1656, %v1663
        %v1669 = vmul.f32 %v1657, %v1663
        %v1670 = vmul.f32 %v1658, %v1663
        %v1671 = vmul.f32 %v1659, %v1663
        %v1672 = vadd.f32 %v1619, %v1664
        %v1673 = vadd.f32 %v1620, %v1665
        %v1674 = vadd.f32 %v1621, %v1666
        %v1675 = vadd.f32 %v1622, %v1667
        %v1676 = vadd.f32 %v1623, %v1668
        %v1677 = vadd.f32 %v1624, %v1669
        %v1678 = vadd.f32 %v1625, %v1670
        %v1679 = vadd.f32 %v1626, %v1671
        %v1680 = vrot.slane %v1557, 7
        %v1681 = vsel %vm309, %v1578, %v1680
        %v1683 = vsel %vm300, %v1681, 0.0
        %v1684 = vlaneseq
        %v1685 = vshrl.u32 %v1684, 7
        %v1686 = vsub.s32 3, %v1685
        %v1687 = vrot.slane %v1558, %v1686
        %v1688 = vmul.f32 %v1588, %v1687
        %v1689 = vmul.f32 %v1589, %v1687
        %v1690 = vmul.f32 %v1590, %v1687
        %v1691 = vmul.f32 %v1591, %v1687
        %v1692 = vmul.f32 %v1592, %v1687
        %v1693 = vmul.f32 %v1593, %v1687
        %v1694 = vmul.f32 %v1594, %v1687
        %v1695 = vmul.f32 %v1683, %v1687
        %v1696 = vadd.f32 %v1672, %v1688
        %v1697 = vadd.f32 %v1673, %v1689
        %v1698 = vadd.f32 %v1674, %v1690
        %v1699 = vadd.f32 %v1675, %v1691
        %v1700 = vadd.f32 %v1676, %v1692
        %v1701 = vadd.f32 %v1677, %v1693
        %v1702 = vadd.f32 %v1678, %v1694
        %v1703 = vadd.f32 %v1679, %v1695
        %v1704 = vlaneseq
        %v1705 = vshrl.u32 %v1704, 7
        %v1706 = vsub.s32 4, %v1705
        %v1707 = vrot.slane %v1558, %v1706
        %v1708 = vmul.f32 %v1550, %v1707
        %v1709 = vmul.f32 %v1551, %v1707
        %v1710 = vmul.f32 %v1552, %v1707
        %v1711 = vmul.f32 %v1553, %v1707
        %v1712 = vmul.f32 %v1554, %v1707
        %v1713 = vmul.f32 %v1555, %v1707
        %v1714 = vmul.f32 %v1556, %v1707
        %v1715 = vmul.f32 %v1557, %v1707
        %v1716 = vadd.f32 %v1696, %v1708
        %v1717 = vadd.f32 %v1697, %v1709
        %v1718 = vadd.f32 %v1698, %v1710
        %v1719 = vadd.f32 %v1699, %v1711
        %v1720 = vadd.f32 %v1700, %v1712
        %v1721 = vadd.f32 %v1701, %v1713
        %v1722 = vadd.f32 %v1702, %v1714
        %v1723 = vadd.f32 %v1703, %v1715
        %v1725 = vsel %vm582, %v1641, 0.0
        %v1726 = vsel %vm301, %v1725, 0.0
        %v1727 = vlaneseq
        %v1728 = vshrl.u32 %v1727, 7
        %v1729 = vsub.s32 5, %v1728
        %v1730 = vrot.slane %v1558, %v1729
        %v1731 = vmul.f32 %v1653, %v1730
        %v1732 = vmul.f32 %v1654, %v1730
        %v1733 = vmul.f32 %v1655, %v1730
        %v1734 = vmul.f32 %v1656, %v1730
        %v1735 = vmul.f32 %v1657, %v1730
        %v1736 = vmul.f32 %v1658, %v1730
        %v1737 = vmul.f32 %v1659, %v1730
        %v1738 = vmul.f32 %v1726, %v1730
        %v1739 = vadd.f32 %v1716, %v1731
        %v1740 = vadd.f32 %v1717, %v1732
        %v1741 = vadd.f32 %v1718, %v1733
        %v1742 = vadd.f32 %v1719, %v1734
        %v1743 = vadd.f32 %v1720, %v1735
        %v1744 = vadd.f32 %v1721, %v1736
        %v1745 = vadd.f32 %v1722, %v1737
        %v1746 = vadd.f32 %v1723, %v1738
        %v1748 = vsel %vm309, %v1680, 0.0
        %v1749 = vsel %vm300, %v1748, 0.0
        %v1750 = vlaneseq
        %v1751 = vshrl.u32 %v1750, 7
        %v1752 = vsub.s32 6, %v1751
        %v1753 = vrot.slane %v1558, %v1752
        %v1754 = vmul.f32 %v1589, %v1753
        %v1755 = vmul.f32 %v1590, %v1753
        %v1756 = vmul.f32 %v1591, %v1753
        %v1757 = vmul.f32 %v1592, %v1753
        %v1758 = vmul.f32 %v1593, %v1753
        %v1759 = vmul.f32 %v1594, %v1753
        %v1760 = vmul.f32 %v1683, %v1753
        %v1761 = vmul.f32 %v1749, %v1753
        %v1762 = vadd.f32 %v1739, %v1754
        %v1763 = vadd.f32 %v1740, %v1755
        %v1764 = vadd.f32 %v1741, %v1756
        %v1765 = vadd.f32 %v1742, %v1757
        %v1766 = vadd.f32 %v1743, %v1758
        %v1767 = vadd.f32 %v1744, %v1759
        %v1768 = vadd.f32 %v1745, %v1760
        %v1769 = vadd.f32 %v1746, %v1761
        %v1770 = vlaneseq
        %v1771 = vshrl.u32 %v1770, 7
        %v1772 = vsub.s32 7, %v1771
        %v1773 = vrot.slane %v1558, %v1772
        %v1774 = vmul.f32 %v1551, %v1773
        %v1775 = vmul.f32 %v1552, %v1773
        %v1776 = vmul.f32 %v1553, %v1773
        %v1777 = vmul.f32 %v1554, %v1773
        %v1778 = vmul.f32 %v1555, %v1773
        %v1779 = vmul.f32 %v1556, %v1773
        %v1780 = vmul.f32 %v1557, %v1773
        %v1781 = vmul.f32 %v1773, 0.0
        %v1782 = vadd.f32 %v1762, %v1774
        %v1783 = vadd.f32 %v1763, %v1775
        %v1784 = vadd.f32 %v1764, %v1776
        %v1785 = vadd.f32 %v1765, %v1777
        %v1786 = vadd.f32 %v1766, %v1778
        %v1787 = vadd.f32 %v1767, %v1779
        %v1788 = vadd.f32 %v1768, %v1780
        %v1789 = vadd.f32 %v1769, %v1781
        %v1790 = vlaneseq
        %v1791 = vshrl.u32 %v1790, 7
        %v1792 = vsub.s32 0, %v1791
        %v1793 = vrot.slane %v1559, %v1792
        %v1794 = vmul.f32 %v1654, %v1793
        %v1795 = vmul.f32 %v1655, %v1793
        %v1796 = vmul.f32 %v1656, %v1793
        %v1797 = vmul.f32 %v1657, %v1793
        %v1798 = vmul.f32 %v1658, %v1793
        %v1799 = vmul.f32 %v1659, %v1793
        %v1800 = vmul.f32 %v1726, %v1793
        %v1801 = vmul.f32 %v1793, 0.0
        %v1802 = vadd.f32 %v1782, %v1794
        %v1803 = vadd.f32 %v1783, %v1795
        %v1804 = vadd.f32 %v1784, %v1796
        %v1805 = vadd.f32 %v1785, %v1797
        %v1806 = vadd.f32 %v1786, %v1798
        %v1807 = vadd.f32 %v1787, %v1799
        %v1808 = vadd.f32 %v1788, %v1800
        %v1809 = vadd.f32 %v1789, %v1801
        %v1810 = vld [vmem:[%s4] sm:$0x1]
        %v1811 = vlaneseq
        %v1812 = vshrl.u32 %v1811, 7
        %v1813 = vsub.s32 0, %v1812
        %v1814 = vrot.slane %v1810, %v1813
        %v1815 = vadd.f32 %v1802, %v1814
        %v1816 = vadd.f32 %v1803, %v1814
        %v1817 = vadd.f32 %v1804, %v1814
        %v1818 = vadd.f32 %v1805, %v1814
        %v1819 = vadd.f32 %v1806, %v1814
        %v1820 = vadd.f32 %v1807, %v1814
        %v1821 = vadd.f32 %v1808, %v1814
        %v1822 = vadd.f32 %v1809, %v1814
        %v1823 = vld [vmem:[%s5] sm:$0xff]
        %v1824 = vld [vmem:[%s5 + $0x8] sm:$0xff]
        %v1825 = vld [vmem:[%s5 + $0x10] sm:$0xff]
        %v1826 = vld [vmem:[%s5 + $0x18] sm:$0xff]
        %v1827 = vld [vmem:[%s5 + $0x20] sm:$0xff]
        %v1828 = vld [vmem:[%s5 + $0x28] sm:$0xff]
        %v1829 = vld [vmem:[%s5 + $0x30] sm:$0xff]
        %v1830 = vld [vmem:[%s5 + $0x38] sm:$0xff]
        %v1831 = vld [vmem:[%s5 + $0x40] sm:$0xff]
        %v1832 = vld [vmem:[%s5 + $0x48] sm:$0xff]
        %v1833 = vld [vmem:[%s5 + $0x50] sm:$0xff]
        %v1834 = vld [vmem:[%s5 + $0x58] sm:$0xff]
        %v1835 = vld [vmem:[%s5 + $0x60] sm:$0xff]
        %v1836 = vld [vmem:[%s5 + $0x68] sm:$0xff]
        %v1837 = vld [vmem:[%s5 + $0x70] sm:$0xff]
        %v1838 = vld [vmem:[%s5 + $0x78] sm:$0xff]
        %v1839 = vld [vmem:[%s6] sm:$0x1]
        %v1840 = vlaneseq
        %v1841 = vshrl.u32 %v1840, 7
        %v1842 = vsub.s32 0, %v1841
        %v1843 = vrot.slane %v1839, %v1842
        %1844 = vmatprep.subr.mxu0 0.0
        %1845 = vmatpush1.msra.mxu0 %v1823
        %1846 = vmatprep.subr.mxu0 0.0
        %1847 = vmatpush1.msra.mxu0 %v1824
        %1848 = vmatprep.subr.mxu0 0.0
        %1849 = vmatpush1.msra.mxu0 %v1825
        %1850 = vmatprep.subr.mxu0 0.0
        %1851 = vmatpush1.msra.mxu0 %v1826
        %1852 = vmatprep.subr.mxu0 0.0
        %1853 = vmatpush1.msra.mxu0 %v1827
        %1854 = vmatprep.subr.mxu0 0.0
        %1855 = vmatpush1.msra.mxu0 %v1828
        %1856 = vmatprep.subr.mxu0 0.0
        %1857 = vmatpush1.msra.mxu0 %v1829
        %1858 = vmatprep.subr.mxu0 0.0
        %1859 = vmatpush1.msra.mxu0 %v1830
        %1860 = vmatprep.subr.mxu0 0.0
        %1861 = vmatpush1.msra.mxu0 %v1831
        %1862 = vmatprep.subr.mxu0 0.0
        %1863 = vmatpush1.msra.mxu0 %v1832
        %1864 = vmatprep.subr.mxu0 0.0
        %1865 = vmatpush1.msra.mxu0 %v1833
        %1866 = vmatprep.subr.mxu0 0.0
        %1867 = vmatpush1.msra.mxu0 %v1834
        %1868 = vmatprep.subr.mxu0 0.0
        %1869 = vmatpush1.msra.mxu0 %v1835
        %1870 = vmatprep.subr.mxu0 0.0
        %1871 = vmatpush1.msra.mxu0 %v1836
        %1872 = vmatprep.subr.mxu0 0.0
        %1873 = vmatpush1.msra.mxu0 %v1837
        %1874 = vmatprep.subr.mxu0 0.0
        %1875 = vmatpush1.msra.mxu0 %v1838
        %1876 = vmatprep.subr.mxu0 0.0
        %1877 = vmatpush1.msra.mxu0 0.0
        %1878 = vmatprep.subr.mxu0 0.0
        %1879 = vmatpush1.msra.mxu0 0.0
        %1880 = vmatprep.subr.mxu0 0.0
        %1881 = vmatpush1.msra.mxu0 0.0
        %1882 = vmatprep.subr.mxu0 0.0
        %1883 = vmatpush1.msra.mxu0 0.0
        %1884 = vmatprep.subr.mxu0 0.0
        %1885 = vmatpush1.msra.mxu0 0.0
        %1886 = vmatprep.subr.mxu0 0.0
        %1887 = vmatpush1.msra.mxu0 0.0
        %1888 = vmatprep.subr.mxu0 0.0
        %1889 = vmatpush1.msra.mxu0 0.0
        %1890 = vmatprep.subr.mxu0 0.0
        %1891 = vmatpush1.msra.mxu0 0.0
        %1892 = vmatprep.subr.mxu0 0.0
        %1893 = vmatpush1.msra.mxu0 0.0
        %1894 = vmatprep.subr.mxu0 0.0
        %1895 = vmatpush1.msra.mxu0 0.0
        %1896 = vmatprep.subr.mxu0 0.0
        %1897 = vmatpush1.msra.mxu0 0.0
        %1898 = vmatprep.subr.mxu0 0.0
        %1899 = vmatpush1.msra.mxu0 0.0
        %1900 = vmatprep.subr.mxu0 0.0
        %1901 = vmatpush1.msra.mxu0 0.0
        %1902 = vmatprep.subr.mxu0 0.0
        %1903 = vmatpush1.msra.mxu0 0.0
        %1904 = vmatprep.subr.mxu0 0.0
        %1905 = vmatpush1.msra.mxu0 0.0
        %1906 = vmatprep.subr.mxu0 0.0
        %1907 = vmatpush1.msra.mxu0 0.0
        %1908 = vmatprep.mubr.f32.mxu0 0.0
        %1909 = vmatmul.mubr.f32.gmra.mrb[0].mxu0 %v1815
        %v1910 = vpop.f32.mrb[0].mxu0
        %v1911 = vadd.f32 %v1843, %v1910
        %v1912 = vpop.f32.mrb[0].mxu0
        %1913 = vmatprep.mubr.f32.mxu0 0.0
        %1914 = vmatmul.mubr.f32.gmra.mrb[0].mxu0 %v1816
        %v1915 = vpop.f32.mrb[0].mxu0
        %v1916 = vadd.f32 %v1843, %v1915
        %v1917 = vpop.f32.mrb[0].mxu0
        %1918 = vmatprep.mubr.f32.mxu0 0.0
        %1919 = vmatmul.mubr.f32.gmra.mrb[0].mxu0 %v1817
        %v1920 = vpop.f32.mrb[0].mxu0
        %v1921 = vadd.f32 %v1843, %v1920
        %v1922 = vpop.f32.mrb[0].mxu0
        %1923 = vmatprep.mubr.f32.mxu0 0.0
        %1924 = vmatmul.mubr.f32.gmra.mrb[0].mxu0 %v1818
        %v1925 = vpop.f32.mrb[0].mxu0
        %v1926 = vadd.f32 %v1843, %v1925
        %v1927 = vpop.f32.mrb[0].mxu0
        %1928 = vmatprep.mubr.f32.mxu0 0.0
        %1929 = vmatmul.mubr.f32.gmra.mrb[0].mxu0 %v1819
        %v1930 = vpop.f32.mrb[0].mxu0
        %v1931 = vadd.f32 %v1843, %v1930
        %v1932 = vpop.f32.mrb[0].mxu0
        %1933 = vmatprep.mubr.f32.mxu0 0.0
        %1934 = vmatmul.mubr.f32.gmra.mrb[0].mxu0 %v1820
        %v1935 = vpop.f32.mrb[0].mxu0
        %v1936 = vadd.f32 %v1843, %v1935
        %v1937 = vpop.f32.mrb[0].mxu0
        %1938 = vmatprep.mubr.f32.mxu0 0.0
        %1939 = vmatmul.mubr.f32.gmra.mrb[0].mxu0 %v1821
        %v1940 = vpop.f32.mrb[0].mxu0
        %v1941 = vadd.f32 %v1843, %v1940
        %v1942 = vpop.f32.mrb[0].mxu0
        %1943 = vmatprep.mubr.f32.mxu0 0.0
        %1944 = vmatmul.mubr.f32.gmra.mrb[0].mxu0 %v1822
        %v1945 = vpop.f32.mrb[0].mxu0
        %v1946 = vadd.f32 %v1843, %v1945
        %v1947 = vpop.f32.mrb[0].mxu0
        %1948 = vdwg.mxu0
        %v1949 = vadd.f32 %v1911, %v1550
        %v1950 = vadd.f32 %v1916, %v1551
        %v1951 = vadd.f32 %v1921, %v1552
        %v1952 = vadd.f32 %v1926, %v1553
        %v1953 = vadd.f32 %v1931, %v1554
        %v1954 = vadd.f32 %v1936, %v1555
        %v1955 = vadd.f32 %v1941, %v1556
        %v1956 = vadd.f32 %v1946, %v1557
        %v1957 = vmax.f32 %v1949, 0.0
        %v1958 = vmax.f32 %v1950, 0.0
        %v1959 = vmax.f32 %v1951, 0.0
        %v1960 = vmax.f32 %v1952, 0.0
        %v1961 = vmax.f32 %v1953, 0.0
        %v1962 = vmax.f32 %v1954, 0.0
        %v1963 = vmax.f32 %v1955, 0.0
        %v1964 = vmax.f32 %v1956, 0.0
        %s1965 = scalar_lea.vmem %s3, 16
        %v1966 = vld [vmem:[%s1965] sm:$0xff]
        %v1967 = vld [vmem:[%s1965 + $0x8] sm:$0x1]
        %v1975 = vrot.slane %v1957, 7
        %v1976 = vrot.slane %v1958, 7
        %v1977 = vsel %vm309, %v1975, %v1976
        %v1978 = vrot.slane %v1959, 7
        %v1979 = vsel %vm309, %v1976, %v1978
        %v1980 = vrot.slane %v1960, 7
        %v1981 = vsel %vm309, %v1978, %v1980
        %v1982 = vrot.slane %v1961, 7
        %v1983 = vsel %vm309, %v1980, %v1982
        %v1984 = vrot.slane %v1962, 7
        %v1985 = vsel %vm309, %v1982, %v1984
        %v1986 = vrot.slane %v1963, 7
        %v1987 = vsel %vm309, %v1984, %v1986
        %v1995 = vsel %vm309, 0.0, %v1975
        %v1996 = vsel %vm300, %v1995, 0.0
        %v1997 = vsel %vm300, %v1977, 0.0
        %v1998 = vsel %vm300, %v1979, 0.0
        %v1999 = vsel %vm300, %v1981, 0.0
        %v2000 = vsel %vm300, %v1983, 0.0
        %v2001 = vsel %vm300, %v1985, 0.0
        %v2002 = vsel %vm300, %v1987, 0.0
        %v2003 = vlaneseq
        %v2004 = vshrl.u32 %v2003, 7
        %v2005 = vsub.s32 0, %v2004
        %v2006 = vrot.slane %v1966, %v2005
        %v2007 = vmul.f32 %v2006, 0.0
        %v2008 = vmul.f32 %v1996, %v2006
        %v2009 = vmul.f32 %v1997, %v2006
        %v2010 = vmul.f32 %v1998, %v2006
        %v2011 = vmul.f32 %v1999, %v2006
        %v2012 = vmul.f32 %v2000, %v2006
        %v2013 = vmul.f32 %v2001, %v2006
        %v2014 = vmul.f32 %v2002, %v2006
        %v2015 = vlaneseq
        %v2016 = vshrl.u32 %v2015, 7
        %v2017 = vsub.s32 1, %v2016
        %v2018 = vrot.slane %v1966, %v2017
        %v2019 = vmul.f32 %v2018, 0.0
        %v2020 = vmul.f32 %v1957, %v2018
        %v2021 = vmul.f32 %v1958, %v2018
        %v2022 = vmul.f32 %v1959, %v2018
        %v2023 = vmul.f32 %v1960, %v2018
        %v2024 = vmul.f32 %v1961, %v2018
        %v2025 = vmul.f32 %v1962, %v2018
        %v2026 = vmul.f32 %v1963, %v2018
        %v2027 = vadd.f32 %v2007, %v2019
        %v2028 = vadd.f32 %v2008, %v2020
        %v2029 = vadd.f32 %v2009, %v2021
        %v2030 = vadd.f32 %v2010, %v2022
        %v2031 = vadd.f32 %v2011, %v2023
        %v2032 = vadd.f32 %v2012, %v2024
        %v2033 = vadd.f32 %v2013, %v2025
        %v2034 = vadd.f32 %v2014, %v2026
        %v2036 = vrot.slane %v1957, 1
        %v2037 = vrot.slane %v1958, 1
        %v2038 = vsel %vm582, %v2036, %v2037
        %v2039 = vrot.slane %v1959, 1
        %v2040 = vsel %vm582, %v2037, %v2039
        %v2041 = vrot.slane %v1960, 1
        %v2042 = vsel %vm582, %v2039, %v2041
        %v2043 = vrot.slane %v1961, 1
        %v2044 = vsel %vm582, %v2041, %v2043
        %v2045 = vrot.slane %v1962, 1
        %v2046 = vsel %vm582, %v2043, %v2045
        %v2047 = vrot.slane %v1963, 1
        %v2048 = vsel %vm582, %v2045, %v2047
        %v2049 = vrot.slane %v1964, 1
        %v2050 = vsel %vm582, %v2047, %v2049
        %v2059 = vsel %vm582, 0.0, %v2036
        %v2060 = vsel %vm301, %v2059, 0.0
        %v2061 = vsel %vm301, %v2038, 0.0
        %v2062 = vsel %vm301, %v2040, 0.0
        %v2063 = vsel %vm301, %v2042, 0.0
        %v2064 = vsel %vm301, %v2044, 0.0
        %v2065 = vsel %vm301, %v2046, 0.0
        %v2066 = vsel %vm301, %v2048, 0.0
        %v2067 = vsel %vm301, %v2050, 0.0
        %v2068 = vlaneseq
        %v2069 = vshrl.u32 %v2068, 7
        %v2070 = vsub.s32 2, %v2069
        %v2071 = vrot.slane %v1966, %v2070
        %v2072 = vmul.f32 %v2060, %v2071
        %v2073 = vmul.f32 %v2061, %v2071
        %v2074 = vmul.f32 %v2062, %v2071
        %v2075 = vmul.f32 %v2063, %v2071
        %v2076 = vmul.f32 %v2064, %v2071
        %v2077 = vmul.f32 %v2065, %v2071
        %v2078 = vmul.f32 %v2066, %v2071
        %v2079 = vmul.f32 %v2067, %v2071
        %v2080 = vadd.f32 %v2027, %v2072
        %v2081 = vadd.f32 %v2028, %v2073
        %v2082 = vadd.f32 %v2029, %v2074
        %v2083 = vadd.f32 %v2030, %v2075
        %v2084 = vadd.f32 %v2031, %v2076
        %v2085 = vadd.f32 %v2032, %v2077
        %v2086 = vadd.f32 %v2033, %v2078
        %v2087 = vadd.f32 %v2034, %v2079
        %v2088 = vrot.slane %v1964, 7
        %v2089 = vsel %vm309, %v1986, %v2088
        %v2091 = vsel %vm300, %v2089, 0.0
        %v2092 = vlaneseq
        %v2093 = vshrl.u32 %v2092, 7
        %v2094 = vsub.s32 3, %v2093
        %v2095 = vrot.slane %v1966, %v2094
        %v2096 = vmul.f32 %v1996, %v2095
        %v2097 = vmul.f32 %v1997, %v2095
        %v2098 = vmul.f32 %v1998, %v2095
        %v2099 = vmul.f32 %v1999, %v2095
        %v2100 = vmul.f32 %v2000, %v2095
        %v2101 = vmul.f32 %v2001, %v2095
        %v2102 = vmul.f32 %v2002, %v2095
        %v2103 = vmul.f32 %v2091, %v2095
        %v2104 = vadd.f32 %v2080, %v2096
        %v2105 = vadd.f32 %v2081, %v2097
        %v2106 = vadd.f32 %v2082, %v2098
        %v2107 = vadd.f32 %v2083, %v2099
        %v2108 = vadd.f32 %v2084, %v2100
        %v2109 = vadd.f32 %v2085, %v2101
        %v2110 = vadd.f32 %v2086, %v2102
        %v2111 = vadd.f32 %v2087, %v2103
        %v2112 = vlaneseq
        %v2113 = vshrl.u32 %v2112, 7
        %v2114 = vsub.s32 4, %v2113
        %v2115 = vrot.slane %v1966, %v2114
        %v2116 = vmul.f32 %v1957, %v2115
        %v2117 = vmul.f32 %v1958, %v2115
        %v2118 = vmul.f32 %v1959, %v2115
        %v2119 = vmul.f32 %v1960, %v2115
        %v2120 = vmul.f32 %v1961, %v2115
        %v2121 = vmul.f32 %v1962, %v2115
        %v2122 = vmul.f32 %v1963, %v2115
        %v2123 = vmul.f32 %v1964, %v2115
        %v2124 = vadd.f32 %v2104, %v2116
        %v2125 = vadd.f32 %v2105, %v2117
        %v2126 = vadd.f32 %v2106, %v2118
        %v2127 = vadd.f32 %v2107, %v2119
        %v2128 = vadd.f32 %v2108, %v2120
        %v2129 = vadd.f32 %v2109, %v2121
        %v2130 = vadd.f32 %v2110, %v2122
        %v2131 = vadd.f32 %v2111, %v2123
        %v2133 = vsel %vm582, %v2049, 0.0
        %v2134 = vsel %vm301, %v2133, 0.0
        %v2135 = vlaneseq
        %v2136 = vshrl.u32 %v2135, 7
        %v2137 = vsub.s32 5, %v2136
        %v2138 = vrot.slane %v1966, %v2137
        %v2139 = vmul.f32 %v2061, %v2138
        %v2140 = vmul.f32 %v2062, %v2138
        %v2141 = vmul.f32 %v2063, %v2138
        %v2142 = vmul.f32 %v2064, %v2138
        %v2143 = vmul.f32 %v2065, %v2138
        %v2144 = vmul.f32 %v2066, %v2138
        %v2145 = vmul.f32 %v2067, %v2138
        %v2146 = vmul.f32 %v2134, %v2138
        %v2147 = vadd.f32 %v2124, %v2139
        %v2148 = vadd.f32 %v2125, %v2140
        %v2149 = vadd.f32 %v2126, %v2141
        %v2150 = vadd.f32 %v2127, %v2142
        %v2151 = vadd.f32 %v2128, %v2143
        %v2152 = vadd.f32 %v2129, %v2144
        %v2153 = vadd.f32 %v2130, %v2145
        %v2154 = vadd.f32 %v2131, %v2146
        %v2156 = vsel %vm309, %v2088, 0.0
        %v2157 = vsel %vm300, %v2156, 0.0
        %v2158 = vlaneseq
        %v2159 = vshrl.u32 %v2158, 7
        %v2160 = vsub.s32 6, %v2159
        %v2161 = vrot.slane %v1966, %v2160
        %v2162 = vmul.f32 %v1997, %v2161
        %v2163 = vmul.f32 %v1998, %v2161
        %v2164 = vmul.f32 %v1999, %v2161
        %v2165 = vmul.f32 %v2000, %v2161
        %v2166 = vmul.f32 %v2001, %v2161
        %v2167 = vmul.f32 %v2002, %v2161
        %v2168 = vmul.f32 %v2091, %v2161
        %v2169 = vmul.f32 %v2157, %v2161
        %v2170 = vadd.f32 %v2147, %v2162
        %v2171 = vadd.f32 %v2148, %v2163
        %v2172 = vadd.f32 %v2149, %v2164
        %v2173 = vadd.f32 %v2150, %v2165
        %v2174 = vadd.f32 %v2151, %v2166
        %v2175 = vadd.f32 %v2152, %v2167
        %v2176 = vadd.f32 %v2153, %v2168
        %v2177 = vadd.f32 %v2154, %v2169
        %v2178 = vlaneseq
        %v2179 = vshrl.u32 %v2178, 7
        %v2180 = vsub.s32 7, %v2179
        %v2181 = vrot.slane %v1966, %v2180
        %v2182 = vmul.f32 %v1958, %v2181
        %v2183 = vmul.f32 %v1959, %v2181
        %v2184 = vmul.f32 %v1960, %v2181
        %v2185 = vmul.f32 %v1961, %v2181
        %v2186 = vmul.f32 %v1962, %v2181
        %v2187 = vmul.f32 %v1963, %v2181
        %v2188 = vmul.f32 %v1964, %v2181
        %v2189 = vmul.f32 %v2181, 0.0
        %v2190 = vadd.f32 %v2170, %v2182
        %v2191 = vadd.f32 %v2171, %v2183
        %v2192 = vadd.f32 %v2172, %v2184
        %v2193 = vadd.f32 %v2173, %v2185
        %v2194 = vadd.f32 %v2174, %v2186
        %v2195 = vadd.f32 %v2175, %v2187
        %v2196 = vadd.f32 %v2176, %v2188
        %v2197 = vadd.f32 %v2177, %v2189
        %v2198 = vlaneseq
        %v2199 = vshrl.u32 %v2198, 7
        %v2200 = vsub.s32 0, %v2199
        %v2201 = vrot.slane %v1967, %v2200
        %v2202 = vmul.f32 %v2062, %v2201
        %v2203 = vmul.f32 %v2063, %v2201
        %v2204 = vmul.f32 %v2064, %v2201
        %v2205 = vmul.f32 %v2065, %v2201
        %v2206 = vmul.f32 %v2066, %v2201
        %v2207 = vmul.f32 %v2067, %v2201
        %v2208 = vmul.f32 %v2134, %v2201
        %v2209 = vmul.f32 %v2201, 0.0
        %v2210 = vadd.f32 %v2190, %v2202
        %v2211 = vadd.f32 %v2191, %v2203
        %v2212 = vadd.f32 %v2192, %v2204
        %v2213 = vadd.f32 %v2193, %v2205
        %v2214 = vadd.f32 %v2194, %v2206
        %v2215 = vadd.f32 %v2195, %v2207
        %v2216 = vadd.f32 %v2196, %v2208
        %v2217 = vadd.f32 %v2197, %v2209
        %v2218 = vld [vmem:[%s4 + $0x1] sm:$0x1]
        %v2219 = vlaneseq
        %v2220 = vshrl.u32 %v2219, 7
        %v2221 = vsub.s32 0, %v2220
        %v2222 = vrot.slane %v2218, %v2221
        %v2223 = vadd.f32 %v2210, %v2222
        %v2224 = vadd.f32 %v2211, %v2222
        %v2225 = vadd.f32 %v2212, %v2222
        %v2226 = vadd.f32 %v2213, %v2222
        %v2227 = vadd.f32 %v2214, %v2222
        %v2228 = vadd.f32 %v2215, %v2222
        %v2229 = vadd.f32 %v2216, %v2222
        %v2230 = vadd.f32 %v2217, %v2222
        %s2231 = scalar_lea.vmem %s5, 128
        %v2232 = vld [vmem:[%s2231] sm:$0xff]
        %v2233 = vld [vmem:[%s2231 + $0x8] sm:$0xff]
        %v2234 = vld [vmem:[%s2231 + $0x10] sm:$0xff]
        %v2235 = vld [vmem:[%s2231 + $0x18] sm:$0xff]
        %v2236 = vld [vmem:[%s2231 + $0x20] sm:$0xff]
        %v2237 = vld [vmem:[%s2231 + $0x28] sm:$0xff]
        %v2238 = vld [vmem:[%s2231 + $0x30] sm:$0xff]
        %v2239 = vld [vmem:[%s2231 + $0x38] sm:$0xff]
        %v2240 = vld [vmem:[%s2231 + $0x40] sm:$0xff]
        %v2241 = vld [vmem:[%s2231 + $0x48] sm:$0xff]
        %v2242 = vld [vmem:[%s2231 + $0x50] sm:$0xff]
        %v2243 = vld [vmem:[%s2231 + $0x58] sm:$0xff]
        %v2244 = vld [vmem:[%s2231 + $0x60] sm:$0xff]
        %v2245 = vld [vmem:[%s2231 + $0x68] sm:$0xff]
        %v2246 = vld [vmem:[%s2231 + $0x70] sm:$0xff]
        %v2247 = vld [vmem:[%s2231 + $0x78] sm:$0xff]
        %v2248 = vld [vmem:[%s6 + $0x1] sm:$0x1]
        %v2249 = vlaneseq
        %v2250 = vshrl.u32 %v2249, 7
        %v2251 = vsub.s32 0, %v2250
        %v2252 = vrot.slane %v2248, %v2251
        %2253 = vmatprep.subr.mxu0 0.0
        %2254 = vmatpush1.msra.mxu0 %v2232
        %2255 = vmatprep.subr.mxu0 0.0
        %2256 = vmatpush1.msra.mxu0 %v2233
        %2257 = vmatprep.subr.mxu0 0.0
        %2258 = vmatpush1.msra.mxu0 %v2234
        %2259 = vmatprep.subr.mxu0 0.0
        %2260 = vmatpush1.msra.mxu0 %v2235
        %2261 = vmatprep.subr.mxu0 0.0
        %2262 = vmatpush1.msra.mxu0 %v2236
        %2263 = vmatprep.subr.mxu0 0.0
        %2264 = vmatpush1.msra.mxu0 %v2237
        %2265 = vmatprep.subr.mxu0 0.0
        %2266 = vmatpush1.msra.mxu0 %v2238
        %2267 = vmatprep.subr.mxu0 0.0
        %2268 = vmatpush1.msra.mxu0 %v2239
        %2269 = vmatprep.subr.mxu0 0.0
        %2270 = vmatpush1.msra.mxu0 %v2240
        %2271 = vmatprep.subr.mxu0 0.0
        %2272 = vmatpush1.msra.mxu0 %v2241
        %2273 = vmatprep.subr.mxu0 0.0
        %2274 = vmatpush1.msra.mxu0 %v2242
        %2275 = vmatprep.subr.mxu0 0.0
        %2276 = vmatpush1.msra.mxu0 %v2243
        %2277 = vmatprep.subr.mxu0 0.0
        %2278 = vmatpush1.msra.mxu0 %v2244
        %2279 = vmatprep.subr.mxu0 0.0
        %2280 = vmatpush1.msra.mxu0 %v2245
        %2281 = vmatprep.subr.mxu0 0.0
        %2282 = vmatpush1.msra.mxu0 %v2246
        %2283 = vmatprep.subr.mxu0 0.0
        %2284 = vmatpush1.msra.mxu0 %v2247
        %2285 = vmatprep.subr.mxu0 0.0
        %2286 = vmatpush1.msra.mxu0 0.0
        %2287 = vmatprep.subr.mxu0 0.0
        %2288 = vmatpush1.msra.mxu0 0.0
        %2289 = vmatprep.subr.mxu0 0.0
        %2290 = vmatpush1.msra.mxu0 0.0
        %2291 = vmatprep.subr.mxu0 0.0
        %2292 = vmatpush1.msra.mxu0 0.0
        %2293 = vmatprep.subr.mxu0 0.0
        %2294 = vmatpush1.msra.mxu0 0.0
        %2295 = vmatprep.subr.mxu0 0.0
        %2296 = vmatpush1.msra.mxu0 0.0
        %2297 = vmatprep.subr.mxu0 0.0
        %2298 = vmatpush1.msra.mxu0 0.0
        %2299 = vmatprep.subr.mxu0 0.0
        %2300 = vmatpush1.msra.mxu0 0.0
        %2301 = vmatprep.subr.mxu0 0.0
        %2302 = vmatpush1.msra.mxu0 0.0
        %2303 = vmatprep.subr.mxu0 0.0
        %2304 = vmatpush1.msra.mxu0 0.0
        %2305 = vmatprep.subr.mxu0 0.0
        %2306 = vmatpush1.msra.mxu0 0.0
        %2307 = vmatprep.subr.mxu0 0.0
        %2308 = vmatpush1.msra.mxu0 0.0
        %2309 = vmatprep.subr.mxu0 0.0
        %2310 = vmatpush1.msra.mxu0 0.0
        %2311 = vmatprep.subr.mxu0 0.0
        %2312 = vmatpush1.msra.mxu0 0.0
        %2313 = vmatprep.subr.mxu0 0.0
        %2314 = vmatpush1.msra.mxu0 0.0
        %2315 = vmatprep.subr.mxu0 0.0
        %2316 = vmatpush1.msra.mxu0 0.0
        %2317 = vmatprep.mubr.f32.mxu0 0.0
        %2318 = vmatmul.mubr.f32.gmra.mrb[0].mxu0 %v2223
        %v2319 = vpop.f32.mrb[0].mxu0
        %v2320 = vadd.f32 %v2252, %v2319
        %v2321 = vpop.f32.mrb[0].mxu0
        %2322 = vmatprep.mubr.f32.mxu0 0.0
        %2323 = vmatmul.mubr.f32.gmra.mrb[0].mxu0 %v2224
        %v2324 = vpop.f32.mrb[0].mxu0
        %v2325 = vadd.f32 %v2252, %v2324
        %v2326 = vpop.f32.mrb[0].mxu0
        %2327 = vmatprep.mubr.f32.mxu0 0.0
        %2328 = vmatmul.mubr.f32.gmra.mrb[0].mxu0 %v2225
        %v2329 = vpop.f32.mrb[0].mxu0
        %v2330 = vadd.f32 %v2252, %v2329
        %v2331 = vpop.f32.mrb[0].mxu0
        %2332 = vmatprep.mubr.f32.mxu0 0.0
        %2333 = vmatmul.mubr.f32.gmra.mrb[0].mxu0 %v2226
        %v2334 = vpop.f32.mrb[0].mxu0
        %v2335 = vadd.f32 %v2252, %v2334
        %v2336 = vpop.f32.mrb[0].mxu0
        %2337 = vmatprep.mubr.f32.mxu0 0.0
        %2338 = vmatmul.mubr.f32.gmra.mrb[0].mxu0 %v2227
        %v2339 = vpop.f32.mrb[0].mxu0
        %v2340 = vadd.f32 %v2252, %v2339
        %v2341 = vpop.f32.mrb[0].mxu0
        %2342 = vmatprep.mubr.f32.mxu0 0.0
        %2343 = vmatmul.mubr.f32.gmra.mrb[0].mxu0 %v2228
        %v2344 = vpop.f32.mrb[0].mxu0
        %v2345 = vadd.f32 %v2252, %v2344
        %v2346 = vpop.f32.mrb[0].mxu0
        %2347 = vmatprep.mubr.f32.mxu0 0.0
        %2348 = vmatmul.mubr.f32.gmra.mrb[0].mxu0 %v2229
        %v2349 = vpop.f32.mrb[0].mxu0
        %v2350 = vadd.f32 %v2252, %v2349
        %v2351 = vpop.f32.mrb[0].mxu0
        %2352 = vmatprep.mubr.f32.mxu0 0.0
        %2353 = vmatmul.mubr.f32.gmra.mrb[0].mxu0 %v2230
        %v2354 = vpop.f32.mrb[0].mxu0
        %v2355 = vadd.f32 %v2252, %v2354
        %v2356 = vpop.f32.mrb[0].mxu0
        %2357 = vdwg.mxu0
        %v2358 = vadd.f32 %v2320, %v1957
        %v2359 = vadd.f32 %v2325, %v1958
        %v2360 = vadd.f32 %v2330, %v1959
        %v2361 = vadd.f32 %v2335, %v1960
        %v2362 = vadd.f32 %v2340, %v1961
        %v2363 = vadd.f32 %v2345, %v1962
        %v2364 = vadd.f32 %v2350, %v1963
        %v2365 = vadd.f32 %v2355, %v1964
        %v2366 = vmax.f32 %v2358, 0.0
        %v2367 = vmax.f32 %v2359, 0.0
        %v2368 = vmax.f32 %v2360, 0.0
        %v2369 = vmax.f32 %v2361, 0.0
        %v2370 = vmax.f32 %v2362, 0.0
        %v2371 = vmax.f32 %v2363, 0.0
        %v2372 = vmax.f32 %v2364, 0.0
        %v2373 = vmax.f32 %v2365, 0.0
        %s2374 = scalar_lea.vmem %s3, 32
        %v2375 = vld [vmem:[%s2374] sm:$0xff]
        %v2376 = vld [vmem:[%s2374 + $0x8] sm:$0x1]
        %v2384 = vrot.slane %v2366, 7
        %v2385 = vrot.slane %v2367, 7
        %v2386 = vsel %vm309, %v2384, %v2385
        %v2387 = vrot.slane %v2368, 7
        %v2388 = vsel %vm309, %v2385, %v2387
        %v2389 = vrot.slane %v2369, 7
        %v2390 = vsel %vm309, %v2387, %v2389
        %v2391 = vrot.slane %v2370, 7
        %v2392 = vsel %vm309, %v2389, %v2391
        %v2393 = vrot.slane %v2371, 7
        %v2394 = vsel %vm309, %v2391, %v2393
        %v2395 = vrot.slane %v2372, 7
        %v2396 = vsel %vm309, %v2393, %v2395
        %v2404 = vsel %vm309, 0.0, %v2384
        %v2405 = vsel %vm300, %v2404, 0.0
        %v2406 = vsel %vm300, %v2386, 0.0
        %v2407 = vsel %vm300, %v2388, 0.0
        %v2408 = vsel %vm300, %v2390, 0.0
        %v2409 = vsel %vm300, %v2392, 0.0
        %v2410 = vsel %vm300, %v2394, 0.0
        %v2411 = vsel %vm300, %v2396, 0.0
        %v2412 = vlaneseq
        %v2413 = vshrl.u32 %v2412, 7
        %v2414 = vsub.s32 0, %v2413
        %v2415 = vrot.slane %v2375, %v2414
        %v2416 = vmul.f32 %v2415, 0.0
        %v2417 = vmul.f32 %v2405, %v2415
        %v2418 = vmul.f32 %v2406, %v2415
        %v2419 = vmul.f32 %v2407, %v2415
        %v2420 = vmul.f32 %v2408, %v2415
        %v2421 = vmul.f32 %v2409, %v2415
        %v2422 = vmul.f32 %v2410, %v2415
        %v2423 = vmul.f32 %v2411, %v2415
        %v2424 = vlaneseq
        %v2425 = vshrl.u32 %v2424, 7
        %v2426 = vsub.s32 1, %v2425
        %v2427 = vrot.slane %v2375, %v2426
        %v2428 = vmul.f32 %v2427, 0.0
        %v2429 = vmul.f32 %v2366, %v2427
        %v2430 = vmul.f32 %v2367, %v2427
        %v2431 = vmul.f32 %v2368, %v2427
        %v2432 = vmul.f32 %v2369, %v2427
        %v2433 = vmul.f32 %v2370, %v2427
        %v2434 = vmul.f32 %v2371, %v2427
        %v2435 = vmul.f32 %v2372, %v2427
        %v2436 = vadd.f32 %v2416, %v2428
        %v2437 = vadd.f32 %v2417, %v2429
        %v2438 = vadd.f32 %v2418, %v2430
        %v2439 = vadd.f32 %v2419, %v2431
        %v2440 = vadd.f32 %v2420, %v2432
        %v2441 = vadd.f32 %v2421, %v2433
        %v2442 = vadd.f32 %v2422, %v2434
        %v2443 = vadd.f32 %v2423, %v2435
        %v2445 = vrot.slane %v2366, 1
        %v2446 = vrot.slane %v2367, 1
        %v2447 = vsel %vm582, %v2445, %v2446
        %v2448 = vrot.slane %v2368, 1
        %v2449 = vsel %vm582, %v2446, %v2448
        %v2450 = vrot.slane %v2369, 1
        %v2451 = vsel %vm582, %v2448, %v2450
        %v2452 = vrot.slane %v2370, 1
        %v2453 = vsel %vm582, %v2450, %v2452
        %v2454 = vrot.slane %v2371, 1
        %v2455 = vsel %vm582, %v2452, %v2454
        %v2456 = vrot.slane %v2372, 1
        %v2457 = vsel %vm582, %v2454, %v2456
        %v2458 = vrot.slane %v2373, 1
        %v2459 = vsel %vm582, %v2456, %v2458
        %v2468 = vsel %vm582, 0.0, %v2445
        %v2469 = vsel %vm301, %v2468, 0.0
        %v2470 = vsel %vm301, %v2447, 0.0
        %v2471 = vsel %vm301, %v2449, 0.0
        %v2472 = vsel %vm301, %v2451, 0.0
        %v2473 = vsel %vm301, %v2453, 0.0
        %v2474 = vsel %vm301, %v2455, 0.0
        %v2475 = vsel %vm301, %v2457, 0.0
        %v2476 = vsel %vm301, %v2459, 0.0
        %v2477 = vlaneseq
        %v2478 = vshrl.u32 %v2477, 7
        %v2479 = vsub.s32 2, %v2478
        %v2480 = vrot.slane %v2375, %v2479
        %v2481 = vmul.f32 %v2469, %v2480
        %v2482 = vmul.f32 %v2470, %v2480
        %v2483 = vmul.f32 %v2471, %v2480
        %v2484 = vmul.f32 %v2472, %v2480
        %v2485 = vmul.f32 %v2473, %v2480
        %v2486 = vmul.f32 %v2474, %v2480
        %v2487 = vmul.f32 %v2475, %v2480
        %v2488 = vmul.f32 %v2476, %v2480
        %v2489 = vadd.f32 %v2436, %v2481
        %v2490 = vadd.f32 %v2437, %v2482
        %v2491 = vadd.f32 %v2438, %v2483
        %v2492 = vadd.f32 %v2439, %v2484
        %v2493 = vadd.f32 %v2440, %v2485
        %v2494 = vadd.f32 %v2441, %v2486
        %v2495 = vadd.f32 %v2442, %v2487
        %v2496 = vadd.f32 %v2443, %v2488
        %v2497 = vrot.slane %v2373, 7
        %v2498 = vsel %vm309, %v2395, %v2497
        %v2500 = vsel %vm300, %v2498, 0.0
        %v2501 = vlaneseq
        %v2502 = vshrl.u32 %v2501, 7
        %v2503 = vsub.s32 3, %v2502
        %v2504 = vrot.slane %v2375, %v2503
        %v2505 = vmul.f32 %v2405, %v2504
        %v2506 = vmul.f32 %v2406, %v2504
        %v2507 = vmul.f32 %v2407, %v2504
        %v2508 = vmul.f32 %v2408, %v2504
        %v2509 = vmul.f32 %v2409, %v2504
        %v2510 = vmul.f32 %v2410, %v2504
        %v2511 = vmul.f32 %v2411, %v2504
        %v2512 = vmul.f32 %v2500, %v2504
        %v2513 = vadd.f32 %v2489, %v2505
        %v2514 = vadd.f32 %v2490, %v2506
        %v2515 = vadd.f32 %v2491, %v2507
        %v2516 = vadd.f32 %v2492, %v2508
        %v2517 = vadd.f32 %v2493, %v2509
        %v2518 = vadd.f32 %v2494, %v2510
        %v2519 = vadd.f32 %v2495, %v2511
        %v2520 = vadd.f32 %v2496, %v2512
        %v2521 = vlaneseq
        %v2522 = vshrl.u32 %v2521, 7
        %v2523 = vsub.s32 4, %v2522
        %v2524 = vrot.slane %v2375, %v2523
        %v2525 = vmul.f32 %v2366, %v2524
        %v2526 = vmul.f32 %v2367, %v2524
        %v2527 = vmul.f32 %v2368, %v2524
        %v2528 = vmul.f32 %v2369, %v2524
        %v2529 = vmul.f32 %v2370, %v2524
        %v2530 = vmul.f32 %v2371, %v2524
        %v2531 = vmul.f32 %v2372, %v2524
        %v2532 = vmul.f32 %v2373, %v2524
        %v2533 = vadd.f32 %v2513, %v2525
        %v2534 = vadd.f32 %v2514, %v2526
        %v2535 = vadd.f32 %v2515, %v2527
        %v2536 = vadd.f32 %v2516, %v2528
        %v2537 = vadd.f32 %v2517, %v2529
        %v2538 = vadd.f32 %v2518, %v2530
        %v2539 = vadd.f32 %v2519, %v2531
        %v2540 = vadd.f32 %v2520, %v2532
        %v2542 = vsel %vm582, %v2458, 0.0
        %v2543 = vsel %vm301, %v2542, 0.0
        %v2544 = vlaneseq
        %v2545 = vshrl.u32 %v2544, 7
        %v2546 = vsub.s32 5, %v2545
        %v2547 = vrot.slane %v2375, %v2546
        %v2548 = vmul.f32 %v2470, %v2547
        %v2549 = vmul.f32 %v2471, %v2547
        %v2550 = vmul.f32 %v2472, %v2547
        %v2551 = vmul.f32 %v2473, %v2547
        %v2552 = vmul.f32 %v2474, %v2547
        %v2553 = vmul.f32 %v2475, %v2547
        %v2554 = vmul.f32 %v2476, %v2547
        %v2555 = vmul.f32 %v2543, %v2547
        %v2556 = vadd.f32 %v2533, %v2548
        %v2557 = vadd.f32 %v2534, %v2549
        %v2558 = vadd.f32 %v2535, %v2550
        %v2559 = vadd.f32 %v2536, %v2551
        %v2560 = vadd.f32 %v2537, %v2552
        %v2561 = vadd.f32 %v2538, %v2553
        %v2562 = vadd.f32 %v2539, %v2554
        %v2563 = vadd.f32 %v2540, %v2555
        %v2565 = vsel %vm309, %v2497, 0.0
        %v2566 = vsel %vm300, %v2565, 0.0
        %v2567 = vlaneseq
        %v2568 = vshrl.u32 %v2567, 7
        %v2569 = vsub.s32 6, %v2568
        %v2570 = vrot.slane %v2375, %v2569
        %v2571 = vmul.f32 %v2406, %v2570
        %v2572 = vmul.f32 %v2407, %v2570
        %v2573 = vmul.f32 %v2408, %v2570
        %v2574 = vmul.f32 %v2409, %v2570
        %v2575 = vmul.f32 %v2410, %v2570
        %v2576 = vmul.f32 %v2411, %v2570
        %v2577 = vmul.f32 %v2500, %v2570
        %v2578 = vmul.f32 %v2566, %v2570
        %v2579 = vadd.f32 %v2556, %v2571
        %v2580 = vadd.f32 %v2557, %v2572
        %v2581 = vadd.f32 %v2558, %v2573
        %v2582 = vadd.f32 %v2559, %v2574
        %v2583 = vadd.f32 %v2560, %v2575
        %v2584 = vadd.f32 %v2561, %v2576
        %v2585 = vadd.f32 %v2562, %v2577
        %v2586 = vadd.f32 %v2563, %v2578
        %v2587 = vlaneseq
        %v2588 = vshrl.u32 %v2587, 7
        %v2589 = vsub.s32 7, %v2588
        %v2590 = vrot.slane %v2375, %v2589
        %v2591 = vmul.f32 %v2367, %v2590
        %v2592 = vmul.f32 %v2368, %v2590
        %v2593 = vmul.f32 %v2369, %v2590
        %v2594 = vmul.f32 %v2370, %v2590
        %v2595 = vmul.f32 %v2371, %v2590
        %v2596 = vmul.f32 %v2372, %v2590
        %v2597 = vmul.f32 %v2373, %v2590
        %v2598 = vmul.f32 %v2590, 0.0
        %v2599 = vadd.f32 %v2579, %v2591
        %v2600 = vadd.f32 %v2580, %v2592
        %v2601 = vadd.f32 %v2581, %v2593
        %v2602 = vadd.f32 %v2582, %v2594
        %v2603 = vadd.f32 %v2583, %v2595
        %v2604 = vadd.f32 %v2584, %v2596
        %v2605 = vadd.f32 %v2585, %v2597
        %v2606 = vadd.f32 %v2586, %v2598
        %v2607 = vlaneseq
        %v2608 = vshrl.u32 %v2607, 7
        %v2609 = vsub.s32 0, %v2608
        %v2610 = vrot.slane %v2376, %v2609
        %v2611 = vmul.f32 %v2471, %v2610
        %v2612 = vmul.f32 %v2472, %v2610
        %v2613 = vmul.f32 %v2473, %v2610
        %v2614 = vmul.f32 %v2474, %v2610
        %v2615 = vmul.f32 %v2475, %v2610
        %v2616 = vmul.f32 %v2476, %v2610
        %v2617 = vmul.f32 %v2543, %v2610
        %v2618 = vmul.f32 %v2610, 0.0
        %v2619 = vadd.f32 %v2599, %v2611
        %v2620 = vadd.f32 %v2600, %v2612
        %v2621 = vadd.f32 %v2601, %v2613
        %v2622 = vadd.f32 %v2602, %v2614
        %v2623 = vadd.f32 %v2603, %v2615
        %v2624 = vadd.f32 %v2604, %v2616
        %v2625 = vadd.f32 %v2605, %v2617
        %v2626 = vadd.f32 %v2606, %v2618
        %v2627 = vld [vmem:[%s4 + $0x2] sm:$0x1]
        %v2628 = vlaneseq
        %v2629 = vshrl.u32 %v2628, 7
        %v2630 = vsub.s32 0, %v2629
        %v2631 = vrot.slane %v2627, %v2630
        %v2632 = vadd.f32 %v2619, %v2631
        %v2633 = vadd.f32 %v2620, %v2631
        %v2634 = vadd.f32 %v2621, %v2631
        %v2635 = vadd.f32 %v2622, %v2631
        %v2636 = vadd.f32 %v2623, %v2631
        %v2637 = vadd.f32 %v2624, %v2631
        %v2638 = vadd.f32 %v2625, %v2631
        %v2639 = vadd.f32 %v2626, %v2631
        %s2640 = scalar_lea.vmem %s5, 256
        %v2641 = vld [vmem:[%s2640] sm:$0xff]
        %v2642 = vld [vmem:[%s2640 + $0x8] sm:$0xff]
        %v2643 = vld [vmem:[%s2640 + $0x10] sm:$0xff]
        %v2644 = vld [vmem:[%s2640 + $0x18] sm:$0xff]
        %v2645 = vld [vmem:[%s2640 + $0x20] sm:$0xff]
        %v2646 = vld [vmem:[%s2640 + $0x28] sm:$0xff]
        %v2647 = vld [vmem:[%s2640 + $0x30] sm:$0xff]
        %v2648 = vld [vmem:[%s2640 + $0x38] sm:$0xff]
        %v2649 = vld [vmem:[%s2640 + $0x40] sm:$0xff]
        %v2650 = vld [vmem:[%s2640 + $0x48] sm:$0xff]
        %v2651 = vld [vmem:[%s2640 + $0x50] sm:$0xff]
        %v2652 = vld [vmem:[%s2640 + $0x58] sm:$0xff]
        %v2653 = vld [vmem:[%s2640 + $0x60] sm:$0xff]
        %v2654 = vld [vmem:[%s2640 + $0x68] sm:$0xff]
        %v2655 = vld [vmem:[%s2640 + $0x70] sm:$0xff]
        %v2656 = vld [vmem:[%s2640 + $0x78] sm:$0xff]
        %v2657 = vld [vmem:[%s6 + $0x2] sm:$0x1]
        %v2658 = vlaneseq
        %v2659 = vshrl.u32 %v2658, 7
        %v2660 = vsub.s32 0, %v2659
        %v2661 = vrot.slane %v2657, %v2660
        %2662 = vmatprep.subr.mxu0 0.0
        %2663 = vmatpush1.msra.mxu0 %v2641
        %2664 = vmatprep.subr.mxu0 0.0
        %2665 = vmatpush1.msra.mxu0 %v2642
        %2666 = vmatprep.subr.mxu0 0.0
        %2667 = vmatpush1.msra.mxu0 %v2643
        %2668 = vmatprep.subr.mxu0 0.0
        %2669 = vmatpush1.msra.mxu0 %v2644
        %2670 = vmatprep.subr.mxu0 0.0
        %2671 = vmatpush1.msra.mxu0 %v2645
        %2672 = vmatprep.subr.mxu0 0.0
        %2673 = vmatpush1.msra.mxu0 %v2646
        %2674 = vmatprep.subr.mxu0 0.0
        %2675 = vmatpush1.msra.mxu0 %v2647
        %2676 = vmatprep.subr.mxu0 0.0
        %2677 = vmatpush1.msra.mxu0 %v2648
        %2678 = vmatprep.subr.mxu0 0.0
        %2679 = vmatpush1.msra.mxu0 %v2649
        %2680 = vmatprep.subr.mxu0 0.0
        %2681 = vmatpush1.msra.mxu0 %v2650
        %2682 = vmatprep.subr.mxu0 0.0
        %2683 = vmatpush1.msra.mxu0 %v2651
        %2684 = vmatprep.subr.mxu0 0.0
        %2685 = vmatpush1.msra.mxu0 %v2652
        %2686 = vmatprep.subr.mxu0 0.0
        %2687 = vmatpush1.msra.mxu0 %v2653
        %2688 = vmatprep.subr.mxu0 0.0
        %2689 = vmatpush1.msra.mxu0 %v2654
        %2690 = vmatprep.subr.mxu0 0.0
        %2691 = vmatpush1.msra.mxu0 %v2655
        %2692 = vmatprep.subr.mxu0 0.0
        %2693 = vmatpush1.msra.mxu0 %v2656
        %2694 = vmatprep.subr.mxu0 0.0
        %2695 = vmatpush1.msra.mxu0 0.0
        %2696 = vmatprep.subr.mxu0 0.0
        %2697 = vmatpush1.msra.mxu0 0.0
        %2698 = vmatprep.subr.mxu0 0.0
        %2699 = vmatpush1.msra.mxu0 0.0
        %2700 = vmatprep.subr.mxu0 0.0
        %2701 = vmatpush1.msra.mxu0 0.0
        %2702 = vmatprep.subr.mxu0 0.0
        %2703 = vmatpush1.msra.mxu0 0.0
        %2704 = vmatprep.subr.mxu0 0.0
        %2705 = vmatpush1.msra.mxu0 0.0
        %2706 = vmatprep.subr.mxu0 0.0
        %2707 = vmatpush1.msra.mxu0 0.0
        %2708 = vmatprep.subr.mxu0 0.0
        %2709 = vmatpush1.msra.mxu0 0.0
        %2710 = vmatprep.subr.mxu0 0.0
        %2711 = vmatpush1.msra.mxu0 0.0
        %2712 = vmatprep.subr.mxu0 0.0
        %2713 = vmatpush1.msra.mxu0 0.0
        %2714 = vmatprep.subr.mxu0 0.0
        %2715 = vmatpush1.msra.mxu0 0.0
        %2716 = vmatprep.subr.mxu0 0.0
        %2717 = vmatpush1.msra.mxu0 0.0
        %2718 = vmatprep.subr.mxu0 0.0
        %2719 = vmatpush1.msra.mxu0 0.0
        %2720 = vmatprep.subr.mxu0 0.0
        %2721 = vmatpush1.msra.mxu0 0.0
        %2722 = vmatprep.subr.mxu0 0.0
        %2723 = vmatpush1.msra.mxu0 0.0
        %2724 = vmatprep.subr.mxu0 0.0
        %2725 = vmatpush1.msra.mxu0 0.0
        %2726 = vmatprep.mubr.f32.mxu0 0.0
        %2727 = vmatmul.mubr.f32.gmra.mrb[0].mxu0 %v2632
        %v2728 = vpop.f32.mrb[0].mxu0
        %v2729 = vadd.f32 %v2661, %v2728
        %v2730 = vpop.f32.mrb[0].mxu0
        %2731 = vmatprep.mubr.f32.mxu0 0.0
        %2732 = vmatmul.mubr.f32.gmra.mrb[0].mxu0 %v2633
        %v2733 = vpop.f32.mrb[0].mxu0
        %v2734 = vpop.f32.mrb[0].mxu0
        %2735 = vmatprep.mubr.f32.mxu0 0.0
        %2736 = vmatmul.mubr.f32.gmra.mrb[0].mxu0 %v2634
        %v2737 = vpop.f32.mrb[0].mxu0
        %v2738 = vadd.f32 %v2661, %v2737
        %v2739 = vpop.f32.mrb[0].mxu0
        %2740 = vmatprep.mubr.f32.mxu0 0.0
        %2741 = vmatmul.mubr.f32.gmra.mrb[0].mxu0 %v2635
        %v2742 = vpop.f32.mrb[0].mxu0
        %v2743 = vpop.f32.mrb[0].mxu0
        %2744 = vmatprep.mubr.f32.mxu0 0.0
        %2745 = vmatmul.mubr.f32.gmra.mrb[0].mxu0 %v2636
        %v2746 = vpop.f32.mrb[0].mxu0
        %v2747 = vadd.f32 %v2661, %v2746
        %v2748 = vpop.f32.mrb[0].mxu0
        %2749 = vmatprep.mubr.f32.mxu0 0.0
        %2750 = vmatmul.mubr.f32.gmra.mrb[0].mxu0 %v2637
        %v2751 = vpop.f32.mrb[0].mxu0
        %v2752 = vpop.f32.mrb[0].mxu0
        %2753 = vmatprep.mubr.f32.mxu0 0.0
        %2754 = vmatmul.mubr.f32.gmra.mrb[0].mxu0 %v2638
        %v2755 = vpop.f32.mrb[0].mxu0
        %v2756 = vadd.f32 %v2661, %v2755
        %v2757 = vpop.f32.mrb[0].mxu0
        %2758 = vmatprep.mubr.f32.mxu0 0.0
        %2759 = vmatmul.mubr.f32.gmra.mrb[0].mxu0 %v2639
        %v2760 = vpop.f32.mrb[0].mxu0
        %v2761 = vpop.f32.mrb[0].mxu0
        %2762 = vdwg.mxu0
        %v2763 = vmax.f32 %v2366, %v2447
        %v2764 = vmax.f32 %v2368, %v2451
        %v2765 = vmax.f32 %v2370, %v2455
        %v2766 = vmax.f32 %v2372, %v2459
        %v2767 = vmax.f32 %v2367, %v2449
        %v2768 = vmax.f32 %v2369, %v2453
        %v2769 = vmax.f32 %v2371, %v2457
        %v2770 = vmax.f32 %v2373, %v2542
        %v2771 = vmax.f32 %v2763, %v2767
        %v2772 = vmax.f32 %v2764, %v2768
        %v2773 = vmax.f32 %v2765, %v2769
        %v2774 = vmax.f32 %v2766, %v2770
        %v2775 = vadd.f32 %v2729, %v2771
        %v2776 = vadd.f32 %v2738, %v2772
        %v2777 = vadd.f32 %v2747, %v2773
        %v2778 = vadd.f32 %v2756, %v2774
        %v2779 = vmax.f32 %v2775, 0.0
        %v2780 = vmax.f32 %v2776, 0.0
        %v2781 = vmax.f32 %v2777, 0.0
        %v2782 = vmax.f32 %v2778, 0.0
        %v2784 = vrot.slane %v2779, 1
        %v2786 = vrot.slane %v2779, 2
        %v2788 = vrot.slane %v2779, 3
        %v2791 = vrot.slane %v2780, 4
        %v2793 = vrot.slane %v2780, 5
        %v2795 = vrot.slane %v2780, 6
        %v2797 = vrot.slane %v2780, 7
        %v2800 = vrot.slane %v2781, 1
        %v2802 = vrot.slane %v2781, 2
        %v2804 = vrot.slane %v2781, 3
        %v2807 = vrot.slane %v2782, 4
        %v2809 = vrot.slane %v2782, 5
        %v2811 = vrot.slane %v2782, 6
        %v2813 = vrot.slane %v2782, 7
        %v2815 = vsel %vm309, %v2779, %v2784
        %vm2816 = vcmask 1041408
        %v2817 = vsel %vm2816, %v2815, %v2786
        %vm2818 = vcmask 1042432
        %v2819 = vsel %vm2818, %v2817, %v2788
        %vm2820 = vcmask 1043456
        %v2821 = vsel %vm2820, %v2819, %v2791
        %vm2822 = vcmask 1044480
        %v2823 = vsel %vm2822, %v2821, %v2793
        %vm2824 = vcmask 1045504
        %v2825 = vsel %vm2824, %v2823, %v2795
        %v2826 = vsel %vm582, %v2825, %v2797
        %v2827 = vsel %vm309, %v2781, %v2800
        %v2828 = vsel %vm2816, %v2827, %v2802
        %v2829 = vsel %vm2818, %v2828, %v2804
        %v2830 = vsel %vm2820, %v2829, %v2807
        %v2831 = vsel %vm2822, %v2830, %v2809
        %v2832 = vsel %vm2824, %v2831, %v2811
        %v2833 = vsel %vm582, %v2832, %v2813
        %s2834 = scalar_lea.vmem %s3, 48
        %v2835 = vld [vmem:[%s2834] sm:$0xff]
        %v2836 = vld [vmem:[%s2834 + $0x8] sm:$0x1]
        %v2837 = vrot.slane %v299, 4
        %v2838 = vsel %vm2820, %v299, %v2837
        %vm2839 = vcmp.ne.s32.totalorder %v2838, 0
        %vm2840 = vcmp.ne.s32.totalorder %v2838, 3
        %v2843 = vrot.slane %v2826, 3
        %v2844 = vrot.slane %v2833, 3
        %v2845 = vsel %vm2822, %v2843, %v2844
        %v2848 = vsel %vm2822, 0.0, %v2843
        %v2849 = vsel %vm2839, %v2848, 0.0
        %v2850 = vsel %vm2839, %v2845, 0.0
        %v2851 = vlaneseq
        %v2852 = vshrl.u32 %v2851, 7
        %v2853 = vsub.s32 0, %v2852
        %v2854 = vrot.slane %v2835, %v2853
        %v2855 = vmul.f32 %v2849, %v2854
        %v2856 = vmul.f32 %v2850, %v2854
        %v2857 = vrot.slane %v2826, 4
        %v2858 = vrot.slane %v2833, 4
        %v2859 = vsel %vm2820, %v2857, %v2858
        %v2862 = vsel %vm2820, 0.0, %v2857
        %v2863 = vlaneseq
        %v2864 = vshrl.u32 %v2863, 7
        %v2865 = vsub.s32 1, %v2864
        %v2866 = vrot.slane %v2835, %v2865
        %v2867 = vmul.f32 %v2862, %v2866
        %v2868 = vmul.f32 %v2859, %v2866
        %v2869 = vadd.f32 %v2855, %v2867
        %v2870 = vadd.f32 %v2856, %v2868
        %v2871 = vrot.slane %v2826, 5
        %v2872 = vrot.slane %v2833, 5
        %v2873 = vsel %vm2818, %v2871, %v2872
        %v2876 = vsel %vm2818, 0.0, %v2871
        %v2877 = vsel %vm2840, %v2876, 0.0
        %v2878 = vsel %vm2840, %v2873, 0.0
        %v2879 = vlaneseq
        %v2880 = vshrl.u32 %v2879, 7
        %v2881 = vsub.s32 2, %v2880
        %v2882 = vrot.slane %v2835, %v2881
        %v2883 = vmul.f32 %v2877, %v2882
        %v2884 = vmul.f32 %v2878, %v2882
        %v2885 = vadd.f32 %v2869, %v2883
        %v2886 = vadd.f32 %v2870, %v2884
        %v2887 = vrot.slane %v2826, 7
        %v2888 = vrot.slane %v2833, 7
        %v2889 = vsel %vm309, %v2887, %v2888
        %v2892 = vsel %vm309, 0.0, %v2887
        %v2893 = vsel %vm2839, %v2892, 0.0
        %v2894 = vsel %vm2839, %v2889, 0.0
        %v2895 = vlaneseq
        %v2896 = vshrl.u32 %v2895, 7
        %v2897 = vsub.s32 3, %v2896
        %v2898 = vrot.slane %v2835, %v2897
        %v2899 = vmul.f32 %v2893, %v2898
        %v2900 = vmul.f32 %v2894, %v2898
        %v2901 = vadd.f32 %v2885, %v2899
        %v2902 = vadd.f32 %v2886, %v2900
        %v2903 = vlaneseq
        %v2904 = vshrl.u32 %v2903, 7
        %v2905 = vsub.s32 4, %v2904
        %v2906 = vrot.slane %v2835, %v2905
        %v2907 = vmul.f32 %v2826, %v2906
        %v2908 = vmul.f32 %v2833, %v2906
        %v2909 = vadd.f32 %v2901, %v2907
        %v2910 = vadd.f32 %v2902, %v2908
        %v2911 = vrot.slane %v2826, 1
        %v2912 = vrot.slane %v2833, 1
        %v2913 = vsel %vm582, %v2911, %v2912
        %v2916 = vsel %vm582, %v2912, 0.0
        %v2917 = vsel %vm2840, %v2913, 0.0
        %v2918 = vsel %vm2840, %v2916, 0.0
        %v2919 = vlaneseq
        %v2920 = vshrl.u32 %v2919, 7
        %v2921 = vsub.s32 5, %v2920
        %v2922 = vrot.slane %v2835, %v2921
        %v2923 = vmul.f32 %v2917, %v2922
        %v2924 = vmul.f32 %v2918, %v2922
        %v2925 = vadd.f32 %v2909, %v2923
        %v2926 = vadd.f32 %v2910, %v2924
        %v2928 = vsel %vm2822, %v2844, 0.0
        %v2929 = vsel %vm2839, %v2928, 0.0
        %v2930 = vlaneseq
        %v2931 = vshrl.u32 %v2930, 7
        %v2932 = vsub.s32 6, %v2931
        %v2933 = vrot.slane %v2835, %v2932
        %v2934 = vmul.f32 %v2850, %v2933
        %v2935 = vmul.f32 %v2929, %v2933
        %v2936 = vadd.f32 %v2925, %v2934
        %v2937 = vadd.f32 %v2926, %v2935
        %v2939 = vsel %vm2820, %v2858, 0.0
        %v2940 = vlaneseq
        %v2941 = vshrl.u32 %v2940, 7
        %v2942 = vsub.s32 7, %v2941
        %v2943 = vrot.slane %v2835, %v2942
        %v2944 = vmul.f32 %v2859, %v2943
        %v2945 = vmul.f32 %v2939, %v2943
        %v2946 = vadd.f32 %v2936, %v2944
        %v2947 = vadd.f32 %v2937, %v2945
        %v2949 = vsel %vm2818, %v2872, 0.0
        %v2950 = vsel %vm2840, %v2949, 0.0
        %v2951 = vlaneseq
        %v2952 = vshrl.u32 %v2951, 7
        %v2953 = vsub.s32 0, %v2952
        %v2954 = vrot.slane %v2836, %v2953
        %v2955 = vmul.f32 %v2878, %v2954
        %v2956 = vmul.f32 %v2950, %v2954
        %v2957 = vadd.f32 %v2946, %v2955
        %v2958 = vadd.f32 %v2947, %v2956
        %v2959 = vld [vmem:[%s4 + $0x3] sm:$0x1]
        %v2960 = vlaneseq
        %v2961 = vshrl.u32 %v2960, 7
        %v2962 = vsub.s32 0, %v2961
        %v2963 = vrot.slane %v2959, %v2962
        %v2964 = vadd.f32 %v2957, %v2963
        %v2965 = vadd.f32 %v2958, %v2963
        %s2966 = scalar_lea.vmem %s5, 384
        %v2967 = vld [vmem:[%s2966] sm:$0xff]
        %v2968 = vld [vmem:[%s2966 + $0x8] sm:$0xff]
        %v2969 = vld [vmem:[%s2966 + $0x10] sm:$0xff]
        %v2970 = vld [vmem:[%s2966 + $0x18] sm:$0xff]
        %v2971 = vld [vmem:[%s2966 + $0x20] sm:$0xff]
        %v2972 = vld [vmem:[%s2966 + $0x28] sm:$0xff]
        %v2973 = vld [vmem:[%s2966 + $0x30] sm:$0xff]
        %v2974 = vld [vmem:[%s2966 + $0x38] sm:$0xff]
        %v2975 = vld [vmem:[%s2966 + $0x40] sm:$0xff]
        %v2976 = vld [vmem:[%s2966 + $0x48] sm:$0xff]
        %v2977 = vld [vmem:[%s2966 + $0x50] sm:$0xff]
        %v2978 = vld [vmem:[%s2966 + $0x58] sm:$0xff]
        %v2979 = vld [vmem:[%s2966 + $0x60] sm:$0xff]
        %v2980 = vld [vmem:[%s2966 + $0x68] sm:$0xff]
        %v2981 = vld [vmem:[%s2966 + $0x70] sm:$0xff]
        %v2982 = vld [vmem:[%s2966 + $0x78] sm:$0xff]
        %v2983 = vld [vmem:[%s6 + $0x3] sm:$0x1]
        %v2984 = vlaneseq
        %v2985 = vshrl.u32 %v2984, 7
        %v2986 = vsub.s32 0, %v2985
        %v2987 = vrot.slane %v2983, %v2986
        %2988 = vmatprep.subr.mxu0 0.0
        %2989 = vmatpush1.msra.mxu0 %v2967
        %2990 = vmatprep.subr.mxu0 0.0
        %2991 = vmatpush1.msra.mxu0 %v2968
        %2992 = vmatprep.subr.mxu0 0.0
        %2993 = vmatpush1.msra.mxu0 %v2969
        %2994 = vmatprep.subr.mxu0 0.0
        %2995 = vmatpush1.msra.mxu0 %v2970
        %2996 = vmatprep.subr.mxu0 0.0
        %2997 = vmatpush1.msra.mxu0 %v2971
        %2998 = vmatprep.subr.mxu0 0.0
        %2999 = vmatpush1.msra.mxu0 %v2972
        %3000 = vmatprep.subr.mxu0 0.0
        %3001 = vmatpush1.msra.mxu0 %v2973
        %3002 = vmatprep.subr.mxu0 0.0
        %3003 = vmatpush1.msra.mxu0 %v2974
        %3004 = vmatprep.subr.mxu0 0.0
        %3005 = vmatpush1.msra.mxu0 %v2975
        %3006 = vmatprep.subr.mxu0 0.0
        %3007 = vmatpush1.msra.mxu0 %v2976
        %3008 = vmatprep.subr.mxu0 0.0
        %3009 = vmatpush1.msra.mxu0 %v2977
        %3010 = vmatprep.subr.mxu0 0.0
        %3011 = vmatpush1.msra.mxu0 %v2978
        %3012 = vmatprep.subr.mxu0 0.0
        %3013 = vmatpush1.msra.mxu0 %v2979
        %3014 = vmatprep.subr.mxu0 0.0
        %3015 = vmatpush1.msra.mxu0 %v2980
        %3016 = vmatprep.subr.mxu0 0.0
        %3017 = vmatpush1.msra.mxu0 %v2981
        %3018 = vmatprep.subr.mxu0 0.0
        %3019 = vmatpush1.msra.mxu0 %v2982
        %3020 = vmatprep.subr.mxu0 0.0
        %3021 = vmatpush1.msra.mxu0 0.0
        %3022 = vmatprep.subr.mxu0 0.0
        %3023 = vmatpush1.msra.mxu0 0.0
        %3024 = vmatprep.subr.mxu0 0.0
        %3025 = vmatpush1.msra.mxu0 0.0
        %3026 = vmatprep.subr.mxu0 0.0
        %3027 = vmatpush1.msra.mxu0 0.0
        %3028 = vmatprep.subr.mxu0 0.0
        %3029 = vmatpush1.msra.mxu0 0.0
        %3030 = vmatprep.subr.mxu0 0.0
        %3031 = vmatpush1.msra.mxu0 0.0
        %3032 = vmatprep.subr.mxu0 0.0
        %3033 = vmatpush1.msra.mxu0 0.0
        %3034 = vmatprep.subr.mxu0 0.0
        %3035 = vmatpush1.msra.mxu0 0.0
        %3036 = vmatprep.subr.mxu0 0.0
        %3037 = vmatpush1.msra.mxu0 0.0
        %3038 = vmatprep.subr.mxu0 0.0
        %3039 = vmatpush1.msra.mxu0 0.0
        %3040 = vmatprep.subr.mxu0 0.0
        %3041 = vmatpush1.msra.mxu0 0.0
        %3042 = vmatprep.subr.mxu0 0.0
        %3043 = vmatpush1.msra.mxu0 0.0
        %3044 = vmatprep.subr.mxu0 0.0
        %3045 = vmatpush1.msra.mxu0 0.0
        %3046 = vmatprep.subr.mxu0 0.0
        %3047 = vmatpush1.msra.mxu0 0.0
        %3048 = vmatprep.subr.mxu0 0.0
        %3049 = vmatpush1.msra.mxu0 0.0
        %3050 = vmatprep.subr.mxu0 0.0
        %3051 = vmatpush1.msra.mxu0 0.0
        %3052 = vmatprep.mubr.f32.mxu0 0.0
        %3053 = vmatmul.mubr.f32.gmra.mrb[0].mxu0 %v2964
        %v3054 = vpop.f32.mrb[0].mxu0
        %v3055 = vadd.f32 %v2987, %v3054
        %v3056 = vpop.f32.mrb[0].mxu0
        %3057 = vmatprep.mubr.f32.mxu0 0.0
        %3058 = vmatmul.mubr.f32.gmra.mrb[0].mxu0 %v2965
        %v3059 = vpop.f32.mrb[0].mxu0
        %v3060 = vadd.f32 %v2987, %v3059
        %v3061 = vpop.f32.mrb[0].mxu0
        %3062 = vdwg.mxu0
        %v3063 = vadd.f32 %v3055, %v2826
        %v3064 = vadd.f32 %v3060, %v2833
        %v3065 = vmax.f32 %v3063, 0.0
        %v3066 = vmax.f32 %v3064, 0.0
        %s3067 = scalar_lea.vmem %s3, 64
        %v3068 = vld [vmem:[%s3067] sm:$0xff]
        %v3069 = vld [vmem:[%s3067 + $0x8] sm:$0x1]
        %v3072 = vrot.slane %v3065, 3
        %v3073 = vrot.slane %v3066, 3
        %v3074 = vsel %vm2822, %v3072, %v3073
        %v3077 = vsel %vm2822, 0.0, %v3072
        %v3078 = vsel %vm2839, %v3077, 0.0
        %v3079 = vsel %vm2839, %v3074, 0.0
        %v3080 = vlaneseq
        %v3081 = vshrl.u32 %v3080, 7
        %v3082 = vsub.s32 0, %v3081
        %v3083 = vrot.slane %v3068, %v3082
        %v3084 = vmul.f32 %v3078, %v3083
        %v3085 = vmul.f32 %v3079, %v3083
        %v3086 = vrot.slane %v3065, 4
        %v3087 = vrot.slane %v3066, 4
        %v3088 = vsel %vm2820, %v3086, %v3087
        %v3091 = vsel %vm2820, 0.0, %v3086
        %v3092 = vlaneseq
        %v3093 = vshrl.u32 %v3092, 7
        %v3094 = vsub.s32 1, %v3093
        %v3095 = vrot.slane %v3068, %v3094
        %v3096 = vmul.f32 %v3091, %v3095
        %v3097 = vmul.f32 %v3088, %v3095
        %v3098 = vadd.f32 %v3084, %v3096
        %v3099 = vadd.f32 %v3085, %v3097
        %v3100 = vrot.slane %v3065, 5
        %v3101 = vrot.slane %v3066, 5
        %v3102 = vsel %vm2818, %v3100, %v3101
        %v3105 = vsel %vm2818, 0.0, %v3100
        %v3106 = vsel %vm2840, %v3105, 0.0
        %v3107 = vsel %vm2840, %v3102, 0.0
        %v3108 = vlaneseq
        %v3109 = vshrl.u32 %v3108, 7
        %v3110 = vsub.s32 2, %v3109
        %v3111 = vrot.slane %v3068, %v3110
        %v3112 = vmul.f32 %v3106, %v3111
        %v3113 = vmul.f32 %v3107, %v3111
        %v3114 = vadd.f32 %v3098, %v3112
        %v3115 = vadd.f32 %v3099, %v3113
        %v3116 = vrot.slane %v3065, 7
        %v3117 = vrot.slane %v3066, 7
        %v3118 = vsel %vm309, %v3116, %v3117
        %v3121 = vsel %vm309, 0.0, %v3116
        %v3122 = vsel %vm2839, %v3121, 0.0
        %v3123 = vsel %vm2839, %v3118, 0.0
        %v3124 = vlaneseq
        %v3125 = vshrl.u32 %v3124, 7
        %v3126 = vsub.s32 3, %v3125
        %v3127 = vrot.slane %v3068, %v3126
        %v3128 = vmul.f32 %v3122, %v3127
        %v3129 = vmul.f32 %v3123, %v3127
        %v3130 = vadd.f32 %v3114, %v3128
        %v3131 = vadd.f32 %v3115, %v3129
        %v3132 = vlaneseq
        %v3133 = vshrl.u32 %v3132, 7
        %v3134 = vsub.s32 4, %v3133
        %v3135 = vrot.slane %v3068, %v3134
        %v3136 = vmul.f32 %v3065, %v3135
        %v3137 = vmul.f32 %v3066, %v3135
        %v3138 = vadd.f32 %v3130, %v3136
        %v3139 = vadd.f32 %v3131, %v3137
        %v3140 = vrot.slane %v3065, 1
        %v3141 = vrot.slane %v3066, 1
        %v3142 = vsel %vm582, %v3140, %v3141
        %v3145 = vsel %vm582, %v3141, 0.0
        %v3146 = vsel %vm2840, %v3142, 0.0
        %v3147 = vsel %vm2840, %v3145, 0.0
        %v3148 = vlaneseq
        %v3149 = vshrl.u32 %v3148, 7
        %v3150 = vsub.s32 5, %v3149
        %v3151 = vrot.slane %v3068, %v3150
        %v3152 = vmul.f32 %v3146, %v3151
        %v3153 = vmul.f32 %v3147, %v3151
        %v3154 = vadd.f32 %v3138, %v3152
        %v3155 = vadd.f32 %v3139, %v3153
        %v3157 = vsel %vm2822, %v3073, 0.0
        %v3158 = vsel %vm2839, %v3157, 0.0
        %v3159 = vlaneseq
        %v3160 = vshrl.u32 %v3159, 7
        %v3161 = vsub.s32 6, %v3160
        %v3162 = vrot.slane %v3068, %v3161
        %v3163 = vmul.f32 %v3079, %v3162
        %v3164 = vmul.f32 %v3158, %v3162
        %v3165 = vadd.f32 %v3154, %v3163
        %v3166 = vadd.f32 %v3155, %v3164
        %v3168 = vsel %vm2820, %v3087, 0.0
        %v3169 = vlaneseq
        %v3170 = vshrl.u32 %v3169, 7
        %v3171 = vsub.s32 7, %v3170
        %v3172 = vrot.slane %v3068, %v3171
        %v3173 = vmul.f32 %v3088, %v3172
        %v3174 = vmul.f32 %v3168, %v3172
        %v3175 = vadd.f32 %v3165, %v3173
        %v3176 = vadd.f32 %v3166, %v3174
        %v3178 = vsel %vm2818, %v3101, 0.0
        %v3179 = vsel %vm2840, %v3178, 0.0
        %v3180 = vlaneseq
        %v3181 = vshrl.u32 %v3180, 7
        %v3182 = vsub.s32 0, %v3181
        %v3183 = vrot.slane %v3069, %v3182
        %v3184 = vmul.f32 %v3107, %v3183
        %v3185 = vmul.f32 %v3179, %v3183
        %v3186 = vadd.f32 %v3175, %v3184
        %v3187 = vadd.f32 %v3176, %v3185
        %v3188 = vld [vmem:[%s4 + $0x4] sm:$0x1]
        %v3189 = vlaneseq
        %v3190 = vshrl.u32 %v3189, 7
        %v3191 = vsub.s32 0, %v3190
        %v3192 = vrot.slane %v3188, %v3191
        %v3193 = vadd.f32 %v3186, %v3192
        %v3194 = vadd.f32 %v3187, %v3192
        %s3195 = scalar_lea.vmem %s5, 512
        %v3196 = vld [vmem:[%s3195] sm:$0xff]
        %v3197 = vld [vmem:[%s3195 + $0x8] sm:$0xff]
        %v3198 = vld [vmem:[%s3195 + $0x10] sm:$0xff]
        %v3199 = vld [vmem:[%s3195 + $0x18] sm:$0xff]
        %v3200 = vld [vmem:[%s3195 + $0x20] sm:$0xff]
        %v3201 = vld [vmem:[%s3195 + $0x28] sm:$0xff]
        %v3202 = vld [vmem:[%s3195 + $0x30] sm:$0xff]
        %v3203 = vld [vmem:[%s3195 + $0x38] sm:$0xff]
        %v3204 = vld [vmem:[%s3195 + $0x40] sm:$0xff]
        %v3205 = vld [vmem:[%s3195 + $0x48] sm:$0xff]
        %v3206 = vld [vmem:[%s3195 + $0x50] sm:$0xff]
        %v3207 = vld [vmem:[%s3195 + $0x58] sm:$0xff]
        %v3208 = vld [vmem:[%s3195 + $0x60] sm:$0xff]
        %v3209 = vld [vmem:[%s3195 + $0x68] sm:$0xff]
        %v3210 = vld [vmem:[%s3195 + $0x70] sm:$0xff]
        %v3211 = vld [vmem:[%s3195 + $0x78] sm:$0xff]
        %v3212 = vld [vmem:[%s6 + $0x4] sm:$0x1]
        %v3213 = vlaneseq
        %v3214 = vshrl.u32 %v3213, 7
        %v3215 = vsub.s32 0, %v3214
        %v3216 = vrot.slane %v3212, %v3215
        %3217 = vmatprep.subr.mxu0 0.0
        %3218 = vmatpush1.msra.mxu0 %v3196
        %3219 = vmatprep.subr.mxu0 0.0
        %3220 = vmatpush1.msra.mxu0 %v3197
        %3221 = vmatprep.subr.mxu0 0.0
        %3222 = vmatpush1.msra.mxu0 %v3198
        %3223 = vmatprep.subr.mxu0 0.0
        %3224 = vmatpush1.msra.mxu0 %v3199
        %3225 = vmatprep.subr.mxu0 0.0
        %3226 = vmatpush1.msra.mxu0 %v3200
        %3227 = vmatprep.subr.mxu0 0.0
        %3228 = vmatpush1.msra.mxu0 %v3201
        %3229 = vmatprep.subr.mxu0 0.0
        %3230 = vmatpush1.msra.mxu0 %v3202
        %3231 = vmatprep.subr.mxu0 0.0
        %3232 = vmatpush1.msra.mxu0 %v3203
        %3233 = vmatprep.subr.mxu0 0.0
        %3234 = vmatpush1.msra.mxu0 %v3204
        %3235 = vmatprep.subr.mxu0 0.0
        %3236 = vmatpush1.msra.mxu0 %v3205
        %3237 = vmatprep.subr.mxu0 0.0
        %3238 = vmatpush1.msra.mxu0 %v3206
        %3239 = vmatprep.subr.mxu0 0.0
        %3240 = vmatpush1.msra.mxu0 %v3207
        %3241 = vmatprep.subr.mxu0 0.0
        %3242 = vmatpush1.msra.mxu0 %v3208
        %3243 = vmatprep.subr.mxu0 0.0
        %3244 = vmatpush1.msra.mxu0 %v3209
        %3245 = vmatprep.subr.mxu0 0.0
        %3246 = vmatpush1.msra.mxu0 %v3210
        %3247 = vmatprep.subr.mxu0 0.0
        %3248 = vmatpush1.msra.mxu0 %v3211
        %3249 = vmatprep.subr.mxu0 0.0
        %3250 = vmatpush1.msra.mxu0 0.0
        %3251 = vmatprep.subr.mxu0 0.0
        %3252 = vmatpush1.msra.mxu0 0.0
        %3253 = vmatprep.subr.mxu0 0.0
        %3254 = vmatpush1.msra.mxu0 0.0
        %3255 = vmatprep.subr.mxu0 0.0
        %3256 = vmatpush1.msra.mxu0 0.0
        %3257 = vmatprep.subr.mxu0 0.0
        %3258 = vmatpush1.msra.mxu0 0.0
        %3259 = vmatprep.subr.mxu0 0.0
        %3260 = vmatpush1.msra.mxu0 0.0
        %3261 = vmatprep.subr.mxu0 0.0
        %3262 = vmatpush1.msra.mxu0 0.0
        %3263 = vmatprep.subr.mxu0 0.0
        %3264 = vmatpush1.msra.mxu0 0.0
        %3265 = vmatprep.subr.mxu0 0.0
        %3266 = vmatpush1.msra.mxu0 0.0
        %3267 = vmatprep.subr.mxu0 0.0
        %3268 = vmatpush1.msra.mxu0 0.0
        %3269 = vmatprep.subr.mxu0 0.0
        %3270 = vmatpush1.msra.mxu0 0.0
        %3271 = vmatprep.subr.mxu0 0.0
        %3272 = vmatpush1.msra.mxu0 0.0
        %3273 = vmatprep.subr.mxu0 0.0
        %3274 = vmatpush1.msra.mxu0 0.0
        %3275 = vmatprep.subr.mxu0 0.0
        %3276 = vmatpush1.msra.mxu0 0.0
        %3277 = vmatprep.subr.mxu0 0.0
        %3278 = vmatpush1.msra.mxu0 0.0
        %3279 = vmatprep.subr.mxu0 0.0
        %3280 = vmatpush1.msra.mxu0 0.0
        %3281 = vmatprep.mubr.f32.mxu0 0.0
        %3282 = vmatmul.mubr.f32.gmra.mrb[0].mxu0 %v3193
        %v3283 = vpop.f32.mrb[0].mxu0
        %v3284 = vadd.f32 %v3216, %v3283
        %v3285 = vpop.f32.mrb[0].mxu0
        %3286 = vmatprep.mubr.f32.mxu0 0.0
        %3287 = vmatmul.mubr.f32.gmra.mrb[0].mxu0 %v3194
        %v3288 = vpop.f32.mrb[0].mxu0
        %v3289 = vadd.f32 %v3216, %v3288
        %v3290 = vpop.f32.mrb[0].mxu0
        %3291 = vdwg.mxu0
        %v3292 = vadd.f32 %v3284, %v3065
        %v3293 = vadd.f32 %v3289, %v3066
        %v3294 = vmax.f32 %v3292, 0.0
        %v3295 = vmax.f32 %v3293, 0.0
        %s3296 = scalar_lea.vmem %s3, 80
        %v3297 = vld [vmem:[%s3296] sm:$0xff]
        %v3298 = vld [vmem:[%s3296 + $0x8] sm:$0x1]
        %v3301 = vrot.slane %v3294, 3
        %v3302 = vrot.slane %v3295, 3
        %v3303 = vsel %vm2822, %v3301, %v3302
        %v3306 = vsel %vm2822, 0.0, %v3301
        %v3307 = vsel %vm2839, %v3306, 0.0
        %v3308 = vsel %vm2839, %v3303, 0.0
        %v3309 = vlaneseq
        %v3310 = vshrl.u32 %v3309, 7
        %v3311 = vsub.s32 0, %v3310
        %v3312 = vrot.slane %v3297, %v3311
        %v3313 = vmul.f32 %v3307, %v3312
        %v3314 = vmul.f32 %v3308, %v3312
        %v3315 = vrot.slane %v3294, 4
        %v3316 = vrot.slane %v3295, 4
        %v3317 = vsel %vm2820, %v3315, %v3316
        %v3320 = vsel %vm2820, 0.0, %v3315
        %v3321 = vlaneseq
        %v3322 = vshrl.u32 %v3321, 7
        %v3323 = vsub.s32 1, %v3322
        %v3324 = vrot.slane %v3297, %v3323
        %v3325 = vmul.f32 %v3320, %v3324
        %v3326 = vmul.f32 %v3317, %v3324
        %v3327 = vadd.f32 %v3313, %v3325
        %v3328 = vadd.f32 %v3314, %v3326
        %v3329 = vrot.slane %v3294, 5
        %v3330 = vrot.slane %v3295, 5
        %v3331 = vsel %vm2818, %v3329, %v3330
        %v3334 = vsel %vm2818, 0.0, %v3329
        %v3335 = vsel %vm2840, %v3334, 0.0
        %v3336 = vsel %vm2840, %v3331, 0.0
        %v3337 = vlaneseq
        %v3338 = vshrl.u32 %v3337, 7
        %v3339 = vsub.s32 2, %v3338
        %v3340 = vrot.slane %v3297, %v3339
        %v3341 = vmul.f32 %v3335, %v3340
        %v3342 = vmul.f32 %v3336, %v3340
        %v3343 = vadd.f32 %v3327, %v3341
        %v3344 = vadd.f32 %v3328, %v3342
        %v3345 = vrot.slane %v3294, 7
        %v3346 = vrot.slane %v3295, 7
        %v3347 = vsel %vm309, %v3345, %v3346
        %v3350 = vsel %vm309, 0.0, %v3345
        %v3351 = vsel %vm2839, %v3350, 0.0
        %v3352 = vsel %vm2839, %v3347, 0.0
        %v3353 = vlaneseq
        %v3354 = vshrl.u32 %v3353, 7
        %v3355 = vsub.s32 3, %v3354
        %v3356 = vrot.slane %v3297, %v3355
        %v3357 = vmul.f32 %v3351, %v3356
        %v3358 = vmul.f32 %v3352, %v3356
        %v3359 = vadd.f32 %v3343, %v3357
        %v3360 = vadd.f32 %v3344, %v3358
        %v3361 = vlaneseq
        %v3362 = vshrl.u32 %v3361, 7
        %v3363 = vsub.s32 4, %v3362
        %v3364 = vrot.slane %v3297, %v3363
        %v3365 = vmul.f32 %v3294, %v3364
        %v3366 = vmul.f32 %v3295, %v3364
        %v3367 = vadd.f32 %v3359, %v3365
        %v3368 = vadd.f32 %v3360, %v3366
        %v3369 = vrot.slane %v3294, 1
        %v3370 = vrot.slane %v3295, 1
        %v3371 = vsel %vm582, %v3369, %v3370
        %v3374 = vsel %vm582, %v3370, 0.0
        %v3375 = vsel %vm2840, %v3371, 0.0
        %v3376 = vsel %vm2840, %v3374, 0.0
        %v3377 = vlaneseq
        %v3378 = vshrl.u32 %v3377, 7
        %v3379 = vsub.s32 5, %v3378
        %v3380 = vrot.slane %v3297, %v3379
        %v3381 = vmul.f32 %v3375, %v3380
        %v3382 = vmul.f32 %v3376, %v3380
        %v3383 = vadd.f32 %v3367, %v3381
        %v3384 = vadd.f32 %v3368, %v3382
        %v3386 = vsel %vm2822, %v3302, 0.0
        %v3387 = vsel %vm2839, %v3386, 0.0
        %v3388 = vlaneseq
        %v3389 = vshrl.u32 %v3388, 7
        %v3390 = vsub.s32 6, %v3389
        %v3391 = vrot.slane %v3297, %v3390
        %v3392 = vmul.f32 %v3308, %v3391
        %v3393 = vmul.f32 %v3387, %v3391
        %v3394 = vadd.f32 %v3383, %v3392
        %v3395 = vadd.f32 %v3384, %v3393
        %v3397 = vsel %vm2820, %v3316, 0.0
        %v3398 = vlaneseq
        %v3399 = vshrl.u32 %v3398, 7
        %v3400 = vsub.s32 7, %v3399
        %v3401 = vrot.slane %v3297, %v3400
        %v3402 = vmul.f32 %v3317, %v3401
        %v3403 = vmul.f32 %v3397, %v3401
        %v3404 = vadd.f32 %v3394, %v3402
        %v3405 = vadd.f32 %v3395, %v3403
        %v3407 = vsel %vm2818, %v3330, 0.0
        %v3408 = vsel %vm2840, %v3407, 0.0
        %v3409 = vlaneseq
        %v3410 = vshrl.u32 %v3409, 7
        %v3411 = vsub.s32 0, %v3410
        %v3412 = vrot.slane %v3298, %v3411
        %v3413 = vmul.f32 %v3336, %v3412
        %v3414 = vmul.f32 %v3408, %v3412
        %v3415 = vadd.f32 %v3404, %v3413
        %v3416 = vadd.f32 %v3405, %v3414
        %v3417 = vld [vmem:[%s4 + $0x5] sm:$0x1]
        %v3418 = vlaneseq
        %v3419 = vshrl.u32 %v3418, 7
        %v3420 = vsub.s32 0, %v3419
        %v3421 = vrot.slane %v3417, %v3420
        %v3422 = vadd.f32 %v3415, %v3421
        %v3423 = vadd.f32 %v3416, %v3421
        %s3424 = scalar_lea.vmem %s5, 640
        %v3425 = vld [vmem:[%s3424] sm:$0xff]
        %v3426 = vld [vmem:[%s3424 + $0x8] sm:$0xff]
        %v3427 = vld [vmem:[%s3424 + $0x10] sm:$0xff]
        %v3428 = vld [vmem:[%s3424 + $0x18] sm:$0xff]
        %v3429 = vld [vmem:[%s3424 + $0x20] sm:$0xff]
        %v3430 = vld [vmem:[%s3424 + $0x28] sm:$0xff]
        %v3431 = vld [vmem:[%s3424 + $0x30] sm:$0xff]
        %v3432 = vld [vmem:[%s3424 + $0x38] sm:$0xff]
        %v3433 = vld [vmem:[%s3424 + $0x40] sm:$0xff]
        %v3434 = vld [vmem:[%s3424 + $0x48] sm:$0xff]
        %v3435 = vld [vmem:[%s3424 + $0x50] sm:$0xff]
        %v3436 = vld [vmem:[%s3424 + $0x58] sm:$0xff]
        %v3437 = vld [vmem:[%s3424 + $0x60] sm:$0xff]
        %v3438 = vld [vmem:[%s3424 + $0x68] sm:$0xff]
        %v3439 = vld [vmem:[%s3424 + $0x70] sm:$0xff]
        %v3440 = vld [vmem:[%s3424 + $0x78] sm:$0xff]
        %v3441 = vld [vmem:[%s6 + $0x5] sm:$0x1]
        %v3442 = vlaneseq
        %v3443 = vshrl.u32 %v3442, 7
        %v3444 = vsub.s32 0, %v3443
        %v3445 = vrot.slane %v3441, %v3444
        %3446 = vmatprep.subr.mxu0 0.0
        %3447 = vmatpush1.msra.mxu0 %v3425
        %3448 = vmatprep.subr.mxu0 0.0
        %3449 = vmatpush1.msra.mxu0 %v3426
        %3450 = vmatprep.subr.mxu0 0.0
        %3451 = vmatpush1.msra.mxu0 %v3427
        %3452 = vmatprep.subr.mxu0 0.0
        %3453 = vmatpush1.msra.mxu0 %v3428
        %3454 = vmatprep.subr.mxu0 0.0
        %3455 = vmatpush1.msra.mxu0 %v3429
        %3456 = vmatprep.subr.mxu0 0.0
        %3457 = vmatpush1.msra.mxu0 %v3430
        %3458 = vmatprep.subr.mxu0 0.0
        %3459 = vmatpush1.msra.mxu0 %v3431
        %3460 = vmatprep.subr.mxu0 0.0
        %3461 = vmatpush1.msra.mxu0 %v3432
        %3462 = vmatprep.subr.mxu0 0.0
        %3463 = vmatpush1.msra.mxu0 %v3433
        %3464 = vmatprep.subr.mxu0 0.0
        %3465 = vmatpush1.msra.mxu0 %v3434
        %3466 = vmatprep.subr.mxu0 0.0
        %3467 = vmatpush1.msra.mxu0 %v3435
        %3468 = vmatprep.subr.mxu0 0.0
        %3469 = vmatpush1.msra.mxu0 %v3436
        %3470 = vmatprep.subr.mxu0 0.0
        %3471 = vmatpush1.msra.mxu0 %v3437
        %3472 = vmatprep.subr.mxu0 0.0
        %3473 = vmatpush1.msra.mxu0 %v3438
        %3474 = vmatprep.subr.mxu0 0.0
        %3475 = vmatpush1.msra.mxu0 %v3439
        %3476 = vmatprep.subr.mxu0 0.0
        %3477 = vmatpush1.msra.mxu0 %v3440
        %3478 = vmatprep.subr.mxu0 0.0
        %3479 = vmatpush1.msra.mxu0 0.0
        %3480 = vmatprep.subr.mxu0 0.0
        %3481 = vmatpush1.msra.mxu0 0.0
        %3482 = vmatprep.subr.mxu0 0.0
        %3483 = vmatpush1.msra.mxu0 0.0
        %3484 = vmatprep.subr.mxu0 0.0
        %3485 = vmatpush1.msra.mxu0 0.0
        %3486 = vmatprep.subr.mxu0 0.0
        %3487 = vmatpush1.msra.mxu0 0.0
        %3488 = vmatprep.subr.mxu0 0.0
        %3489 = vmatpush1.msra.mxu0 0.0
        %3490 = vmatprep.subr.mxu0 0.0
        %3491 = vmatpush1.msra.mxu0 0.0
        %3492 = vmatprep.subr.mxu0 0.0
        %3493 = vmatpush1.msra.mxu0 0.0
        %3494 = vmatprep.subr.mxu0 0.0
        %3495 = vmatpush1.msra.mxu0 0.0
        %3496 = vmatprep.subr.mxu0 0.0
        %3497 = vmatpush1.msra.mxu0 0.0
        %3498 = vmatprep.subr.mxu0 0.0
        %3499 = vmatpush1.msra.mxu0 0.0
        %3500 = vmatprep.subr.mxu0 0.0
        %3501 = vmatpush1.msra.mxu0 0.0
        %3502 = vmatprep.subr.mxu0 0.0
        %3503 = vmatpush1.msra.mxu0 0.0
        %3504 = vmatprep.subr.mxu0 0.0
        %3505 = vmatpush1.msra.mxu0 0.0
        %3506 = vmatprep.subr.mxu0 0.0
        %3507 = vmatpush1.msra.mxu0 0.0
        %3508 = vmatprep.subr.mxu0 0.0
        %3509 = vmatpush1.msra.mxu0 0.0
        %3510 = vmatprep.mubr.f32.mxu0 0.0
        %3511 = vmatmul.mubr.f32.gmra.mrb[0].mxu0 %v3422
        %v3512 = vpop.f32.mrb[0].mxu0
        %v3513 = vadd.f32 %v3445, %v3512
        %v3514 = vpop.f32.mrb[0].mxu0
        %3515 = vmatprep.mubr.f32.mxu0 0.0
        %3516 = vmatmul.mubr.f32.gmra.mrb[0].mxu0 %v3423
        %v3517 = vpop.f32.mrb[0].mxu0
        %v3518 = vadd.f32 %v3445, %v3517
        %v3519 = vpop.f32.mrb[0].mxu0
        %3520 = vdwg.mxu0
        %v3521 = vmax.f32 %v3294, %v3371
        %v3522 = vmax.f32 %v3295, %v3374
        %v3523 = vmax.f32 %v3317, %v3331
        %v3524 = vmax.f32 %v3397, %v3407
        %v3525 = vmax.f32 %v3521, %v3523
        %v3526 = vmax.f32 %v3522, %v3524
        %v3527 = vadd.f32 %v3513, %v3525
        %v3528 = vadd.f32 %v3518, %v3526
        %v3529 = vmax.f32 %v3527, 0.0
        %v3530 = vmax.f32 %v3528, 0.0
        %v3532 = vrot.slane %v3529, 1
        %v3535 = vrot.slane %v3530, 6
        %v3537 = vrot.slane %v3530, 7
        %v3539 = vsel %vm309, %v3529, %v3532
        %v3540 = vsel %vm2816, %v3539, %v3535
        %v3541 = vsel %vm2818, %v3540, %v3537
        %s3542 = scalar_lea.vmem %s3, 96
        %v3543 = vld [vmem:[%s3542] sm:$0xff]
        %v3544 = vld [vmem:[%s3542 + $0x8] sm:$0x1]
        %v3545 = vrot.slane %v299, 6
        %v3546 = vsel %vm2816, %v299, %v3545
        %vm3547 = vcmp.ne.s32.totalorder %v3546, 0
        %vm3548 = vcmp.ne.s32.totalorder %v3546, 1
        %v3550 = vrot.slane %v3541, 5
        %v3552 = vsel %vm2818, 0.0, %v3550
        %v3553 = vsel %vm3547, %v3552, 0.0
        %v3554 = vlaneseq
        %v3555 = vshrl.u32 %v3554, 7
        %v3556 = vsub.s32 0, %v3555
        %v3557 = vrot.slane %v3543, %v3556
        %v3558 = vmul.f32 %v3553, %v3557
        %v3559 = vrot.slane %v3541, 6
        %v3561 = vsel %vm2816, 0.0, %v3559
        %v3562 = vlaneseq
        %v3563 = vshrl.u32 %v3562, 7
        %v3564 = vsub.s32 1, %v3563
        %v3565 = vrot.slane %v3543, %v3564
        %v3566 = vmul.f32 %v3561, %v3565
        %v3567 = vadd.f32 %v3558, %v3566
        %v3568 = vrot.slane %v3541, 7
        %v3570 = vsel %vm309, 0.0, %v3568
        %v3571 = vsel %vm3548, %v3570, 0.0
        %v3572 = vlaneseq
        %v3573 = vshrl.u32 %v3572, 7
        %v3574 = vsub.s32 2, %v3573
        %v3575 = vrot.slane %v3543, %v3574
        %v3576 = vmul.f32 %v3571, %v3575
        %v3577 = vadd.f32 %v3567, %v3576
        %v3578 = vsel %vm3547, %v3570, 0.0
        %v3579 = vlaneseq
        %v3580 = vshrl.u32 %v3579, 7
        %v3581 = vsub.s32 3, %v3580
        %v3582 = vrot.slane %v3543, %v3581
        %v3583 = vmul.f32 %v3578, %v3582
        %v3584 = vadd.f32 %v3577, %v3583
        %v3585 = vlaneseq
        %v3586 = vshrl.u32 %v3585, 7
        %v3587 = vsub.s32 4, %v3586
        %v3588 = vrot.slane %v3543, %v3587
        %v3589 = vmul.f32 %v3541, %v3588
        %v3590 = vadd.f32 %v3584, %v3589
        %v3591 = vrot.slane %v3541, 1
        %v3593 = vsel %vm2818, %v3591, 0.0
        %v3594 = vsel %vm3548, %v3593, 0.0
        %v3595 = vlaneseq
        %v3596 = vshrl.u32 %v3595, 7
        %v3597 = vsub.s32 5, %v3596
        %v3598 = vrot.slane %v3543, %v3597
        %v3599 = vmul.f32 %v3594, %v3598
        %v3600 = vadd.f32 %v3590, %v3599
        %v3601 = vsel %vm3547, %v3593, 0.0
        %v3602 = vlaneseq
        %v3603 = vshrl.u32 %v3602, 7
        %v3604 = vsub.s32 6, %v3603
        %v3605 = vrot.slane %v3543, %v3604
        %v3606 = vmul.f32 %v3601, %v3605
        %v3607 = vadd.f32 %v3600, %v3606
        %v3608 = vrot.slane %v3541, 2
        %v3610 = vsel %vm2816, %v3608, 0.0
        %v3611 = vlaneseq
        %v3612 = vshrl.u32 %v3611, 7
        %v3613 = vsub.s32 7, %v3612
        %v3614 = vrot.slane %v3543, %v3613
        %v3615 = vmul.f32 %v3610, %v3614
        %v3616 = vadd.f32 %v3607, %v3615
        %v3617 = vrot.slane %v3541, 3
        %v3619 = vsel %vm309, %v3617, 0.0
        %v3620 = vsel %vm3548, %v3619, 0.0
        %v3621 = vlaneseq
        %v3622 = vshrl.u32 %v3621, 7
        %v3623 = vsub.s32 0, %v3622
        %v3624 = vrot.slane %v3544, %v3623
        %v3625 = vmul.f32 %v3620, %v3624
        %v3626 = vadd.f32 %v3616, %v3625
        %v3627 = vld [vmem:[%s4 + $0x6] sm:$0x1]
        %v3628 = vlaneseq
        %v3629 = vshrl.u32 %v3628, 7
        %v3630 = vsub.s32 0, %v3629
        %v3631 = vrot.slane %v3627, %v3630
        %v3632 = vadd.f32 %v3626, %v3631
        %s3633 = scalar_lea.vmem %s5, 768
        %v3634 = vld [vmem:[%s3633] sm:$0xff]
        %v3635 = vld [vmem:[%s3633 + $0x8] sm:$0xff]
        %v3636 = vld [vmem:[%s3633 + $0x10] sm:$0xff]
        %v3637 = vld [vmem:[%s3633 + $0x18] sm:$0xff]
        %v3638 = vld [vmem:[%s3633 + $0x20] sm:$0xff]
        %v3639 = vld [vmem:[%s3633 + $0x28] sm:$0xff]
        %v3640 = vld [vmem:[%s3633 + $0x30] sm:$0xff]
        %v3641 = vld [vmem:[%s3633 + $0x38] sm:$0xff]
        %v3642 = vld [vmem:[%s3633 + $0x40] sm:$0xff]
        %v3643 = vld [vmem:[%s3633 + $0x48] sm:$0xff]
        %v3644 = vld [vmem:[%s3633 + $0x50] sm:$0xff]
        %v3645 = vld [vmem:[%s3633 + $0x58] sm:$0xff]
        %v3646 = vld [vmem:[%s3633 + $0x60] sm:$0xff]
        %v3647 = vld [vmem:[%s3633 + $0x68] sm:$0xff]
        %v3648 = vld [vmem:[%s3633 + $0x70] sm:$0xff]
        %v3649 = vld [vmem:[%s3633 + $0x78] sm:$0xff]
        %v3650 = vld [vmem:[%s6 + $0x6] sm:$0x1]
        %v3651 = vlaneseq
        %v3652 = vshrl.u32 %v3651, 7
        %v3653 = vsub.s32 0, %v3652
        %v3654 = vrot.slane %v3650, %v3653
        %3655 = vmatprep.subr.mxu0 0.0
        %3656 = vmatpush1.msra.mxu0 %v3634
        %3657 = vmatprep.subr.mxu0 0.0
        %3658 = vmatpush1.msra.mxu0 %v3635
        %3659 = vmatprep.subr.mxu0 0.0
        %3660 = vmatpush1.msra.mxu0 %v3636
        %3661 = vmatprep.subr.mxu0 0.0
        %3662 = vmatpush1.msra.mxu0 %v3637
        %3663 = vmatprep.subr.mxu0 0.0
        %3664 = vmatpush1.msra.mxu0 %v3638
        %3665 = vmatprep.subr.mxu0 0.0
        %3666 = vmatpush1.msra.mxu0 %v3639
        %3667 = vmatprep.subr.mxu0 0.0
        %3668 = vmatpush1.msra.mxu0 %v3640
        %3669 = vmatprep.subr.mxu0 0.0
        %3670 = vmatpush1.msra.mxu0 %v3641
        %3671 = vmatprep.subr.mxu0 0.0
        %3672 = vmatpush1.msra.mxu0 %v3642
        %3673 = vmatprep.subr.mxu0 0.0
        %3674 = vmatpush1.msra.mxu0 %v3643
        %3675 = vmatprep.subr.mxu0 0.0
        %3676 = vmatpush1.msra.mxu0 %v3644
        %3677 = vmatprep.subr.mxu0 0.0
        %3678 = vmatpush1.msra.mxu0 %v3645
        %3679 = vmatprep.subr.mxu0 0.0
        %3680 = vmatpush1.msra.mxu0 %v3646
        %3681 = vmatprep.subr.mxu0 0.0
        %3682 = vmatpush1.msra.mxu0 %v3647
        %3683 = vmatprep.subr.mxu0 0.0
        %3684 = vmatpush1.msra.mxu0 %v3648
        %3685 = vmatprep.subr.mxu0 0.0
        %3686 = vmatpush1.msra.mxu0 %v3649
        %3687 = vmatprep.subr.mxu0 0.0
        %3688 = vmatpush1.msra.mxu0 0.0
        %3689 = vmatprep.subr.mxu0 0.0
        %3690 = vmatpush1.msra.mxu0 0.0
        %3691 = vmatprep.subr.mxu0 0.0
        %3692 = vmatpush1.msra.mxu0 0.0
        %3693 = vmatprep.subr.mxu0 0.0
        %3694 = vmatpush1.msra.mxu0 0.0
        %3695 = vmatprep.subr.mxu0 0.0
        %3696 = vmatpush1.msra.mxu0 0.0
        %3697 = vmatprep.subr.mxu0 0.0
        %3698 = vmatpush1.msra.mxu0 0.0
        %3699 = vmatprep.subr.mxu0 0.0
        %3700 = vmatpush1.msra.mxu0 0.0
        %3701 = vmatprep.subr.mxu0 0.0
        %3702 = vmatpush1.msra.mxu0 0.0
        %3703 = vmatprep.subr.mxu0 0.0
        %3704 = vmatpush1.msra.mxu0 0.0
        %3705 = vmatprep.subr.mxu0 0.0
        %3706 = vmatpush1.msra.mxu0 0.0
        %3707 = vmatprep.subr.mxu0 0.0
        %3708 = vmatpush1.msra.mxu0 0.0
        %3709 = vmatprep.subr.mxu0 0.0
        %3710 = vmatpush1.msra.mxu0 0.0
        %3711 = vmatprep.subr.mxu0 0.0
        %3712 = vmatpush1.msra.mxu0 0.0
        %3713 = vmatprep.subr.mxu0 0.0
        %3714 = vmatpush1.msra.mxu0 0.0
        %3715 = vmatprep.subr.mxu0 0.0
        %3716 = vmatpush1.msra.mxu0 0.0
        %3717 = vmatprep.subr.mxu0 0.0
        %3718 = vmatpush1.msra.mxu0 0.0
        %3719 = vmatprep.mubr.f32.mxu0 0.0
        %3720 = vmatmul.mubr.f32.gmra.mrb[0].mxu0 %v3632
        %v3721 = vpop.f32.mrb[0].mxu0
        %v3722 = vadd.f32 %v3654, %v3721
        %v3723 = vpop.f32.mrb[0].mxu0
        %3724 = vdwg.mxu0
        %v3725 = vadd.f32 %v3722, %v3541
        %v3726 = vmax.f32 %v3725, 0.0
        %s3727 = scalar_lea.vmem %s3, 112
        %v3728 = vld [vmem:[%s3727] sm:$0xff]
        %v3729 = vld [vmem:[%s3727 + $0x8] sm:$0x1]
        %v3731 = vrot.slane %v3726, 5
        %v3733 = vsel %vm2818, 0.0, %v3731
        %v3734 = vsel %vm3547, %v3733, 0.0
        %v3735 = vlaneseq
        %v3736 = vshrl.u32 %v3735, 7
        %v3737 = vsub.s32 0, %v3736
        %v3738 = vrot.slane %v3728, %v3737
        %v3739 = vmul.f32 %v3734, %v3738
        %v3740 = vrot.slane %v3726, 6
        %v3742 = vsel %vm2816, 0.0, %v3740
        %v3743 = vlaneseq
        %v3744 = vshrl.u32 %v3743, 7
        %v3745 = vsub.s32 1, %v3744
        %v3746 = vrot.slane %v3728, %v3745
        %v3747 = vmul.f32 %v3742, %v3746
        %v3748 = vadd.f32 %v3739, %v3747
        %v3749 = vrot.slane %v3726, 7
        %v3751 = vsel %vm309, 0.0, %v3749
        %v3752 = vsel %vm3548, %v3751, 0.0
        %v3753 = vlaneseq
        %v3754 = vshrl.u32 %v3753, 7
        %v3755 = vsub.s32 2, %v3754
        %v3756 = vrot.slane %v3728, %v3755
        %v3757 = vmul.f32 %v3752, %v3756
        %v3758 = vadd.f32 %v3748, %v3757
        %v3759 = vsel %vm3547, %v3751, 0.0
        %v3760 = vlaneseq
        %v3761 = vshrl.u32 %v3760, 7
        %v3762 = vsub.s32 3, %v3761
        %v3763 = vrot.slane %v3728, %v3762
        %v3764 = vmul.f32 %v3759, %v3763
        %v3765 = vadd.f32 %v3758, %v3764
        %v3766 = vlaneseq
        %v3767 = vshrl.u32 %v3766, 7
        %v3768 = vsub.s32 4, %v3767
        %v3769 = vrot.slane %v3728, %v3768
        %v3770 = vmul.f32 %v3726, %v3769
        %v3771 = vadd.f32 %v3765, %v3770
        %v3772 = vrot.slane %v3726, 1
        %v3774 = vsel %vm2818, %v3772, 0.0
        %v3775 = vsel %vm3548, %v3774, 0.0
        %v3776 = vlaneseq
        %v3777 = vshrl.u32 %v3776, 7
        %v3778 = vsub.s32 5, %v3777
        %v3779 = vrot.slane %v3728, %v3778
        %v3780 = vmul.f32 %v3775, %v3779
        %v3781 = vadd.f32 %v3771, %v3780
        %v3782 = vsel %vm3547, %v3774, 0.0
        %v3783 = vlaneseq
        %v3784 = vshrl.u32 %v3783, 7
        %v3785 = vsub.s32 6, %v3784
        %v3786 = vrot.slane %v3728, %v3785
        %v3787 = vmul.f32 %v3782, %v3786
        %v3788 = vadd.f32 %v3781, %v3787
        %v3789 = vrot.slane %v3726, 2
        %v3791 = vsel %vm2816, %v3789, 0.0
        %v3792 = vlaneseq
        %v3793 = vshrl.u32 %v3792, 7
        %v3794 = vsub.s32 7, %v3793
        %v3795 = vrot.slane %v3728, %v3794
        %v3796 = vmul.f32 %v3791, %v3795
        %v3797 = vadd.f32 %v3788, %v3796
        %v3798 = vrot.slane %v3726, 3
        %v3800 = vsel %vm309, %v3798, 0.0
        %v3801 = vsel %vm3548, %v3800, 0.0
        %v3802 = vlaneseq
        %v3803 = vshrl.u32 %v3802, 7
        %v3804 = vsub.s32 0, %v3803
        %v3805 = vrot.slane %v3729, %v3804
        %v3806 = vmul.f32 %v3801, %v3805
        %v3807 = vadd.f32 %v3797, %v3806
        %v3808 = vld [vmem:[%s4 + $0x7] sm:$0x1]
        %v3809 = vlaneseq
        %v3810 = vshrl.u32 %v3809, 7
        %v3811 = vsub.s32 0, %v3810
        %v3812 = vrot.slane %v3808, %v3811
        %v3813 = vadd.f32 %v3807, %v3812
        %s3814 = scalar_lea.vmem %s5, 896
        %v3815 = vld [vmem:[%s3814] sm:$0xff]
        %v3816 = vld [vmem:[%s3814 + $0x8] sm:$0xff]
        %v3817 = vld [vmem:[%s3814 + $0x10] sm:$0xff]
        %v3818 = vld [vmem:[%s3814 + $0x18] sm:$0xff]
        %v3819 = vld [vmem:[%s3814 + $0x20] sm:$0xff]
        %v3820 = vld [vmem:[%s3814 + $0x28] sm:$0xff]
        %v3821 = vld [vmem:[%s3814 + $0x30] sm:$0xff]
        %v3822 = vld [vmem:[%s3814 + $0x38] sm:$0xff]
        %v3823 = vld [vmem:[%s3814 + $0x40] sm:$0xff]
        %v3824 = vld [vmem:[%s3814 + $0x48] sm:$0xff]
        %v3825 = vld [vmem:[%s3814 + $0x50] sm:$0xff]
        %v3826 = vld [vmem:[%s3814 + $0x58] sm:$0xff]
        %v3827 = vld [vmem:[%s3814 + $0x60] sm:$0xff]
        %v3828 = vld [vmem:[%s3814 + $0x68] sm:$0xff]
        %v3829 = vld [vmem:[%s3814 + $0x70] sm:$0xff]
        %v3830 = vld [vmem:[%s3814 + $0x78] sm:$0xff]
        %v3831 = vld [vmem:[%s6 + $0x7] sm:$0x1]
        %v3832 = vlaneseq
        %v3833 = vshrl.u32 %v3832, 7
        %v3834 = vsub.s32 0, %v3833
        %v3835 = vrot.slane %v3831, %v3834
        %3836 = vmatprep.subr.mxu0 0.0
        %3837 = vmatpush1.msra.mxu0 %v3815
        %3838 = vmatprep.subr.mxu0 0.0
        %3839 = vmatpush1.msra.mxu0 %v3816
        %3840 = vmatprep.subr.mxu0 0.0
        %3841 = vmatpush1.msra.mxu0 %v3817
        %3842 = vmatprep.subr.mxu0 0.0
        %3843 = vmatpush1.msra.mxu0 %v3818
        %3844 = vmatprep.subr.mxu0 0.0
        %3845 = vmatpush1.msra.mxu0 %v3819
        %3846 = vmatprep.subr.mxu0 0.0
        %3847 = vmatpush1.msra.mxu0 %v3820
        %3848 = vmatprep.subr.mxu0 0.0
        %3849 = vmatpush1.msra.mxu0 %v3821
        %3850 = vmatprep.subr.mxu0 0.0
        %3851 = vmatpush1.msra.mxu0 %v3822
        %3852 = vmatprep.subr.mxu0 0.0
        %3853 = vmatpush1.msra.mxu0 %v3823
        %3854 = vmatprep.subr.mxu0 0.0
        %3855 = vmatpush1.msra.mxu0 %v3824
        %3856 = vmatprep.subr.mxu0 0.0
        %3857 = vmatpush1.msra.mxu0 %v3825
        %3858 = vmatprep.subr.mxu0 0.0
        %3859 = vmatpush1.msra.mxu0 %v3826
        %3860 = vmatprep.subr.mxu0 0.0
        %3861 = vmatpush1.msra.mxu0 %v3827
        %3862 = vmatprep.subr.mxu0 0.0
        %3863 = vmatpush1.msra.mxu0 %v3828
        %3864 = vmatprep.subr.mxu0 0.0
        %3865 = vmatpush1.msra.mxu0 %v3829
        %3866 = vmatprep.subr.mxu0 0.0
        %3867 = vmatpush1.msra.mxu0 %v3830
        %3868 = vmatprep.subr.mxu0 0.0
        %3869 = vmatpush1.msra.mxu0 0.0
        %3870 = vmatprep.subr.mxu0 0.0
        %3871 = vmatpush1.msra.mxu0 0.0
        %3872 = vmatprep.subr.mxu0 0.0
        %3873 = vmatpush1.msra.mxu0 0.0
        %3874 = vmatprep.subr.mxu0 0.0
        %3875 = vmatpush1.msra.mxu0 0.0
        %3876 = vmatprep.subr.mxu0 0.0
        %3877 = vmatpush1.msra.mxu0 0.0
        %3878 = vmatprep.subr.mxu0 0.0
        %3879 = vmatpush1.msra.mxu0 0.0
        %3880 = vmatprep.subr.mxu0 0.0
        %3881 = vmatpush1.msra.mxu0 0.0
        %3882 = vmatprep.subr.mxu0 0.0
        %3883 = vmatpush1.msra.mxu0 0.0
        %3884 = vmatprep.subr.mxu0 0.0
        %3885 = vmatpush1.msra.mxu0 0.0
        %3886 = vmatprep.subr.mxu0 0.0
        %3887 = vmatpush1.msra.mxu0 0.0
        %3888 = vmatprep.subr.mxu0 0.0
        %3889 = vmatpush1.msra.mxu0 0.0
        %3890 = vmatprep.subr.mxu0 0.0
        %3891 = vmatpush1.msra.mxu0 0.0
        %3892 = vmatprep.subr.mxu0 0.0
        %3893 = vmatpush1.msra.mxu0 0.0
        %3894 = vmatprep.subr.mxu0 0.0
        %3895 = vmatpush1.msra.mxu0 0.0
        %3896 = vmatprep.subr.mxu0 0.0
        %3897 = vmatpush1.msra.mxu0 0.0
        %3898 = vmatprep.subr.mxu0 0.0
        %3899 = vmatpush1.msra.mxu0 0.0
        %3900 = vmatprep.mubr.f32.mxu0 0.0
        %3901 = vmatmul.mubr.f32.gmra.mrb[0].mxu0 %v3813
        %v3902 = vpop.f32.mrb[0].mxu0
        %v3903 = vadd.f32 %v3835, %v3902
        %v3904 = vpop.f32.mrb[0].mxu0
        %3905 = vdwg.mxu0
        %v3906 = vadd.f32 %v3903, %v3726
        %v3907 = vmax.f32 %v3906, 0.0
        %s3908 = scalar_lea.vmem %s3, 128
        %v3909 = vld [vmem:[%s3908] sm:$0xff]
        %v3910 = vld [vmem:[%s3908 + $0x8] sm:$0x1]
        %v3912 = vrot.slane %v3907, 5
        %v3914 = vsel %vm2818, 0.0, %v3912
        %v3915 = vsel %vm3547, %v3914, 0.0
        %v3916 = vlaneseq
        %v3917 = vshrl.u32 %v3916, 7
        %v3918 = vsub.s32 0, %v3917
        %v3919 = vrot.slane %v3909, %v3918
        %v3920 = vmul.f32 %v3915, %v3919
        %v3921 = vrot.slane %v3907, 6
        %v3923 = vsel %vm2816, 0.0, %v3921
        %v3924 = vlaneseq
        %v3925 = vshrl.u32 %v3924, 7
        %v3926 = vsub.s32 1, %v3925
        %v3927 = vrot.slane %v3909, %v3926
        %v3928 = vmul.f32 %v3923, %v3927
        %v3929 = vadd.f32 %v3920, %v3928
        %v3930 = vrot.slane %v3907, 7
        %v3932 = vsel %vm309, 0.0, %v3930
        %v3933 = vsel %vm3548, %v3932, 0.0
        %v3934 = vlaneseq
        %v3935 = vshrl.u32 %v3934, 7
        %v3936 = vsub.s32 2, %v3935
        %v3937 = vrot.slane %v3909, %v3936
        %v3938 = vmul.f32 %v3933, %v3937
        %v3939 = vadd.f32 %v3929, %v3938
        %v3940 = vsel %vm3547, %v3932, 0.0
        %v3941 = vlaneseq
        %v3942 = vshrl.u32 %v3941, 7
        %v3943 = vsub.s32 3, %v3942
        %v3944 = vrot.slane %v3909, %v3943
        %v3945 = vmul.f32 %v3940, %v3944
        %v3946 = vadd.f32 %v3939, %v3945
        %v3947 = vlaneseq
        %v3948 = vshrl.u32 %v3947, 7
        %v3949 = vsub.s32 4, %v3948
        %v3950 = vrot.slane %v3909, %v3949
        %v3951 = vmul.f32 %v3907, %v3950
        %v3952 = vadd.f32 %v3946, %v3951
        %v3953 = vrot.slane %v3907, 1
        %v3955 = vsel %vm2818, %v3953, 0.0
        %v3956 = vsel %vm3548, %v3955, 0.0
        %v3957 = vlaneseq
        %v3958 = vshrl.u32 %v3957, 7
        %v3959 = vsub.s32 5, %v3958
        %v3960 = vrot.slane %v3909, %v3959
        %v3961 = vmul.f32 %v3956, %v3960
        %v3962 = vadd.f32 %v3952, %v3961
        %v3963 = vsel %vm3547, %v3955, 0.0
        %v3964 = vlaneseq
        %v3965 = vshrl.u32 %v3964, 7
        %v3966 = vsub.s32 6, %v3965
        %v3967 = vrot.slane %v3909, %v3966
        %v3968 = vmul.f32 %v3963, %v3967
        %v3969 = vadd.f32 %v3962, %v3968
        %v3970 = vrot.slane %v3907, 2
        %v3972 = vsel %vm2816, %v3970, 0.0
        %v3973 = vlaneseq
        %v3974 = vshrl.u32 %v3973, 7
        %v3975 = vsub.s32 7, %v3974
        %v3976 = vrot.slane %v3909, %v3975
        %v3977 = vmul.f32 %v3972, %v3976
        %v3978 = vadd.f32 %v3969, %v3977
        %v3979 = vrot.slane %v3907, 3
        %v3981 = vsel %vm309, %v3979, 0.0
        %v3982 = vsel %vm3548, %v3981, 0.0
        %v3983 = vlaneseq
        %v3984 = vshrl.u32 %v3983, 7
        %v3985 = vsub.s32 0, %v3984
        %v3986 = vrot.slane %v3910, %v3985
        %v3987 = vmul.f32 %v3982, %v3986
        %v3988 = vadd.f32 %v3978, %v3987
        %v3989 = vld [vmem:[%s4 + $0x8] sm:$0x1]
        %v3990 = vlaneseq
        %v3991 = vshrl.u32 %v3990, 7
        %v3992 = vsub.s32 0, %v3991
        %v3993 = vrot.slane %v3989, %v3992
        %v3994 = vadd.f32 %v3988, %v3993
        %s3995 = scalar_lea.vmem %s5, 1024
        %v3996 = vld [vmem:[%s3995] sm:$0xff]
        %v3997 = vld [vmem:[%s3995 + $0x8] sm:$0xff]
        %v3998 = vld [vmem:[%s3995 + $0x10] sm:$0xff]
        %v3999 = vld [vmem:[%s3995 + $0x18] sm:$0xff]
        %v4000 = vld [vmem:[%s3995 + $0x20] sm:$0xff]
        %v4001 = vld [vmem:[%s3995 + $0x28] sm:$0xff]
        %v4002 = vld [vmem:[%s3995 + $0x30] sm:$0xff]
        %v4003 = vld [vmem:[%s3995 + $0x38] sm:$0xff]
        %v4004 = vld [vmem:[%s3995 + $0x40] sm:$0xff]
        %v4005 = vld [vmem:[%s3995 + $0x48] sm:$0xff]
        %v4006 = vld [vmem:[%s3995 + $0x50] sm:$0xff]
        %v4007 = vld [vmem:[%s3995 + $0x58] sm:$0xff]
        %v4008 = vld [vmem:[%s3995 + $0x60] sm:$0xff]
        %v4009 = vld [vmem:[%s3995 + $0x68] sm:$0xff]
        %v4010 = vld [vmem:[%s3995 + $0x70] sm:$0xff]
        %v4011 = vld [vmem:[%s3995 + $0x78] sm:$0xff]
        %v4012 = vld [vmem:[%s6 + $0x8] sm:$0x1]
        %v4013 = vlaneseq
        %v4014 = vshrl.u32 %v4013, 7
        %v4015 = vsub.s32 0, %v4014
        %v4016 = vrot.slane %v4012, %v4015
        %4017 = vmatprep.subr.mxu0 0.0
        %4018 = vmatpush1.msra.mxu0 %v3996
        %4019 = vmatprep.subr.mxu0 0.0
        %4020 = vmatpush1.msra.mxu0 %v3997
        %4021 = vmatprep.subr.mxu0 0.0
        %4022 = vmatpush1.msra.mxu0 %v3998
        %4023 = vmatprep.subr.mxu0 0.0
        %4024 = vmatpush1.msra.mxu0 %v3999
        %4025 = vmatprep.subr.mxu0 0.0
        %4026 = vmatpush1.msra.mxu0 %v4000
        %4027 = vmatprep.subr.mxu0 0.0
        %4028 = vmatpush1.msra.mxu0 %v4001
        %4029 = vmatprep.subr.mxu0 0.0
        %4030 = vmatpush1.msra.mxu0 %v4002
        %4031 = vmatprep.subr.mxu0 0.0
        %4032 = vmatpush1.msra.mxu0 %v4003
        %4033 = vmatprep.subr.mxu0 0.0
        %4034 = vmatpush1.msra.mxu0 %v4004
        %4035 = vmatprep.subr.mxu0 0.0
        %4036 = vmatpush1.msra.mxu0 %v4005
        %4037 = vmatprep.subr.mxu0 0.0
        %4038 = vmatpush1.msra.mxu0 %v4006
        %4039 = vmatprep.subr.mxu0 0.0
        %4040 = vmatpush1.msra.mxu0 %v4007
        %4041 = vmatprep.subr.mxu0 0.0
        %4042 = vmatpush1.msra.mxu0 %v4008
        %4043 = vmatprep.subr.mxu0 0.0
        %4044 = vmatpush1.msra.mxu0 %v4009
        %4045 = vmatprep.subr.mxu0 0.0
        %4046 = vmatpush1.msra.mxu0 %v4010
        %4047 = vmatprep.subr.mxu0 0.0
        %4048 = vmatpush1.msra.mxu0 %v4011
        %4049 = vmatprep.subr.mxu0 0.0
        %4050 = vmatpush1.msra.mxu0 0.0
        %4051 = vmatprep.subr.mxu0 0.0
        %4052 = vmatpush1.msra.mxu0 0.0
        %4053 = vmatprep.subr.mxu0 0.0
        %4054 = vmatpush1.msra.mxu0 0.0
        %4055 = vmatprep.subr.mxu0 0.0
        %4056 = vmatpush1.msra.mxu0 0.0
        %4057 = vmatprep.subr.mxu0 0.0
        %4058 = vmatpush1.msra.mxu0 0.0
        %4059 = vmatprep.subr.mxu0 0.0
        %4060 = vmatpush1.msra.mxu0 0.0
        %4061 = vmatprep.subr.mxu0 0.0
        %4062 = vmatpush1.msra.mxu0 0.0
        %4063 = vmatprep.subr.mxu0 0.0
        %4064 = vmatpush1.msra.mxu0 0.0
        %4065 = vmatprep.subr.mxu0 0.0
        %4066 = vmatpush1.msra.mxu0 0.0
        %4067 = vmatprep.subr.mxu0 0.0
        %4068 = vmatpush1.msra.mxu0 0.0
        %4069 = vmatprep.subr.mxu0 0.0
        %4070 = vmatpush1.msra.mxu0 0.0
        %4071 = vmatprep.subr.mxu0 0.0
        %4072 = vmatpush1.msra.mxu0 0.0
        %4073 = vmatprep.subr.mxu0 0.0
        %4074 = vmatpush1.msra.mxu0 0.0
        %4075 = vmatprep.subr.mxu0 0.0
        %4076 = vmatpush1.msra.mxu0 0.0
        %4077 = vmatprep.subr.mxu0 0.0
        %4078 = vmatpush1.msra.mxu0 0.0
        %4079 = vmatprep.subr.mxu0 0.0
        %4080 = vmatpush1.msra.mxu0 0.0
        %4081 = vmatprep.mubr.f32.mxu0 0.0
        %4082 = vmatmul.mubr.f32.gmra.mrb[0].mxu0 %v3994
        %v4083 = vpop.f32.mrb[0].mxu0
        %v4084 = vadd.f32 %v4016, %v4083
        %v4085 = vpop.f32.mrb[0].mxu0
        %4086 = vdwg.mxu0
        %v4087 = vadd.f32 %v4084, %v3907
        %v4088 = vmax.f32 %v4087, 0.0
        %s4089 = scalar_lea.vmem %s3, 144
        %v4090 = vld [vmem:[%s4089] sm:$0xff]
        %v4091 = vld [vmem:[%s4089 + $0x8] sm:$0x1]
        %v4093 = vrot.slane %v4088, 5
        %v4095 = vsel %vm2818, 0.0, %v4093
        %v4096 = vsel %vm3547, %v4095, 0.0
        %v4097 = vlaneseq
        %v4098 = vshrl.u32 %v4097, 7
        %v4099 = vsub.s32 0, %v4098
        %v4100 = vrot.slane %v4090, %v4099
        %v4101 = vmul.f32 %v4096, %v4100
        %v4102 = vrot.slane %v4088, 6
        %v4104 = vsel %vm2816, 0.0, %v4102
        %v4105 = vlaneseq
        %v4106 = vshrl.u32 %v4105, 7
        %v4107 = vsub.s32 1, %v4106
        %v4108 = vrot.slane %v4090, %v4107
        %v4109 = vmul.f32 %v4104, %v4108
        %v4110 = vadd.f32 %v4101, %v4109
        %v4111 = vrot.slane %v4088, 7
        %v4113 = vsel %vm309, 0.0, %v4111
        %v4114 = vsel %vm3548, %v4113, 0.0
        %v4115 = vlaneseq
        %v4116 = vshrl.u32 %v4115, 7
        %v4117 = vsub.s32 2, %v4116
        %v4118 = vrot.slane %v4090, %v4117
        %v4119 = vmul.f32 %v4114, %v4118
        %v4120 = vadd.f32 %v4110, %v4119
        %v4121 = vsel %vm3547, %v4113, 0.0
        %v4122 = vlaneseq
        %v4123 = vshrl.u32 %v4122, 7
        %v4124 = vsub.s32 3, %v4123
        %v4125 = vrot.slane %v4090, %v4124
        %v4126 = vmul.f32 %v4121, %v4125
        %v4127 = vadd.f32 %v4120, %v4126
        %v4128 = vlaneseq
        %v4129 = vshrl.u32 %v4128, 7
        %v4130 = vsub.s32 4, %v4129
        %v4131 = vrot.slane %v4090, %v4130
        %v4132 = vmul.f32 %v4088, %v4131
        %v4133 = vadd.f32 %v4127, %v4132
        %v4134 = vrot.slane %v4088, 1
        %v4136 = vsel %vm2818, %v4134, 0.0
        %v4137 = vsel %vm3548, %v4136, 0.0
        %v4138 = vlaneseq
        %v4139 = vshrl.u32 %v4138, 7
        %v4140 = vsub.s32 5, %v4139
        %v4141 = vrot.slane %v4090, %v4140
        %v4142 = vmul.f32 %v4137, %v4141
        %v4143 = vadd.f32 %v4133, %v4142
        %v4144 = vsel %vm3547, %v4136, 0.0
        %v4145 = vlaneseq
        %v4146 = vshrl.u32 %v4145, 7
        %v4147 = vsub.s32 6, %v4146
        %v4148 = vrot.slane %v4090, %v4147
        %v4149 = vmul.f32 %v4144, %v4148
        %v4150 = vadd.f32 %v4143, %v4149
        %v4151 = vrot.slane %v4088, 2
        %v4153 = vsel %vm2816, %v4151, 0.0
        %v4154 = vlaneseq
        %v4155 = vshrl.u32 %v4154, 7
        %v4156 = vsub.s32 7, %v4155
        %v4157 = vrot.slane %v4090, %v4156
        %v4158 = vmul.f32 %v4153, %v4157
        %v4159 = vadd.f32 %v4150, %v4158
        %v4160 = vrot.slane %v4088, 3
        %v4162 = vsel %vm309, %v4160, 0.0
        %v4163 = vsel %vm3548, %v4162, 0.0
        %v4164 = vlaneseq
        %v4165 = vshrl.u32 %v4164, 7
        %v4166 = vsub.s32 0, %v4165
        %v4167 = vrot.slane %v4091, %v4166
        %v4168 = vmul.f32 %v4163, %v4167
        %v4169 = vadd.f32 %v4159, %v4168
        %v4170 = vld [vmem:[%s4 + $0x9] sm:$0x1]
        %v4171 = vlaneseq
        %v4172 = vshrl.u32 %v4171, 7
        %v4173 = vsub.s32 0, %v4172
        %v4174 = vrot.slane %v4170, %v4173
        %v4175 = vadd.f32 %v4169, %v4174
        %s4176 = scalar_lea.vmem %s5, 1152
        %v4177 = vld [vmem:[%s4176] sm:$0xff]
        %v4178 = vld [vmem:[%s4176 + $0x8] sm:$0xff]
        %v4179 = vld [vmem:[%s4176 + $0x10] sm:$0xff]
        %v4180 = vld [vmem:[%s4176 + $0x18] sm:$0xff]
        %v4181 = vld [vmem:[%s4176 + $0x20] sm:$0xff]
        %v4182 = vld [vmem:[%s4176 + $0x28] sm:$0xff]
        %v4183 = vld [vmem:[%s4176 + $0x30] sm:$0xff]
        %v4184 = vld [vmem:[%s4176 + $0x38] sm:$0xff]
        %v4185 = vld [vmem:[%s4176 + $0x40] sm:$0xff]
        %v4186 = vld [vmem:[%s4176 + $0x48] sm:$0xff]
        %v4187 = vld [vmem:[%s4176 + $0x50] sm:$0xff]
        %v4188 = vld [vmem:[%s4176 + $0x58] sm:$0xff]
        %v4189 = vld [vmem:[%s4176 + $0x60] sm:$0xff]
        %v4190 = vld [vmem:[%s4176 + $0x68] sm:$0xff]
        %v4191 = vld [vmem:[%s4176 + $0x70] sm:$0xff]
        %v4192 = vld [vmem:[%s4176 + $0x78] sm:$0xff]
        %v4193 = vld [vmem:[%s6 + $0x9] sm:$0x1]
        %v4194 = vlaneseq
        %v4195 = vshrl.u32 %v4194, 7
        %v4196 = vsub.s32 0, %v4195
        %v4197 = vrot.slane %v4193, %v4196
        %4198 = vmatprep.subr.mxu0 0.0
        %4199 = vmatpush1.msra.mxu0 %v4177
        %4200 = vmatprep.subr.mxu0 0.0
        %4201 = vmatpush1.msra.mxu0 %v4178
        %4202 = vmatprep.subr.mxu0 0.0
        %4203 = vmatpush1.msra.mxu0 %v4179
        %4204 = vmatprep.subr.mxu0 0.0
        %4205 = vmatpush1.msra.mxu0 %v4180
        %4206 = vmatprep.subr.mxu0 0.0
        %4207 = vmatpush1.msra.mxu0 %v4181
        %4208 = vmatprep.subr.mxu0 0.0
        %4209 = vmatpush1.msra.mxu0 %v4182
        %4210 = vmatprep.subr.mxu0 0.0
        %4211 = vmatpush1.msra.mxu0 %v4183
        %4212 = vmatprep.subr.mxu0 0.0
        %4213 = vmatpush1.msra.mxu0 %v4184
        %4214 = vmatprep.subr.mxu0 0.0
        %4215 = vmatpush1.msra.mxu0 %v4185
        %4216 = vmatprep.subr.mxu0 0.0
        %4217 = vmatpush1.msra.mxu0 %v4186
        %4218 = vmatprep.subr.mxu0 0.0
        %4219 = vmatpush1.msra.mxu0 %v4187
        %4220 = vmatprep.subr.mxu0 0.0
        %4221 = vmatpush1.msra.mxu0 %v4188
        %4222 = vmatprep.subr.mxu0 0.0
        %4223 = vmatpush1.msra.mxu0 %v4189
        %4224 = vmatprep.subr.mxu0 0.0
        %4225 = vmatpush1.msra.mxu0 %v4190
        %4226 = vmatprep.subr.mxu0 0.0
        %4227 = vmatpush1.msra.mxu0 %v4191
        %4228 = vmatprep.subr.mxu0 0.0
        %4229 = vmatpush1.msra.mxu0 %v4192
        %4230 = vmatprep.subr.mxu0 0.0
        %4231 = vmatpush1.msra.mxu0 0.0
        %4232 = vmatprep.subr.mxu0 0.0
        %4233 = vmatpush1.msra.mxu0 0.0
        %4234 = vmatprep.subr.mxu0 0.0
        %4235 = vmatpush1.msra.mxu0 0.0
        %4236 = vmatprep.subr.mxu0 0.0
        %4237 = vmatpush1.msra.mxu0 0.0
        %4238 = vmatprep.subr.mxu0 0.0
        %4239 = vmatpush1.msra.mxu0 0.0
        %4240 = vmatprep.subr.mxu0 0.0
        %4241 = vmatpush1.msra.mxu0 0.0
        %4242 = vmatprep.subr.mxu0 0.0
        %4243 = vmatpush1.msra.mxu0 0.0
        %4244 = vmatprep.subr.mxu0 0.0
        %4245 = vmatpush1.msra.mxu0 0.0
        %4246 = vmatprep.subr.mxu0 0.0
        %4247 = vmatpush1.msra.mxu0 0.0
        %4248 = vmatprep.subr.mxu0 0.0
        %4249 = vmatpush1.msra.mxu0 0.0
        %4250 = vmatprep.subr.mxu0 0.0
        %4251 = vmatpush1.msra.mxu0 0.0
        %4252 = vmatprep.subr.mxu0 0.0
        %4253 = vmatpush1.msra.mxu0 0.0
        %4254 = vmatprep.subr.mxu0 0.0
        %4255 = vmatpush1.msra.mxu0 0.0
        %4256 = vmatprep.subr.mxu0 0.0
        %4257 = vmatpush1.msra.mxu0 0.0
        %4258 = vmatprep.subr.mxu0 0.0
        %4259 = vmatpush1.msra.mxu0 0.0
        %4260 = vmatprep.subr.mxu0 0.0
        %4261 = vmatpush1.msra.mxu0 0.0
        %4262 = vmatprep.mubr.f32.mxu0 0.0
        %4263 = vmatmul.mubr.f32.gmra.mrb[0].mxu0 %v4175
        %v4264 = vpop.f32.mrb[0].mxu0
        %v4265 = vadd.f32 %v4197, %v4264
        %v4266 = vpop.f32.mrb[0].mxu0
        %4267 = vdwg.mxu0
        %v4268 = vadd.f32 %v4265, %v4088
        %v4269 = vmax.f32 %v4268, 0.0
        %s4270 = scalar_lea.vmem %s3, 160
        %v4271 = vld [vmem:[%s4270] sm:$0xff]
        %v4272 = vld [vmem:[%s4270 + $0x8] sm:$0x1]
        %v4274 = vrot.slane %v4269, 5
        %v4276 = vsel %vm2818, 0.0, %v4274
        %v4277 = vsel %vm3547, %v4276, 0.0
        %v4278 = vlaneseq
        %v4279 = vshrl.u32 %v4278, 7
        %v4280 = vsub.s32 0, %v4279
        %v4281 = vrot.slane %v4271, %v4280
        %v4282 = vmul.f32 %v4277, %v4281
        %v4283 = vrot.slane %v4269, 6
        %v4285 = vsel %vm2816, 0.0, %v4283
        %v4286 = vlaneseq
        %v4287 = vshrl.u32 %v4286, 7
        %v4288 = vsub.s32 1, %v4287
        %v4289 = vrot.slane %v4271, %v4288
        %v4290 = vmul.f32 %v4285, %v4289
        %v4291 = vadd.f32 %v4282, %v4290
        %v4292 = vrot.slane %v4269, 7
        %v4294 = vsel %vm309, 0.0, %v4292
        %v4295 = vsel %vm3548, %v4294, 0.0
        %v4296 = vlaneseq
        %v4297 = vshrl.u32 %v4296, 7
        %v4298 = vsub.s32 2, %v4297
        %v4299 = vrot.slane %v4271, %v4298
        %v4300 = vmul.f32 %v4295, %v4299
        %v4301 = vadd.f32 %v4291, %v4300
        %v4302 = vsel %vm3547, %v4294, 0.0
        %v4303 = vlaneseq
        %v4304 = vshrl.u32 %v4303, 7
        %v4305 = vsub.s32 3, %v4304
        %v4306 = vrot.slane %v4271, %v4305
        %v4307 = vmul.f32 %v4302, %v4306
        %v4308 = vadd.f32 %v4301, %v4307
        %v4309 = vlaneseq
        %v4310 = vshrl.u32 %v4309, 7
        %v4311 = vsub.s32 4, %v4310
        %v4312 = vrot.slane %v4271, %v4311
        %v4313 = vmul.f32 %v4269, %v4312
        %v4314 = vadd.f32 %v4308, %v4313
        %v4315 = vrot.slane %v4269, 1
        %v4317 = vsel %vm2818, %v4315, 0.0
        %v4318 = vsel %vm3548, %v4317, 0.0
        %v4319 = vlaneseq
        %v4320 = vshrl.u32 %v4319, 7
        %v4321 = vsub.s32 5, %v4320
        %v4322 = vrot.slane %v4271, %v4321
        %v4323 = vmul.f32 %v4318, %v4322
        %v4324 = vadd.f32 %v4314, %v4323
        %v4325 = vsel %vm3547, %v4317, 0.0
        %v4326 = vlaneseq
        %v4327 = vshrl.u32 %v4326, 7
        %v4328 = vsub.s32 6, %v4327
        %v4329 = vrot.slane %v4271, %v4328
        %v4330 = vmul.f32 %v4325, %v4329
        %v4331 = vadd.f32 %v4324, %v4330
        %v4332 = vrot.slane %v4269, 2
        %v4334 = vsel %vm2816, %v4332, 0.0
        %v4335 = vlaneseq
        %v4336 = vshrl.u32 %v4335, 7
        %v4337 = vsub.s32 7, %v4336
        %v4338 = vrot.slane %v4271, %v4337
        %v4339 = vmul.f32 %v4334, %v4338
        %v4340 = vadd.f32 %v4331, %v4339
        %v4341 = vrot.slane %v4269, 3
        %v4343 = vsel %vm309, %v4341, 0.0
        %v4344 = vsel %vm3548, %v4343, 0.0
        %v4345 = vlaneseq
        %v4346 = vshrl.u32 %v4345, 7
        %v4347 = vsub.s32 0, %v4346
        %v4348 = vrot.slane %v4272, %v4347
        %v4349 = vmul.f32 %v4344, %v4348
        %v4350 = vadd.f32 %v4340, %v4349
        %v4351 = vld [vmem:[%s4 + $0xa] sm:$0x1]
        %v4352 = vlaneseq
        %v4353 = vshrl.u32 %v4352, 7
        %v4354 = vsub.s32 0, %v4353
        %v4355 = vrot.slane %v4351, %v4354
        %v4356 = vadd.f32 %v4350, %v4355
        %s4357 = scalar_lea.vmem %s5, 1280
        %v4358 = vld [vmem:[%s4357] sm:$0xff]
        %v4359 = vld [vmem:[%s4357 + $0x8] sm:$0xff]
        %v4360 = vld [vmem:[%s4357 + $0x10] sm:$0xff]
        %v4361 = vld [vmem:[%s4357 + $0x18] sm:$0xff]
        %v4362 = vld [vmem:[%s4357 + $0x20] sm:$0xff]
        %v4363 = vld [vmem:[%s4357 + $0x28] sm:$0xff]
        %v4364 = vld [vmem:[%s4357 + $0x30] sm:$0xff]
        %v4365 = vld [vmem:[%s4357 + $0x38] sm:$0xff]
        %v4366 = vld [vmem:[%s4357 + $0x40] sm:$0xff]
        %v4367 = vld [vmem:[%s4357 + $0x48] sm:$0xff]
        %v4368 = vld [vmem:[%s4357 + $0x50] sm:$0xff]
        %v4369 = vld [vmem:[%s4357 + $0x58] sm:$0xff]
        %v4370 = vld [vmem:[%s4357 + $0x60] sm:$0xff]
        %v4371 = vld [vmem:[%s4357 + $0x68] sm:$0xff]
        %v4372 = vld [vmem:[%s4357 + $0x70] sm:$0xff]
        %v4373 = vld [vmem:[%s4357 + $0x78] sm:$0xff]
        %v4374 = vld [vmem:[%s6 + $0xa] sm:$0x1]
        %v4375 = vlaneseq
        %v4376 = vshrl.u32 %v4375, 7
        %v4377 = vsub.s32 0, %v4376
        %v4378 = vrot.slane %v4374, %v4377
        %4379 = vmatprep.subr.mxu0 0.0
        %4380 = vmatpush1.msra.mxu0 %v4358
        %4381 = vmatprep.subr.mxu0 0.0
        %4382 = vmatpush1.msra.mxu0 %v4359
        %4383 = vmatprep.subr.mxu0 0.0
        %4384 = vmatpush1.msra.mxu0 %v4360
        %4385 = vmatprep.subr.mxu0 0.0
        %4386 = vmatpush1.msra.mxu0 %v4361
        %4387 = vmatprep.subr.mxu0 0.0
        %4388 = vmatpush1.msra.mxu0 %v4362
        %4389 = vmatprep.subr.mxu0 0.0
        %4390 = vmatpush1.msra.mxu0 %v4363
        %4391 = vmatprep.subr.mxu0 0.0
        %4392 = vmatpush1.msra.mxu0 %v4364
        %4393 = vmatprep.subr.mxu0 0.0
        %4394 = vmatpush1.msra.mxu0 %v4365
        %4395 = vmatprep.subr.mxu0 0.0
        %4396 = vmatpush1.msra.mxu0 %v4366
        %4397 = vmatprep.subr.mxu0 0.0
        %4398 = vmatpush1.msra.mxu0 %v4367
        %4399 = vmatprep.subr.mxu0 0.0
        %4400 = vmatpush1.msra.mxu0 %v4368
        %4401 = vmatprep.subr.mxu0 0.0
        %4402 = vmatpush1.msra.mxu0 %v4369
        %4403 = vmatprep.subr.mxu0 0.0
        %4404 = vmatpush1.msra.mxu0 %v4370
        %4405 = vmatprep.subr.mxu0 0.0
        %4406 = vmatpush1.msra.mxu0 %v4371
        %4407 = vmatprep.subr.mxu0 0.0
        %4408 = vmatpush1.msra.mxu0 %v4372
        %4409 = vmatprep.subr.mxu0 0.0
        %4410 = vmatpush1.msra.mxu0 %v4373
        %4411 = vmatprep.subr.mxu0 0.0
        %4412 = vmatpush1.msra.mxu0 0.0
        %4413 = vmatprep.subr.mxu0 0.0
        %4414 = vmatpush1.msra.mxu0 0.0
        %4415 = vmatprep.subr.mxu0 0.0
        %4416 = vmatpush1.msra.mxu0 0.0
        %4417 = vmatprep.subr.mxu0 0.0
        %4418 = vmatpush1.msra.mxu0 0.0
        %4419 = vmatprep.subr.mxu0 0.0
        %4420 = vmatpush1.msra.mxu0 0.0
        %4421 = vmatprep.subr.mxu0 0.0
        %4422 = vmatpush1.msra.mxu0 0.0
        %4423 = vmatprep.subr.mxu0 0.0
        %4424 = vmatpush1.msra.mxu0 0.0
        %4425 = vmatprep.subr.mxu0 0.0
        %4426 = vmatpush1.msra.mxu0 0.0
        %4427 = vmatprep.subr.mxu0 0.0
        %4428 = vmatpush1.msra.mxu0 0.0
        %4429 = vmatprep.subr.mxu0 0.0
        %4430 = vmatpush1.msra.mxu0 0.0
        %4431 = vmatprep.subr.mxu0 0.0
        %4432 = vmatpush1.msra.mxu0 0.0
        %4433 = vmatprep.subr.mxu0 0.0
        %4434 = vmatpush1.msra.mxu0 0.0
        %4435 = vmatprep.subr.mxu0 0.0
        %4436 = vmatpush1.msra.mxu0 0.0
        %4437 = vmatprep.subr.mxu0 0.0
        %4438 = vmatpush1.msra.mxu0 0.0
        %4439 = vmatprep.subr.mxu0 0.0
        %4440 = vmatpush1.msra.mxu0 0.0
        %4441 = vmatprep.subr.mxu0 0.0
        %4442 = vmatpush1.msra.mxu0 0.0
        %4443 = vmatprep.mubr.f32.mxu0 0.0
        %4444 = vmatmul.mubr.f32.gmra.mrb[0].mxu0 %v4356
        %v4445 = vpop.f32.mrb[0].mxu0
        %v4446 = vadd.f32 %v4378, %v4445
        %v4447 = vpop.f32.mrb[0].mxu0
        %4448 = vdwg.mxu0
        %v4449 = vadd.f32 %v4446, %v4269
        %v4450 = vmax.f32 %v4449, 0.0
        %s4451 = scalar_lea.vmem %s3, 176
        %v4452 = vld [vmem:[%s4451] sm:$0xff]
        %v4453 = vld [vmem:[%s4451 + $0x8] sm:$0x1]
        %v4455 = vrot.slane %v4450, 5
        %v4457 = vsel %vm2818, 0.0, %v4455
        %v4458 = vsel %vm3547, %v4457, 0.0
        %v4459 = vlaneseq
        %v4460 = vshrl.u32 %v4459, 7
        %v4461 = vsub.s32 0, %v4460
        %v4462 = vrot.slane %v4452, %v4461
        %v4463 = vmul.f32 %v4458, %v4462
        %v4464 = vrot.slane %v4450, 6
        %v4466 = vsel %vm2816, 0.0, %v4464
        %v4467 = vlaneseq
        %v4468 = vshrl.u32 %v4467, 7
        %v4469 = vsub.s32 1, %v4468
        %v4470 = vrot.slane %v4452, %v4469
        %v4471 = vmul.f32 %v4466, %v4470
        %v4472 = vadd.f32 %v4463, %v4471
        %v4473 = vrot.slane %v4450, 7
        %v4475 = vsel %vm309, 0.0, %v4473
        %v4476 = vsel %vm3548, %v4475, 0.0
        %v4477 = vlaneseq
        %v4478 = vshrl.u32 %v4477, 7
        %v4479 = vsub.s32 2, %v4478
        %v4480 = vrot.slane %v4452, %v4479
        %v4481 = vmul.f32 %v4476, %v4480
        %v4482 = vadd.f32 %v4472, %v4481
        %v4483 = vsel %vm3547, %v4475, 0.0
        %v4484 = vlaneseq
        %v4485 = vshrl.u32 %v4484, 7
        %v4486 = vsub.s32 3, %v4485
        %v4487 = vrot.slane %v4452, %v4486
        %v4488 = vmul.f32 %v4483, %v4487
        %v4489 = vadd.f32 %v4482, %v4488
        %v4490 = vlaneseq
        %v4491 = vshrl.u32 %v4490, 7
        %v4492 = vsub.s32 4, %v4491
        %v4493 = vrot.slane %v4452, %v4492
        %v4494 = vmul.f32 %v4450, %v4493
        %v4495 = vadd.f32 %v4489, %v4494
        %v4496 = vrot.slane %v4450, 1
        %v4498 = vsel %vm2818, %v4496, 0.0
        %v4499 = vsel %vm3548, %v4498, 0.0
        %v4500 = vlaneseq
        %v4501 = vshrl.u32 %v4500, 7
        %v4502 = vsub.s32 5, %v4501
        %v4503 = vrot.slane %v4452, %v4502
        %v4504 = vmul.f32 %v4499, %v4503
        %v4505 = vadd.f32 %v4495, %v4504
        %v4506 = vsel %vm3547, %v4498, 0.0
        %v4507 = vlaneseq
        %v4508 = vshrl.u32 %v4507, 7
        %v4509 = vsub.s32 6, %v4508
        %v4510 = vrot.slane %v4452, %v4509
        %v4511 = vmul.f32 %v4506, %v4510
        %v4512 = vadd.f32 %v4505, %v4511
        %v4513 = vrot.slane %v4450, 2
        %v4515 = vsel %vm2816, %v4513, 0.0
        %v4516 = vlaneseq
        %v4517 = vshrl.u32 %v4516, 7
        %v4518 = vsub.s32 7, %v4517
        %v4519 = vrot.slane %v4452, %v4518
        %v4520 = vmul.f32 %v4515, %v4519
        %v4521 = vadd.f32 %v4512, %v4520
        %v4522 = vrot.slane %v4450, 3
        %v4524 = vsel %vm309, %v4522, 0.0
        %v4525 = vsel %vm3548, %v4524, 0.0
        %v4526 = vlaneseq
        %v4527 = vshrl.u32 %v4526, 7
        %v4528 = vsub.s32 0, %v4527
        %v4529 = vrot.slane %v4453, %v4528
        %v4530 = vmul.f32 %v4525, %v4529
        %v4531 = vadd.f32 %v4521, %v4530
        %v4532 = vld [vmem:[%s4 + $0xb] sm:$0x1]
        %v4533 = vlaneseq
        %v4534 = vshrl.u32 %v4533, 7
        %v4535 = vsub.s32 0, %v4534
        %v4536 = vrot.slane %v4532, %v4535
        %v4537 = vadd.f32 %v4531, %v4536
        %s4538 = scalar_lea.vmem %s5, 1408
        %v4539 = vld [vmem:[%s4538] sm:$0xff]
        %v4540 = vld [vmem:[%s4538 + $0x8] sm:$0xff]
        %v4541 = vld [vmem:[%s4538 + $0x10] sm:$0xff]
        %v4542 = vld [vmem:[%s4538 + $0x18] sm:$0xff]
        %v4543 = vld [vmem:[%s4538 + $0x20] sm:$0xff]
        %v4544 = vld [vmem:[%s4538 + $0x28] sm:$0xff]
        %v4545 = vld [vmem:[%s4538 + $0x30] sm:$0xff]
        %v4546 = vld [vmem:[%s4538 + $0x38] sm:$0xff]
        %v4547 = vld [vmem:[%s4538 + $0x40] sm:$0xff]
        %v4548 = vld [vmem:[%s4538 + $0x48] sm:$0xff]
        %v4549 = vld [vmem:[%s4538 + $0x50] sm:$0xff]
        %v4550 = vld [vmem:[%s4538 + $0x58] sm:$0xff]
        %v4551 = vld [vmem:[%s4538 + $0x60] sm:$0xff]
        %v4552 = vld [vmem:[%s4538 + $0x68] sm:$0xff]
        %v4553 = vld [vmem:[%s4538 + $0x70] sm:$0xff]
        %v4554 = vld [vmem:[%s4538 + $0x78] sm:$0xff]
        %v4555 = vld [vmem:[%s6 + $0xb] sm:$0x1]
        %v4556 = vlaneseq
        %v4557 = vshrl.u32 %v4556, 7
        %v4558 = vsub.s32 0, %v4557
        %v4559 = vrot.slane %v4555, %v4558
        %4560 = vmatprep.subr.mxu0 0.0
        %4561 = vmatpush1.msra.mxu0 %v4539
        %4562 = vmatprep.subr.mxu0 0.0
        %4563 = vmatpush1.msra.mxu0 %v4540
        %4564 = vmatprep.subr.mxu0 0.0
        %4565 = vmatpush1.msra.mxu0 %v4541
        %4566 = vmatprep.subr.mxu0 0.0
        %4567 = vmatpush1.msra.mxu0 %v4542
        %4568 = vmatprep.subr.mxu0 0.0
        %4569 = vmatpush1.msra.mxu0 %v4543
        %4570 = vmatprep.subr.mxu0 0.0
        %4571 = vmatpush1.msra.mxu0 %v4544
        %4572 = vmatprep.subr.mxu0 0.0
        %4573 = vmatpush1.msra.mxu0 %v4545
        %4574 = vmatprep.subr.mxu0 0.0
        %4575 = vmatpush1.msra.mxu0 %v4546
        %4576 = vmatprep.subr.mxu0 0.0
        %4577 = vmatpush1.msra.mxu0 %v4547
        %4578 = vmatprep.subr.mxu0 0.0
        %4579 = vmatpush1.msra.mxu0 %v4548
        %4580 = vmatprep.subr.mxu0 0.0
        %4581 = vmatpush1.msra.mxu0 %v4549
        %4582 = vmatprep.subr.mxu0 0.0
        %4583 = vmatpush1.msra.mxu0 %v4550
        %4584 = vmatprep.subr.mxu0 0.0
        %4585 = vmatpush1.msra.mxu0 %v4551
        %4586 = vmatprep.subr.mxu0 0.0
        %4587 = vmatpush1.msra.mxu0 %v4552
        %4588 = vmatprep.subr.mxu0 0.0
        %4589 = vmatpush1.msra.mxu0 %v4553
        %4590 = vmatprep.subr.mxu0 0.0
        %4591 = vmatpush1.msra.mxu0 %v4554
        %4592 = vmatprep.subr.mxu0 0.0
        %4593 = vmatpush1.msra.mxu0 0.0
        %4594 = vmatprep.subr.mxu0 0.0
        %4595 = vmatpush1.msra.mxu0 0.0
        %4596 = vmatprep.subr.mxu0 0.0
        %4597 = vmatpush1.msra.mxu0 0.0
        %4598 = vmatprep.subr.mxu0 0.0
        %4599 = vmatpush1.msra.mxu0 0.0
        %4600 = vmatprep.subr.mxu0 0.0
        %4601 = vmatpush1.msra.mxu0 0.0
        %4602 = vmatprep.subr.mxu0 0.0
        %4603 = vmatpush1.msra.mxu0 0.0
        %4604 = vmatprep.subr.mxu0 0.0
        %4605 = vmatpush1.msra.mxu0 0.0
        %4606 = vmatprep.subr.mxu0 0.0
        %4607 = vmatpush1.msra.mxu0 0.0
        %4608 = vmatprep.subr.mxu0 0.0
        %4609 = vmatpush1.msra.mxu0 0.0
        %4610 = vmatprep.subr.mxu0 0.0
        %4611 = vmatpush1.msra.mxu0 0.0
        %4612 = vmatprep.subr.mxu0 0.0
        %4613 = vmatpush1.msra.mxu0 0.0
        %4614 = vmatprep.subr.mxu0 0.0
        %4615 = vmatpush1.msra.mxu0 0.0
        %4616 = vmatprep.subr.mxu0 0.0
        %4617 = vmatpush1.msra.mxu0 0.0
        %4618 = vmatprep.subr.mxu0 0.0
        %4619 = vmatpush1.msra.mxu0 0.0
        %4620 = vmatprep.subr.mxu0 0.0
        %4621 = vmatpush1.msra.mxu0 0.0
        %4622 = vmatprep.subr.mxu0 0.0
        %4623 = vmatpush1.msra.mxu0 0.0
        %4624 = vmatprep.mubr.f32.mxu0 0.0
        %4625 = vmatmul.mubr.f32.gmra.mrb[0].mxu0 %v4537
        %v4626 = vpop.f32.mrb[0].mxu0
        %v4627 = vadd.f32 %v4559, %v4626
        %v4628 = vpop.f32.mrb[0].mxu0
        %4629 = vdwg.mxu0
        %v4630 = vmax.f32 %v4450, %v4498
        %v4631 = vmax.f32 %v4515, %v4524
        %v4632 = vmax.f32 %v4630, %v4631
        %v4633 = vadd.f32 %v4627, %v4632
        %v4634 = vmax.f32 %v4633, 0.0
        %s4635 = scalar_lea.vmem %s3, 192
        %v4636 = vld [vmem:[%s4635] sm:$0xff]
        %v4638 = vrot.slane %v4636, 4
        %v4640 = vmul.f32 %v4634, %v4638
        %v4641 = vld [vmem:[%s4 + $0xc] sm:$0x1]
        %v4642 = vadd.f32 %v4640, %v4641
        %s4643 = scalar_lea.vmem %s5, 1536
        %v4644 = vld [vmem:[%s4643] sm:$0xff]
        %v4645 = vld [vmem:[%s4643 + $0x8] sm:$0xff]
        %v4646 = vld [vmem:[%s4643 + $0x10] sm:$0xff]
        %v4647 = vld [vmem:[%s4643 + $0x18] sm:$0xff]
        %v4648 = vld [vmem:[%s4643 + $0x20] sm:$0xff]
        %v4649 = vld [vmem:[%s4643 + $0x28] sm:$0xff]
        %v4650 = vld [vmem:[%s4643 + $0x30] sm:$0xff]
        %v4651 = vld [vmem:[%s4643 + $0x38] sm:$0xff]
        %v4652 = vld [vmem:[%s4643 + $0x40] sm:$0xff]
        %v4653 = vld [vmem:[%s4643 + $0x48] sm:$0xff]
        %v4654 = vld [vmem:[%s4643 + $0x50] sm:$0xff]
        %v4655 = vld [vmem:[%s4643 + $0x58] sm:$0xff]
        %v4656 = vld [vmem:[%s4643 + $0x60] sm:$0xff]
        %v4657 = vld [vmem:[%s4643 + $0x68] sm:$0xff]
        %v4658 = vld [vmem:[%s4643 + $0x70] sm:$0xff]
        %v4659 = vld [vmem:[%s4643 + $0x78] sm:$0xff]
        %v4660 = vld [vmem:[%s6 + $0xc] sm:$0x1]
        %4661 = vmatprep.subr.mxu0 0.0
        %4662 = vmatpush1.msra.mxu0 %v4644
        %4663 = vmatprep.subr.mxu0 0.0
        %4664 = vmatpush1.msra.mxu0 %v4645
        %4665 = vmatprep.subr.mxu0 0.0
        %4666 = vmatpush1.msra.mxu0 %v4646
        %4667 = vmatprep.subr.mxu0 0.0
        %4668 = vmatpush1.msra.mxu0 %v4647
        %4669 = vmatprep.subr.mxu0 0.0
        %4670 = vmatpush1.msra.mxu0 %v4648
        %4671 = vmatprep.subr.mxu0 0.0
        %4672 = vmatpush1.msra.mxu0 %v4649
        %4673 = vmatprep.subr.mxu0 0.0
        %4674 = vmatpush1.msra.mxu0 %v4650
        %4675 = vmatprep.subr.mxu0 0.0
        %4676 = vmatpush1.msra.mxu0 %v4651
        %4677 = vmatprep.subr.mxu0 0.0
        %4678 = vmatpush1.msra.mxu0 %v4652
        %4679 = vmatprep.subr.mxu0 0.0
        %4680 = vmatpush1.msra.mxu0 %v4653
        %4681 = vmatprep.subr.mxu0 0.0
        %4682 = vmatpush1.msra.mxu0 %v4654
        %4683 = vmatprep.subr.mxu0 0.0
        %4684 = vmatpush1.msra.mxu0 %v4655
        %4685 = vmatprep.subr.mxu0 0.0
        %4686 = vmatpush1.msra.mxu0 %v4656
        %4687 = vmatprep.subr.mxu0 0.0
        %4688 = vmatpush1.msra.mxu0 %v4657
        %4689 = vmatprep.subr.mxu0 0.0
        %4690 = vmatpush1.msra.mxu0 %v4658
        %4691 = vmatprep.subr.mxu0 0.0
        %4692 = vmatpush1.msra.mxu0 %v4659
        %4693 = vmatprep.subr.mxu0 0.0
        %4694 = vmatpush1.msra.mxu0 0.0
        %4695 = vmatprep.subr.mxu0 0.0
        %4696 = vmatpush1.msra.mxu0 0.0
        %4697 = vmatprep.subr.mxu0 0.0
        %4698 = vmatpush1.msra.mxu0 0.0
        %4699 = vmatprep.subr.mxu0 0.0
        %4700 = vmatpush1.msra.mxu0 0.0
        %4701 = vmatprep.subr.mxu0 0.0
        %4702 = vmatpush1.msra.mxu0 0.0
        %4703 = vmatprep.subr.mxu0 0.0
        %4704 = vmatpush1.msra.mxu0 0.0
        %4705 = vmatprep.subr.mxu0 0.0
        %4706 = vmatpush1.msra.mxu0 0.0
        %4707 = vmatprep.subr.mxu0 0.0
        %4708 = vmatpush1.msra.mxu0 0.0
        %4709 = vmatprep.subr.mxu0 0.0
        %4710 = vmatpush1.msra.mxu0 0.0
        %4711 = vmatprep.subr.mxu0 0.0
        %4712 = vmatpush1.msra.mxu0 0.0
        %4713 = vmatprep.subr.mxu0 0.0
        %4714 = vmatpush1.msra.mxu0 0.0
        %4715 = vmatprep.subr.mxu0 0.0
        %4716 = vmatpush1.msra.mxu0 0.0
        %4717 = vmatprep.subr.mxu0 0.0
        %4718 = vmatpush1.msra.mxu0 0.0
        %4719 = vmatprep.subr.mxu0 0.0
        %4720 = vmatpush1.msra.mxu0 0.0
        %4721 = vmatprep.subr.mxu0 0.0
        %4722 = vmatpush1.msra.mxu0 0.0
        %4723 = vmatprep.subr.mxu0 0.0
        %4724 = vmatpush1.msra.mxu0 0.0
        %4725 = vmatprep.mubr.f32.mxu0 0.0
        %4726 = vmatmul.mubr.f32.gmra.mrb[0].mxu0 %v4642
        %v4727 = vpop.f32.mrb[0].mxu0
        %v4728 = vadd.f32 %v4660, %v4727
        %v4729 = vpop.f32.mrb[0].mxu0
        %4730 = vdwg.mxu0
        %v4731 = vadd.f32 %v4728, %v4634
        %v4732 = vmax.f32 %v4731, 0.0
        %s4733 = scalar_lea.vmem %s3, 208
        %v4734 = vld [vmem:[%s4733] sm:$0xff]
        %v4736 = vrot.slane %v4734, 4
        %v4738 = vmul.f32 %v4732, %v4736
        %v4739 = vld [vmem:[%s4 + $0xd] sm:$0x1]
        %v4740 = vadd.f32 %v4738, %v4739
        %s4741 = scalar_lea.vmem %s5, 1664
        %v4742 = vld [vmem:[%s4741] sm:$0xff]
        %v4743 = vld [vmem:[%s4741 + $0x8] sm:$0xff]
        %v4744 = vld [vmem:[%s4741 + $0x10] sm:$0xff]
        %v4745 = vld [vmem:[%s4741 + $0x18] sm:$0xff]
        %v4746 = vld [vmem:[%s4741 + $0x20] sm:$0xff]
        %v4747 = vld [vmem:[%s4741 + $0x28] sm:$0xff]
        %v4748 = vld [vmem:[%s4741 + $0x30] sm:$0xff]
        %v4749 = vld [vmem:[%s4741 + $0x38] sm:$0xff]
        %v4750 = vld [vmem:[%s4741 + $0x40] sm:$0xff]
        %v4751 = vld [vmem:[%s4741 + $0x48] sm:$0xff]
        %v4752 = vld [vmem:[%s4741 + $0x50] sm:$0xff]
        %v4753 = vld [vmem:[%s4741 + $0x58] sm:$0xff]
        %v4754 = vld [vmem:[%s4741 + $0x60] sm:$0xff]
        %v4755 = vld [vmem:[%s4741 + $0x68] sm:$0xff]
        %v4756 = vld [vmem:[%s4741 + $0x70] sm:$0xff]
        %v4757 = vld [vmem:[%s4741 + $0x78] sm:$0xff]
        %v4758 = vld [vmem:[%s6 + $0xd] sm:$0x1]
        %4759 = vmatprep.subr.mxu0 0.0
        %4760 = vmatpush1.msra.mxu0 %v4742
        %4761 = vmatprep.subr.mxu0 0.0
        %4762 = vmatpush1.msra.mxu0 %v4743
        %4763 = vmatprep.subr.mxu0 0.0
        %4764 = vmatpush1.msra.mxu0 %v4744
        %4765 = vmatprep.subr.mxu0 0.0
        %4766 = vmatpush1.msra.mxu0 %v4745
        %4767 = vmatprep.subr.mxu0 0.0
        %4768 = vmatpush1.msra.mxu0 %v4746
        %4769 = vmatprep.subr.mxu0 0.0
        %4770 = vmatpush1.msra.mxu0 %v4747
        %4771 = vmatprep.subr.mxu0 0.0
        %4772 = vmatpush1.msra.mxu0 %v4748
        %4773 = vmatprep.subr.mxu0 0.0
        %4774 = vmatpush1.msra.mxu0 %v4749
        %4775 = vmatprep.subr.mxu0 0.0
        %4776 = vmatpush1.msra.mxu0 %v4750
        %4777 = vmatprep.subr.mxu0 0.0
        %4778 = vmatpush1.msra.mxu0 %v4751
        %4779 = vmatprep.subr.mxu0 0.0
        %4780 = vmatpush1.msra.mxu0 %v4752
        %4781 = vmatprep.subr.mxu0 0.0
        %4782 = vmatpush1.msra.mxu0 %v4753
        %4783 = vmatprep.subr.mxu0 0.0
        %4784 = vmatpush1.msra.mxu0 %v4754
        %4785 = vmatprep.subr.mxu0 0.0
        %4786 = vmatpush1.msra.mxu0 %v4755
        %4787 = vmatprep.subr.mxu0 0.0
        %4788 = vmatpush1.msra.mxu0 %v4756
        %4789 = vmatprep.subr.mxu0 0.0
        %4790 = vmatpush1.msra.mxu0 %v4757
        %4791 = vmatprep.subr.mxu0 0.0
        %4792 = vmatpush1.msra.mxu0 0.0
        %4793 = vmatprep.subr.mxu0 0.0
        %4794 = vmatpush1.msra.mxu0 0.0
        %4795 = vmatprep.subr.mxu0 0.0
        %4796 = vmatpush1.msra.mxu0 0.0
        %4797 = vmatprep.subr.mxu0 0.0
        %4798 = vmatpush1.msra.mxu0 0.0
        %4799 = vmatprep.subr.mxu0 0.0
        %4800 = vmatpush1.msra.mxu0 0.0
        %4801 = vmatprep.subr.mxu0 0.0
        %4802 = vmatpush1.msra.mxu0 0.0
        %4803 = vmatprep.subr.mxu0 0.0
        %4804 = vmatpush1.msra.mxu0 0.0
        %4805 = vmatprep.subr.mxu0 0.0
        %4806 = vmatpush1.msra.mxu0 0.0
        %4807 = vmatprep.subr.mxu0 0.0
        %4808 = vmatpush1.msra.mxu0 0.0
        %4809 = vmatprep.subr.mxu0 0.0
        %4810 = vmatpush1.msra.mxu0 0.0
        %4811 = vmatprep.subr.mxu0 0.0
        %4812 = vmatpush1.msra.mxu0 0.0
        %4813 = vmatprep.subr.mxu0 0.0
        %4814 = vmatpush1.msra.mxu0 0.0
        %4815 = vmatprep.subr.mxu0 0.0
        %4816 = vmatpush1.msra.mxu0 0.0
        %4817 = vmatprep.subr.mxu0 0.0
        %4818 = vmatpush1.msra.mxu0 0.0
        %4819 = vmatprep.subr.mxu0 0.0
        %4820 = vmatpush1.msra.mxu0 0.0
        %4821 = vmatprep.subr.mxu0 0.0
        %4822 = vmatpush1.msra.mxu0 0.0
        %4823 = vmatprep.mubr.f32.mxu0 0.0
        %4824 = vmatmul.mubr.f32.gmra.mrb[0].mxu0 %v4740
        %v4825 = vpop.f32.mrb[0].mxu0
        %v4826 = vadd.f32 %v4758, %v4825
        %v4827 = vpop.f32.mrb[0].mxu0
        %4828 = vdwg.mxu0
        %v4829 = vadd.f32 %v4826, %v4732
        %v4830 = vmax.f32 %v4829, 0.0
        %s4831 = scalar_lea.vmem %s3, 224
        %v4832 = vld [vmem:[%s4831] sm:$0xff]
        %v4834 = vrot.slane %v4832, 4
        %v4836 = vmul.f32 %v4830, %v4834
        %v4837 = vld [vmem:[%s4 + $0xe] sm:$0x1]
        %v4838 = vadd.f32 %v4836, %v4837
        %s4839 = scalar_lea.vmem %s5, 1792
        %v4840 = vld [vmem:[%s4839] sm:$0xff]
        %v4841 = vld [vmem:[%s4839 + $0x8] sm:$0xff]
        %v4842 = vld [vmem:[%s4839 + $0x10] sm:$0xff]
        %v4843 = vld [vmem:[%s4839 + $0x18] sm:$0xff]
        %v4844 = vld [vmem:[%s4839 + $0x20] sm:$0xff]
        %v4845 = vld [vmem:[%s4839 + $0x28] sm:$0xff]
        %v4846 = vld [vmem:[%s4839 + $0x30] sm:$0xff]
        %v4847 = vld [vmem:[%s4839 + $0x38] sm:$0xff]
        %v4848 = vld [vmem:[%s4839 + $0x40] sm:$0xff]
        %v4849 = vld [vmem:[%s4839 + $0x48] sm:$0xff]
        %v4850 = vld [vmem:[%s4839 + $0x50] sm:$0xff]
        %v4851 = vld [vmem:[%s4839 + $0x58] sm:$0xff]
        %v4852 = vld [vmem:[%s4839 + $0x60] sm:$0xff]
        %v4853 = vld [vmem:[%s4839 + $0x68] sm:$0xff]
        %v4854 = vld [vmem:[%s4839 + $0x70] sm:$0xff]
        %v4855 = vld [vmem:[%s4839 + $0x78] sm:$0xff]
        %v4856 = vld [vmem:[%s6 + $0xe] sm:$0x1]
        %4857 = vmatprep.subr.mxu0 0.0
        %4858 = vmatpush1.msra.mxu0 %v4840
        %4859 = vmatprep.subr.mxu0 0.0
        %4860 = vmatpush1.msra.mxu0 %v4841
        %4861 = vmatprep.subr.mxu0 0.0
        %4862 = vmatpush1.msra.mxu0 %v4842
        %4863 = vmatprep.subr.mxu0 0.0
        %4864 = vmatpush1.msra.mxu0 %v4843
        %4865 = vmatprep.subr.mxu0 0.0
        %4866 = vmatpush1.msra.mxu0 %v4844
        %4867 = vmatprep.subr.mxu0 0.0
        %4868 = vmatpush1.msra.mxu0 %v4845
        %4869 = vmatprep.subr.mxu0 0.0
        %4870 = vmatpush1.msra.mxu0 %v4846
        %4871 = vmatprep.subr.mxu0 0.0
        %4872 = vmatpush1.msra.mxu0 %v4847
        %4873 = vmatprep.subr.mxu0 0.0
        %4874 = vmatpush1.msra.mxu0 %v4848
        %4875 = vmatprep.subr.mxu0 0.0
        %4876 = vmatpush1.msra.mxu0 %v4849
        %4877 = vmatprep.subr.mxu0 0.0
        %4878 = vmatpush1.msra.mxu0 %v4850
        %4879 = vmatprep.subr.mxu0 0.0
        %4880 = vmatpush1.msra.mxu0 %v4851
        %4881 = vmatprep.subr.mxu0 0.0
        %4882 = vmatpush1.msra.mxu0 %v4852
        %4883 = vmatprep.subr.mxu0 0.0
        %4884 = vmatpush1.msra.mxu0 %v4853
        %4885 = vmatprep.subr.mxu0 0.0
        %4886 = vmatpush1.msra.mxu0 %v4854
        %4887 = vmatprep.subr.mxu0 0.0
        %4888 = vmatpush1.msra.mxu0 %v4855
        %4889 = vmatprep.subr.mxu0 0.0
        %4890 = vmatpush1.msra.mxu0 0.0
        %4891 = vmatprep.subr.mxu0 0.0
        %4892 = vmatpush1.msra.mxu0 0.0
        %4893 = vmatprep.subr.mxu0 0.0
        %4894 = vmatpush1.msra.mxu0 0.0
        %4895 = vmatprep.subr.mxu0 0.0
        %4896 = vmatpush1.msra.mxu0 0.0
        %4897 = vmatprep.subr.mxu0 0.0
        %4898 = vmatpush1.msra.mxu0 0.0
        %4899 = vmatprep.subr.mxu0 0.0
        %4900 = vmatpush1.msra.mxu0 0.0
        %4901 = vmatprep.subr.mxu0 0.0
        %4902 = vmatpush1.msra.mxu0 0.0
        %4903 = vmatprep.subr.mxu0 0.0
        %4904 = vmatpush1.msra.mxu0 0.0
        %4905 = vmatprep.subr.mxu0 0.0
        %4906 = vmatpush1.msra.mxu0 0.0
        %4907 = vmatprep.subr.mxu0 0.0
        %4908 = vmatpush1.msra.mxu0 0.0
        %4909 = vmatprep.subr.mxu0 0.0
        %4910 = vmatpush1.msra.mxu0 0.0
        %4911 = vmatprep.subr.mxu0 0.0
        %4912 = vmatpush1.msra.mxu0 0.0
        %4913 = vmatprep.subr.mxu0 0.0
        %4914 = vmatpush1.msra.mxu0 0.0
        %4915 = vmatprep.subr.mxu0 0.0
        %4916 = vmatpush1.msra.mxu0 0.0
        %4917 = vmatprep.subr.mxu0 0.0
        %4918 = vmatpush1.msra.mxu0 0.0
        %4919 = vmatprep.subr.mxu0 0.0
        %4920 = vmatpush1.msra.mxu0 0.0
        %4921 = vmatprep.mubr.f32.mxu0 0.0
        %4922 = vmatmul.mubr.f32.gmra.mrb[0].mxu0 %v4838
        %v4923 = vpop.f32.mrb[0].mxu0
        %v4924 = vadd.f32 %v4856, %v4923
        %v4925 = vpop.f32.mrb[0].mxu0
        %4926 = vdwg.mxu0
        %v4927 = vadd.f32 %v4924, %v4830
        %v4928 = vmax.f32 %v4927, 0.0
        %s4929 = scalar_lea.vmem %s3, 240
        %v4930 = vld [vmem:[%s4929] sm:$0xff]
        %v4932 = vrot.slane %v4930, 4
        %v4934 = vmul.f32 %v4928, %v4932
        %v4935 = vld [vmem:[%s4 + $0xf] sm:$0x1]
        %v4936 = vadd.f32 %v4934, %v4935
        %s4937 = scalar_lea.vmem %s5, 1920
        %v4938 = vld [vmem:[%s4937] sm:$0xff]
        %v4939 = vld [vmem:[%s4937 + $0x8] sm:$0xff]
        %v4940 = vld [vmem:[%s4937 + $0x10] sm:$0xff]
        %v4941 = vld [vmem:[%s4937 + $0x18] sm:$0xff]
        %v4942 = vld [vmem:[%s4937 + $0x20] sm:$0xff]
        %v4943 = vld [vmem:[%s4937 + $0x28] sm:$0xff]
        %v4944 = vld [vmem:[%s4937 + $0x30] sm:$0xff]
        %v4945 = vld [vmem:[%s4937 + $0x38] sm:$0xff]
        %v4946 = vld [vmem:[%s4937 + $0x40] sm:$0xff]
        %v4947 = vld [vmem:[%s4937 + $0x48] sm:$0xff]
        %v4948 = vld [vmem:[%s4937 + $0x50] sm:$0xff]
        %v4949 = vld [vmem:[%s4937 + $0x58] sm:$0xff]
        %v4950 = vld [vmem:[%s4937 + $0x60] sm:$0xff]
        %v4951 = vld [vmem:[%s4937 + $0x68] sm:$0xff]
        %v4952 = vld [vmem:[%s4937 + $0x70] sm:$0xff]
        %v4953 = vld [vmem:[%s4937 + $0x78] sm:$0xff]
        %v4954 = vld [vmem:[%s6 + $0xf] sm:$0x1]
        %4955 = vmatprep.subr.mxu0 0.0
        %4956 = vmatpush1.msra.mxu0 %v4938
        %4957 = vmatprep.subr.mxu0 0.0
        %4958 = vmatpush1.msra.mxu0 %v4939
        %4959 = vmatprep.subr.mxu0 0.0
        %4960 = vmatpush1.msra.mxu0 %v4940
        %4961 = vmatprep.subr.mxu0 0.0
        %4962 = vmatpush1.msra.mxu0 %v4941
        %4963 = vmatprep.subr.mxu0 0.0
        %4964 = vmatpush1.msra.mxu0 %v4942
        %4965 = vmatprep.subr.mxu0 0.0
        %4966 = vmatpush1.msra.mxu0 %v4943
        %4967 = vmatprep.subr.mxu0 0.0
        %4968 = vmatpush1.msra.mxu0 %v4944
        %4969 = vmatprep.subr.mxu0 0.0
        %4970 = vmatpush1.msra.mxu0 %v4945
        %4971 = vmatprep.subr.mxu0 0.0
        %4972 = vmatpush1.msra.mxu0 %v4946
        %4973 = vmatprep.subr.mxu0 0.0
        %4974 = vmatpush1.msra.mxu0 %v4947
        %4975 = vmatprep.subr.mxu0 0.0
        %4976 = vmatpush1.msra.mxu0 %v4948
        %4977 = vmatprep.subr.mxu0 0.0
        %4978 = vmatpush1.msra.mxu0 %v4949
        %4979 = vmatprep.subr.mxu0 0.0
        %4980 = vmatpush1.msra.mxu0 %v4950
        %4981 = vmatprep.subr.mxu0 0.0
        %4982 = vmatpush1.msra.mxu0 %v4951
        %4983 = vmatprep.subr.mxu0 0.0
        %4984 = vmatpush1.msra.mxu0 %v4952
        %4985 = vmatprep.subr.mxu0 0.0
        %4986 = vmatpush1.msra.mxu0 %v4953
        %4987 = vmatprep.subr.mxu0 0.0
        %4988 = vmatpush1.msra.mxu0 0.0
        %4989 = vmatprep.subr.mxu0 0.0
        %4990 = vmatpush1.msra.mxu0 0.0
        %4991 = vmatprep.subr.mxu0 0.0
        %4992 = vmatpush1.msra.mxu0 0.0
        %4993 = vmatprep.subr.mxu0 0.0
        %4994 = vmatpush1.msra.mxu0 0.0
        %4995 = vmatprep.subr.mxu0 0.0
        %4996 = vmatpush1.msra.mxu0 0.0
        %4997 = vmatprep.subr.mxu0 0.0
        %4998 = vmatpush1.msra.mxu0 0.0
        %4999 = vmatprep.subr.mxu0 0.0
        %5000 = vmatpush1.msra.mxu0 0.0
        %5001 = vmatprep.subr.mxu0 0.0
        %5002 = vmatpush1.msra.mxu0 0.0
        %5003 = vmatprep.subr.mxu0 0.0
        %5004 = vmatpush1.msra.mxu0 0.0
        %5005 = vmatprep.subr.mxu0 0.0
        %5006 = vmatpush1.msra.mxu0 0.0
        %5007 = vmatprep.subr.mxu0 0.0
        %5008 = vmatpush1.msra.mxu0 0.0
        %5009 = vmatprep.subr.mxu0 0.0
        %5010 = vmatpush1.msra.mxu0 0.0
        %5011 = vmatprep.subr.mxu0 0.0
        %5012 = vmatpush1.msra.mxu0 0.0
        %5013 = vmatprep.subr.mxu0 0.0
        %5014 = vmatpush1.msra.mxu0 0.0
        %5015 = vmatprep.subr.mxu0 0.0
        %5016 = vmatpush1.msra.mxu0 0.0
        %5017 = vmatprep.subr.mxu0 0.0
        %5018 = vmatpush1.msra.mxu0 0.0
        %5019 = vmatprep.mubr.f32.mxu0 0.0
        %5020 = vmatmul.mubr.f32.gmra.mrb[0].mxu0 %v4936
        %v5021 = vpop.f32.mrb[0].mxu0
        %v5022 = vadd.f32 %v4954, %v5021
        %v5023 = vpop.f32.mrb[0].mxu0
        %5024 = vdwg.mxu0
        %v5025 = vadd.f32 %v5022, %v4928
        %v5026 = vmax.f32 %v5025, 0.0
        %5027 = vst [vmem:[%s289] sm:$0x1] %v5026
        %p5028 = scmp.lt.s32.totalorder %s19, 1
        %s5029 = scalar_select %p5028, %s19, 1
        %s5030 = scalar_lea.vmem %s7, %s5029
        // Predicated region
        $region53: #{mediapipe_blazeface.1} parent=47 // pred_check
          %p5031 = pneg %p189
        $region54: #{mediapipe_blazeface.1} parent=47 // pred_check_branch
          %5033 = sbr.rel (%p5031) target = $region56
        $region55: #{mediapipe_blazeface.1} parent=47 // pred_region
          _
        $region56: #{mediapipe_blazeface.1} parent=47 // pred_fallthru
          _
      $region48: #{mediapipe_blazeface.1} parent=5 // pred_fallthru
        _
      %p5034 = scmp.le.s32.totalorder 2, %s14
      // Predicated region
      $region57: #{mediapipe_blazeface.1} parent=5 // pred_check
        %p5035 = pneg %p5034
      $region58: #{mediapipe_blazeface.1} parent=5 // pred_check_branch
        %5037 = sbr.rel (%p5035) target = $region60
      $region59: #{mediapipe_blazeface.1} parent=5 // pred_region
        %s5038 = ssub.s32 %s14, 2
        // Predicated region
        $region61: #{mediapipe_blazeface.1} parent=59 // pred_check
          %p5039 = pneg %p195
        $region62: #{mediapipe_blazeface.1} parent=59 // pred_check_branch
          %5041 = sbr.rel (%p5039) target = $region64
        $region63: #{mediapipe_blazeface.1} parent=59 // pred_region
          %p5042 = scmp.lt.s32.totalorder %s20, 1
          %s5043 = scalar_select %p5042, %s20, 1
          %s5044 = scalar_lea.vmem %s7, %s5043
        $region64: #{mediapipe_blazeface.1} parent=59 // pred_fallthru
          _
      $region60: #{mediapipe_blazeface.1} parent=5 // pred_fallthru
        _
    $region6: #{mediapipe_blazeface.1} parent=1 // loop_footer
      %s18 = sadd.s32 1, %s14
    $region7: #{mediapipe_blazeface.1} parent=1 // loop_footer_branch
      %13 = sbr.rel target = $region3
    $region8: #{mediapipe_blazeface.1} parent=1 // loop_exit
      _
    %5045 = vsyncpa [#allocation3], 1
    %s5046 = scalar_lea.sflag [#allocation3], 1
    %5047 = vsyncpa %s5046, 1

</llo_original>
